<compile_context>
chip_gen: v5e
topology: v5e:2x2
jax: 0.10.0
libtpu: 0.0.40
codegen_flags: <defaults>
</compile_context>

<pallas_src>
import functools

import jax
import jax.numpy as jnp
from jax.experimental import pallas as pl
from jax.experimental.pallas import tpu as pltpu


BB = 8        # batch rows per grid step == f32 sublane tile of the output
LANES = 128   # lane width: conv-channel / num_classes padding target


def _round_up(x, m):
    return ((x + m - 1) // m) * m


# ----------------------------------------------------------------------------
# Fused kernel: 3x3x3 'same' conv (taps folded into K) + global average pool
#               + classifier Linear, one grid step per 8-batch chunk.
# ----------------------------------------------------------------------------

def _conv_gap_cls_kernel(x_ref, wconv_ref, bconv_ref, wcls_ref, bcls_ref,
                         o_ref, *, D, HWp, inv_count):
    """x_ref:     (1, D+2, BB*HWp, 9*Cin) bf16 -- 9x spatial im2col per padded
                  depth slice; 8 batch elements stacked along the row axis
                  (rows [b*HWp, (b+1)*HWp) belong to batch b, pad rows = 0).
       wconv_ref: (3, 9*Cin, Cpad) bf16  -- one weight slab per depth tap.
       bconv_ref: (1, Cpad) f32
       wcls_ref:  (Cpad, Npad) bf16      -- d_conv->Cpad zero pad folded in.
       bcls_ref:  (1, Npad) f32
       o_ref:     (BB, Npad) f32         -- logits, batch on the sublane axis.
    """
    c_pad = wconv_ref.shape[-1]

    # Resident weights: load once, reuse across the whole depth loop.
    w0 = wconv_ref[0, :, :]
    w1 = wconv_ref[1, :, :]
    w2 = wconv_ref[2, :, :]

    # GAP accumulator lives in vregs (BB x Cpad f32 = 4 KiB); no VMEM scratch.
    feat = jnp.zeros((BB, c_pad), jnp.float32)

    for z in range(D):                      # static depth loop (D known)
        # Value-chained accumulation: first depth tap writes, later taps add.
        acc = jnp.dot(x_ref[0, z, :, :], w0,
                      preferred_element_type=jnp.float32)
        acc = acc + jnp.dot(x_ref[0, z + 1, :, :], w1,
                            preferred_element_type=jnp.float32)
        acc = acc + jnp.dot(x_ref[0, z + 2, :, :], w2,
                            preferred_element_type=jnp.float32)
        # Per-batch partial global-average-pool sum (zero pad rows add 0).
        feat = feat + jnp.sum(acc.reshape(BB, HWp, c_pad), axis=1)

    # Finish GAP (+ conv bias) in f32.
    feat = feat * inv_count + bconv_ref[...]

    # Fused classifier: Dropout is identity in eval; Linear(d_conv, classes).
    logits = jnp.dot(feat.astype(jnp.bfloat16), wcls_ref[...],
                     preferred_element_type=jnp.float32) + bcls_ref[...]
    o_ref[...] = logits.astype(o_ref.dtype)


def conv_gap_cls_pallas(x_win, wconv, bconv, wcls, bcls, *, D, HWp, inv_count):
    """x_win: (n_chunks, D+2, BB*HWp, 9*Cin) bf16.  Returns (n_chunks*BB, Npad)
    f32 logits with batch on the sublane axis."""
    nch, dp2, rows, k9 = x_win.shape
    c_pad = wconv.shape[-1]
    n_pad = wcls.shape[-1]

    kern = functools.partial(_conv_gap_cls_kernel, D=D, HWp=HWp,
                             inv_count=inv_count)
    return pl.pallas_call(
        kern,
        out_shape=jax.ShapeDtypeStruct((nch * BB, n_pad), jnp.float32),
        grid=(nch,),
        in_specs=[
            pl.BlockSpec((1, dp2, rows, k9), lambda i: (i, 0, 0, 0)),
            pl.BlockSpec((3, k9, c_pad), lambda i: (0, 0, 0)),   # resident
            pl.BlockSpec((1, c_pad), lambda i: (0, 0)),          # resident
            pl.BlockSpec((c_pad, n_pad), lambda i: (0, 0)),      # resident
            pl.BlockSpec((1, n_pad), lambda i: (0, 0)),          # resident
        ],
        out_specs=pl.BlockSpec((BB, n_pad), lambda i: (i, 0)),
        compiler_params=pltpu.CompilerParams(
            dimension_semantics=("parallel",),
            # Explicit VMEM budget (review): blocks here are well under the
            # 32 MiB default scoped limit (v7x physical VMEM = 64 MiB).
            vmem_limit_bytes=32 * 1024 * 1024),
    )(x_win, wconv, bconv, wcls, bcls)


# ----------------------------------------------------------------------------
# One-time weight prep (hoisted out of the jitted forward) + forward pass
# ----------------------------------------------------------------------------

def prepare_weights(params, *, in_channel, d_conv, num_classes):
    """Pad / fold / bf16-cast the weights once, outside the jitted forward."""
    cin = in_channel
    c_pad = _round_up(max(d_conv, LANES), LANES)
    n_pad = _round_up(max(num_classes, LANES), LANES)

    # (27, Cin, d_conv) tap-major (kd, kh, kw)  ->  (3, 9*Cin, Cpad)
    wconv = params["conv_w"].reshape(3, 9 * cin, d_conv)
    wconv = jnp.pad(wconv, ((0, 0), (0, 0), (0, c_pad - d_conv)))
    bconv = jnp.pad(params["conv_b"], (0, c_pad - d_conv)).reshape(1, c_pad)

    # Classifier with the d_conv->Cpad zero pad folded into the weight rows.
    wcls = jnp.pad(params["cls_w"],
                   ((0, c_pad - d_conv), (0, n_pad - num_classes)))
    bcls = jnp.pad(params["cls_b"], (0, n_pad - num_classes)).reshape(1, n_pad)

    return {
        "wconv": wconv.astype(jnp.bfloat16),
        "bconv": bconv.astype(jnp.float32),
        "wcls": wcls.astype(jnp.bfloat16),
        "bcls": bcls.astype(jnp.float32),
    }


def s3transcnn_forward(x, prep, *, num_classes):
    """logits = classifier(convs(x)).

    The PyTorch forward also runs a transformer branch (trans_emb -> BertModel
    -> trans_out -> trans_squeeze) whose result is immediately overwritten by
    `emb = self.convs(x)`; it never reaches the logits, so it is skipped here
    (dead code; output semantics unchanged).
    """
    bs, cin, D, H, W = x.shape                # module names: (bs, n, w, h, d)

    # --- input prep: bf16 first, then channels-last + spatial 'same' pad +
    #     9x per-depth-slice im2col (spatial taps folded into the K axis). ---
    # TODO(synk): for realistic volumes, chunk the depth axis and build the
    # halo / windows inside the kernel instead of materializing them in HBM.
    xb = x.astype(jnp.bfloat16)
    xcl = jnp.transpose(xb, (0, 2, 3, 4, 1))                    # (bs,D,H,W,C)
    xp = jnp.pad(xcl, ((0, 0), (1, 1), (1, 1), (1, 1), (0, 0)))
    wins = [xp[:, :, kh:kh + H, kw:kw + W, :]
            for kh in range(3) for kw in range(3)]              # 9 shifts
    xw = jnp.stack(wins, axis=4)                                # (bs,D+2,H,W,9,C)
    xw = xw.reshape(bs, D + 2, H * W, 9 * cin)

    HWp = _round_up(H * W, 16)                # bf16 packs 16 rows per vreg tile
    bs_pad = _round_up(bs, BB)
    xw = jnp.pad(xw, ((0, bs_pad - bs), (0, 0), (0, HWp - H * W), (0, 0)))
    nch = bs_pad // BB
    xw = xw.reshape(nch, BB, D + 2, HWp, 9 * cin)
    xw = jnp.transpose(xw, (0, 2, 1, 3, 4))   # depth-major, batch on rows
    xw = xw.reshape(nch, D + 2, BB * HWp, 9 * cin)

    logits = conv_gap_cls_pallas(
        xw, prep["wconv"], prep["bconv"], prep["wcls"], prep["bcls"],
        D=D, HWp=HWp, inv_count=1.0 / float(D * H * W))

    return logits[:bs, :num_classes]


# ----------------------------------------------------------------------------
# Parameters + pure-JAX reference (for an in-script correctness check)
# ----------------------------------------------------------------------------

def init_params(key, *, in_channel, d_conv, num_classes):
    k1, k2, k3, k4 = jax.random.split(key, 4)
    s = 0.02
    return {
        # conv stand-in: 3x3x3 taps (kd, kh, kw), tap-major flattening.
        "conv_w": s * jax.random.normal(k1, (27, in_channel, d_conv),
                                        jnp.float32),
        "conv_b": s * jax.random.normal(k2, (d_conv,), jnp.float32),
        # classifier: Linear(d_conv, num_classes)
        "cls_w": s * jax.random.normal(k3, (d_conv, num_classes), jnp.float32),
        "cls_b": s * jax.random.normal(k4, (num_classes,), jnp.float32),
    }


def reference_forward(x, params):
    """Pure-JAX (f32) reference of the live path: conv3x3x3 -> GAP -> linear."""
    n = x.shape[1]
    kernel = params["conv_w"].reshape(3, 3, 3, n, -1)            # DHWIO
    y = jax.lax.conv_general_dilated(
        x, kernel, window_strides=(1, 1, 1),
        padding=((1, 1), (1, 1), (1, 1)),
        dimension_numbers=("NCDHW", "DHWIO", "NCDHW"))
    y = y + params["conv_b"][None, :, None, None, None]
    feat = jnp.mean(y, axis=(2, 3, 4))
    return feat @ params["cls_w"] + params["cls_b"][None, :]


if __name__ == "__main__":
    bs, n, w, h, d = 2, 4, 8, 8, 8            # x: (bs, in_channel, w, h, d)
    d_conv, num_classes = 32, 3

    key = jax.random.PRNGKey(0)
    kx, kp = jax.random.split(key)
    x = jax.random.normal(kx, (bs, n, w, h, d), dtype=jnp.float32)
    params = init_params(kp, in_channel=n, d_conv=d_conv,
                         num_classes=num_classes)

    # One-time weight prep (padding / folding / bf16 casts hoisted out of the
    # jitted forward per the performance review).
    prep = prepare_weights(params, in_channel=n, d_conv=d_conv,
                           num_classes=num_classes)
    prep = jax.block_until_ready(prep)

    fwd = jax.jit(functools.partial(s3transcnn_forward,
                                    num_classes=num_classes))
    logits = jax.block_until_ready(fwd(x, prep))

    assert logits.shape == (bs, num_classes)
    assert bool(jnp.all(jnp.isfinite(logits)))

    # Check against the f32 reference (Pallas path uses bf16 matmul inputs).
    ref = reference_forward(x, params)
    assert bool(jnp.allclose(logits, ref, rtol=5e-2, atol=5e-3)), (
        "mismatch vs reference: max abs err = "
        f"{float(jnp.max(jnp.abs(logits - ref)))}")

    print("KERNEL_OK")
</pallas_src>

<mosaic_0001>
module attributes {stable_mosaic.version = 11 : i64} {
  func.func @_conv_gap_cls_kernel(%arg0: i32, %arg1: memref<1x10x512x36xbf16, #tpu.memory_space<vmem>>, %arg2: memref<3x36x128xbf16, #tpu.memory_space<vmem>>, %arg3: memref<1x128xf32, #tpu.memory_space<vmem>>, %arg4: memref<128x128xbf16, #tpu.memory_space<vmem>>, %arg5: memref<1x128xf32, #tpu.memory_space<vmem>>, %arg6: memref<8x128xf32, #tpu.memory_space<vmem>>) attributes {dimension_semantics = [#tpu.dimension_semantics<parallel>], iteration_bounds = array<i64: 1>, scalar_prefetch = 0 : i64, scratch_operands = 0 : i64, tpu.core_type = #tpu.core_type<tc>, window_params = [{transform_indices = @transform_0, window_bounds = array<i64: 1, 10, 512, 36>}, {pipeline_mode = #tpu.pipeline_mode<synchronous>, transform_indices = @transform_1, window_bounds = array<i64: 3, 36, 128>}, {pipeline_mode = #tpu.pipeline_mode<synchronous>, transform_indices = @transform_2, window_bounds = array<i64: 1, 128>}, {pipeline_mode = #tpu.pipeline_mode<synchronous>, transform_indices = @transform_3, window_bounds = array<i64: 128, 128>}, {pipeline_mode = #tpu.pipeline_mode<synchronous>, transform_indices = @transform_4, window_bounds = array<i64: 1, 128>}, {transform_indices = @transform_5, window_bounds = array<i64: 8, 128>}]} {
    %c0 = arith.constant 0 : index
    %c0_0 = arith.constant 0 : index
    %c0_1 = arith.constant 0 : index
    %0 = vector.load %arg2[%c0, %c0_0, %c0_1] : memref<3x36x128xbf16, #tpu.memory_space<vmem>>, vector<1x36x128xbf16>
    %1 = vector.shape_cast %0 : vector<1x36x128xbf16> to vector<36x128xbf16>
    %c1 = arith.constant 1 : index
    %c0_2 = arith.constant 0 : index
    %c0_3 = arith.constant 0 : index
    %2 = vector.load %arg2[%c1, %c0_2, %c0_3] : memref<3x36x128xbf16, #tpu.memory_space<vmem>>, vector<1x36x128xbf16>
    %3 = vector.shape_cast %2 : vector<1x36x128xbf16> to vector<36x128xbf16>
    %c2 = arith.constant 2 : index
    %c0_4 = arith.constant 0 : index
    %c0_5 = arith.constant 0 : index
    %4 = vector.load %arg2[%c2, %c0_4, %c0_5] : memref<3x36x128xbf16, #tpu.memory_space<vmem>>, vector<1x36x128xbf16>
    %5 = vector.shape_cast %4 : vector<1x36x128xbf16> to vector<36x128xbf16>
    %cst = arith.constant 0.000000e+00 : f32
    %6 = vector.broadcast %cst : f32 to vector<8x128xf32>
    %c0_6 = arith.constant 0 : index
    %c0_7 = arith.constant 0 : index
    %c0_8 = arith.constant 0 : index
    %c0_9 = arith.constant 0 : index
    %7 = vector.load %arg1[%c0_6, %c0_7, %c0_8, %c0_9] : memref<1x10x512x36xbf16, #tpu.memory_space<vmem>>, vector<1x1x512x36xbf16>
    %8 = vector.shape_cast %7 : vector<1x1x512x36xbf16> to vector<512x36xbf16>
    %cst_10 = arith.constant dense<0.000000e+00> : vector<512x128xf32>
    %9 = tpu.matmul %8, %1, %cst_10 {dimension_numbers = #tpu.dot_dimension_numbers<[1], [0], [0], [1], [0, 0, 1, 1], [], []>} : vector<512x36xbf16>, vector<36x128xbf16>, vector<512x128xf32> -> vector<512x128xf32>
    %c0_11 = arith.constant 0 : index
    %c1_12 = arith.constant 1 : index
    %c0_13 = arith.constant 0 : index
    %c0_14 = arith.constant 0 : index
    %10 = vector.load %arg1[%c0_11, %c1_12, %c0_13, %c0_14] : memref<1x10x512x36xbf16, #tpu.memory_space<vmem>>, vector<1x1x512x36xbf16>
    %11 = vector.shape_cast %10 : vector<1x1x512x36xbf16> to vector<512x36xbf16>
    %cst_15 = arith.constant dense<0.000000e+00> : vector<512x128xf32>
    %12 = tpu.matmul %11, %3, %cst_15 {dimension_numbers = #tpu.dot_dimension_numbers<[1], [0], [0], [1], [0, 0, 1, 1], [], []>} : vector<512x36xbf16>, vector<36x128xbf16>, vector<512x128xf32> -> vector<512x128xf32>
    %13 = arith.addf %9, %12 : vector<512x128xf32>
    %c0_16 = arith.constant 0 : index
    %c2_17 = arith.constant 2 : index
    %c0_18 = arith.constant 0 : index
    %c0_19 = arith.constant 0 : index
    %14 = vector.load %arg1[%c0_16, %c2_17, %c0_18, %c0_19] : memref<1x10x512x36xbf16, #tpu.memory_space<vmem>>, vector<1x1x512x36xbf16>
    %15 = vector.shape_cast %14 : vector<1x1x512x36xbf16> to vector<512x36xbf16>
    %cst_20 = arith.constant dense<0.000000e+00> : vector<512x128xf32>
    %16 = tpu.matmul %15, %5, %cst_20 {dimension_numbers = #tpu.dot_dimension_numbers<[1], [0], [0], [1], [0, 0, 1, 1], [], []>} : vector<512x36xbf16>, vector<36x128xbf16>, vector<512x128xf32> -> vector<512x128xf32>
    %17 = arith.addf %13, %16 : vector<512x128xf32>
    %18 = vector.shape_cast %17 : vector<512x128xf32> to vector<8x64x128xf32>
    %cst_21 = arith.constant dense<0.000000e+00> : vector<8x128xf32>
    %19 = vector.multi_reduction <add>, %18, %cst_21 [1] : vector<8x64x128xf32> to vector<8x128xf32>
    %20 = arith.addf %6, %19 : vector<8x128xf32>
    %c0_22 = arith.constant 0 : index
    %c1_23 = arith.constant 1 : index
    %c0_24 = arith.constant 0 : index
    %c0_25 = arith.constant 0 : index
    %21 = vector.load %arg1[%c0_22, %c1_23, %c0_24, %c0_25] : memref<1x10x512x36xbf16, #tpu.memory_space<vmem>>, vector<1x1x512x36xbf16>
    %22 = vector.shape_cast %21 : vector<1x1x512x36xbf16> to vector<512x36xbf16>
    %cst_26 = arith.constant dense<0.000000e+00> : vector<512x128xf32>
    %23 = tpu.matmul %22, %1, %cst_26 {dimension_numbers = #tpu.dot_dimension_numbers<[1], [0], [0], [1], [0, 0, 1, 1], [], []>} : vector<512x36xbf16>, vector<36x128xbf16>, vector<512x128xf32> -> vector<512x128xf32>
    %c0_27 = arith.constant 0 : index
    %c2_28 = arith.constant 2 : index
    %c0_29 = arith.constant 0 : index
    %c0_30 = arith.constant 0 : index
    %24 = vector.load %arg1[%c0_27, %c2_28, %c0_29, %c0_30] : memref<1x10x512x36xbf16, #tpu.memory_space<vmem>>, vector<1x1x512x36xbf16>
    %25 = vector.shape_cast %24 : vector<1x1x512x36xbf16> to vector<512x36xbf16>
    %cst_31 = arith.constant dense<0.000000e+00> : vector<512x128xf32>
    %26 = tpu.matmul %25, %3, %cst_31 {dimension_numbers = #tpu.dot_dimension_numbers<[1], [0], [0], [1], [0, 0, 1, 1], [], []>} : vector<512x36xbf16>, vector<36x128xbf16>, vector<512x128xf32> -> vector<512x128xf32>
    %27 = arith.addf %23, %26 : vector<512x128xf32>
    %c0_32 = arith.constant 0 : index
    %c3 = arith.constant 3 : index
    %c0_33 = arith.constant 0 : index
    %c0_34 = arith.constant 0 : index
    %28 = vector.load %arg1[%c0_32, %c3, %c0_33, %c0_34] : memref<1x10x512x36xbf16, #tpu.memory_space<vmem>>, vector<1x1x512x36xbf16>
    %29 = vector.shape_cast %28 : vector<1x1x512x36xbf16> to vector<512x36xbf16>
    %cst_35 = arith.constant dense<0.000000e+00> : vector<512x128xf32>
    %30 = tpu.matmul %29, %5, %cst_35 {dimension_numbers = #tpu.dot_dimension_numbers<[1], [0], [0], [1], [0, 0, 1, 1], [], []>} : vector<512x36xbf16>, vector<36x128xbf16>, vector<512x128xf32> -> vector<512x128xf32>
    %31 = arith.addf %27, %30 : vector<512x128xf32>
    %32 = vector.shape_cast %31 : vector<512x128xf32> to vector<8x64x128xf32>
    %cst_36 = arith.constant dense<0.000000e+00> : vector<8x128xf32>
    %33 = vector.multi_reduction <add>, %32, %cst_36 [1] : vector<8x64x128xf32> to vector<8x128xf32>
    %34 = arith.addf %20, %33 : vector<8x128xf32>
    %c0_37 = arith.constant 0 : index
    %c2_38 = arith.constant 2 : index
    %c0_39 = arith.constant 0 : index
    %c0_40 = arith.constant 0 : index
    %35 = vector.load %arg1[%c0_37, %c2_38, %c0_39, %c0_40] : memref<1x10x512x36xbf16, #tpu.memory_space<vmem>>, vector<1x1x512x36xbf16>
    %36 = vector.shape_cast %35 : vector<1x1x512x36xbf16> to vector<512x36xbf16>
    %cst_41 = arith.constant dense<0.000000e+00> : vector<512x128xf32>
    %37 = tpu.matmul %36, %1, %cst_41 {dimension_numbers = #tpu.dot_dimension_numbers<[1], [0], [0], [1], [0, 0, 1, 1], [], []>} : vector<512x36xbf16>, vector<36x128xbf16>, vector<512x128xf32> -> vector<512x128xf32>
    %c0_42 = arith.constant 0 : index
    %c3_43 = arith.constant 3 : index
    %c0_44 = arith.constant 0 : index
    %c0_45 = arith.constant 0 : index
    %38 = vector.load %arg1[%c0_42, %c3_43, %c0_44, %c0_45] : memref<1x10x512x36xbf16, #tpu.memory_space<vmem>>, vector<1x1x512x36xbf16>
    %39 = vector.shape_cast %38 : vector<1x1x512x36xbf16> to vector<512x36xbf16>
    %cst_46 = arith.constant dense<0.000000e+00> : vector<512x128xf32>
    %40 = tpu.matmul %39, %3, %cst_46 {dimension_numbers = #tpu.dot_dimension_numbers<[1], [0], [0], [1], [0, 0, 1, 1], [], []>} : vector<512x36xbf16>, vector<36x128xbf16>, vector<512x128xf32> -> vector<512x128xf32>
    %41 = arith.addf %37, %40 : vector<512x128xf32>
    %c0_47 = arith.constant 0 : index
    %c4 = arith.constant 4 : index
    %c0_48 = arith.constant 0 : index
    %c0_49 = arith.constant 0 : index
    %42 = vector.load %arg1[%c0_47, %c4, %c0_48, %c0_49] : memref<1x10x512x36xbf16, #tpu.memory_space<vmem>>, vector<1x1x512x36xbf16>
    %43 = vector.shape_cast %42 : vector<1x1x512x36xbf16> to vector<512x36xbf16>
    %cst_50 = arith.constant dense<0.000000e+00> : vector<512x128xf32>
    %44 = tpu.matmul %43, %5, %cst_50 {dimension_numbers = #tpu.dot_dimension_numbers<[1], [0], [0], [1], [0, 0, 1, 1], [], []>} : vector<512x36xbf16>, vector<36x128xbf16>, vector<512x128xf32> -> vector<512x128xf32>
    %45 = arith.addf %41, %44 : vector<512x128xf32>
    %46 = vector.shape_cast %45 : vector<512x128xf32> to vector<8x64x128xf32>
    %cst_51 = arith.constant dense<0.000000e+00> : vector<8x128xf32>
    %47 = vector.multi_reduction <add>, %46, %cst_51 [1] : vector<8x64x128xf32> to vector<8x128xf32>
    %48 = arith.addf %34, %47 : vector<8x128xf32>
    %c0_52 = arith.constant 0 : index
    %c3_53 = arith.constant 3 : index
    %c0_54 = arith.constant 0 : index
    %c0_55 = arith.constant 0 : index
    %49 = vector.load %arg1[%c0_52, %c3_53, %c0_54, %c0_55] : memref<1x10x512x36xbf16, #tpu.memory_space<vmem>>, vector<1x1x512x36xbf16>
    %50 = vector.shape_cast %49 : vector<1x1x512x36xbf16> to vector<512x36xbf16>
    %cst_56 = arith.constant dense<0.000000e+00> : vector<512x128xf32>
    %51 = tpu.matmul %50, %1, %cst_56 {dimension_numbers = #tpu.dot_dimension_numbers<[1], [0], [0], [1], [0, 0, 1, 1], [], []>} : vector<512x36xbf16>, vector<36x128xbf16>, vector<512x128xf32> -> vector<512x128xf32>
    %c0_57 = arith.constant 0 : index
    %c4_58 = arith.constant 4 : index
    %c0_59 = arith.constant 0 : index
    %c0_60 = arith.constant 0 : index
    %52 = vector.load %arg1[%c0_57, %c4_58, %c0_59, %c0_60] : memref<1x10x512x36xbf16, #tpu.memory_space<vmem>>, vector<1x1x512x36xbf16>
    %53 = vector.shape_cast %52 : vector<1x1x512x36xbf16> to vector<512x36xbf16>
    %cst_61 = arith.constant dense<0.000000e+00> : vector<512x128xf32>
    %54 = tpu.matmul %53, %3, %cst_61 {dimension_numbers = #tpu.dot_dimension_numbers<[1], [0], [0], [1], [0, 0, 1, 1], [], []>} : vector<512x36xbf16>, vector<36x128xbf16>, vector<512x128xf32> -> vector<512x128xf32>
    %55 = arith.addf %51, %54 : vector<512x128xf32>
    %c0_62 = arith.constant 0 : index
    %c5 = arith.constant 5 : index
    %c0_63 = arith.constant 0 : index
    %c0_64 = arith.constant 0 : index
    %56 = vector.load %arg1[%c0_62, %c5, %c0_63, %c0_64] : memref<1x10x512x36xbf16, #tpu.memory_space<vmem>>, vector<1x1x512x36xbf16>
    %57 = vector.shape_cast %56 : vector<1x1x512x36xbf16> to vector<512x36xbf16>
    %cst_65 = arith.constant dense<0.000000e+00> : vector<512x128xf32>
    %58 = tpu.matmul %57, %5, %cst_65 {dimension_numbers = #tpu.dot_dimension_numbers<[1], [0], [0], [1], [0, 0, 1, 1], [], []>} : vector<512x36xbf16>, vector<36x128xbf16>, vector<512x128xf32> -> vector<512x128xf32>
    %59 = arith.addf %55, %58 : vector<512x128xf32>
    %60 = vector.shape_cast %59 : vector<512x128xf32> to vector<8x64x128xf32>
    %cst_66 = arith.constant dense<0.000000e+00> : vector<8x128xf32>
    %61 = vector.multi_reduction <add>, %60, %cst_66 [1] : vector<8x64x128xf32> to vector<8x128xf32>
    %62 = arith.addf %48, %61 : vector<8x128xf32>
    %c0_67 = arith.constant 0 : index
    %c4_68 = arith.constant 4 : index
    %c0_69 = arith.constant 0 : index
    %c0_70 = arith.constant 0 : index
    %63 = vector.load %arg1[%c0_67, %c4_68, %c0_69, %c0_70] : memref<1x10x512x36xbf16, #tpu.memory_space<vmem>>, vector<1x1x512x36xbf16>
    %64 = vector.shape_cast %63 : vector<1x1x512x36xbf16> to vector<512x36xbf16>
    %cst_71 = arith.constant dense<0.000000e+00> : vector<512x128xf32>
    %65 = tpu.matmul %64, %1, %cst_71 {dimension_numbers = #tpu.dot_dimension_numbers<[1], [0], [0], [1], [0, 0, 1, 1], [], []>} : vector<512x36xbf16>, vector<36x128xbf16>, vector<512x128xf32> -> vector<512x128xf32>
    %c0_72 = arith.constant 0 : index
    %c5_73 = arith.constant 5 : index
    %c0_74 = arith.constant 0 : index
    %c0_75 = arith.constant 0 : index
    %66 = vector.load %arg1[%c0_72, %c5_73, %c0_74, %c0_75] : memref<1x10x512x36xbf16, #tpu.memory_space<vmem>>, vector<1x1x512x36xbf16>
    %67 = vector.shape_cast %66 : vector<1x1x512x36xbf16> to vector<512x36xbf16>
    %cst_76 = arith.constant dense<0.000000e+00> : vector<512x128xf32>
    %68 = tpu.matmul %67, %3, %cst_76 {dimension_numbers = #tpu.dot_dimension_numbers<[1], [0], [0], [1], [0, 0, 1, 1], [], []>} : vector<512x36xbf16>, vector<36x128xbf16>, vector<512x128xf32> -> vector<512x128xf32>
    %69 = arith.addf %65, %68 : vector<512x128xf32>
    %c0_77 = arith.constant 0 : index
    %c6 = arith.constant 6 : index
    %c0_78 = arith.constant 0 : index
    %c0_79 = arith.constant 0 : index
    %70 = vector.load %arg1[%c0_77, %c6, %c0_78, %c0_79] : memref<1x10x512x36xbf16, #tpu.memory_space<vmem>>, vector<1x1x512x36xbf16>
    %71 = vector.shape_cast %70 : vector<1x1x512x36xbf16> to vector<512x36xbf16>
    %cst_80 = arith.constant dense<0.000000e+00> : vector<512x128xf32>
    %72 = tpu.matmul %71, %5, %cst_80 {dimension_numbers = #tpu.dot_dimension_numbers<[1], [0], [0], [1], [0, 0, 1, 1], [], []>} : vector<512x36xbf16>, vector<36x128xbf16>, vector<512x128xf32> -> vector<512x128xf32>
    %73 = arith.addf %69, %72 : vector<512x128xf32>
    %74 = vector.shape_cast %73 : vector<512x128xf32> to vector<8x64x128xf32>
    %cst_81 = arith.constant dense<0.000000e+00> : vector<8x128xf32>
    %75 = vector.multi_reduction <add>, %74, %cst_81 [1] : vector<8x64x128xf32> to vector<8x128xf32>
    %76 = arith.addf %62, %75 : vector<8x128xf32>
    %c0_82 = arith.constant 0 : index
    %c5_83 = arith.constant 5 : index
    %c0_84 = arith.constant 0 : index
    %c0_85 = arith.constant 0 : index
    %77 = vector.load %arg1[%c0_82, %c5_83, %c0_84, %c0_85] : memref<1x10x512x36xbf16, #tpu.memory_space<vmem>>, vector<1x1x512x36xbf16>
    %78 = vector.shape_cast %77 : vector<1x1x512x36xbf16> to vector<512x36xbf16>
    %cst_86 = arith.constant dense<0.000000e+00> : vector<512x128xf32>
    %79 = tpu.matmul %78, %1, %cst_86 {dimension_numbers = #tpu.dot_dimension_numbers<[1], [0], [0], [1], [0, 0, 1, 1], [], []>} : vector<512x36xbf16>, vector<36x128xbf16>, vector<512x128xf32> -> vector<512x128xf32>
    %c0_87 = arith.constant 0 : index
    %c6_88 = arith.constant 6 : index
    %c0_89 = arith.constant 0 : index
    %c0_90 = arith.constant 0 : index
    %80 = vector.load %arg1[%c0_87, %c6_88, %c0_89, %c0_90] : memref<1x10x512x36xbf16, #tpu.memory_space<vmem>>, vector<1x1x512x36xbf16>
    %81 = vector.shape_cast %80 : vector<1x1x512x36xbf16> to vector<512x36xbf16>
    %cst_91 = arith.constant dense<0.000000e+00> : vector<512x128xf32>
    %82 = tpu.matmul %81, %3, %cst_91 {dimension_numbers = #tpu.dot_dimension_numbers<[1], [0], [0], [1], [0, 0, 1, 1], [], []>} : vector<512x36xbf16>, vector<36x128xbf16>, vector<512x128xf32> -> vector<512x128xf32>
    %83 = arith.addf %79, %82 : vector<512x128xf32>
    %c0_92 = arith.constant 0 : index
    %c7 = arith.constant 7 : index
    %c0_93 = arith.constant 0 : index
    %c0_94 = arith.constant 0 : index
    %84 = vector.load %arg1[%c0_92, %c7, %c0_93, %c0_94] : memref<1x10x512x36xbf16, #tpu.memory_space<vmem>>, vector<1x1x512x36xbf16>
    %85 = vector.shape_cast %84 : vector<1x1x512x36xbf16> to vector<512x36xbf16>
    %cst_95 = arith.constant dense<0.000000e+00> : vector<512x128xf32>
    %86 = tpu.matmul %85, %5, %cst_95 {dimension_numbers = #tpu.dot_dimension_numbers<[1], [0], [0], [1], [0, 0, 1, 1], [], []>} : vector<512x36xbf16>, vector<36x128xbf16>, vector<512x128xf32> -> vector<512x128xf32>
    %87 = arith.addf %83, %86 : vector<512x128xf32>
    %88 = vector.shape_cast %87 : vector<512x128xf32> to vector<8x64x128xf32>
    %cst_96 = arith.constant dense<0.000000e+00> : vector<8x128xf32>
    %89 = vector.multi_reduction <add>, %88, %cst_96 [1] : vector<8x64x128xf32> to vector<8x128xf32>
    %90 = arith.addf %76, %89 : vector<8x128xf32>
    %c0_97 = arith.constant 0 : index
    %c6_98 = arith.constant 6 : index
    %c0_99 = arith.constant 0 : index
    %c0_100 = arith.constant 0 : index
    %91 = vector.load %arg1[%c0_97, %c6_98, %c0_99, %c0_100] : memref<1x10x512x36xbf16, #tpu.memory_space<vmem>>, vector<1x1x512x36xbf16>
    %92 = vector.shape_cast %91 : vector<1x1x512x36xbf16> to vector<512x36xbf16>
    %cst_101 = arith.constant dense<0.000000e+00> : vector<512x128xf32>
    %93 = tpu.matmul %92, %1, %cst_101 {dimension_numbers = #tpu.dot_dimension_numbers<[1], [0], [0], [1], [0, 0, 1, 1], [], []>} : vector<512x36xbf16>, vector<36x128xbf16>, vector<512x128xf32> -> vector<512x128xf32>
    %c0_102 = arith.constant 0 : index
    %c7_103 = arith.constant 7 : index
    %c0_104 = arith.constant 0 : index
    %c0_105 = arith.constant 0 : index
    %94 = vector.load %arg1[%c0_102, %c7_103, %c0_104, %c0_105] : memref<1x10x512x36xbf16, #tpu.memory_space<vmem>>, vector<1x1x512x36xbf16>
    %95 = vector.shape_cast %94 : vector<1x1x512x36xbf16> to vector<512x36xbf16>
    %cst_106 = arith.constant dense<0.000000e+00> : vector<512x128xf32>
    %96 = tpu.matmul %95, %3, %cst_106 {dimension_numbers = #tpu.dot_dimension_numbers<[1], [0], [0], [1], [0, 0, 1, 1], [], []>} : vector<512x36xbf16>, vector<36x128xbf16>, vector<512x128xf32> -> vector<512x128xf32>
    %97 = arith.addf %93, %96 : vector<512x128xf32>
    %c0_107 = arith.constant 0 : index
    %c8 = arith.constant 8 : index
    %c0_108 = arith.constant 0 : index
    %c0_109 = arith.constant 0 : index
    %98 = vector.load %arg1[%c0_107, %c8, %c0_108, %c0_109] : memref<1x10x512x36xbf16, #tpu.memory_space<vmem>>, vector<1x1x512x36xbf16>
    %99 = vector.shape_cast %98 : vector<1x1x512x36xbf16> to vector<512x36xbf16>
    %cst_110 = arith.constant dense<0.000000e+00> : vector<512x128xf32>
    %100 = tpu.matmul %99, %5, %cst_110 {dimension_numbers = #tpu.dot_dimension_numbers<[1], [0], [0], [1], [0, 0, 1, 1], [], []>} : vector<512x36xbf16>, vector<36x128xbf16>, vector<512x128xf32> -> vector<512x128xf32>
    %101 = arith.addf %97, %100 : vector<512x128xf32>
    %102 = vector.shape_cast %101 : vector<512x128xf32> to vector<8x64x128xf32>
    %cst_111 = arith.constant dense<0.000000e+00> : vector<8x128xf32>
    %103 = vector.multi_reduction <add>, %102, %cst_111 [1] : vector<8x64x128xf32> to vector<8x128xf32>
    %104 = arith.addf %90, %103 : vector<8x128xf32>
    %c0_112 = arith.constant 0 : index
    %c7_113 = arith.constant 7 : index
    %c0_114 = arith.constant 0 : index
    %c0_115 = arith.constant 0 : index
    %105 = vector.load %arg1[%c0_112, %c7_113, %c0_114, %c0_115] : memref<1x10x512x36xbf16, #tpu.memory_space<vmem>>, vector<1x1x512x36xbf16>
    %106 = vector.shape_cast %105 : vector<1x1x512x36xbf16> to vector<512x36xbf16>
    %cst_116 = arith.constant dense<0.000000e+00> : vector<512x128xf32>
    %107 = tpu.matmul %106, %1, %cst_116 {dimension_numbers = #tpu.dot_dimension_numbers<[1], [0], [0], [1], [0, 0, 1, 1], [], []>} : vector<512x36xbf16>, vector<36x128xbf16>, vector<512x128xf32> -> vector<512x128xf32>
    %c0_117 = arith.constant 0 : index
    %c8_118 = arith.constant 8 : index
    %c0_119 = arith.constant 0 : index
    %c0_120 = arith.constant 0 : index
    %108 = vector.load %arg1[%c0_117, %c8_118, %c0_119, %c0_120] : memref<1x10x512x36xbf16, #tpu.memory_space<vmem>>, vector<1x1x512x36xbf16>
    %109 = vector.shape_cast %108 : vector<1x1x512x36xbf16> to vector<512x36xbf16>
    %cst_121 = arith.constant dense<0.000000e+00> : vector<512x128xf32>
    %110 = tpu.matmul %109, %3, %cst_121 {dimension_numbers = #tpu.dot_dimension_numbers<[1], [0], [0], [1], [0, 0, 1, 1], [], []>} : vector<512x36xbf16>, vector<36x128xbf16>, vector<512x128xf32> -> vector<512x128xf32>
    %111 = arith.addf %107, %110 : vector<512x128xf32>
    %c0_122 = arith.constant 0 : index
    %c9 = arith.constant 9 : index
    %c0_123 = arith.constant 0 : index
    %c0_124 = arith.constant 0 : index
    %112 = vector.load %arg1[%c0_122, %c9, %c0_123, %c0_124] : memref<1x10x512x36xbf16, #tpu.memory_space<vmem>>, vector<1x1x512x36xbf16>
    %113 = vector.shape_cast %112 : vector<1x1x512x36xbf16> to vector<512x36xbf16>
    %cst_125 = arith.constant dense<0.000000e+00> : vector<512x128xf32>
    %114 = tpu.matmul %113, %5, %cst_125 {dimension_numbers = #tpu.dot_dimension_numbers<[1], [0], [0], [1], [0, 0, 1, 1], [], []>} : vector<512x36xbf16>, vector<36x128xbf16>, vector<512x128xf32> -> vector<512x128xf32>
    %115 = arith.addf %111, %114 : vector<512x128xf32>
    %116 = vector.shape_cast %115 : vector<512x128xf32> to vector<8x64x128xf32>
    %cst_126 = arith.constant dense<0.000000e+00> : vector<8x128xf32>
    %117 = vector.multi_reduction <add>, %116, %cst_126 [1] : vector<8x64x128xf32> to vector<8x128xf32>
    %118 = arith.addf %104, %117 : vector<8x128xf32>
    %cst_127 = arith.constant 0.001953125 : f32
    %119 = vector.broadcast %cst_127 : f32 to vector<8x128xf32>
    %120 = arith.mulf %118, %119 : vector<8x128xf32>
    %c0_128 = arith.constant 0 : index
    %c0_129 = arith.constant 0 : index
    %121 = vector.load %arg3[%c0_128, %c0_129] : memref<1x128xf32, #tpu.memory_space<vmem>>, vector<1x128xf32>
    %122 = vector.broadcast %121 : vector<1x128xf32> to vector<8x128xf32>
    %123 = arith.addf %120, %122 : vector<8x128xf32>
    %124 = arith.truncf %123 : vector<8x128xf32> to vector<8x128xbf16>
    %c0_130 = arith.constant 0 : index
    %c0_131 = arith.constant 0 : index
    %125 = vector.load %arg4[%c0_130, %c0_131] : memref<128x128xbf16, #tpu.memory_space<vmem>>, vector<128x128xbf16>
    %cst_132 = arith.constant dense<0.000000e+00> : vector<8x128xf32>
    %126 = tpu.matmul %124, %125, %cst_132 {dimension_numbers = #tpu.dot_dimension_numbers<[1], [0], [0], [1], [0, 0, 1, 1], [], []>} : vector<8x128xbf16>, vector<128x128xbf16>, vector<8x128xf32> -> vector<8x128xf32>
    %c0_133 = arith.constant 0 : index
    %c0_134 = arith.constant 0 : index
    %127 = vector.load %arg5[%c0_133, %c0_134] : memref<1x128xf32, #tpu.memory_space<vmem>>, vector<1x128xf32>
    %128 = vector.broadcast %127 : vector<1x128xf32> to vector<8x128xf32>
    %129 = arith.addf %126, %128 : vector<8x128xf32>
    %c0_135 = arith.constant 0 : index
    %c0_136 = arith.constant 0 : index
    %130 = vector.load %arg6[%c0_135, %c0_136] : memref<8x128xf32, #tpu.memory_space<vmem>>, vector<8x128xf32>
    tpu.vector_store %arg6[%c0_135, %c0_136], %129 {strides = array<i32>} : memref<8x128xf32, #tpu.memory_space<vmem>>, vector<8x128xf32>,
    return
  }
  func.func @transform_0(%arg0: i32) -> (i32, i32, i32, i32) {
    %c0_i32 = arith.constant 0 : i32
    %c0_i32_0 = arith.constant 0 : i32
    %c0_i32_1 = arith.constant 0 : i32
    %c0_i32_2 = arith.constant 0 : i32
    return %arg0, %c0_i32, %c0_i32_0, %c0_i32_1 : i32, i32, i32, i32
  }
  func.func @transform_1(%arg0: i32) -> (i32, i32, i32) {
    %c0_i32 = arith.constant 0 : i32
    %c0_i32_0 = arith.constant 0 : i32
    %c0_i32_1 = arith.constant 0 : i32
    %c0_i32_2 = arith.constant 0 : i32
    return %c0_i32, %c0_i32_0, %c0_i32_1 : i32, i32, i32
  }
  func.func @transform_2(%arg0: i32) -> (i32, i32) {
    %c0_i32 = arith.constant 0 : i32
    %c0_i32_0 = arith.constant 0 : i32
    %c0_i32_1 = arith.constant 0 : i32
    return %c0_i32, %c0_i32_0 : i32, i32
  }
  func.func @transform_3(%arg0: i32) -> (i32, i32) {
    %c0_i32 = arith.constant 0 : i32
    %c0_i32_0 = arith.constant 0 : i32
    %c0_i32_1 = arith.constant 0 : i32
    return %c0_i32, %c0_i32_0 : i32, i32
  }
  func.func @transform_4(%arg0: i32) -> (i32, i32) {
    %c0_i32 = arith.constant 0 : i32
    %c0_i32_0 = arith.constant 0 : i32
    %c0_i32_1 = arith.constant 0 : i32
    return %c0_i32, %c0_i32_0 : i32, i32
  }
  func.func @transform_5(%arg0: i32) -> (i32, i32) {
    %c0_i32 = arith.constant 0 : i32
    %c0_i32_0 = arith.constant 0 : i32
    return %arg0, %c0_i32 : i32, i32
  }
}

</mosaic_0001>

<llo_original>
// kernel: s3transcnn_forward.1
$region0: #{s3transcnn_forward.1}
  #allocation0 [shape = 'u32[]', space=smem, size = 0x4, offset = 0x4, fixed_abs, tag = 'smem constant byte address 0x4 - core index']
  #allocation1 [shape = 'u32[72,128]{1,0:T(1,128)}', space=vmem, size = 0x9000, scoped, tag = 'internal scratch']
  %s0 = inlined_call_operand.vmem [shape: bf16[1,10,512,36], index: 0, kind: input, shape index: {}]
  %s1 = inlined_call_operand.vmem [shape: bf16[3,36,128], index: 1, kind: input, shape index: {}]
  %s2 = inlined_call_operand.vmem [shape: f32[1,128], index: 2, kind: input, shape index: {}]
  %s3 = inlined_call_operand.vmem [shape: bf16[128,128], index: 3, kind: input, shape index: {}]
  %s4 = inlined_call_operand.vmem [shape: f32[1,128], index: 4, kind: input, shape index: {}]
  %s5 = inlined_call_operand.vmem [shape: f32[8,128], index: 5, kind: output, shape index: {}]
  %s6 = sld [smem:[#allocation0]]
  $region30: #{s3transcnn_forward.1} parent=0
    _
  %s8 = ssub.s32 1, %s6
  %s9 = scalar_select 0, %s8, %s6
  // Predicated region
  $region2: #{s3transcnn_forward.1} parent=0 // pred_check
    _
  $region3: #{s3transcnn_forward.1} parent=0 // pred_check_branch
    %11 = sbr.rel (0) target = $region5
  $region4: #{s3transcnn_forward.1} parent=0 // pred_region
    _
  $region5: #{s3transcnn_forward.1} parent=0 // pred_fallthru
    _
  // Predicated region
  $region6: #{s3transcnn_forward.1} parent=0 // pred_check
    _
  $region7: #{s3transcnn_forward.1} parent=0 // pred_check_branch
    %13 = sbr.rel (0) target = $region9
  $region8: #{s3transcnn_forward.1} parent=0 // pred_region
    _
  $region9: #{s3transcnn_forward.1} parent=0 // pred_fallthru
    _
  // Predicated region
  $region10: #{s3transcnn_forward.1} parent=0 // pred_check
    _
  $region11: #{s3transcnn_forward.1} parent=0 // pred_check_branch
    %15 = sbr.rel (0) target = $region13
  $region12: #{s3transcnn_forward.1} parent=0 // pred_region
    _
  $region13: #{s3transcnn_forward.1} parent=0 // pred_fallthru
    _
  // Predicated region
  $region14: #{s3transcnn_forward.1} parent=0 // pred_check
    _
  $region15: #{s3transcnn_forward.1} parent=0 // pred_check_branch
    %17 = sbr.rel (0) target = $region17
  $region16: #{s3transcnn_forward.1} parent=0 // pred_region
    _
  $region17: #{s3transcnn_forward.1} parent=0 // pred_fallthru
    _
  // Predicated region
  $region18: #{s3transcnn_forward.1} parent=0 // pred_check
    _
  $region19: #{s3transcnn_forward.1} parent=0 // pred_check_branch
    %19 = sbr.rel (0) target = $region21
  $region20: #{s3transcnn_forward.1} parent=0 // pred_region
    _
  $region21: #{s3transcnn_forward.1} parent=0 // pred_fallthru
    _
  %v21 = vld [vmem:[%s1] sm:$0xf]
  %v22 = vld [vmem:[%s1 + $0x4] sm:$0xf]
  %v23 = vld [vmem:[%s1 + $0x8] sm:$0xf]
  %v24 = vld [vmem:[%s1 + $0xc] sm:$0xf]
  %v25 = vld [vmem:[%s1 + $0x10] sm:$0x3]
  %s26 = scalar_lea.vmem %s1, 20
  %v27 = vld [vmem:[%s26] sm:$0xf]
  %v28 = vld [vmem:[%s26 + $0x4] sm:$0xf]
  %v29 = vld [vmem:[%s26 + $0x8] sm:$0xf]
  %v30 = vld [vmem:[%s26 + $0xc] sm:$0xf]
  %v31 = vld [vmem:[%s26 + $0x10] sm:$0x3]
  %s32 = scalar_lea.vmem %s1, 40
  %v33 = vld [vmem:[%s32] sm:$0xf]
  %v34 = vld [vmem:[%s32 + $0x4] sm:$0xf]
  %v35 = vld [vmem:[%s32 + $0x8] sm:$0xf]
  %v36 = vld [vmem:[%s32 + $0xc] sm:$0xf]
  %v37 = vld [vmem:[%s32 + $0x10] sm:$0x3]
  %v38 = vld [vmem:[%s0] sm:$0xf]
  %v39 = vld [vmem:[%s0 + $0x4] sm:$0xf]
  %v40 = vld [vmem:[%s0 + $0x8] sm:$0xf]
  %v41 = vld [vmem:[%s0 + $0xc] sm:$0xf]
  %v42 = vld [vmem:[%s0 + $0x10] sm:$0xf]
  %v43 = vld [vmem:[%s0 + $0x14] sm:$0xf]
  %v44 = vld [vmem:[%s0 + $0x18] sm:$0xf]
  %v45 = vld [vmem:[%s0 + $0x1c] sm:$0xf]
  %v46 = vld [vmem:[%s0 + $0x20] sm:$0xf]
  %v47 = vld [vmem:[%s0 + $0x24] sm:$0xf]
  %v48 = vld [vmem:[%s0 + $0x28] sm:$0xf]
  %v49 = vld [vmem:[%s0 + $0x2c] sm:$0xf]
  %v50 = vld [vmem:[%s0 + $0x30] sm:$0xf]
  %v51 = vld [vmem:[%s0 + $0x34] sm:$0xf]
  %v52 = vld [vmem:[%s0 + $0x38] sm:$0xf]
  %v53 = vld [vmem:[%s0 + $0x3c] sm:$0xf]
  %v54 = vld [vmem:[%s0 + $0x40] sm:$0xf]
  %v55 = vld [vmem:[%s0 + $0x44] sm:$0xf]
  %v56 = vld [vmem:[%s0 + $0x48] sm:$0xf]
  %v57 = vld [vmem:[%s0 + $0x4c] sm:$0xf]
  %v58 = vld [vmem:[%s0 + $0x50] sm:$0xf]
  %v59 = vld [vmem:[%s0 + $0x54] sm:$0xf]
  %v60 = vld [vmem:[%s0 + $0x58] sm:$0xf]
  %v61 = vld [vmem:[%s0 + $0x5c] sm:$0xf]
  %v62 = vld [vmem:[%s0 + $0x60] sm:$0xf]
  %v63 = vld [vmem:[%s0 + $0x64] sm:$0xf]
  %v64 = vld [vmem:[%s0 + $0x68] sm:$0xf]
  %v65 = vld [vmem:[%s0 + $0x6c] sm:$0xf]
  %v66 = vld [vmem:[%s0 + $0x70] sm:$0xf]
  %v67 = vld [vmem:[%s0 + $0x74] sm:$0xf]
  %v68 = vld [vmem:[%s0 + $0x78] sm:$0xf]
  %v69 = vld [vmem:[%s0 + $0x7c] sm:$0xf]
  %v70 = vld [vmem:[%s0 + $0x80] sm:$0xf]
  %v71 = vld [vmem:[%s0 + $0x84] sm:$0xf]
  %v72 = vld [vmem:[%s0 + $0x88] sm:$0xf]
  %v73 = vld [vmem:[%s0 + $0x8c] sm:$0xf]
  %v74 = vld [vmem:[%s0 + $0x90] sm:$0xf]
  %v75 = vld [vmem:[%s0 + $0x94] sm:$0xf]
  %v76 = vld [vmem:[%s0 + $0x98] sm:$0xf]
  %v77 = vld [vmem:[%s0 + $0x9c] sm:$0xf]
  %v78 = vld [vmem:[%s0 + $0xa0] sm:$0xf]
  %v79 = vld [vmem:[%s0 + $0xa4] sm:$0xf]
  %v80 = vld [vmem:[%s0 + $0xa8] sm:$0xf]
  %v81 = vld [vmem:[%s0 + $0xac] sm:$0xf]
  %v82 = vld [vmem:[%s0 + $0xb0] sm:$0xf]
  %v83 = vld [vmem:[%s0 + $0xb4] sm:$0xf]
  %v84 = vld [vmem:[%s0 + $0xb8] sm:$0xf]
  %v85 = vld [vmem:[%s0 + $0xbc] sm:$0xf]
  %v86 = vld [vmem:[%s0 + $0xc0] sm:$0xf]
  %v87 = vld [vmem:[%s0 + $0xc4] sm:$0xf]
  %v88 = vld [vmem:[%s0 + $0xc8] sm:$0xf]
  %v89 = vld [vmem:[%s0 + $0xcc] sm:$0xf]
  %v90 = vld [vmem:[%s0 + $0xd0] sm:$0xf]
  %v91 = vld [vmem:[%s0 + $0xd4] sm:$0xf]
  %v92 = vld [vmem:[%s0 + $0xd8] sm:$0xf]
  %v93 = vld [vmem:[%s0 + $0xdc] sm:$0xf]
  %v94 = vld [vmem:[%s0 + $0xe0] sm:$0xf]
  %v95 = vld [vmem:[%s0 + $0xe4] sm:$0xf]
  %v96 = vld [vmem:[%s0 + $0xe8] sm:$0xf]
  %v97 = vld [vmem:[%s0 + $0xec] sm:$0xf]
  %v98 = vld [vmem:[%s0 + $0xf0] sm:$0xf]
  %v99 = vld [vmem:[%s0 + $0xf4] sm:$0xf]
  %v100 = vld [vmem:[%s0 + $0xf8] sm:$0xf]
  %v101 = vld [vmem:[%s0 + $0xfc] sm:$0xf]
  %s102 = scalar_lea.vmem %s0, 256
  %v103 = vld [vmem:[%s102] sm:$0xf]
  %v104 = vld [vmem:[%s102 + $0x4] sm:$0xf]
  %v105 = vld [vmem:[%s102 + $0x8] sm:$0xf]
  %v106 = vld [vmem:[%s102 + $0xc] sm:$0xf]
  %v107 = vld [vmem:[%s102 + $0x10] sm:$0xf]
  %v108 = vld [vmem:[%s102 + $0x14] sm:$0xf]
  %v109 = vld [vmem:[%s102 + $0x18] sm:$0xf]
  %v110 = vld [vmem:[%s102 + $0x1c] sm:$0xf]
  %v111 = vld [vmem:[%s102 + $0x20] sm:$0xf]
  %v112 = vld [vmem:[%s102 + $0x24] sm:$0xf]
  %v113 = vld [vmem:[%s102 + $0x28] sm:$0xf]
  %v114 = vld [vmem:[%s102 + $0x2c] sm:$0xf]
  %v115 = vld [vmem:[%s102 + $0x30] sm:$0xf]
  %v116 = vld [vmem:[%s102 + $0x34] sm:$0xf]
  %v117 = vld [vmem:[%s102 + $0x38] sm:$0xf]
  %v118 = vld [vmem:[%s102 + $0x3c] sm:$0xf]
  %v119 = vld [vmem:[%s102 + $0x40] sm:$0xf]
  %v120 = vld [vmem:[%s102 + $0x44] sm:$0xf]
  %v121 = vld [vmem:[%s102 + $0x48] sm:$0xf]
  %v122 = vld [vmem:[%s102 + $0x4c] sm:$0xf]
  %v123 = vld [vmem:[%s102 + $0x50] sm:$0xf]
  %v124 = vld [vmem:[%s102 + $0x54] sm:$0xf]
  %v125 = vld [vmem:[%s102 + $0x58] sm:$0xf]
  %v126 = vld [vmem:[%s102 + $0x5c] sm:$0xf]
  %v127 = vld [vmem:[%s102 + $0x60] sm:$0xf]
  %v128 = vld [vmem:[%s102 + $0x64] sm:$0xf]
  %v129 = vld [vmem:[%s102 + $0x68] sm:$0xf]
  %v130 = vld [vmem:[%s102 + $0x6c] sm:$0xf]
  %v131 = vld [vmem:[%s102 + $0x70] sm:$0xf]
  %v132 = vld [vmem:[%s102 + $0x74] sm:$0xf]
  %v133 = vld [vmem:[%s102 + $0x78] sm:$0xf]
  %v134 = vld [vmem:[%s102 + $0x7c] sm:$0xf]
  %v135 = vld [vmem:[%s102 + $0x80] sm:$0xf]
  %v136 = vld [vmem:[%s102 + $0x84] sm:$0xf]
  %v137 = vld [vmem:[%s102 + $0x88] sm:$0xf]
  %v138 = vld [vmem:[%s102 + $0x8c] sm:$0xf]
  %v139 = vld [vmem:[%s102 + $0x90] sm:$0xf]
  %v140 = vld [vmem:[%s102 + $0x94] sm:$0xf]
  %v141 = vld [vmem:[%s102 + $0x98] sm:$0xf]
  %v142 = vld [vmem:[%s102 + $0x9c] sm:$0xf]
  %v143 = vld [vmem:[%s102 + $0xa0] sm:$0xf]
  %v144 = vld [vmem:[%s102 + $0xa4] sm:$0xf]
  %v145 = vld [vmem:[%s102 + $0xa8] sm:$0xf]
  %v146 = vld [vmem:[%s102 + $0xac] sm:$0xf]
  %v147 = vld [vmem:[%s102 + $0xb0] sm:$0xf]
  %v148 = vld [vmem:[%s102 + $0xb4] sm:$0xf]
  %v149 = vld [vmem:[%s102 + $0xb8] sm:$0xf]
  %v150 = vld [vmem:[%s102 + $0xbc] sm:$0xf]
  %v151 = vld [vmem:[%s102 + $0xc0] sm:$0xf]
  %v152 = vld [vmem:[%s102 + $0xc4] sm:$0xf]
  %v153 = vld [vmem:[%s102 + $0xc8] sm:$0xf]
  %v154 = vld [vmem:[%s102 + $0xcc] sm:$0xf]
  %v155 = vld [vmem:[%s102 + $0xd0] sm:$0xf]
  %v156 = vld [vmem:[%s102 + $0xd4] sm:$0xf]
  %v157 = vld [vmem:[%s102 + $0xd8] sm:$0xf]
  %v158 = vld [vmem:[%s102 + $0xdc] sm:$0xf]
  %v159 = vld [vmem:[%s102 + $0xe0] sm:$0xf]
  %v160 = vld [vmem:[%s102 + $0xe4] sm:$0xf]
  %v161 = vld [vmem:[%s102 + $0xe8] sm:$0xf]
  %v162 = vld [vmem:[%s102 + $0xec] sm:$0xf]
  %v163 = vld [vmem:[%s102 + $0xf0] sm:$0xf]
  %v164 = vld [vmem:[%s102 + $0xf4] sm:$0xf]
  %v165 = vld [vmem:[%s102 + $0xf8] sm:$0xf]
  %v166 = vld [vmem:[%s102 + $0xfc] sm:$0xf]
  %v231 = vunpack.c.l.b16 %v103
  %v232 = vunpack.c.l.b16 %v104
  %v233 = vunpack.c.l.b16 %v105
  %v234 = vunpack.c.l.b16 %v106
  %v235 = vunpack.c.l.b16 %v107
  %v236 = vunpack.c.l.b16 %v108
  %v237 = vunpack.c.l.b16 %v109
  %v238 = vunpack.c.l.b16 %v110
  %v239 = vunpack.c.l.b16 %v111
  %v240 = vunpack.c.l.b16 %v112
  %v241 = vunpack.c.l.b16 %v113
  %v242 = vunpack.c.l.b16 %v114
  %v243 = vunpack.c.l.b16 %v115
  %v244 = vunpack.c.l.b16 %v116
  %v245 = vunpack.c.l.b16 %v117
  %v246 = vunpack.c.l.b16 %v118
  %v247 = vunpack.c.l.b16 %v119
  %v248 = vunpack.c.l.b16 %v120
  %v249 = vunpack.c.l.b16 %v121
  %v250 = vunpack.c.l.b16 %v122
  %v251 = vunpack.c.l.b16 %v123
  %v252 = vunpack.c.l.b16 %v124
  %v253 = vunpack.c.l.b16 %v125
  %v254 = vunpack.c.l.b16 %v126
  %v255 = vunpack.c.l.b16 %v127
  %v256 = vunpack.c.l.b16 %v128
  %v257 = vunpack.c.l.b16 %v129
  %v258 = vunpack.c.l.b16 %v130
  %v259 = vunpack.c.l.b16 %v131
  %v260 = vunpack.c.l.b16 %v132
  %v261 = vunpack.c.l.b16 %v133
  %v262 = vunpack.c.l.b16 %v134
  %v263 = vunpack.c.l.b16 %v135
  %v264 = vunpack.c.l.b16 %v136
  %v265 = vunpack.c.l.b16 %v137
  %v266 = vunpack.c.l.b16 %v138
  %v267 = vunpack.c.l.b16 %v139
  %v268 = vunpack.c.l.b16 %v140
  %v269 = vunpack.c.l.b16 %v141
  %v270 = vunpack.c.l.b16 %v142
  %v271 = vunpack.c.l.b16 %v143
  %v272 = vunpack.c.l.b16 %v144
  %v273 = vunpack.c.l.b16 %v145
  %v274 = vunpack.c.l.b16 %v146
  %v275 = vunpack.c.l.b16 %v147
  %v276 = vunpack.c.l.b16 %v148
  %v277 = vunpack.c.l.b16 %v149
  %v278 = vunpack.c.l.b16 %v150
  %v279 = vunpack.c.l.b16 %v151
  %v280 = vunpack.c.l.b16 %v152
  %v281 = vunpack.c.l.b16 %v153
  %v282 = vunpack.c.l.b16 %v154
  %v283 = vunpack.c.l.b16 %v155
  %v284 = vunpack.c.l.b16 %v156
  %v285 = vunpack.c.l.b16 %v157
  %v286 = vunpack.c.l.b16 %v158
  %v287 = vunpack.c.l.b16 %v159
  %v288 = vunpack.c.l.b16 %v160
  %v289 = vunpack.c.l.b16 %v161
  %v290 = vunpack.c.l.b16 %v162
  %v291 = vunpack.c.l.b16 %v163
  %v292 = vunpack.c.l.b16 %v164
  %v293 = vunpack.c.l.b16 %v165
  %v294 = vunpack.c.l.b16 %v166
  %v295 = vpack.c.b16 %v232, %v231
  %v296 = vpack.c.b16 %v234, %v233
  %v297 = vpack.c.b16 %v236, %v235
  %v298 = vpack.c.b16 %v238, %v237
  %v299 = vpack.c.b16 %v240, %v239
  %v300 = vpack.c.b16 %v242, %v241
  %v301 = vpack.c.b16 %v244, %v243
  %v302 = vpack.c.b16 %v246, %v245
  %v303 = vpack.c.b16 %v248, %v247
  %v304 = vpack.c.b16 %v250, %v249
  %v305 = vpack.c.b16 %v252, %v251
  %v306 = vpack.c.b16 %v254, %v253
  %v307 = vpack.c.b16 %v256, %v255
  %v308 = vpack.c.b16 %v258, %v257
  %v309 = vpack.c.b16 %v260, %v259
  %v310 = vpack.c.b16 %v262, %v261
  %v311 = vpack.c.b16 %v264, %v263
  %v312 = vpack.c.b16 %v266, %v265
  %v313 = vpack.c.b16 %v268, %v267
  %v314 = vpack.c.b16 %v270, %v269
  %v315 = vpack.c.b16 %v272, %v271
  %v316 = vpack.c.b16 %v274, %v273
  %v317 = vpack.c.b16 %v276, %v275
  %v318 = vpack.c.b16 %v278, %v277
  %v319 = vpack.c.b16 %v280, %v279
  %v320 = vpack.c.b16 %v282, %v281
  %v321 = vpack.c.b16 %v284, %v283
  %v322 = vpack.c.b16 %v286, %v285
  %v323 = vpack.c.b16 %v288, %v287
  %v324 = vpack.c.b16 %v290, %v289
  %v325 = vpack.c.b16 %v292, %v291
  %v326 = vpack.c.b16 %v294, %v293
  %v332 = vunpack.c.l.b16 %v27
  %v333 = vunpack.c.l.b16 %v28
  %v334 = vunpack.c.l.b16 %v29
  %v335 = vunpack.c.l.b16 %v30
  %v336 = vunpack.c.l.b16 %v31
  %v337 = vpack.c.b16 %v333, %v332
  %v338 = vpack.c.b16 %v335, %v334
  %v339 = vpack.c.b16 %v336, %v336
  %vm342 = vcmask 293888
  %v344 = vsel %vm342, %v295, 0
  %v347 = vsel %vm342, %v296, 0
  %v350 = vsel %vm342, %v297, 0
  %v353 = vsel %vm342, %v298, 0
  %v356 = vsel %vm342, %v299, 0
  %v359 = vsel %vm342, %v300, 0
  %v362 = vsel %vm342, %v301, 0
  %v365 = vsel %vm342, %v302, 0
  %v368 = vsel %vm342, %v303, 0
  %v371 = vsel %vm342, %v304, 0
  %v374 = vsel %vm342, %v305, 0
  %v377 = vsel %vm342, %v306, 0
  %v380 = vsel %vm342, %v307, 0
  %v383 = vsel %vm342, %v308, 0
  %v386 = vsel %vm342, %v309, 0
  %v389 = vsel %vm342, %v310, 0
  %v392 = vsel %vm342, %v311, 0
  %v395 = vsel %vm342, %v312, 0
  %v398 = vsel %vm342, %v313, 0
  %v401 = vsel %vm342, %v314, 0
  %v404 = vsel %vm342, %v315, 0
  %v407 = vsel %vm342, %v316, 0
  %v410 = vsel %vm342, %v317, 0
  %v413 = vsel %vm342, %v318, 0
  %v416 = vsel %vm342, %v319, 0
  %v419 = vsel %vm342, %v320, 0
  %v422 = vsel %vm342, %v321, 0
  %v425 = vsel %vm342, %v322, 0
  %v428 = vsel %vm342, %v323, 0
  %v431 = vsel %vm342, %v324, 0
  %v434 = vsel %vm342, %v325, 0
  %v437 = vsel %vm342, %v326, 0
  %vm439 = vcmask 1041408
  %v441 = vsel %vm439, %v339, 0
  %443 = vmatpush.bf16.msra.mxu0 0
  %444 = vmatpush.bf16.msra.mxu0 0
  %445 = vmatpush.bf16.msra.mxu0 0
  %446 = vmatpush.bf16.msra.mxu0 0
  %447 = vmatpush.bf16.msra.mxu0 0
  %448 = vmatpush.bf16.msra.mxu0 %v441
  %449 = vmatpush.bf16.msra.mxu0 %v338
  %450 = vmatpush.bf16.msra.mxu0 %v337
  %451 = vmatmul.bf16.gmra.mxu0 %v344
  %v452 = vpop.f32.mrf.mxu0
  %v453 = vadd.f32 0.0, %v452
  %v454 = vpop.f32.mrf.mxu0
  %v455 = vadd.f32 0.0, %v454
  %456 = vmatmul.bf16.gmra.mxu0 %v347
  %v457 = vpop.f32.mrf.mxu0
  %v458 = vadd.f32 0.0, %v457
  %v459 = vpop.f32.mrf.mxu0
  %v460 = vadd.f32 0.0, %v459
  %461 = vmatmul.bf16.gmra.mxu0 %v350
  %v462 = vpop.f32.mrf.mxu0
  %v463 = vadd.f32 0.0, %v462
  %v464 = vpop.f32.mrf.mxu0
  %v465 = vadd.f32 0.0, %v464
  %466 = vmatmul.bf16.gmra.mxu0 %v353
  %v467 = vpop.f32.mrf.mxu0
  %v468 = vadd.f32 0.0, %v467
  %v469 = vpop.f32.mrf.mxu0
  %v470 = vadd.f32 0.0, %v469
  %471 = vmatmul.bf16.gmra.mxu0 %v356
  %v472 = vpop.f32.mrf.mxu0
  %v473 = vadd.f32 0.0, %v472
  %v474 = vpop.f32.mrf.mxu0
  %v475 = vadd.f32 0.0, %v474
  %476 = vmatmul.bf16.gmra.mxu0 %v359
  %v477 = vpop.f32.mrf.mxu0
  %v478 = vadd.f32 0.0, %v477
  %v479 = vpop.f32.mrf.mxu0
  %v480 = vadd.f32 0.0, %v479
  %481 = vmatmul.bf16.gmra.mxu0 %v362
  %v482 = vpop.f32.mrf.mxu0
  %v483 = vadd.f32 0.0, %v482
  %v484 = vpop.f32.mrf.mxu0
  %v485 = vadd.f32 0.0, %v484
  %486 = vmatmul.bf16.gmra.mxu0 %v365
  %v487 = vpop.f32.mrf.mxu0
  %v488 = vadd.f32 0.0, %v487
  %v489 = vpop.f32.mrf.mxu0
  %v490 = vadd.f32 0.0, %v489
  %491 = vmatmul.bf16.gmra.mxu0 %v368
  %v492 = vpop.f32.mrf.mxu0
  %v493 = vadd.f32 0.0, %v492
  %v494 = vpop.f32.mrf.mxu0
  %v495 = vadd.f32 0.0, %v494
  %496 = vmatmul.bf16.gmra.mxu0 %v371
  %v497 = vpop.f32.mrf.mxu0
  %v498 = vadd.f32 0.0, %v497
  %v499 = vpop.f32.mrf.mxu0
  %v500 = vadd.f32 0.0, %v499
  %501 = vmatmul.bf16.gmra.mxu0 %v374
  %v502 = vpop.f32.mrf.mxu0
  %v503 = vadd.f32 0.0, %v502
  %v504 = vpop.f32.mrf.mxu0
  %v505 = vadd.f32 0.0, %v504
  %506 = vmatmul.bf16.gmra.mxu0 %v377
  %v507 = vpop.f32.mrf.mxu0
  %v508 = vadd.f32 0.0, %v507
  %v509 = vpop.f32.mrf.mxu0
  %v510 = vadd.f32 0.0, %v509
  %511 = vmatmul.bf16.gmra.mxu0 %v380
  %v512 = vpop.f32.mrf.mxu0
  %v513 = vadd.f32 0.0, %v512
  %v514 = vpop.f32.mrf.mxu0
  %v515 = vadd.f32 0.0, %v514
  %516 = vmatmul.bf16.gmra.mxu0 %v383
  %v517 = vpop.f32.mrf.mxu0
  %v518 = vadd.f32 0.0, %v517
  %v519 = vpop.f32.mrf.mxu0
  %v520 = vadd.f32 0.0, %v519
  %521 = vmatmul.bf16.gmra.mxu0 %v386
  %v522 = vpop.f32.mrf.mxu0
  %v523 = vadd.f32 0.0, %v522
  %v524 = vpop.f32.mrf.mxu0
  %v525 = vadd.f32 0.0, %v524
  %526 = vmatmul.bf16.gmra.mxu0 %v389
  %v527 = vpop.f32.mrf.mxu0
  %v528 = vadd.f32 0.0, %v527
  %v529 = vpop.f32.mrf.mxu0
  %v530 = vadd.f32 0.0, %v529
  %531 = vmatmul.bf16.gmra.mxu0 %v392
  %v532 = vpop.f32.mrf.mxu0
  %v533 = vadd.f32 0.0, %v532
  %v534 = vpop.f32.mrf.mxu0
  %v535 = vadd.f32 0.0, %v534
  %536 = vmatmul.bf16.gmra.mxu0 %v395
  %v537 = vpop.f32.mrf.mxu0
  %v538 = vadd.f32 0.0, %v537
  %v539 = vpop.f32.mrf.mxu0
  %v540 = vadd.f32 0.0, %v539
  %541 = vmatmul.bf16.gmra.mxu0 %v398
  %v542 = vpop.f32.mrf.mxu0
  %v543 = vadd.f32 0.0, %v542
  %v544 = vpop.f32.mrf.mxu0
  %v545 = vadd.f32 0.0, %v544
  %546 = vmatmul.bf16.gmra.mxu0 %v401
  %v547 = vpop.f32.mrf.mxu0
  %v548 = vadd.f32 0.0, %v547
  %v549 = vpop.f32.mrf.mxu0
  %v550 = vadd.f32 0.0, %v549
  %551 = vmatmul.bf16.gmra.mxu0 %v404
  %v552 = vpop.f32.mrf.mxu0
  %v553 = vadd.f32 0.0, %v552
  %v554 = vpop.f32.mrf.mxu0
  %v555 = vadd.f32 0.0, %v554
  %556 = vmatmul.bf16.gmra.mxu0 %v407
  %v557 = vpop.f32.mrf.mxu0
  %v558 = vadd.f32 0.0, %v557
  %v559 = vpop.f32.mrf.mxu0
  %v560 = vadd.f32 0.0, %v559
  %561 = vmatmul.bf16.gmra.mxu0 %v410
  %v562 = vpop.f32.mrf.mxu0
  %v563 = vadd.f32 0.0, %v562
  %v564 = vpop.f32.mrf.mxu0
  %v565 = vadd.f32 0.0, %v564
  %566 = vmatmul.bf16.gmra.mxu0 %v413
  %v567 = vpop.f32.mrf.mxu0
  %v568 = vadd.f32 0.0, %v567
  %v569 = vpop.f32.mrf.mxu0
  %v570 = vadd.f32 0.0, %v569
  %571 = vmatmul.bf16.gmra.mxu0 %v416
  %v572 = vpop.f32.mrf.mxu0
  %v573 = vadd.f32 0.0, %v572
  %v574 = vpop.f32.mrf.mxu0
  %v575 = vadd.f32 0.0, %v574
  %576 = vmatmul.bf16.gmra.mxu0 %v419
  %v577 = vpop.f32.mrf.mxu0
  %v578 = vadd.f32 0.0, %v577
  %v579 = vpop.f32.mrf.mxu0
  %v580 = vadd.f32 0.0, %v579
  %581 = vmatmul.bf16.gmra.mxu0 %v422
  %v582 = vpop.f32.mrf.mxu0
  %v583 = vadd.f32 0.0, %v582
  %v584 = vpop.f32.mrf.mxu0
  %v585 = vadd.f32 0.0, %v584
  %586 = vmatmul.bf16.gmra.mxu0 %v425
  %v587 = vpop.f32.mrf.mxu0
  %v588 = vadd.f32 0.0, %v587
  %v589 = vpop.f32.mrf.mxu0
  %v590 = vadd.f32 0.0, %v589
  %591 = vmatmul.bf16.gmra.mxu0 %v428
  %v592 = vpop.f32.mrf.mxu0
  %v593 = vadd.f32 0.0, %v592
  %v594 = vpop.f32.mrf.mxu0
  %v595 = vadd.f32 0.0, %v594
  %596 = vmatmul.bf16.gmra.mxu0 %v431
  %v597 = vpop.f32.mrf.mxu0
  %v598 = vadd.f32 0.0, %v597
  %v599 = vpop.f32.mrf.mxu0
  %v600 = vadd.f32 0.0, %v599
  %601 = vmatmul.bf16.gmra.mxu0 %v434
  %v602 = vpop.f32.mrf.mxu0
  %v603 = vadd.f32 0.0, %v602
  %v604 = vpop.f32.mrf.mxu0
  %v605 = vadd.f32 0.0, %v604
  %606 = vmatmul.bf16.gmra.mxu0 %v437
  %v607 = vpop.f32.mrf.mxu0
  %v608 = vadd.f32 0.0, %v607
  %v609 = vpop.f32.mrf.mxu0
  %v610 = vadd.f32 0.0, %v609
  %611 = vdwg.mxu0
  %v676 = vunpack.c.l.b16 %v38
  %v677 = vunpack.c.l.b16 %v39
  %v678 = vunpack.c.l.b16 %v40
  %v679 = vunpack.c.l.b16 %v41
  %v680 = vunpack.c.l.b16 %v42
  %v681 = vunpack.c.l.b16 %v43
  %v682 = vunpack.c.l.b16 %v44
  %v683 = vunpack.c.l.b16 %v45
  %v684 = vunpack.c.l.b16 %v46
  %v685 = vunpack.c.l.b16 %v47
  %v686 = vunpack.c.l.b16 %v48
  %v687 = vunpack.c.l.b16 %v49
  %v688 = vunpack.c.l.b16 %v50
  %v689 = vunpack.c.l.b16 %v51
  %v690 = vunpack.c.l.b16 %v52
  %v691 = vunpack.c.l.b16 %v53
  %v692 = vunpack.c.l.b16 %v54
  %v693 = vunpack.c.l.b16 %v55
  %v694 = vunpack.c.l.b16 %v56
  %v695 = vunpack.c.l.b16 %v57
  %v696 = vunpack.c.l.b16 %v58
  %v697 = vunpack.c.l.b16 %v59
  %v698 = vunpack.c.l.b16 %v60
  %v699 = vunpack.c.l.b16 %v61
  %v700 = vunpack.c.l.b16 %v62
  %v701 = vunpack.c.l.b16 %v63
  %v702 = vunpack.c.l.b16 %v64
  %v703 = vunpack.c.l.b16 %v65
  %v704 = vunpack.c.l.b16 %v66
  %v705 = vunpack.c.l.b16 %v67
  %v706 = vunpack.c.l.b16 %v68
  %v707 = vunpack.c.l.b16 %v69
  %v708 = vunpack.c.l.b16 %v70
  %v709 = vunpack.c.l.b16 %v71
  %v710 = vunpack.c.l.b16 %v72
  %v711 = vunpack.c.l.b16 %v73
  %v712 = vunpack.c.l.b16 %v74
  %v713 = vunpack.c.l.b16 %v75
  %v714 = vunpack.c.l.b16 %v76
  %v715 = vunpack.c.l.b16 %v77
  %v716 = vunpack.c.l.b16 %v78
  %v717 = vunpack.c.l.b16 %v79
  %v718 = vunpack.c.l.b16 %v80
  %v719 = vunpack.c.l.b16 %v81
  %v720 = vunpack.c.l.b16 %v82
  %v721 = vunpack.c.l.b16 %v83
  %v722 = vunpack.c.l.b16 %v84
  %v723 = vunpack.c.l.b16 %v85
  %v724 = vunpack.c.l.b16 %v86
  %v725 = vunpack.c.l.b16 %v87
  %v726 = vunpack.c.l.b16 %v88
  %v727 = vunpack.c.l.b16 %v89
  %v728 = vunpack.c.l.b16 %v90
  %v729 = vunpack.c.l.b16 %v91
  %v730 = vunpack.c.l.b16 %v92
  %v731 = vunpack.c.l.b16 %v93
  %v732 = vunpack.c.l.b16 %v94
  %v733 = vunpack.c.l.b16 %v95
  %v734 = vunpack.c.l.b16 %v96
  %v735 = vunpack.c.l.b16 %v97
  %v736 = vunpack.c.l.b16 %v98
  %v737 = vunpack.c.l.b16 %v99
  %v738 = vunpack.c.l.b16 %v100
  %v739 = vunpack.c.l.b16 %v101
  %v740 = vpack.c.b16 %v677, %v676
  %v741 = vpack.c.b16 %v679, %v678
  %v742 = vpack.c.b16 %v681, %v680
  %v743 = vpack.c.b16 %v683, %v682
  %v744 = vpack.c.b16 %v685, %v684
  %v745 = vpack.c.b16 %v687, %v686
  %v746 = vpack.c.b16 %v689, %v688
  %v747 = vpack.c.b16 %v691, %v690
  %v748 = vpack.c.b16 %v693, %v692
  %v749 = vpack.c.b16 %v695, %v694
  %v750 = vpack.c.b16 %v697, %v696
  %v751 = vpack.c.b16 %v699, %v698
  %v752 = vpack.c.b16 %v701, %v700
  %v753 = vpack.c.b16 %v703, %v702
  %v754 = vpack.c.b16 %v705, %v704
  %v755 = vpack.c.b16 %v707, %v706
  %v756 = vpack.c.b16 %v709, %v708
  %v757 = vpack.c.b16 %v711, %v710
  %v758 = vpack.c.b16 %v713, %v712
  %v759 = vpack.c.b16 %v715, %v714
  %v760 = vpack.c.b16 %v717, %v716
  %v761 = vpack.c.b16 %v719, %v718
  %v762 = vpack.c.b16 %v721, %v720
  %v763 = vpack.c.b16 %v723, %v722
  %v764 = vpack.c.b16 %v725, %v724
  %v765 = vpack.c.b16 %v727, %v726
  %v766 = vpack.c.b16 %v729, %v728
  %v767 = vpack.c.b16 %v731, %v730
  %v768 = vpack.c.b16 %v733, %v732
  %v769 = vpack.c.b16 %v735, %v734
  %v770 = vpack.c.b16 %v737, %v736
  %v771 = vpack.c.b16 %v739, %v738
  %v777 = vunpack.c.l.b16 %v21
  %v778 = vunpack.c.l.b16 %v22
  %v779 = vunpack.c.l.b16 %v23
  %v780 = vunpack.c.l.b16 %v24
  %v781 = vunpack.c.l.b16 %v25
  %v782 = vpack.c.b16 %v778, %v777
  %v783 = vpack.c.b16 %v780, %v779
  %v784 = vpack.c.b16 %v781, %v781
  %v788 = vsel %vm342, %v740, 0
  %v791 = vsel %vm342, %v741, 0
  %v794 = vsel %vm342, %v742, 0
  %v797 = vsel %vm342, %v743, 0
  %v800 = vsel %vm342, %v744, 0
  %v803 = vsel %vm342, %v745, 0
  %v806 = vsel %vm342, %v746, 0
  %v809 = vsel %vm342, %v747, 0
  %v812 = vsel %vm342, %v748, 0
  %v815 = vsel %vm342, %v749, 0
  %v818 = vsel %vm342, %v750, 0
  %v821 = vsel %vm342, %v751, 0
  %v824 = vsel %vm342, %v752, 0
  %v827 = vsel %vm342, %v753, 0
  %v830 = vsel %vm342, %v754, 0
  %v833 = vsel %vm342, %v755, 0
  %v836 = vsel %vm342, %v756, 0
  %v839 = vsel %vm342, %v757, 0
  %v842 = vsel %vm342, %v758, 0
  %v845 = vsel %vm342, %v759, 0
  %v848 = vsel %vm342, %v760, 0
  %v851 = vsel %vm342, %v761, 0
  %v854 = vsel %vm342, %v762, 0
  %v857 = vsel %vm342, %v763, 0
  %v860 = vsel %vm342, %v764, 0
  %v863 = vsel %vm342, %v765, 0
  %v866 = vsel %vm342, %v766, 0
  %v869 = vsel %vm342, %v767, 0
  %v872 = vsel %vm342, %v768, 0
  %v875 = vsel %vm342, %v769, 0
  %v878 = vsel %vm342, %v770, 0
  %v881 = vsel %vm342, %v771, 0
  %v884 = vsel %vm439, %v784, 0
  %886 = vmatpush.bf16.msra.mxu0 0
  %887 = vmatpush.bf16.msra.mxu0 0
  %888 = vmatpush.bf16.msra.mxu0 0
  %889 = vmatpush.bf16.msra.mxu0 0
  %890 = vmatpush.bf16.msra.mxu0 0
  %891 = vmatpush.bf16.msra.mxu0 %v884
  %892 = vmatpush.bf16.msra.mxu0 %v783
  %893 = vmatpush.bf16.msra.mxu0 %v782
  %894 = vmatmul.bf16.gmra.mxu0 %v788
  %v895 = vpop.f32.mrf.mxu0
  %v896 = vadd.f32 %v453, %v895
  %v897 = vpop.f32.mrf.mxu0
  %v898 = vadd.f32 %v455, %v897
  %899 = vmatmul.bf16.gmra.mxu0 %v791
  %v900 = vpop.f32.mrf.mxu0
  %v901 = vadd.f32 %v458, %v900
  %v902 = vpop.f32.mrf.mxu0
  %v903 = vadd.f32 %v460, %v902
  %904 = vmatmul.bf16.gmra.mxu0 %v794
  %v905 = vpop.f32.mrf.mxu0
  %v906 = vadd.f32 %v463, %v905
  %v907 = vpop.f32.mrf.mxu0
  %v908 = vadd.f32 %v465, %v907
  %909 = vmatmul.bf16.gmra.mxu0 %v797
  %v910 = vpop.f32.mrf.mxu0
  %v911 = vadd.f32 %v468, %v910
  %v912 = vpop.f32.mrf.mxu0
  %v913 = vadd.f32 %v470, %v912
  %914 = vmatmul.bf16.gmra.mxu0 %v800
  %v915 = vpop.f32.mrf.mxu0
  %v916 = vadd.f32 %v473, %v915
  %v917 = vpop.f32.mrf.mxu0
  %v918 = vadd.f32 %v475, %v917
  %919 = vmatmul.bf16.gmra.mxu0 %v803
  %v920 = vpop.f32.mrf.mxu0
  %v921 = vadd.f32 %v478, %v920
  %v922 = vpop.f32.mrf.mxu0
  %v923 = vadd.f32 %v480, %v922
  %924 = vmatmul.bf16.gmra.mxu0 %v806
  %v925 = vpop.f32.mrf.mxu0
  %v926 = vadd.f32 %v483, %v925
  %v927 = vpop.f32.mrf.mxu0
  %v928 = vadd.f32 %v485, %v927
  %929 = vmatmul.bf16.gmra.mxu0 %v809
  %v930 = vpop.f32.mrf.mxu0
  %v931 = vadd.f32 %v488, %v930
  %v932 = vpop.f32.mrf.mxu0
  %v933 = vadd.f32 %v490, %v932
  %934 = vmatmul.bf16.gmra.mxu0 %v812
  %v935 = vpop.f32.mrf.mxu0
  %v936 = vadd.f32 %v493, %v935
  %v937 = vpop.f32.mrf.mxu0
  %v938 = vadd.f32 %v495, %v937
  %939 = vmatmul.bf16.gmra.mxu0 %v815
  %v940 = vpop.f32.mrf.mxu0
  %v941 = vadd.f32 %v498, %v940
  %v942 = vpop.f32.mrf.mxu0
  %v943 = vadd.f32 %v500, %v942
  %944 = vmatmul.bf16.gmra.mxu0 %v818
  %v945 = vpop.f32.mrf.mxu0
  %v946 = vadd.f32 %v503, %v945
  %v947 = vpop.f32.mrf.mxu0
  %v948 = vadd.f32 %v505, %v947
  %949 = vmatmul.bf16.gmra.mxu0 %v821
  %v950 = vpop.f32.mrf.mxu0
  %v951 = vadd.f32 %v508, %v950
  %v952 = vpop.f32.mrf.mxu0
  %v953 = vadd.f32 %v510, %v952
  %954 = vmatmul.bf16.gmra.mxu0 %v824
  %v955 = vpop.f32.mrf.mxu0
  %v956 = vadd.f32 %v513, %v955
  %v957 = vpop.f32.mrf.mxu0
  %v958 = vadd.f32 %v515, %v957
  %959 = vmatmul.bf16.gmra.mxu0 %v827
  %v960 = vpop.f32.mrf.mxu0
  %v961 = vadd.f32 %v518, %v960
  %v962 = vpop.f32.mrf.mxu0
  %v963 = vadd.f32 %v520, %v962
  %964 = vmatmul.bf16.gmra.mxu0 %v830
  %v965 = vpop.f32.mrf.mxu0
  %v966 = vadd.f32 %v523, %v965
  %v967 = vpop.f32.mrf.mxu0
  %v968 = vadd.f32 %v525, %v967
  %969 = vmatmul.bf16.gmra.mxu0 %v833
  %v970 = vpop.f32.mrf.mxu0
  %v971 = vadd.f32 %v528, %v970
  %v972 = vpop.f32.mrf.mxu0
  %v973 = vadd.f32 %v530, %v972
  %974 = vmatmul.bf16.gmra.mxu0 %v836
  %v975 = vpop.f32.mrf.mxu0
  %v976 = vadd.f32 %v533, %v975
  %v977 = vpop.f32.mrf.mxu0
  %v978 = vadd.f32 %v535, %v977
  %979 = vmatmul.bf16.gmra.mxu0 %v839
  %v980 = vpop.f32.mrf.mxu0
  %v981 = vadd.f32 %v538, %v980
  %v982 = vpop.f32.mrf.mxu0
  %v983 = vadd.f32 %v540, %v982
  %984 = vmatmul.bf16.gmra.mxu0 %v842
  %v985 = vpop.f32.mrf.mxu0
  %v986 = vadd.f32 %v543, %v985
  %v987 = vpop.f32.mrf.mxu0
  %v988 = vadd.f32 %v545, %v987
  %989 = vmatmul.bf16.gmra.mxu0 %v845
  %v990 = vpop.f32.mrf.mxu0
  %v991 = vadd.f32 %v548, %v990
  %v992 = vpop.f32.mrf.mxu0
  %v993 = vadd.f32 %v550, %v992
  %994 = vmatmul.bf16.gmra.mxu0 %v848
  %v995 = vpop.f32.mrf.mxu0
  %v996 = vadd.f32 %v553, %v995
  %v997 = vpop.f32.mrf.mxu0
  %v998 = vadd.f32 %v555, %v997
  %999 = vmatmul.bf16.gmra.mxu0 %v851
  %v1000 = vpop.f32.mrf.mxu0
  %v1001 = vadd.f32 %v558, %v1000
  %v1002 = vpop.f32.mrf.mxu0
  %v1003 = vadd.f32 %v560, %v1002
  %1004 = vmatmul.bf16.gmra.mxu0 %v854
  %v1005 = vpop.f32.mrf.mxu0
  %v1006 = vadd.f32 %v563, %v1005
  %v1007 = vpop.f32.mrf.mxu0
  %v1008 = vadd.f32 %v565, %v1007
  %1009 = vmatmul.bf16.gmra.mxu0 %v857
  %v1010 = vpop.f32.mrf.mxu0
  %v1011 = vadd.f32 %v568, %v1010
  %v1012 = vpop.f32.mrf.mxu0
  %v1013 = vadd.f32 %v570, %v1012
  %1014 = vmatmul.bf16.gmra.mxu0 %v860
  %v1015 = vpop.f32.mrf.mxu0
  %v1016 = vadd.f32 %v573, %v1015
  %v1017 = vpop.f32.mrf.mxu0
  %v1018 = vadd.f32 %v575, %v1017
  %1019 = vmatmul.bf16.gmra.mxu0 %v863
  %v1020 = vpop.f32.mrf.mxu0
  %v1021 = vadd.f32 %v578, %v1020
  %v1022 = vpop.f32.mrf.mxu0
  %v1023 = vadd.f32 %v580, %v1022
  %1024 = vmatmul.bf16.gmra.mxu0 %v866
  %v1025 = vpop.f32.mrf.mxu0
  %v1026 = vadd.f32 %v583, %v1025
  %v1027 = vpop.f32.mrf.mxu0
  %v1028 = vadd.f32 %v585, %v1027
  %1029 = vmatmul.bf16.gmra.mxu0 %v869
  %v1030 = vpop.f32.mrf.mxu0
  %v1031 = vadd.f32 %v588, %v1030
  %v1032 = vpop.f32.mrf.mxu0
  %v1033 = vadd.f32 %v590, %v1032
  %1034 = vmatmul.bf16.gmra.mxu0 %v872
  %v1035 = vpop.f32.mrf.mxu0
  %v1036 = vadd.f32 %v593, %v1035
  %v1037 = vpop.f32.mrf.mxu0
  %v1038 = vadd.f32 %v595, %v1037
  %1039 = vmatmul.bf16.gmra.mxu0 %v875
  %v1040 = vpop.f32.mrf.mxu0
  %v1041 = vadd.f32 %v598, %v1040
  %v1042 = vpop.f32.mrf.mxu0
  %v1043 = vadd.f32 %v600, %v1042
  %1044 = vmatmul.bf16.gmra.mxu0 %v878
  %v1045 = vpop.f32.mrf.mxu0
  %v1046 = vadd.f32 %v603, %v1045
  %v1047 = vpop.f32.mrf.mxu0
  %v1048 = vadd.f32 %v605, %v1047
  %1049 = vmatmul.bf16.gmra.mxu0 %v881
  %v1050 = vpop.f32.mrf.mxu0
  %v1051 = vadd.f32 %v608, %v1050
  %v1052 = vpop.f32.mrf.mxu0
  %v1053 = vadd.f32 %v610, %v1052
  %1054 = vdwg.mxu0
  %s1055 = scalar_lea.vmem %s0, 512
  %v1056 = vld [vmem:[%s1055] sm:$0xf]
  %v1057 = vld [vmem:[%s1055 + $0x4] sm:$0xf]
  %v1058 = vld [vmem:[%s1055 + $0x8] sm:$0xf]
  %v1059 = vld [vmem:[%s1055 + $0xc] sm:$0xf]
  %v1060 = vld [vmem:[%s1055 + $0x10] sm:$0xf]
  %v1061 = vld [vmem:[%s1055 + $0x14] sm:$0xf]
  %v1062 = vld [vmem:[%s1055 + $0x18] sm:$0xf]
  %v1063 = vld [vmem:[%s1055 + $0x1c] sm:$0xf]
  %v1064 = vld [vmem:[%s1055 + $0x20] sm:$0xf]
  %v1065 = vld [vmem:[%s1055 + $0x24] sm:$0xf]
  %v1066 = vld [vmem:[%s1055 + $0x28] sm:$0xf]
  %v1067 = vld [vmem:[%s1055 + $0x2c] sm:$0xf]
  %v1068 = vld [vmem:[%s1055 + $0x30] sm:$0xf]
  %v1069 = vld [vmem:[%s1055 + $0x34] sm:$0xf]
  %v1070 = vld [vmem:[%s1055 + $0x38] sm:$0xf]
  %v1071 = vld [vmem:[%s1055 + $0x3c] sm:$0xf]
  %v1072 = vld [vmem:[%s1055 + $0x40] sm:$0xf]
  %v1073 = vld [vmem:[%s1055 + $0x44] sm:$0xf]
  %v1074 = vld [vmem:[%s1055 + $0x48] sm:$0xf]
  %v1075 = vld [vmem:[%s1055 + $0x4c] sm:$0xf]
  %v1076 = vld [vmem:[%s1055 + $0x50] sm:$0xf]
  %v1077 = vld [vmem:[%s1055 + $0x54] sm:$0xf]
  %v1078 = vld [vmem:[%s1055 + $0x58] sm:$0xf]
  %v1079 = vld [vmem:[%s1055 + $0x5c] sm:$0xf]
  %v1080 = vld [vmem:[%s1055 + $0x60] sm:$0xf]
  %v1081 = vld [vmem:[%s1055 + $0x64] sm:$0xf]
  %v1082 = vld [vmem:[%s1055 + $0x68] sm:$0xf]
  %v1083 = vld [vmem:[%s1055 + $0x6c] sm:$0xf]
  %v1084 = vld [vmem:[%s1055 + $0x70] sm:$0xf]
  %v1085 = vld [vmem:[%s1055 + $0x74] sm:$0xf]
  %v1086 = vld [vmem:[%s1055 + $0x78] sm:$0xf]
  %v1087 = vld [vmem:[%s1055 + $0x7c] sm:$0xf]
  %v1088 = vld [vmem:[%s1055 + $0x80] sm:$0xf]
  %v1089 = vld [vmem:[%s1055 + $0x84] sm:$0xf]
  %v1090 = vld [vmem:[%s1055 + $0x88] sm:$0xf]
  %v1091 = vld [vmem:[%s1055 + $0x8c] sm:$0xf]
  %v1092 = vld [vmem:[%s1055 + $0x90] sm:$0xf]
  %v1093 = vld [vmem:[%s1055 + $0x94] sm:$0xf]
  %v1094 = vld [vmem:[%s1055 + $0x98] sm:$0xf]
  %v1095 = vld [vmem:[%s1055 + $0x9c] sm:$0xf]
  %v1096 = vld [vmem:[%s1055 + $0xa0] sm:$0xf]
  %v1097 = vld [vmem:[%s1055 + $0xa4] sm:$0xf]
  %v1098 = vld [vmem:[%s1055 + $0xa8] sm:$0xf]
  %v1099 = vld [vmem:[%s1055 + $0xac] sm:$0xf]
  %v1100 = vld [vmem:[%s1055 + $0xb0] sm:$0xf]
  %v1101 = vld [vmem:[%s1055 + $0xb4] sm:$0xf]
  %v1102 = vld [vmem:[%s1055 + $0xb8] sm:$0xf]
  %v1103 = vld [vmem:[%s1055 + $0xbc] sm:$0xf]
  %v1104 = vld [vmem:[%s1055 + $0xc0] sm:$0xf]
  %v1105 = vld [vmem:[%s1055 + $0xc4] sm:$0xf]
  %v1106 = vld [vmem:[%s1055 + $0xc8] sm:$0xf]
  %v1107 = vld [vmem:[%s1055 + $0xcc] sm:$0xf]
  %v1108 = vld [vmem:[%s1055 + $0xd0] sm:$0xf]
  %v1109 = vld [vmem:[%s1055 + $0xd4] sm:$0xf]
  %v1110 = vld [vmem:[%s1055 + $0xd8] sm:$0xf]
  %v1111 = vld [vmem:[%s1055 + $0xdc] sm:$0xf]
  %v1112 = vld [vmem:[%s1055 + $0xe0] sm:$0xf]
  %v1113 = vld [vmem:[%s1055 + $0xe4] sm:$0xf]
  %v1114 = vld [vmem:[%s1055 + $0xe8] sm:$0xf]
  %v1115 = vld [vmem:[%s1055 + $0xec] sm:$0xf]
  %v1116 = vld [vmem:[%s1055 + $0xf0] sm:$0xf]
  %v1117 = vld [vmem:[%s1055 + $0xf4] sm:$0xf]
  %v1118 = vld [vmem:[%s1055 + $0xf8] sm:$0xf]
  %v1119 = vld [vmem:[%s1055 + $0xfc] sm:$0xf]
  %v1184 = vunpack.c.l.b16 %v1056
  %v1185 = vunpack.c.l.b16 %v1057
  %v1186 = vunpack.c.l.b16 %v1058
  %v1187 = vunpack.c.l.b16 %v1059
  %v1188 = vunpack.c.l.b16 %v1060
  %v1189 = vunpack.c.l.b16 %v1061
  %v1190 = vunpack.c.l.b16 %v1062
  %v1191 = vunpack.c.l.b16 %v1063
  %v1192 = vunpack.c.l.b16 %v1064
  %v1193 = vunpack.c.l.b16 %v1065
  %v1194 = vunpack.c.l.b16 %v1066
  %v1195 = vunpack.c.l.b16 %v1067
  %v1196 = vunpack.c.l.b16 %v1068
  %v1197 = vunpack.c.l.b16 %v1069
  %v1198 = vunpack.c.l.b16 %v1070
  %v1199 = vunpack.c.l.b16 %v1071
  %v1200 = vunpack.c.l.b16 %v1072
  %v1201 = vunpack.c.l.b16 %v1073
  %v1202 = vunpack.c.l.b16 %v1074
  %v1203 = vunpack.c.l.b16 %v1075
  %v1204 = vunpack.c.l.b16 %v1076
  %v1205 = vunpack.c.l.b16 %v1077
  %v1206 = vunpack.c.l.b16 %v1078
  %v1207 = vunpack.c.l.b16 %v1079
  %v1208 = vunpack.c.l.b16 %v1080
  %v1209 = vunpack.c.l.b16 %v1081
  %v1210 = vunpack.c.l.b16 %v1082
  %v1211 = vunpack.c.l.b16 %v1083
  %v1212 = vunpack.c.l.b16 %v1084
  %v1213 = vunpack.c.l.b16 %v1085
  %v1214 = vunpack.c.l.b16 %v1086
  %v1215 = vunpack.c.l.b16 %v1087
  %v1216 = vunpack.c.l.b16 %v1088
  %v1217 = vunpack.c.l.b16 %v1089
  %v1218 = vunpack.c.l.b16 %v1090
  %v1219 = vunpack.c.l.b16 %v1091
  %v1220 = vunpack.c.l.b16 %v1092
  %v1221 = vunpack.c.l.b16 %v1093
  %v1222 = vunpack.c.l.b16 %v1094
  %v1223 = vunpack.c.l.b16 %v1095
  %v1224 = vunpack.c.l.b16 %v1096
  %v1225 = vunpack.c.l.b16 %v1097
  %v1226 = vunpack.c.l.b16 %v1098
  %v1227 = vunpack.c.l.b16 %v1099
  %v1228 = vunpack.c.l.b16 %v1100
  %v1229 = vunpack.c.l.b16 %v1101
  %v1230 = vunpack.c.l.b16 %v1102
  %v1231 = vunpack.c.l.b16 %v1103
  %v1232 = vunpack.c.l.b16 %v1104
  %v1233 = vunpack.c.l.b16 %v1105
  %v1234 = vunpack.c.l.b16 %v1106
  %v1235 = vunpack.c.l.b16 %v1107
  %v1236 = vunpack.c.l.b16 %v1108
  %v1237 = vunpack.c.l.b16 %v1109
  %v1238 = vunpack.c.l.b16 %v1110
  %v1239 = vunpack.c.l.b16 %v1111
  %v1240 = vunpack.c.l.b16 %v1112
  %v1241 = vunpack.c.l.b16 %v1113
  %v1242 = vunpack.c.l.b16 %v1114
  %v1243 = vunpack.c.l.b16 %v1115
  %v1244 = vunpack.c.l.b16 %v1116
  %v1245 = vunpack.c.l.b16 %v1117
  %v1246 = vunpack.c.l.b16 %v1118
  %v1247 = vunpack.c.l.b16 %v1119
  %v1248 = vpack.c.b16 %v1185, %v1184
  %v1249 = vpack.c.b16 %v1187, %v1186
  %v1250 = vpack.c.b16 %v1189, %v1188
  %v1251 = vpack.c.b16 %v1191, %v1190
  %v1252 = vpack.c.b16 %v1193, %v1192
  %v1253 = vpack.c.b16 %v1195, %v1194
  %v1254 = vpack.c.b16 %v1197, %v1196
  %v1255 = vpack.c.b16 %v1199, %v1198
  %v1256 = vpack.c.b16 %v1201, %v1200
  %v1257 = vpack.c.b16 %v1203, %v1202
  %v1258 = vpack.c.b16 %v1205, %v1204
  %v1259 = vpack.c.b16 %v1207, %v1206
  %v1260 = vpack.c.b16 %v1209, %v1208
  %v1261 = vpack.c.b16 %v1211, %v1210
  %v1262 = vpack.c.b16 %v1213, %v1212
  %v1263 = vpack.c.b16 %v1215, %v1214
  %v1264 = vpack.c.b16 %v1217, %v1216
  %v1265 = vpack.c.b16 %v1219, %v1218
  %v1266 = vpack.c.b16 %v1221, %v1220
  %v1267 = vpack.c.b16 %v1223, %v1222
  %v1268 = vpack.c.b16 %v1225, %v1224
  %v1269 = vpack.c.b16 %v1227, %v1226
  %v1270 = vpack.c.b16 %v1229, %v1228
  %v1271 = vpack.c.b16 %v1231, %v1230
  %v1272 = vpack.c.b16 %v1233, %v1232
  %v1273 = vpack.c.b16 %v1235, %v1234
  %v1274 = vpack.c.b16 %v1237, %v1236
  %v1275 = vpack.c.b16 %v1239, %v1238
  %v1276 = vpack.c.b16 %v1241, %v1240
  %v1277 = vpack.c.b16 %v1243, %v1242
  %v1278 = vpack.c.b16 %v1245, %v1244
  %v1279 = vpack.c.b16 %v1247, %v1246
  %v1285 = vunpack.c.l.b16 %v33
  %v1286 = vunpack.c.l.b16 %v34
  %v1287 = vunpack.c.l.b16 %v35
  %v1288 = vunpack.c.l.b16 %v36
  %v1289 = vunpack.c.l.b16 %v37
  %v1290 = vpack.c.b16 %v1286, %v1285
  %v1291 = vpack.c.b16 %v1288, %v1287
  %v1292 = vpack.c.b16 %v1289, %v1289
  %v1296 = vsel %vm342, %v1248, 0
  %v1299 = vsel %vm342, %v1249, 0
  %v1302 = vsel %vm342, %v1250, 0
  %v1305 = vsel %vm342, %v1251, 0
  %v1308 = vsel %vm342, %v1252, 0
  %v1311 = vsel %vm342, %v1253, 0
  %v1314 = vsel %vm342, %v1254, 0
  %v1317 = vsel %vm342, %v1255, 0
  %v1320 = vsel %vm342, %v1256, 0
  %v1323 = vsel %vm342, %v1257, 0
  %v1326 = vsel %vm342, %v1258, 0
  %v1329 = vsel %vm342, %v1259, 0
  %v1332 = vsel %vm342, %v1260, 0
  %v1335 = vsel %vm342, %v1261, 0
  %v1338 = vsel %vm342, %v1262, 0
  %v1341 = vsel %vm342, %v1263, 0
  %v1344 = vsel %vm342, %v1264, 0
  %v1347 = vsel %vm342, %v1265, 0
  %v1350 = vsel %vm342, %v1266, 0
  %v1353 = vsel %vm342, %v1267, 0
  %v1356 = vsel %vm342, %v1268, 0
  %v1359 = vsel %vm342, %v1269, 0
  %v1362 = vsel %vm342, %v1270, 0
  %v1365 = vsel %vm342, %v1271, 0
  %v1368 = vsel %vm342, %v1272, 0
  %v1371 = vsel %vm342, %v1273, 0
  %v1374 = vsel %vm342, %v1274, 0
  %v1377 = vsel %vm342, %v1275, 0
  %v1380 = vsel %vm342, %v1276, 0
  %v1383 = vsel %vm342, %v1277, 0
  %v1386 = vsel %vm342, %v1278, 0
  %v1389 = vsel %vm342, %v1279, 0
  %v1392 = vsel %vm439, %v1292, 0
  %1394 = vmatpush.bf16.msra.mxu0 0
  %1395 = vmatpush.bf16.msra.mxu0 0
  %1396 = vmatpush.bf16.msra.mxu0 0
  %1397 = vmatpush.bf16.msra.mxu0 0
  %1398 = vmatpush.bf16.msra.mxu0 0
  %1399 = vmatpush.bf16.msra.mxu0 %v1392
  %1400 = vmatpush.bf16.msra.mxu0 %v1291
  %1401 = vmatpush.bf16.msra.mxu0 %v1290
  %1402 = vmatmul.bf16.gmra.mxu0 %v1296
  %v1403 = vpop.f32.mrf.mxu0
  %v1404 = vadd.f32 0.0, %v1403
  %v1405 = vpop.f32.mrf.mxu0
  %v1406 = vadd.f32 0.0, %v1405
  %1407 = vmatmul.bf16.gmra.mxu0 %v1299
  %v1408 = vpop.f32.mrf.mxu0
  %v1409 = vadd.f32 0.0, %v1408
  %v1410 = vpop.f32.mrf.mxu0
  %v1411 = vadd.f32 0.0, %v1410
  %1412 = vmatmul.bf16.gmra.mxu0 %v1302
  %v1413 = vpop.f32.mrf.mxu0
  %v1414 = vadd.f32 0.0, %v1413
  %v1415 = vpop.f32.mrf.mxu0
  %v1416 = vadd.f32 0.0, %v1415
  %1417 = vmatmul.bf16.gmra.mxu0 %v1305
  %v1418 = vpop.f32.mrf.mxu0
  %v1419 = vadd.f32 0.0, %v1418
  %v1420 = vpop.f32.mrf.mxu0
  %v1421 = vadd.f32 0.0, %v1420
  %1422 = vmatmul.bf16.gmra.mxu0 %v1308
  %v1423 = vpop.f32.mrf.mxu0
  %v1424 = vadd.f32 0.0, %v1423
  %v1425 = vpop.f32.mrf.mxu0
  %v1426 = vadd.f32 0.0, %v1425
  %1427 = vmatmul.bf16.gmra.mxu0 %v1311
  %v1428 = vpop.f32.mrf.mxu0
  %v1429 = vadd.f32 0.0, %v1428
  %v1430 = vpop.f32.mrf.mxu0
  %v1431 = vadd.f32 0.0, %v1430
  %1432 = vmatmul.bf16.gmra.mxu0 %v1314
  %v1433 = vpop.f32.mrf.mxu0
  %v1434 = vadd.f32 0.0, %v1433
  %v1435 = vpop.f32.mrf.mxu0
  %v1436 = vadd.f32 0.0, %v1435
  %1437 = vmatmul.bf16.gmra.mxu0 %v1317
  %v1438 = vpop.f32.mrf.mxu0
  %v1439 = vadd.f32 0.0, %v1438
  %v1440 = vpop.f32.mrf.mxu0
  %v1441 = vadd.f32 0.0, %v1440
  %1442 = vmatmul.bf16.gmra.mxu0 %v1320
  %v1443 = vpop.f32.mrf.mxu0
  %v1444 = vadd.f32 0.0, %v1443
  %v1445 = vpop.f32.mrf.mxu0
  %v1446 = vadd.f32 0.0, %v1445
  %1447 = vmatmul.bf16.gmra.mxu0 %v1323
  %v1448 = vpop.f32.mrf.mxu0
  %v1449 = vadd.f32 0.0, %v1448
  %v1450 = vpop.f32.mrf.mxu0
  %v1451 = vadd.f32 0.0, %v1450
  %1452 = vmatmul.bf16.gmra.mxu0 %v1326
  %v1453 = vpop.f32.mrf.mxu0
  %v1454 = vadd.f32 0.0, %v1453
  %v1455 = vpop.f32.mrf.mxu0
  %v1456 = vadd.f32 0.0, %v1455
  %1457 = vmatmul.bf16.gmra.mxu0 %v1329
  %v1458 = vpop.f32.mrf.mxu0
  %v1459 = vadd.f32 0.0, %v1458
  %v1460 = vpop.f32.mrf.mxu0
  %v1461 = vadd.f32 0.0, %v1460
  %1462 = vmatmul.bf16.gmra.mxu0 %v1332
  %v1463 = vpop.f32.mrf.mxu0
  %v1464 = vadd.f32 0.0, %v1463
  %v1465 = vpop.f32.mrf.mxu0
  %v1466 = vadd.f32 0.0, %v1465
  %1467 = vmatmul.bf16.gmra.mxu0 %v1335
  %v1468 = vpop.f32.mrf.mxu0
  %v1469 = vadd.f32 0.0, %v1468
  %v1470 = vpop.f32.mrf.mxu0
  %v1471 = vadd.f32 0.0, %v1470
  %1472 = vmatmul.bf16.gmra.mxu0 %v1338
  %v1473 = vpop.f32.mrf.mxu0
  %v1474 = vadd.f32 0.0, %v1473
  %v1475 = vpop.f32.mrf.mxu0
  %v1476 = vadd.f32 0.0, %v1475
  %1477 = vmatmul.bf16.gmra.mxu0 %v1341
  %v1478 = vpop.f32.mrf.mxu0
  %v1479 = vadd.f32 0.0, %v1478
  %v1480 = vpop.f32.mrf.mxu0
  %v1481 = vadd.f32 0.0, %v1480
  %1482 = vmatmul.bf16.gmra.mxu0 %v1344
  %v1483 = vpop.f32.mrf.mxu0
  %v1484 = vadd.f32 0.0, %v1483
  %v1485 = vpop.f32.mrf.mxu0
  %v1486 = vadd.f32 0.0, %v1485
  %1487 = vmatmul.bf16.gmra.mxu0 %v1347
  %v1488 = vpop.f32.mrf.mxu0
  %v1489 = vadd.f32 0.0, %v1488
  %v1490 = vpop.f32.mrf.mxu0
  %v1491 = vadd.f32 0.0, %v1490
  %1492 = vmatmul.bf16.gmra.mxu0 %v1350
  %v1493 = vpop.f32.mrf.mxu0
  %v1494 = vadd.f32 0.0, %v1493
  %v1495 = vpop.f32.mrf.mxu0
  %v1496 = vadd.f32 0.0, %v1495
  %1497 = vmatmul.bf16.gmra.mxu0 %v1353
  %v1498 = vpop.f32.mrf.mxu0
  %v1499 = vadd.f32 0.0, %v1498
  %v1500 = vpop.f32.mrf.mxu0
  %v1501 = vadd.f32 0.0, %v1500
  %1502 = vmatmul.bf16.gmra.mxu0 %v1356
  %v1503 = vpop.f32.mrf.mxu0
  %v1504 = vadd.f32 0.0, %v1503
  %v1505 = vpop.f32.mrf.mxu0
  %v1506 = vadd.f32 0.0, %v1505
  %1507 = vmatmul.bf16.gmra.mxu0 %v1359
  %v1508 = vpop.f32.mrf.mxu0
  %v1509 = vadd.f32 0.0, %v1508
  %v1510 = vpop.f32.mrf.mxu0
  %v1511 = vadd.f32 0.0, %v1510
  %1512 = vmatmul.bf16.gmra.mxu0 %v1362
  %v1513 = vpop.f32.mrf.mxu0
  %v1514 = vadd.f32 0.0, %v1513
  %v1515 = vpop.f32.mrf.mxu0
  %v1516 = vadd.f32 0.0, %v1515
  %1517 = vmatmul.bf16.gmra.mxu0 %v1365
  %v1518 = vpop.f32.mrf.mxu0
  %v1519 = vadd.f32 0.0, %v1518
  %v1520 = vpop.f32.mrf.mxu0
  %v1521 = vadd.f32 0.0, %v1520
  %1522 = vmatmul.bf16.gmra.mxu0 %v1368
  %v1523 = vpop.f32.mrf.mxu0
  %v1524 = vadd.f32 0.0, %v1523
  %v1525 = vpop.f32.mrf.mxu0
  %v1526 = vadd.f32 0.0, %v1525
  %1527 = vmatmul.bf16.gmra.mxu0 %v1371
  %v1528 = vpop.f32.mrf.mxu0
  %v1529 = vadd.f32 0.0, %v1528
  %v1530 = vpop.f32.mrf.mxu0
  %v1531 = vadd.f32 0.0, %v1530
  %1532 = vmatmul.bf16.gmra.mxu0 %v1374
  %v1533 = vpop.f32.mrf.mxu0
  %v1534 = vadd.f32 0.0, %v1533
  %v1535 = vpop.f32.mrf.mxu0
  %v1536 = vadd.f32 0.0, %v1535
  %1537 = vmatmul.bf16.gmra.mxu0 %v1377
  %v1538 = vpop.f32.mrf.mxu0
  %v1539 = vadd.f32 0.0, %v1538
  %v1540 = vpop.f32.mrf.mxu0
  %v1541 = vadd.f32 0.0, %v1540
  %1542 = vmatmul.bf16.gmra.mxu0 %v1380
  %v1543 = vpop.f32.mrf.mxu0
  %v1544 = vadd.f32 0.0, %v1543
  %v1545 = vpop.f32.mrf.mxu0
  %v1546 = vadd.f32 0.0, %v1545
  %1547 = vmatmul.bf16.gmra.mxu0 %v1383
  %v1548 = vpop.f32.mrf.mxu0
  %v1549 = vadd.f32 0.0, %v1548
  %v1550 = vpop.f32.mrf.mxu0
  %v1551 = vadd.f32 0.0, %v1550
  %1552 = vmatmul.bf16.gmra.mxu0 %v1386
  %v1553 = vpop.f32.mrf.mxu0
  %v1554 = vadd.f32 0.0, %v1553
  %v1555 = vpop.f32.mrf.mxu0
  %v1556 = vadd.f32 0.0, %v1555
  %1557 = vmatmul.bf16.gmra.mxu0 %v1389
  %v1558 = vpop.f32.mrf.mxu0
  %v1559 = vadd.f32 0.0, %v1558
  %v1560 = vpop.f32.mrf.mxu0
  %v1561 = vadd.f32 0.0, %v1560
  %1562 = vdwg.mxu0
  %v1563 = vadd.f32 %v896, %v1404
  %v1564 = vadd.f32 %v898, %v1406
  %v1565 = vadd.f32 %v901, %v1409
  %v1566 = vadd.f32 %v903, %v1411
  %v1567 = vadd.f32 %v906, %v1414
  %v1568 = vadd.f32 %v908, %v1416
  %v1569 = vadd.f32 %v911, %v1419
  %v1570 = vadd.f32 %v913, %v1421
  %v1571 = vadd.f32 %v916, %v1424
  %v1572 = vadd.f32 %v918, %v1426
  %v1573 = vadd.f32 %v921, %v1429
  %v1574 = vadd.f32 %v923, %v1431
  %v1575 = vadd.f32 %v926, %v1434
  %v1576 = vadd.f32 %v928, %v1436
  %v1577 = vadd.f32 %v931, %v1439
  %v1578 = vadd.f32 %v933, %v1441
  %v1579 = vadd.f32 %v936, %v1444
  %v1580 = vadd.f32 %v938, %v1446
  %v1581 = vadd.f32 %v941, %v1449
  %v1582 = vadd.f32 %v943, %v1451
  %v1583 = vadd.f32 %v946, %v1454
  %v1584 = vadd.f32 %v948, %v1456
  %v1585 = vadd.f32 %v951, %v1459
  %v1586 = vadd.f32 %v953, %v1461
  %v1587 = vadd.f32 %v956, %v1464
  %v1588 = vadd.f32 %v958, %v1466
  %v1589 = vadd.f32 %v961, %v1469
  %v1590 = vadd.f32 %v963, %v1471
  %v1591 = vadd.f32 %v966, %v1474
  %v1592 = vadd.f32 %v968, %v1476
  %v1593 = vadd.f32 %v971, %v1479
  %v1594 = vadd.f32 %v973, %v1481
  %v1595 = vadd.f32 %v976, %v1484
  %v1596 = vadd.f32 %v978, %v1486
  %v1597 = vadd.f32 %v981, %v1489
  %v1598 = vadd.f32 %v983, %v1491
  %v1599 = vadd.f32 %v986, %v1494
  %v1600 = vadd.f32 %v988, %v1496
  %v1601 = vadd.f32 %v991, %v1499
  %v1602 = vadd.f32 %v993, %v1501
  %v1603 = vadd.f32 %v996, %v1504
  %v1604 = vadd.f32 %v998, %v1506
  %v1605 = vadd.f32 %v1001, %v1509
  %v1606 = vadd.f32 %v1003, %v1511
  %v1607 = vadd.f32 %v1006, %v1514
  %v1608 = vadd.f32 %v1008, %v1516
  %v1609 = vadd.f32 %v1011, %v1519
  %v1610 = vadd.f32 %v1013, %v1521
  %v1611 = vadd.f32 %v1016, %v1524
  %v1612 = vadd.f32 %v1018, %v1526
  %v1613 = vadd.f32 %v1021, %v1529
  %v1614 = vadd.f32 %v1023, %v1531
  %v1615 = vadd.f32 %v1026, %v1534
  %v1616 = vadd.f32 %v1028, %v1536
  %v1617 = vadd.f32 %v1031, %v1539
  %v1618 = vadd.f32 %v1033, %v1541
  %v1619 = vadd.f32 %v1036, %v1544
  %v1620 = vadd.f32 %v1038, %v1546
  %v1621 = vadd.f32 %v1041, %v1549
  %v1622 = vadd.f32 %v1043, %v1551
  %v1623 = vadd.f32 %v1046, %v1554
  %v1624 = vadd.f32 %v1048, %v1556
  %v1625 = vadd.f32 %v1051, %v1559
  %v1626 = vadd.f32 %v1053, %v1561
  %v1627 = vadd.f32 %v1563, %v1564
  %v1628 = vadd.f32 %v1627, %v1565
  %v1629 = vadd.f32 %v1628, %v1566
  %v1630 = vadd.f32 %v1629, %v1567
  %v1631 = vadd.f32 %v1630, %v1568
  %v1632 = vadd.f32 %v1631, %v1569
  %v1633 = vadd.f32 %v1632, %v1570
  %v1634 = vrot.slane %v1633, 4
  %v1635 = vadd.f32 %v1633, %v1634
  %v1636 = vrot.slane %v1635, 2
  %v1637 = vadd.f32 %v1635, %v1636
  %v1638 = vrot.slane %v1637, 1
  %v1639 = vadd.f32 %v1637, %v1638
  %v1640 = vadd.f32 %v1571, %v1572
  %v1641 = vadd.f32 %v1640, %v1573
  %v1642 = vadd.f32 %v1641, %v1574
  %v1643 = vadd.f32 %v1642, %v1575
  %v1644 = vadd.f32 %v1643, %v1576
  %v1645 = vadd.f32 %v1644, %v1577
  %v1646 = vadd.f32 %v1645, %v1578
  %v1647 = vrot.slane %v1646, 4
  %v1648 = vadd.f32 %v1646, %v1647
  %v1649 = vrot.slane %v1648, 2
  %v1650 = vadd.f32 %v1648, %v1649
  %v1651 = vrot.slane %v1650, 1
  %v1652 = vadd.f32 %v1650, %v1651
  %v1653 = vadd.f32 %v1579, %v1580
  %v1654 = vadd.f32 %v1653, %v1581
  %v1655 = vadd.f32 %v1654, %v1582
  %v1656 = vadd.f32 %v1655, %v1583
  %v1657 = vadd.f32 %v1656, %v1584
  %v1658 = vadd.f32 %v1657, %v1585
  %v1659 = vadd.f32 %v1658, %v1586
  %v1660 = vrot.slane %v1659, 4
  %v1661 = vadd.f32 %v1659, %v1660
  %v1662 = vrot.slane %v1661, 2
  %v1663 = vadd.f32 %v1661, %v1662
  %v1664 = vrot.slane %v1663, 1
  %v1665 = vadd.f32 %v1663, %v1664
  %v1666 = vadd.f32 %v1587, %v1588
  %v1667 = vadd.f32 %v1666, %v1589
  %v1668 = vadd.f32 %v1667, %v1590
  %v1669 = vadd.f32 %v1668, %v1591
  %v1670 = vadd.f32 %v1669, %v1592
  %v1671 = vadd.f32 %v1670, %v1593
  %v1672 = vadd.f32 %v1671, %v1594
  %v1673 = vrot.slane %v1672, 4
  %v1674 = vadd.f32 %v1672, %v1673
  %v1675 = vrot.slane %v1674, 2
  %v1676 = vadd.f32 %v1674, %v1675
  %v1677 = vrot.slane %v1676, 1
  %v1678 = vadd.f32 %v1676, %v1677
  %v1679 = vadd.f32 %v1595, %v1596
  %v1680 = vadd.f32 %v1679, %v1597
  %v1681 = vadd.f32 %v1680, %v1598
  %v1682 = vadd.f32 %v1681, %v1599
  %v1683 = vadd.f32 %v1682, %v1600
  %v1684 = vadd.f32 %v1683, %v1601
  %v1685 = vadd.f32 %v1684, %v1602
  %v1686 = vrot.slane %v1685, 4
  %v1687 = vadd.f32 %v1685, %v1686
  %v1688 = vrot.slane %v1687, 2
  %v1689 = vadd.f32 %v1687, %v1688
  %v1690 = vrot.slane %v1689, 1
  %v1691 = vadd.f32 %v1689, %v1690
  %v1692 = vadd.f32 %v1603, %v1604
  %v1693 = vadd.f32 %v1692, %v1605
  %v1694 = vadd.f32 %v1693, %v1606
  %v1695 = vadd.f32 %v1694, %v1607
  %v1696 = vadd.f32 %v1695, %v1608
  %v1697 = vadd.f32 %v1696, %v1609
  %v1698 = vadd.f32 %v1697, %v1610
  %v1699 = vrot.slane %v1698, 4
  %v1700 = vadd.f32 %v1698, %v1699
  %v1701 = vrot.slane %v1700, 2
  %v1702 = vadd.f32 %v1700, %v1701
  %v1703 = vrot.slane %v1702, 1
  %v1704 = vadd.f32 %v1702, %v1703
  %v1705 = vadd.f32 %v1611, %v1612
  %v1706 = vadd.f32 %v1705, %v1613
  %v1707 = vadd.f32 %v1706, %v1614
  %v1708 = vadd.f32 %v1707, %v1615
  %v1709 = vadd.f32 %v1708, %v1616
  %v1710 = vadd.f32 %v1709, %v1617
  %v1711 = vadd.f32 %v1710, %v1618
  %v1712 = vrot.slane %v1711, 4
  %v1713 = vadd.f32 %v1711, %v1712
  %v1714 = vrot.slane %v1713, 2
  %v1715 = vadd.f32 %v1713, %v1714
  %v1716 = vrot.slane %v1715, 1
  %v1717 = vadd.f32 %v1715, %v1716
  %v1718 = vadd.f32 %v1619, %v1620
  %v1719 = vadd.f32 %v1718, %v1621
  %v1720 = vadd.f32 %v1719, %v1622
  %v1721 = vadd.f32 %v1720, %v1623
  %v1722 = vadd.f32 %v1721, %v1624
  %v1723 = vadd.f32 %v1722, %v1625
  %v1724 = vadd.f32 %v1723, %v1626
  %v1725 = vrot.slane %v1724, 4
  %v1726 = vadd.f32 %v1724, %v1725
  %v1727 = vrot.slane %v1726, 2
  %v1728 = vadd.f32 %v1726, %v1727
  %v1729 = vrot.slane %v1728, 1
  %v1730 = vadd.f32 %v1728, %v1729
  %v1731 = vadd.f32 %v1639, 0.0
  %v1732 = vadd.f32 %v1652, 0.0
  %v1733 = vadd.f32 %v1665, 0.0
  %v1734 = vadd.f32 %v1678, 0.0
  %v1735 = vadd.f32 %v1691, 0.0
  %v1736 = vadd.f32 %v1704, 0.0
  %v1737 = vadd.f32 %v1717, 0.0
  %v1738 = vadd.f32 %v1730, 0.0
  %1739 = vmatpush.bf16.msra.mxu0 0
  %1740 = vmatpush.bf16.msra.mxu0 0
  %1741 = vmatpush.bf16.msra.mxu0 0
  %1742 = vmatpush.bf16.msra.mxu0 0
  %1743 = vmatpush.bf16.msra.mxu0 0
  %1744 = vmatpush.bf16.msra.mxu0 %v441
  %1745 = vmatpush.bf16.msra.mxu0 %v338
  %1746 = vmatpush.bf16.msra.mxu0 %v337
  %1747 = vmatmul.bf16.gmra.mxu0 %v1296
  %v1748 = vpop.f32.mrf.mxu0
  %v1749 = vadd.f32 0.0, %v1748
  %v1750 = vpop.f32.mrf.mxu0
  %v1751 = vadd.f32 0.0, %v1750
  %1752 = vmatmul.bf16.gmra.mxu0 %v1299
  %v1753 = vpop.f32.mrf.mxu0
  %v1754 = vadd.f32 0.0, %v1753
  %v1755 = vpop.f32.mrf.mxu0
  %v1756 = vadd.f32 0.0, %v1755
  %1757 = vmatmul.bf16.gmra.mxu0 %v1302
  %v1758 = vpop.f32.mrf.mxu0
  %v1759 = vadd.f32 0.0, %v1758
  %v1760 = vpop.f32.mrf.mxu0
  %v1761 = vadd.f32 0.0, %v1760
  %1762 = vmatmul.bf16.gmra.mxu0 %v1305
  %v1763 = vpop.f32.mrf.mxu0
  %v1764 = vadd.f32 0.0, %v1763
  %v1765 = vpop.f32.mrf.mxu0
  %v1766 = vadd.f32 0.0, %v1765
  %1767 = vmatmul.bf16.gmra.mxu0 %v1308
  %v1768 = vpop.f32.mrf.mxu0
  %v1769 = vadd.f32 0.0, %v1768
  %v1770 = vpop.f32.mrf.mxu0
  %v1771 = vadd.f32 0.0, %v1770
  %1772 = vmatmul.bf16.gmra.mxu0 %v1311
  %v1773 = vpop.f32.mrf.mxu0
  %v1774 = vadd.f32 0.0, %v1773
  %v1775 = vpop.f32.mrf.mxu0
  %v1776 = vadd.f32 0.0, %v1775
  %1777 = vmatmul.bf16.gmra.mxu0 %v1314
  %v1778 = vpop.f32.mrf.mxu0
  %v1779 = vadd.f32 0.0, %v1778
  %v1780 = vpop.f32.mrf.mxu0
  %v1781 = vadd.f32 0.0, %v1780
  %1782 = vmatmul.bf16.gmra.mxu0 %v1317
  %v1783 = vpop.f32.mrf.mxu0
  %v1784 = vadd.f32 0.0, %v1783
  %v1785 = vpop.f32.mrf.mxu0
  %v1786 = vadd.f32 0.0, %v1785
  %1787 = vmatmul.bf16.gmra.mxu0 %v1320
  %v1788 = vpop.f32.mrf.mxu0
  %v1789 = vadd.f32 0.0, %v1788
  %v1790 = vpop.f32.mrf.mxu0
  %v1791 = vadd.f32 0.0, %v1790
  %1792 = vmatmul.bf16.gmra.mxu0 %v1323
  %v1793 = vpop.f32.mrf.mxu0
  %v1794 = vadd.f32 0.0, %v1793
  %v1795 = vpop.f32.mrf.mxu0
  %v1796 = vadd.f32 0.0, %v1795
  %1797 = vmatmul.bf16.gmra.mxu0 %v1326
  %v1798 = vpop.f32.mrf.mxu0
  %v1799 = vadd.f32 0.0, %v1798
  %v1800 = vpop.f32.mrf.mxu0
  %v1801 = vadd.f32 0.0, %v1800
  %1802 = vmatmul.bf16.gmra.mxu0 %v1329
  %v1803 = vpop.f32.mrf.mxu0
  %v1804 = vadd.f32 0.0, %v1803
  %v1805 = vpop.f32.mrf.mxu0
  %v1806 = vadd.f32 0.0, %v1805
  %1807 = vmatmul.bf16.gmra.mxu0 %v1332
  %v1808 = vpop.f32.mrf.mxu0
  %v1809 = vadd.f32 0.0, %v1808
  %v1810 = vpop.f32.mrf.mxu0
  %v1811 = vadd.f32 0.0, %v1810
  %1812 = vmatmul.bf16.gmra.mxu0 %v1335
  %v1813 = vpop.f32.mrf.mxu0
  %v1814 = vadd.f32 0.0, %v1813
  %v1815 = vpop.f32.mrf.mxu0
  %v1816 = vadd.f32 0.0, %v1815
  %1817 = vmatmul.bf16.gmra.mxu0 %v1338
  %v1818 = vpop.f32.mrf.mxu0
  %v1819 = vadd.f32 0.0, %v1818
  %v1820 = vpop.f32.mrf.mxu0
  %v1821 = vadd.f32 0.0, %v1820
  %1822 = vmatmul.bf16.gmra.mxu0 %v1341
  %v1823 = vpop.f32.mrf.mxu0
  %v1824 = vadd.f32 0.0, %v1823
  %v1825 = vpop.f32.mrf.mxu0
  %v1826 = vadd.f32 0.0, %v1825
  %1827 = vmatmul.bf16.gmra.mxu0 %v1344
  %v1828 = vpop.f32.mrf.mxu0
  %v1829 = vadd.f32 0.0, %v1828
  %v1830 = vpop.f32.mrf.mxu0
  %v1831 = vadd.f32 0.0, %v1830
  %1832 = vmatmul.bf16.gmra.mxu0 %v1347
  %v1833 = vpop.f32.mrf.mxu0
  %v1834 = vadd.f32 0.0, %v1833
  %v1835 = vpop.f32.mrf.mxu0
  %v1836 = vadd.f32 0.0, %v1835
  %1837 = vmatmul.bf16.gmra.mxu0 %v1350
  %v1838 = vpop.f32.mrf.mxu0
  %v1839 = vadd.f32 0.0, %v1838
  %v1840 = vpop.f32.mrf.mxu0
  %v1841 = vadd.f32 0.0, %v1840
  %1842 = vmatmul.bf16.gmra.mxu0 %v1353
  %v1843 = vpop.f32.mrf.mxu0
  %v1844 = vadd.f32 0.0, %v1843
  %v1845 = vpop.f32.mrf.mxu0
  %v1846 = vadd.f32 0.0, %v1845
  %1847 = vmatmul.bf16.gmra.mxu0 %v1356
  %v1848 = vpop.f32.mrf.mxu0
  %v1849 = vadd.f32 0.0, %v1848
  %v1850 = vpop.f32.mrf.mxu0
  %v1851 = vadd.f32 0.0, %v1850
  %1852 = vmatmul.bf16.gmra.mxu0 %v1359
  %v1853 = vpop.f32.mrf.mxu0
  %v1854 = vadd.f32 0.0, %v1853
  %v1855 = vpop.f32.mrf.mxu0
  %v1856 = vadd.f32 0.0, %v1855
  %1857 = vmatmul.bf16.gmra.mxu0 %v1362
  %v1858 = vpop.f32.mrf.mxu0
  %v1859 = vadd.f32 0.0, %v1858
  %v1860 = vpop.f32.mrf.mxu0
  %v1861 = vadd.f32 0.0, %v1860
  %1862 = vmatmul.bf16.gmra.mxu0 %v1365
  %v1863 = vpop.f32.mrf.mxu0
  %v1864 = vadd.f32 0.0, %v1863
  %v1865 = vpop.f32.mrf.mxu0
  %v1866 = vadd.f32 0.0, %v1865
  %1867 = vmatmul.bf16.gmra.mxu0 %v1368
  %v1868 = vpop.f32.mrf.mxu0
  %v1869 = vadd.f32 0.0, %v1868
  %v1870 = vpop.f32.mrf.mxu0
  %v1871 = vadd.f32 0.0, %v1870
  %1872 = vmatmul.bf16.gmra.mxu0 %v1371
  %v1873 = vpop.f32.mrf.mxu0
  %v1874 = vadd.f32 0.0, %v1873
  %v1875 = vpop.f32.mrf.mxu0
  %v1876 = vadd.f32 0.0, %v1875
  %1877 = vmatmul.bf16.gmra.mxu0 %v1374
  %v1878 = vpop.f32.mrf.mxu0
  %v1879 = vadd.f32 0.0, %v1878
  %v1880 = vpop.f32.mrf.mxu0
  %v1881 = vadd.f32 0.0, %v1880
  %1882 = vmatmul.bf16.gmra.mxu0 %v1377
  %v1883 = vpop.f32.mrf.mxu0
  %v1884 = vadd.f32 0.0, %v1883
  %v1885 = vpop.f32.mrf.mxu0
  %v1886 = vadd.f32 0.0, %v1885
  %1887 = vmatmul.bf16.gmra.mxu0 %v1380
  %v1888 = vpop.f32.mrf.mxu0
  %v1889 = vadd.f32 0.0, %v1888
  %v1890 = vpop.f32.mrf.mxu0
  %v1891 = vadd.f32 0.0, %v1890
  %1892 = vmatmul.bf16.gmra.mxu0 %v1383
  %v1893 = vpop.f32.mrf.mxu0
  %v1894 = vadd.f32 0.0, %v1893
  %v1895 = vpop.f32.mrf.mxu0
  %v1896 = vadd.f32 0.0, %v1895
  %1897 = vmatmul.bf16.gmra.mxu0 %v1386
  %v1898 = vpop.f32.mrf.mxu0
  %v1899 = vadd.f32 0.0, %v1898
  %v1900 = vpop.f32.mrf.mxu0
  %v1901 = vadd.f32 0.0, %v1900
  %1902 = vmatmul.bf16.gmra.mxu0 %v1389
  %v1903 = vpop.f32.mrf.mxu0
  %v1904 = vadd.f32 0.0, %v1903
  %v1905 = vpop.f32.mrf.mxu0
  %v1906 = vadd.f32 0.0, %v1905
  %1907 = vdwg.mxu0
  %1908 = vmatpush.bf16.msra.mxu0 0
  %1909 = vmatpush.bf16.msra.mxu0 0
  %1910 = vmatpush.bf16.msra.mxu0 0
  %1911 = vmatpush.bf16.msra.mxu0 0
  %1912 = vmatpush.bf16.msra.mxu0 0
  %1913 = vmatpush.bf16.msra.mxu0 %v884
  %1914 = vmatpush.bf16.msra.mxu0 %v783
  %1915 = vmatpush.bf16.msra.mxu0 %v782
  %1916 = vmatmul.bf16.gmra.mxu0 %v344
  %v1917 = vpop.f32.mrf.mxu0
  %v1918 = vadd.f32 %v1749, %v1917
  %v1919 = vpop.f32.mrf.mxu0
  %v1920 = vadd.f32 %v1751, %v1919
  %1921 = vmatmul.bf16.gmra.mxu0 %v347
  %v1922 = vpop.f32.mrf.mxu0
  %v1923 = vadd.f32 %v1754, %v1922
  %v1924 = vpop.f32.mrf.mxu0
  %v1925 = vadd.f32 %v1756, %v1924
  %1926 = vmatmul.bf16.gmra.mxu0 %v350
  %v1927 = vpop.f32.mrf.mxu0
  %v1928 = vadd.f32 %v1759, %v1927
  %v1929 = vpop.f32.mrf.mxu0
  %v1930 = vadd.f32 %v1761, %v1929
  %1931 = vmatmul.bf16.gmra.mxu0 %v353
  %v1932 = vpop.f32.mrf.mxu0
  %v1933 = vadd.f32 %v1764, %v1932
  %v1934 = vpop.f32.mrf.mxu0
  %v1935 = vadd.f32 %v1766, %v1934
  %1936 = vmatmul.bf16.gmra.mxu0 %v356
  %v1937 = vpop.f32.mrf.mxu0
  %v1938 = vadd.f32 %v1769, %v1937
  %v1939 = vpop.f32.mrf.mxu0
  %v1940 = vadd.f32 %v1771, %v1939
  %1941 = vmatmul.bf16.gmra.mxu0 %v359
  %v1942 = vpop.f32.mrf.mxu0
  %v1943 = vadd.f32 %v1774, %v1942
  %v1944 = vpop.f32.mrf.mxu0
  %v1945 = vadd.f32 %v1776, %v1944
  %1946 = vmatmul.bf16.gmra.mxu0 %v362
  %v1947 = vpop.f32.mrf.mxu0
  %v1948 = vadd.f32 %v1779, %v1947
  %v1949 = vpop.f32.mrf.mxu0
  %v1950 = vadd.f32 %v1781, %v1949
  %1951 = vmatmul.bf16.gmra.mxu0 %v365
  %v1952 = vpop.f32.mrf.mxu0
  %v1953 = vadd.f32 %v1784, %v1952
  %v1954 = vpop.f32.mrf.mxu0
  %v1955 = vadd.f32 %v1786, %v1954
  %1956 = vmatmul.bf16.gmra.mxu0 %v368
  %v1957 = vpop.f32.mrf.mxu0
  %v1958 = vadd.f32 %v1789, %v1957
  %v1959 = vpop.f32.mrf.mxu0
  %v1960 = vadd.f32 %v1791, %v1959
  %1961 = vmatmul.bf16.gmra.mxu0 %v371
  %v1962 = vpop.f32.mrf.mxu0
  %v1963 = vadd.f32 %v1794, %v1962
  %v1964 = vpop.f32.mrf.mxu0
  %v1965 = vadd.f32 %v1796, %v1964
  %1966 = vmatmul.bf16.gmra.mxu0 %v374
  %v1967 = vpop.f32.mrf.mxu0
  %v1968 = vadd.f32 %v1799, %v1967
  %v1969 = vpop.f32.mrf.mxu0
  %v1970 = vadd.f32 %v1801, %v1969
  %1971 = vmatmul.bf16.gmra.mxu0 %v377
  %v1972 = vpop.f32.mrf.mxu0
  %v1973 = vadd.f32 %v1804, %v1972
  %v1974 = vpop.f32.mrf.mxu0
  %v1975 = vadd.f32 %v1806, %v1974
  %1976 = vmatmul.bf16.gmra.mxu0 %v380
  %v1977 = vpop.f32.mrf.mxu0
  %v1978 = vadd.f32 %v1809, %v1977
  %v1979 = vpop.f32.mrf.mxu0
  %v1980 = vadd.f32 %v1811, %v1979
  %1981 = vmatmul.bf16.gmra.mxu0 %v383
  %v1982 = vpop.f32.mrf.mxu0
  %v1983 = vadd.f32 %v1814, %v1982
  %v1984 = vpop.f32.mrf.mxu0
  %v1985 = vadd.f32 %v1816, %v1984
  %1986 = vmatmul.bf16.gmra.mxu0 %v386
  %v1987 = vpop.f32.mrf.mxu0
  %v1988 = vadd.f32 %v1819, %v1987
  %v1989 = vpop.f32.mrf.mxu0
  %v1990 = vadd.f32 %v1821, %v1989
  %1991 = vmatmul.bf16.gmra.mxu0 %v389
  %v1992 = vpop.f32.mrf.mxu0
  %v1993 = vadd.f32 %v1824, %v1992
  %v1994 = vpop.f32.mrf.mxu0
  %v1995 = vadd.f32 %v1826, %v1994
  %1996 = vmatmul.bf16.gmra.mxu0 %v392
  %v1997 = vpop.f32.mrf.mxu0
  %v1998 = vadd.f32 %v1829, %v1997
  %v1999 = vpop.f32.mrf.mxu0
  %v2000 = vadd.f32 %v1831, %v1999
  %2001 = vmatmul.bf16.gmra.mxu0 %v395
  %v2002 = vpop.f32.mrf.mxu0
  %v2003 = vadd.f32 %v1834, %v2002
  %v2004 = vpop.f32.mrf.mxu0
  %v2005 = vadd.f32 %v1836, %v2004
  %2006 = vmatmul.bf16.gmra.mxu0 %v398
  %v2007 = vpop.f32.mrf.mxu0
  %v2008 = vadd.f32 %v1839, %v2007
  %v2009 = vpop.f32.mrf.mxu0
  %v2010 = vadd.f32 %v1841, %v2009
  %2011 = vmatmul.bf16.gmra.mxu0 %v401
  %v2012 = vpop.f32.mrf.mxu0
  %v2013 = vadd.f32 %v1844, %v2012
  %v2014 = vpop.f32.mrf.mxu0
  %v2015 = vadd.f32 %v1846, %v2014
  %2016 = vmatmul.bf16.gmra.mxu0 %v404
  %v2017 = vpop.f32.mrf.mxu0
  %v2018 = vadd.f32 %v1849, %v2017
  %v2019 = vpop.f32.mrf.mxu0
  %v2020 = vadd.f32 %v1851, %v2019
  %2021 = vmatmul.bf16.gmra.mxu0 %v407
  %v2022 = vpop.f32.mrf.mxu0
  %v2023 = vadd.f32 %v1854, %v2022
  %v2024 = vpop.f32.mrf.mxu0
  %v2025 = vadd.f32 %v1856, %v2024
  %2026 = vmatmul.bf16.gmra.mxu0 %v410
  %v2027 = vpop.f32.mrf.mxu0
  %v2028 = vadd.f32 %v1859, %v2027
  %v2029 = vpop.f32.mrf.mxu0
  %v2030 = vadd.f32 %v1861, %v2029
  %2031 = vmatmul.bf16.gmra.mxu0 %v413
  %v2032 = vpop.f32.mrf.mxu0
  %v2033 = vadd.f32 %v1864, %v2032
  %v2034 = vpop.f32.mrf.mxu0
  %v2035 = vadd.f32 %v1866, %v2034
  %2036 = vmatmul.bf16.gmra.mxu0 %v416
  %v2037 = vpop.f32.mrf.mxu0
  %v2038 = vadd.f32 %v1869, %v2037
  %v2039 = vpop.f32.mrf.mxu0
  %v2040 = vadd.f32 %v1871, %v2039
  %2041 = vmatmul.bf16.gmra.mxu0 %v419
  %v2042 = vpop.f32.mrf.mxu0
  %v2043 = vadd.f32 %v1874, %v2042
  %v2044 = vpop.f32.mrf.mxu0
  %v2045 = vadd.f32 %v1876, %v2044
  %2046 = vmatmul.bf16.gmra.mxu0 %v422
  %v2047 = vpop.f32.mrf.mxu0
  %v2048 = vadd.f32 %v1879, %v2047
  %v2049 = vpop.f32.mrf.mxu0
  %v2050 = vadd.f32 %v1881, %v2049
  %2051 = vmatmul.bf16.gmra.mxu0 %v425
  %v2052 = vpop.f32.mrf.mxu0
  %v2053 = vadd.f32 %v1884, %v2052
  %v2054 = vpop.f32.mrf.mxu0
  %v2055 = vadd.f32 %v1886, %v2054
  %2056 = vmatmul.bf16.gmra.mxu0 %v428
  %v2057 = vpop.f32.mrf.mxu0
  %v2058 = vadd.f32 %v1889, %v2057
  %v2059 = vpop.f32.mrf.mxu0
  %v2060 = vadd.f32 %v1891, %v2059
  %2061 = vmatmul.bf16.gmra.mxu0 %v431
  %v2062 = vpop.f32.mrf.mxu0
  %v2063 = vadd.f32 %v1894, %v2062
  %v2064 = vpop.f32.mrf.mxu0
  %v2065 = vadd.f32 %v1896, %v2064
  %2066 = vmatmul.bf16.gmra.mxu0 %v434
  %v2067 = vpop.f32.mrf.mxu0
  %v2068 = vadd.f32 %v1899, %v2067
  %v2069 = vpop.f32.mrf.mxu0
  %v2070 = vadd.f32 %v1901, %v2069
  %2071 = vmatmul.bf16.gmra.mxu0 %v437
  %v2072 = vpop.f32.mrf.mxu0
  %v2073 = vadd.f32 %v1904, %v2072
  %v2074 = vpop.f32.mrf.mxu0
  %v2075 = vadd.f32 %v1906, %v2074
  %2076 = vdwg.mxu0
  %s2077 = scalar_lea.vmem %s0, 768
  %v2078 = vld [vmem:[%s2077] sm:$0xf]
  %v2079 = vld [vmem:[%s2077 + $0x4] sm:$0xf]
  %v2080 = vld [vmem:[%s2077 + $0x8] sm:$0xf]
  %v2081 = vld [vmem:[%s2077 + $0xc] sm:$0xf]
  %v2082 = vld [vmem:[%s2077 + $0x10] sm:$0xf]
  %v2083 = vld [vmem:[%s2077 + $0x14] sm:$0xf]
  %v2084 = vld [vmem:[%s2077 + $0x18] sm:$0xf]
  %v2085 = vld [vmem:[%s2077 + $0x1c] sm:$0xf]
  %v2086 = vld [vmem:[%s2077 + $0x20] sm:$0xf]
  %v2087 = vld [vmem:[%s2077 + $0x24] sm:$0xf]
  %v2088 = vld [vmem:[%s2077 + $0x28] sm:$0xf]
  %v2089 = vld [vmem:[%s2077 + $0x2c] sm:$0xf]
  %v2090 = vld [vmem:[%s2077 + $0x30] sm:$0xf]
  %v2091 = vld [vmem:[%s2077 + $0x34] sm:$0xf]
  %v2092 = vld [vmem:[%s2077 + $0x38] sm:$0xf]
  %v2093 = vld [vmem:[%s2077 + $0x3c] sm:$0xf]
  %v2094 = vld [vmem:[%s2077 + $0x40] sm:$0xf]
  %v2095 = vld [vmem:[%s2077 + $0x44] sm:$0xf]
  %v2096 = vld [vmem:[%s2077 + $0x48] sm:$0xf]
  %v2097 = vld [vmem:[%s2077 + $0x4c] sm:$0xf]
  %v2098 = vld [vmem:[%s2077 + $0x50] sm:$0xf]
  %v2099 = vld [vmem:[%s2077 + $0x54] sm:$0xf]
  %v2100 = vld [vmem:[%s2077 + $0x58] sm:$0xf]
  %v2101 = vld [vmem:[%s2077 + $0x5c] sm:$0xf]
  %v2102 = vld [vmem:[%s2077 + $0x60] sm:$0xf]
  %v2103 = vld [vmem:[%s2077 + $0x64] sm:$0xf]
  %v2104 = vld [vmem:[%s2077 + $0x68] sm:$0xf]
  %v2105 = vld [vmem:[%s2077 + $0x6c] sm:$0xf]
  %v2106 = vld [vmem:[%s2077 + $0x70] sm:$0xf]
  %v2107 = vld [vmem:[%s2077 + $0x74] sm:$0xf]
  %v2108 = vld [vmem:[%s2077 + $0x78] sm:$0xf]
  %v2109 = vld [vmem:[%s2077 + $0x7c] sm:$0xf]
  %v2110 = vld [vmem:[%s2077 + $0x80] sm:$0xf]
  %v2111 = vld [vmem:[%s2077 + $0x84] sm:$0xf]
  %v2112 = vld [vmem:[%s2077 + $0x88] sm:$0xf]
  %v2113 = vld [vmem:[%s2077 + $0x8c] sm:$0xf]
  %v2114 = vld [vmem:[%s2077 + $0x90] sm:$0xf]
  %v2115 = vld [vmem:[%s2077 + $0x94] sm:$0xf]
  %v2116 = vld [vmem:[%s2077 + $0x98] sm:$0xf]
  %v2117 = vld [vmem:[%s2077 + $0x9c] sm:$0xf]
  %v2118 = vld [vmem:[%s2077 + $0xa0] sm:$0xf]
  %v2119 = vld [vmem:[%s2077 + $0xa4] sm:$0xf]
  %v2120 = vld [vmem:[%s2077 + $0xa8] sm:$0xf]
  %v2121 = vld [vmem:[%s2077 + $0xac] sm:$0xf]
  %v2122 = vld [vmem:[%s2077 + $0xb0] sm:$0xf]
  %v2123 = vld [vmem:[%s2077 + $0xb4] sm:$0xf]
  %v2124 = vld [vmem:[%s2077 + $0xb8] sm:$0xf]
  %v2125 = vld [vmem:[%s2077 + $0xbc] sm:$0xf]
  %v2126 = vld [vmem:[%s2077 + $0xc0] sm:$0xf]
  %v2127 = vld [vmem:[%s2077 + $0xc4] sm:$0xf]
  %v2128 = vld [vmem:[%s2077 + $0xc8] sm:$0xf]
  %v2129 = vld [vmem:[%s2077 + $0xcc] sm:$0xf]
  %v2130 = vld [vmem:[%s2077 + $0xd0] sm:$0xf]
  %v2131 = vld [vmem:[%s2077 + $0xd4] sm:$0xf]
  %v2132 = vld [vmem:[%s2077 + $0xd8] sm:$0xf]
  %v2133 = vld [vmem:[%s2077 + $0xdc] sm:$0xf]
  %v2134 = vld [vmem:[%s2077 + $0xe0] sm:$0xf]
  %v2135 = vld [vmem:[%s2077 + $0xe4] sm:$0xf]
  %v2136 = vld [vmem:[%s2077 + $0xe8] sm:$0xf]
  %v2137 = vld [vmem:[%s2077 + $0xec] sm:$0xf]
  %v2138 = vld [vmem:[%s2077 + $0xf0] sm:$0xf]
  %v2139 = vld [vmem:[%s2077 + $0xf4] sm:$0xf]
  %v2140 = vld [vmem:[%s2077 + $0xf8] sm:$0xf]
  %v2141 = vld [vmem:[%s2077 + $0xfc] sm:$0xf]
  %v2206 = vunpack.c.l.b16 %v2078
  %v2207 = vunpack.c.l.b16 %v2079
  %v2208 = vunpack.c.l.b16 %v2080
  %v2209 = vunpack.c.l.b16 %v2081
  %v2210 = vunpack.c.l.b16 %v2082
  %v2211 = vunpack.c.l.b16 %v2083
  %v2212 = vunpack.c.l.b16 %v2084
  %v2213 = vunpack.c.l.b16 %v2085
  %v2214 = vunpack.c.l.b16 %v2086
  %v2215 = vunpack.c.l.b16 %v2087
  %v2216 = vunpack.c.l.b16 %v2088
  %v2217 = vunpack.c.l.b16 %v2089
  %v2218 = vunpack.c.l.b16 %v2090
  %v2219 = vunpack.c.l.b16 %v2091
  %v2220 = vunpack.c.l.b16 %v2092
  %v2221 = vunpack.c.l.b16 %v2093
  %v2222 = vunpack.c.l.b16 %v2094
  %v2223 = vunpack.c.l.b16 %v2095
  %v2224 = vunpack.c.l.b16 %v2096
  %v2225 = vunpack.c.l.b16 %v2097
  %v2226 = vunpack.c.l.b16 %v2098
  %v2227 = vunpack.c.l.b16 %v2099
  %v2228 = vunpack.c.l.b16 %v2100
  %v2229 = vunpack.c.l.b16 %v2101
  %v2230 = vunpack.c.l.b16 %v2102
  %v2231 = vunpack.c.l.b16 %v2103
  %v2232 = vunpack.c.l.b16 %v2104
  %v2233 = vunpack.c.l.b16 %v2105
  %v2234 = vunpack.c.l.b16 %v2106
  %v2235 = vunpack.c.l.b16 %v2107
  %v2236 = vunpack.c.l.b16 %v2108
  %v2237 = vunpack.c.l.b16 %v2109
  %v2238 = vunpack.c.l.b16 %v2110
  %v2239 = vunpack.c.l.b16 %v2111
  %v2240 = vunpack.c.l.b16 %v2112
  %v2241 = vunpack.c.l.b16 %v2113
  %v2242 = vunpack.c.l.b16 %v2114
  %v2243 = vunpack.c.l.b16 %v2115
  %v2244 = vunpack.c.l.b16 %v2116
  %v2245 = vunpack.c.l.b16 %v2117
  %v2246 = vunpack.c.l.b16 %v2118
  %v2247 = vunpack.c.l.b16 %v2119
  %v2248 = vunpack.c.l.b16 %v2120
  %v2249 = vunpack.c.l.b16 %v2121
  %v2250 = vunpack.c.l.b16 %v2122
  %v2251 = vunpack.c.l.b16 %v2123
  %v2252 = vunpack.c.l.b16 %v2124
  %v2253 = vunpack.c.l.b16 %v2125
  %v2254 = vunpack.c.l.b16 %v2126
  %v2255 = vunpack.c.l.b16 %v2127
  %v2256 = vunpack.c.l.b16 %v2128
  %v2257 = vunpack.c.l.b16 %v2129
  %v2258 = vunpack.c.l.b16 %v2130
  %v2259 = vunpack.c.l.b16 %v2131
  %v2260 = vunpack.c.l.b16 %v2132
  %v2261 = vunpack.c.l.b16 %v2133
  %v2262 = vunpack.c.l.b16 %v2134
  %v2263 = vunpack.c.l.b16 %v2135
  %v2264 = vunpack.c.l.b16 %v2136
  %v2265 = vunpack.c.l.b16 %v2137
  %v2266 = vunpack.c.l.b16 %v2138
  %v2267 = vunpack.c.l.b16 %v2139
  %v2268 = vunpack.c.l.b16 %v2140
  %v2269 = vunpack.c.l.b16 %v2141
  %v2270 = vpack.c.b16 %v2207, %v2206
  %v2271 = vpack.c.b16 %v2209, %v2208
  %v2272 = vpack.c.b16 %v2211, %v2210
  %v2273 = vpack.c.b16 %v2213, %v2212
  %v2274 = vpack.c.b16 %v2215, %v2214
  %v2275 = vpack.c.b16 %v2217, %v2216
  %v2276 = vpack.c.b16 %v2219, %v2218
  %v2277 = vpack.c.b16 %v2221, %v2220
  %v2278 = vpack.c.b16 %v2223, %v2222
  %v2279 = vpack.c.b16 %v2225, %v2224
  %v2280 = vpack.c.b16 %v2227, %v2226
  %v2281 = vpack.c.b16 %v2229, %v2228
  %v2282 = vpack.c.b16 %v2231, %v2230
  %v2283 = vpack.c.b16 %v2233, %v2232
  %v2284 = vpack.c.b16 %v2235, %v2234
  %v2285 = vpack.c.b16 %v2237, %v2236
  %v2286 = vpack.c.b16 %v2239, %v2238
  %v2287 = vpack.c.b16 %v2241, %v2240
  %v2288 = vpack.c.b16 %v2243, %v2242
  %v2289 = vpack.c.b16 %v2245, %v2244
  %v2290 = vpack.c.b16 %v2247, %v2246
  %v2291 = vpack.c.b16 %v2249, %v2248
  %v2292 = vpack.c.b16 %v2251, %v2250
  %v2293 = vpack.c.b16 %v2253, %v2252
  %v2294 = vpack.c.b16 %v2255, %v2254
  %v2295 = vpack.c.b16 %v2257, %v2256
  %v2296 = vpack.c.b16 %v2259, %v2258
  %v2297 = vpack.c.b16 %v2261, %v2260
  %v2298 = vpack.c.b16 %v2263, %v2262
  %v2299 = vpack.c.b16 %v2265, %v2264
  %v2300 = vpack.c.b16 %v2267, %v2266
  %v2301 = vpack.c.b16 %v2269, %v2268
  %v2303 = vsel %vm342, %v2270, 0
  %v2306 = vsel %vm342, %v2271, 0
  %v2309 = vsel %vm342, %v2272, 0
  %v2312 = vsel %vm342, %v2273, 0
  %v2315 = vsel %vm342, %v2274, 0
  %v2318 = vsel %vm342, %v2275, 0
  %v2321 = vsel %vm342, %v2276, 0
  %v2324 = vsel %vm342, %v2277, 0
  %v2327 = vsel %vm342, %v2278, 0
  %v2330 = vsel %vm342, %v2279, 0
  %v2333 = vsel %vm342, %v2280, 0
  %v2336 = vsel %vm342, %v2281, 0
  %v2339 = vsel %vm342, %v2282, 0
  %v2342 = vsel %vm342, %v2283, 0
  %v2345 = vsel %vm342, %v2284, 0
  %v2348 = vsel %vm342, %v2285, 0
  %v2351 = vsel %vm342, %v2286, 0
  %v2354 = vsel %vm342, %v2287, 0
  %v2357 = vsel %vm342, %v2288, 0
  %v2360 = vsel %vm342, %v2289, 0
  %v2363 = vsel %vm342, %v2290, 0
  %v2366 = vsel %vm342, %v2291, 0
  %v2369 = vsel %vm342, %v2292, 0
  %v2372 = vsel %vm342, %v2293, 0
  %v2375 = vsel %vm342, %v2294, 0
  %v2378 = vsel %vm342, %v2295, 0
  %v2381 = vsel %vm342, %v2296, 0
  %v2384 = vsel %vm342, %v2297, 0
  %v2387 = vsel %vm342, %v2298, 0
  %v2390 = vsel %vm342, %v2299, 0
  %v2393 = vsel %vm342, %v2300, 0
  %v2396 = vsel %vm342, %v2301, 0
  %2398 = vmatpush.bf16.msra.mxu0 0
  %2399 = vmatpush.bf16.msra.mxu0 0
  %2400 = vmatpush.bf16.msra.mxu0 0
  %2401 = vmatpush.bf16.msra.mxu0 0
  %2402 = vmatpush.bf16.msra.mxu0 0
  %2403 = vmatpush.bf16.msra.mxu0 %v1392
  %2404 = vmatpush.bf16.msra.mxu0 %v1291
  %2405 = vmatpush.bf16.msra.mxu0 %v1290
  %2406 = vmatmul.bf16.gmra.mxu0 %v2303
  %v2407 = vpop.f32.mrf.mxu0
  %v2408 = vadd.f32 0.0, %v2407
  %v2409 = vpop.f32.mrf.mxu0
  %v2410 = vadd.f32 0.0, %v2409
  %2411 = vmatmul.bf16.gmra.mxu0 %v2306
  %v2412 = vpop.f32.mrf.mxu0
  %v2413 = vadd.f32 0.0, %v2412
  %v2414 = vpop.f32.mrf.mxu0
  %v2415 = vadd.f32 0.0, %v2414
  %2416 = vmatmul.bf16.gmra.mxu0 %v2309
  %v2417 = vpop.f32.mrf.mxu0
  %v2418 = vadd.f32 0.0, %v2417
  %v2419 = vpop.f32.mrf.mxu0
  %v2420 = vadd.f32 0.0, %v2419
  %2421 = vmatmul.bf16.gmra.mxu0 %v2312
  %v2422 = vpop.f32.mrf.mxu0
  %v2423 = vadd.f32 0.0, %v2422
  %v2424 = vpop.f32.mrf.mxu0
  %v2425 = vadd.f32 0.0, %v2424
  %2426 = vmatmul.bf16.gmra.mxu0 %v2315
  %v2427 = vpop.f32.mrf.mxu0
  %v2428 = vadd.f32 0.0, %v2427
  %v2429 = vpop.f32.mrf.mxu0
  %v2430 = vadd.f32 0.0, %v2429
  %2431 = vmatmul.bf16.gmra.mxu0 %v2318
  %v2432 = vpop.f32.mrf.mxu0
  %v2433 = vadd.f32 0.0, %v2432
  %v2434 = vpop.f32.mrf.mxu0
  %v2435 = vadd.f32 0.0, %v2434
  %2436 = vmatmul.bf16.gmra.mxu0 %v2321
  %v2437 = vpop.f32.mrf.mxu0
  %v2438 = vadd.f32 0.0, %v2437
  %v2439 = vpop.f32.mrf.mxu0
  %v2440 = vadd.f32 0.0, %v2439
  %2441 = vmatmul.bf16.gmra.mxu0 %v2324
  %v2442 = vpop.f32.mrf.mxu0
  %v2443 = vadd.f32 0.0, %v2442
  %v2444 = vpop.f32.mrf.mxu0
  %v2445 = vadd.f32 0.0, %v2444
  %2446 = vmatmul.bf16.gmra.mxu0 %v2327
  %v2447 = vpop.f32.mrf.mxu0
  %v2448 = vadd.f32 0.0, %v2447
  %v2449 = vpop.f32.mrf.mxu0
  %v2450 = vadd.f32 0.0, %v2449
  %2451 = vmatmul.bf16.gmra.mxu0 %v2330
  %v2452 = vpop.f32.mrf.mxu0
  %v2453 = vadd.f32 0.0, %v2452
  %v2454 = vpop.f32.mrf.mxu0
  %v2455 = vadd.f32 0.0, %v2454
  %2456 = vmatmul.bf16.gmra.mxu0 %v2333
  %v2457 = vpop.f32.mrf.mxu0
  %v2458 = vadd.f32 0.0, %v2457
  %v2459 = vpop.f32.mrf.mxu0
  %v2460 = vadd.f32 0.0, %v2459
  %2461 = vmatmul.bf16.gmra.mxu0 %v2336
  %v2462 = vpop.f32.mrf.mxu0
  %v2463 = vadd.f32 0.0, %v2462
  %v2464 = vpop.f32.mrf.mxu0
  %v2465 = vadd.f32 0.0, %v2464
  %2466 = vmatmul.bf16.gmra.mxu0 %v2339
  %v2467 = vpop.f32.mrf.mxu0
  %v2468 = vadd.f32 0.0, %v2467
  %v2469 = vpop.f32.mrf.mxu0
  %v2470 = vadd.f32 0.0, %v2469
  %2471 = vmatmul.bf16.gmra.mxu0 %v2342
  %v2472 = vpop.f32.mrf.mxu0
  %v2473 = vadd.f32 0.0, %v2472
  %v2474 = vpop.f32.mrf.mxu0
  %v2475 = vadd.f32 0.0, %v2474
  %2476 = vmatmul.bf16.gmra.mxu0 %v2345
  %v2477 = vpop.f32.mrf.mxu0
  %v2478 = vadd.f32 0.0, %v2477
  %v2479 = vpop.f32.mrf.mxu0
  %v2480 = vadd.f32 0.0, %v2479
  %2481 = vmatmul.bf16.gmra.mxu0 %v2348
  %v2482 = vpop.f32.mrf.mxu0
  %v2483 = vadd.f32 0.0, %v2482
  %v2484 = vpop.f32.mrf.mxu0
  %v2485 = vadd.f32 0.0, %v2484
  %2486 = vmatmul.bf16.gmra.mxu0 %v2351
  %v2487 = vpop.f32.mrf.mxu0
  %v2488 = vadd.f32 0.0, %v2487
  %v2489 = vpop.f32.mrf.mxu0
  %v2490 = vadd.f32 0.0, %v2489
  %2491 = vmatmul.bf16.gmra.mxu0 %v2354
  %v2492 = vpop.f32.mrf.mxu0
  %v2493 = vadd.f32 0.0, %v2492
  %v2494 = vpop.f32.mrf.mxu0
  %v2495 = vadd.f32 0.0, %v2494
  %2496 = vmatmul.bf16.gmra.mxu0 %v2357
  %v2497 = vpop.f32.mrf.mxu0
  %v2498 = vadd.f32 0.0, %v2497
  %v2499 = vpop.f32.mrf.mxu0
  %v2500 = vadd.f32 0.0, %v2499
  %2501 = vmatmul.bf16.gmra.mxu0 %v2360
  %v2502 = vpop.f32.mrf.mxu0
  %v2503 = vadd.f32 0.0, %v2502
  %v2504 = vpop.f32.mrf.mxu0
  %v2505 = vadd.f32 0.0, %v2504
  %2506 = vmatmul.bf16.gmra.mxu0 %v2363
  %v2507 = vpop.f32.mrf.mxu0
  %v2508 = vadd.f32 0.0, %v2507
  %v2509 = vpop.f32.mrf.mxu0
  %v2510 = vadd.f32 0.0, %v2509
  %2511 = vmatmul.bf16.gmra.mxu0 %v2366
  %v2512 = vpop.f32.mrf.mxu0
  %v2513 = vadd.f32 0.0, %v2512
  %v2514 = vpop.f32.mrf.mxu0
  %v2515 = vadd.f32 0.0, %v2514
  %2516 = vmatmul.bf16.gmra.mxu0 %v2369
  %v2517 = vpop.f32.mrf.mxu0
  %v2518 = vadd.f32 0.0, %v2517
  %v2519 = vpop.f32.mrf.mxu0
  %v2520 = vadd.f32 0.0, %v2519
  %2521 = vmatmul.bf16.gmra.mxu0 %v2372
  %v2522 = vpop.f32.mrf.mxu0
  %v2523 = vadd.f32 0.0, %v2522
  %v2524 = vpop.f32.mrf.mxu0
  %v2525 = vadd.f32 0.0, %v2524
  %2526 = vmatmul.bf16.gmra.mxu0 %v2375
  %v2527 = vpop.f32.mrf.mxu0
  %v2528 = vadd.f32 0.0, %v2527
  %v2529 = vpop.f32.mrf.mxu0
  %v2530 = vadd.f32 0.0, %v2529
  %2531 = vmatmul.bf16.gmra.mxu0 %v2378
  %v2532 = vpop.f32.mrf.mxu0
  %v2533 = vadd.f32 0.0, %v2532
  %v2534 = vpop.f32.mrf.mxu0
  %v2535 = vadd.f32 0.0, %v2534
  %2536 = vmatmul.bf16.gmra.mxu0 %v2381
  %v2537 = vpop.f32.mrf.mxu0
  %v2538 = vadd.f32 0.0, %v2537
  %v2539 = vpop.f32.mrf.mxu0
  %v2540 = vadd.f32 0.0, %v2539
  %2541 = vmatmul.bf16.gmra.mxu0 %v2384
  %v2542 = vpop.f32.mrf.mxu0
  %v2543 = vadd.f32 0.0, %v2542
  %v2544 = vpop.f32.mrf.mxu0
  %v2545 = vadd.f32 0.0, %v2544
  %2546 = vmatmul.bf16.gmra.mxu0 %v2387
  %v2547 = vpop.f32.mrf.mxu0
  %v2548 = vadd.f32 0.0, %v2547
  %v2549 = vpop.f32.mrf.mxu0
  %v2550 = vadd.f32 0.0, %v2549
  %2551 = vmatmul.bf16.gmra.mxu0 %v2390
  %v2552 = vpop.f32.mrf.mxu0
  %v2553 = vadd.f32 0.0, %v2552
  %v2554 = vpop.f32.mrf.mxu0
  %v2555 = vadd.f32 0.0, %v2554
  %2556 = vmatmul.bf16.gmra.mxu0 %v2393
  %v2557 = vpop.f32.mrf.mxu0
  %v2558 = vadd.f32 0.0, %v2557
  %v2559 = vpop.f32.mrf.mxu0
  %v2560 = vadd.f32 0.0, %v2559
  %2561 = vmatmul.bf16.gmra.mxu0 %v2396
  %v2562 = vpop.f32.mrf.mxu0
  %v2563 = vadd.f32 0.0, %v2562
  %v2564 = vpop.f32.mrf.mxu0
  %v2565 = vadd.f32 0.0, %v2564
  %2566 = vdwg.mxu0
  %v2567 = vadd.f32 %v1918, %v2408
  %v2568 = vadd.f32 %v1920, %v2410
  %v2569 = vadd.f32 %v1923, %v2413
  %v2570 = vadd.f32 %v1925, %v2415
  %v2571 = vadd.f32 %v1928, %v2418
  %v2572 = vadd.f32 %v1930, %v2420
  %v2573 = vadd.f32 %v1933, %v2423
  %v2574 = vadd.f32 %v1935, %v2425
  %v2575 = vadd.f32 %v1938, %v2428
  %v2576 = vadd.f32 %v1940, %v2430
  %v2577 = vadd.f32 %v1943, %v2433
  %v2578 = vadd.f32 %v1945, %v2435
  %v2579 = vadd.f32 %v1948, %v2438
  %v2580 = vadd.f32 %v1950, %v2440
  %v2581 = vadd.f32 %v1953, %v2443
  %v2582 = vadd.f32 %v1955, %v2445
  %v2583 = vadd.f32 %v1958, %v2448
  %v2584 = vadd.f32 %v1960, %v2450
  %v2585 = vadd.f32 %v1963, %v2453
  %v2586 = vadd.f32 %v1965, %v2455
  %v2587 = vadd.f32 %v1968, %v2458
  %v2588 = vadd.f32 %v1970, %v2460
  %v2589 = vadd.f32 %v1973, %v2463
  %v2590 = vadd.f32 %v1975, %v2465
  %v2591 = vadd.f32 %v1978, %v2468
  %v2592 = vadd.f32 %v1980, %v2470
  %v2593 = vadd.f32 %v1983, %v2473
  %v2594 = vadd.f32 %v1985, %v2475
  %v2595 = vadd.f32 %v1988, %v2478
  %v2596 = vadd.f32 %v1990, %v2480
  %v2597 = vadd.f32 %v1993, %v2483
  %v2598 = vadd.f32 %v1995, %v2485
  %v2599 = vadd.f32 %v1998, %v2488
  %v2600 = vadd.f32 %v2000, %v2490
  %v2601 = vadd.f32 %v2003, %v2493
  %v2602 = vadd.f32 %v2005, %v2495
  %v2603 = vadd.f32 %v2008, %v2498
  %v2604 = vadd.f32 %v2010, %v2500
  %v2605 = vadd.f32 %v2013, %v2503
  %v2606 = vadd.f32 %v2015, %v2505
  %v2607 = vadd.f32 %v2018, %v2508
  %v2608 = vadd.f32 %v2020, %v2510
  %v2609 = vadd.f32 %v2023, %v2513
  %v2610 = vadd.f32 %v2025, %v2515
  %v2611 = vadd.f32 %v2028, %v2518
  %v2612 = vadd.f32 %v2030, %v2520
  %v2613 = vadd.f32 %v2033, %v2523
  %v2614 = vadd.f32 %v2035, %v2525
  %v2615 = vadd.f32 %v2038, %v2528
  %v2616 = vadd.f32 %v2040, %v2530
  %v2617 = vadd.f32 %v2043, %v2533
  %v2618 = vadd.f32 %v2045, %v2535
  %v2619 = vadd.f32 %v2048, %v2538
  %v2620 = vadd.f32 %v2050, %v2540
  %v2621 = vadd.f32 %v2053, %v2543
  %v2622 = vadd.f32 %v2055, %v2545
  %v2623 = vadd.f32 %v2058, %v2548
  %v2624 = vadd.f32 %v2060, %v2550
  %v2625 = vadd.f32 %v2063, %v2553
  %v2626 = vadd.f32 %v2065, %v2555
  %v2627 = vadd.f32 %v2068, %v2558
  %v2628 = vadd.f32 %v2070, %v2560
  %v2629 = vadd.f32 %v2073, %v2563
  %v2630 = vadd.f32 %v2075, %v2565
  %v2631 = vadd.f32 %v2567, %v2568
  %v2632 = vadd.f32 %v2631, %v2569
  %v2633 = vadd.f32 %v2632, %v2570
  %v2634 = vadd.f32 %v2633, %v2571
  %v2635 = vadd.f32 %v2634, %v2572
  %v2636 = vadd.f32 %v2635, %v2573
  %v2637 = vadd.f32 %v2636, %v2574
  %v2638 = vrot.slane %v2637, 4
  %v2639 = vadd.f32 %v2637, %v2638
  %v2640 = vrot.slane %v2639, 2
  %v2641 = vadd.f32 %v2639, %v2640
  %v2642 = vrot.slane %v2641, 1
  %v2643 = vadd.f32 %v2641, %v2642
  %v2644 = vadd.f32 %v2575, %v2576
  %v2645 = vadd.f32 %v2644, %v2577
  %v2646 = vadd.f32 %v2645, %v2578
  %v2647 = vadd.f32 %v2646, %v2579
  %v2648 = vadd.f32 %v2647, %v2580
  %v2649 = vadd.f32 %v2648, %v2581
  %v2650 = vadd.f32 %v2649, %v2582
  %v2651 = vrot.slane %v2650, 4
  %v2652 = vadd.f32 %v2650, %v2651
  %v2653 = vrot.slane %v2652, 2
  %v2654 = vadd.f32 %v2652, %v2653
  %v2655 = vrot.slane %v2654, 1
  %v2656 = vadd.f32 %v2654, %v2655
  %v2657 = vadd.f32 %v2583, %v2584
  %v2658 = vadd.f32 %v2657, %v2585
  %v2659 = vadd.f32 %v2658, %v2586
  %v2660 = vadd.f32 %v2659, %v2587
  %v2661 = vadd.f32 %v2660, %v2588
  %v2662 = vadd.f32 %v2661, %v2589
  %v2663 = vadd.f32 %v2662, %v2590
  %v2664 = vrot.slane %v2663, 4
  %v2665 = vadd.f32 %v2663, %v2664
  %v2666 = vrot.slane %v2665, 2
  %v2667 = vadd.f32 %v2665, %v2666
  %v2668 = vrot.slane %v2667, 1
  %v2669 = vadd.f32 %v2667, %v2668
  %v2670 = vadd.f32 %v2591, %v2592
  %v2671 = vadd.f32 %v2670, %v2593
  %v2672 = vadd.f32 %v2671, %v2594
  %v2673 = vadd.f32 %v2672, %v2595
  %v2674 = vadd.f32 %v2673, %v2596
  %v2675 = vadd.f32 %v2674, %v2597
  %v2676 = vadd.f32 %v2675, %v2598
  %v2677 = vrot.slane %v2676, 4
  %v2678 = vadd.f32 %v2676, %v2677
  %v2679 = vrot.slane %v2678, 2
  %v2680 = vadd.f32 %v2678, %v2679
  %v2681 = vrot.slane %v2680, 1
  %v2682 = vadd.f32 %v2680, %v2681
  %v2683 = vadd.f32 %v2599, %v2600
  %v2684 = vadd.f32 %v2683, %v2601
  %v2685 = vadd.f32 %v2684, %v2602
  %v2686 = vadd.f32 %v2685, %v2603
  %v2687 = vadd.f32 %v2686, %v2604
  %v2688 = vadd.f32 %v2687, %v2605
  %v2689 = vadd.f32 %v2688, %v2606
  %v2690 = vrot.slane %v2689, 4
  %v2691 = vadd.f32 %v2689, %v2690
  %v2692 = vrot.slane %v2691, 2
  %v2693 = vadd.f32 %v2691, %v2692
  %v2694 = vrot.slane %v2693, 1
  %v2695 = vadd.f32 %v2693, %v2694
  %v2696 = vadd.f32 %v2607, %v2608
  %v2697 = vadd.f32 %v2696, %v2609
  %v2698 = vadd.f32 %v2697, %v2610
  %v2699 = vadd.f32 %v2698, %v2611
  %v2700 = vadd.f32 %v2699, %v2612
  %v2701 = vadd.f32 %v2700, %v2613
  %v2702 = vadd.f32 %v2701, %v2614
  %v2703 = vrot.slane %v2702, 4
  %v2704 = vadd.f32 %v2702, %v2703
  %v2705 = vrot.slane %v2704, 2
  %v2706 = vadd.f32 %v2704, %v2705
  %v2707 = vrot.slane %v2706, 1
  %v2708 = vadd.f32 %v2706, %v2707
  %v2709 = vadd.f32 %v2615, %v2616
  %v2710 = vadd.f32 %v2709, %v2617
  %v2711 = vadd.f32 %v2710, %v2618
  %v2712 = vadd.f32 %v2711, %v2619
  %v2713 = vadd.f32 %v2712, %v2620
  %v2714 = vadd.f32 %v2713, %v2621
  %v2715 = vadd.f32 %v2714, %v2622
  %v2716 = vrot.slane %v2715, 4
  %v2717 = vadd.f32 %v2715, %v2716
  %v2718 = vrot.slane %v2717, 2
  %v2719 = vadd.f32 %v2717, %v2718
  %v2720 = vrot.slane %v2719, 1
  %v2721 = vadd.f32 %v2719, %v2720
  %v2722 = vadd.f32 %v2623, %v2624
  %v2723 = vadd.f32 %v2722, %v2625
  %v2724 = vadd.f32 %v2723, %v2626
  %v2725 = vadd.f32 %v2724, %v2627
  %v2726 = vadd.f32 %v2725, %v2628
  %v2727 = vadd.f32 %v2726, %v2629
  %v2728 = vadd.f32 %v2727, %v2630
  %v2729 = vrot.slane %v2728, 4
  %v2730 = vadd.f32 %v2728, %v2729
  %v2731 = vrot.slane %v2730, 2
  %v2732 = vadd.f32 %v2730, %v2731
  %v2733 = vrot.slane %v2732, 1
  %v2734 = vadd.f32 %v2732, %v2733
  %v2735 = vadd.f32 %v1731, %v2643
  %v2736 = vadd.f32 %v1732, %v2656
  %v2737 = vadd.f32 %v1733, %v2669
  %v2738 = vadd.f32 %v1734, %v2682
  %v2739 = vadd.f32 %v1735, %v2695
  %v2740 = vadd.f32 %v1736, %v2708
  %v2741 = vadd.f32 %v1737, %v2721
  %v2742 = vadd.f32 %v1738, %v2734
  %2743 = vmatpush.bf16.msra.mxu0 0
  %2744 = vmatpush.bf16.msra.mxu0 0
  %2745 = vmatpush.bf16.msra.mxu0 0
  %2746 = vmatpush.bf16.msra.mxu0 0
  %2747 = vmatpush.bf16.msra.mxu0 0
  %2748 = vmatpush.bf16.msra.mxu0 %v441
  %2749 = vmatpush.bf16.msra.mxu0 %v338
  %2750 = vmatpush.bf16.msra.mxu0 %v337
  %2751 = vmatmul.bf16.gmra.mxu0 %v2303
  %v2752 = vpop.f32.mrf.mxu0
  %v2753 = vadd.f32 0.0, %v2752
  %v2754 = vpop.f32.mrf.mxu0
  %v2755 = vadd.f32 0.0, %v2754
  %2756 = vmatmul.bf16.gmra.mxu0 %v2306
  %v2757 = vpop.f32.mrf.mxu0
  %v2758 = vadd.f32 0.0, %v2757
  %v2759 = vpop.f32.mrf.mxu0
  %v2760 = vadd.f32 0.0, %v2759
  %2761 = vmatmul.bf16.gmra.mxu0 %v2309
  %v2762 = vpop.f32.mrf.mxu0
  %v2763 = vadd.f32 0.0, %v2762
  %v2764 = vpop.f32.mrf.mxu0
  %v2765 = vadd.f32 0.0, %v2764
  %2766 = vmatmul.bf16.gmra.mxu0 %v2312
  %v2767 = vpop.f32.mrf.mxu0
  %v2768 = vadd.f32 0.0, %v2767
  %v2769 = vpop.f32.mrf.mxu0
  %v2770 = vadd.f32 0.0, %v2769
  %2771 = vmatmul.bf16.gmra.mxu0 %v2315
  %v2772 = vpop.f32.mrf.mxu0
  %v2773 = vadd.f32 0.0, %v2772
  %v2774 = vpop.f32.mrf.mxu0
  %v2775 = vadd.f32 0.0, %v2774
  %2776 = vmatmul.bf16.gmra.mxu0 %v2318
  %v2777 = vpop.f32.mrf.mxu0
  %v2778 = vadd.f32 0.0, %v2777
  %v2779 = vpop.f32.mrf.mxu0
  %v2780 = vadd.f32 0.0, %v2779
  %2781 = vmatmul.bf16.gmra.mxu0 %v2321
  %v2782 = vpop.f32.mrf.mxu0
  %v2783 = vadd.f32 0.0, %v2782
  %v2784 = vpop.f32.mrf.mxu0
  %v2785 = vadd.f32 0.0, %v2784
  %2786 = vmatmul.bf16.gmra.mxu0 %v2324
  %v2787 = vpop.f32.mrf.mxu0
  %v2788 = vadd.f32 0.0, %v2787
  %v2789 = vpop.f32.mrf.mxu0
  %v2790 = vadd.f32 0.0, %v2789
  %2791 = vmatmul.bf16.gmra.mxu0 %v2327
  %v2792 = vpop.f32.mrf.mxu0
  %v2793 = vadd.f32 0.0, %v2792
  %v2794 = vpop.f32.mrf.mxu0
  %v2795 = vadd.f32 0.0, %v2794
  %2796 = vmatmul.bf16.gmra.mxu0 %v2330
  %v2797 = vpop.f32.mrf.mxu0
  %v2798 = vadd.f32 0.0, %v2797
  %v2799 = vpop.f32.mrf.mxu0
  %v2800 = vadd.f32 0.0, %v2799
  %2801 = vmatmul.bf16.gmra.mxu0 %v2333
  %v2802 = vpop.f32.mrf.mxu0
  %v2803 = vadd.f32 0.0, %v2802
  %v2804 = vpop.f32.mrf.mxu0
  %v2805 = vadd.f32 0.0, %v2804
  %2806 = vmatmul.bf16.gmra.mxu0 %v2336
  %v2807 = vpop.f32.mrf.mxu0
  %v2808 = vadd.f32 0.0, %v2807
  %v2809 = vpop.f32.mrf.mxu0
  %v2810 = vadd.f32 0.0, %v2809
  %2811 = vmatmul.bf16.gmra.mxu0 %v2339
  %v2812 = vpop.f32.mrf.mxu0
  %v2813 = vadd.f32 0.0, %v2812
  %v2814 = vpop.f32.mrf.mxu0
  %v2815 = vadd.f32 0.0, %v2814
  %2816 = vmatmul.bf16.gmra.mxu0 %v2342
  %v2817 = vpop.f32.mrf.mxu0
  %v2818 = vadd.f32 0.0, %v2817
  %v2819 = vpop.f32.mrf.mxu0
  %v2820 = vadd.f32 0.0, %v2819
  %2821 = vmatmul.bf16.gmra.mxu0 %v2345
  %v2822 = vpop.f32.mrf.mxu0
  %v2823 = vadd.f32 0.0, %v2822
  %v2824 = vpop.f32.mrf.mxu0
  %v2825 = vadd.f32 0.0, %v2824
  %2826 = vmatmul.bf16.gmra.mxu0 %v2348
  %v2827 = vpop.f32.mrf.mxu0
  %v2828 = vadd.f32 0.0, %v2827
  %v2829 = vpop.f32.mrf.mxu0
  %v2830 = vadd.f32 0.0, %v2829
  %2831 = vmatmul.bf16.gmra.mxu0 %v2351
  %v2832 = vpop.f32.mrf.mxu0
  %v2833 = vadd.f32 0.0, %v2832
  %v2834 = vpop.f32.mrf.mxu0
  %v2835 = vadd.f32 0.0, %v2834
  %2836 = vmatmul.bf16.gmra.mxu0 %v2354
  %v2837 = vpop.f32.mrf.mxu0
  %v2838 = vadd.f32 0.0, %v2837
  %v2839 = vpop.f32.mrf.mxu0
  %v2840 = vadd.f32 0.0, %v2839
  %2841 = vmatmul.bf16.gmra.mxu0 %v2357
  %v2842 = vpop.f32.mrf.mxu0
  %v2843 = vadd.f32 0.0, %v2842
  %v2844 = vpop.f32.mrf.mxu0
  %v2845 = vadd.f32 0.0, %v2844
  %2846 = vmatmul.bf16.gmra.mxu0 %v2360
  %v2847 = vpop.f32.mrf.mxu0
  %v2848 = vadd.f32 0.0, %v2847
  %v2849 = vpop.f32.mrf.mxu0
  %v2850 = vadd.f32 0.0, %v2849
  %2851 = vmatmul.bf16.gmra.mxu0 %v2363
  %v2852 = vpop.f32.mrf.mxu0
  %v2853 = vadd.f32 0.0, %v2852
  %v2854 = vpop.f32.mrf.mxu0
  %v2855 = vadd.f32 0.0, %v2854
  %2856 = vmatmul.bf16.gmra.mxu0 %v2366
  %v2857 = vpop.f32.mrf.mxu0
  %v2858 = vadd.f32 0.0, %v2857
  %v2859 = vpop.f32.mrf.mxu0
  %v2860 = vadd.f32 0.0, %v2859
  %2861 = vmatmul.bf16.gmra.mxu0 %v2369
  %v2862 = vpop.f32.mrf.mxu0
  %v2863 = vadd.f32 0.0, %v2862
  %v2864 = vpop.f32.mrf.mxu0
  %v2865 = vadd.f32 0.0, %v2864
  %2866 = vmatmul.bf16.gmra.mxu0 %v2372
  %v2867 = vpop.f32.mrf.mxu0
  %v2868 = vadd.f32 0.0, %v2867
  %v2869 = vpop.f32.mrf.mxu0
  %v2870 = vadd.f32 0.0, %v2869
  %2871 = vmatmul.bf16.gmra.mxu0 %v2375
  %v2872 = vpop.f32.mrf.mxu0
  %v2873 = vadd.f32 0.0, %v2872
  %v2874 = vpop.f32.mrf.mxu0
  %v2875 = vadd.f32 0.0, %v2874
  %2876 = vmatmul.bf16.gmra.mxu0 %v2378
  %v2877 = vpop.f32.mrf.mxu0
  %v2878 = vadd.f32 0.0, %v2877
  %v2879 = vpop.f32.mrf.mxu0
  %v2880 = vadd.f32 0.0, %v2879
  %2881 = vmatmul.bf16.gmra.mxu0 %v2381
  %v2882 = vpop.f32.mrf.mxu0
  %v2883 = vadd.f32 0.0, %v2882
  %v2884 = vpop.f32.mrf.mxu0
  %v2885 = vadd.f32 0.0, %v2884
  %2886 = vmatmul.bf16.gmra.mxu0 %v2384
  %v2887 = vpop.f32.mrf.mxu0
  %v2888 = vadd.f32 0.0, %v2887
  %v2889 = vpop.f32.mrf.mxu0
  %v2890 = vadd.f32 0.0, %v2889
  %2891 = vmatmul.bf16.gmra.mxu0 %v2387
  %v2892 = vpop.f32.mrf.mxu0
  %v2893 = vadd.f32 0.0, %v2892
  %v2894 = vpop.f32.mrf.mxu0
  %v2895 = vadd.f32 0.0, %v2894
  %2896 = vmatmul.bf16.gmra.mxu0 %v2390
  %v2897 = vpop.f32.mrf.mxu0
  %v2898 = vadd.f32 0.0, %v2897
  %v2899 = vpop.f32.mrf.mxu0
  %v2900 = vadd.f32 0.0, %v2899
  %2901 = vmatmul.bf16.gmra.mxu0 %v2393
  %v2902 = vpop.f32.mrf.mxu0
  %v2903 = vadd.f32 0.0, %v2902
  %v2904 = vpop.f32.mrf.mxu0
  %v2905 = vadd.f32 0.0, %v2904
  %2906 = vmatmul.bf16.gmra.mxu0 %v2396
  %v2907 = vpop.f32.mrf.mxu0
  %v2908 = vadd.f32 0.0, %v2907
  %v2909 = vpop.f32.mrf.mxu0
  %v2910 = vadd.f32 0.0, %v2909
  %2911 = vdwg.mxu0
  %2912 = vmatpush.bf16.msra.mxu0 0
  %2913 = vmatpush.bf16.msra.mxu0 0
  %2914 = vmatpush.bf16.msra.mxu0 0
  %2915 = vmatpush.bf16.msra.mxu0 0
  %2916 = vmatpush.bf16.msra.mxu0 0
  %2917 = vmatpush.bf16.msra.mxu0 %v884
  %2918 = vmatpush.bf16.msra.mxu0 %v783
  %2919 = vmatpush.bf16.msra.mxu0 %v782
  %2920 = vmatmul.bf16.gmra.mxu0 %v1296
  %v2921 = vpop.f32.mrf.mxu0
  %v2922 = vadd.f32 %v2753, %v2921
  %v2923 = vpop.f32.mrf.mxu0
  %v2924 = vadd.f32 %v2755, %v2923
  %2925 = vmatmul.bf16.gmra.mxu0 %v1299
  %v2926 = vpop.f32.mrf.mxu0
  %v2927 = vadd.f32 %v2758, %v2926
  %v2928 = vpop.f32.mrf.mxu0
  %v2929 = vadd.f32 %v2760, %v2928
  %2930 = vmatmul.bf16.gmra.mxu0 %v1302
  %v2931 = vpop.f32.mrf.mxu0
  %v2932 = vadd.f32 %v2763, %v2931
  %v2933 = vpop.f32.mrf.mxu0
  %v2934 = vadd.f32 %v2765, %v2933
  %2935 = vmatmul.bf16.gmra.mxu0 %v1305
  %v2936 = vpop.f32.mrf.mxu0
  %v2937 = vadd.f32 %v2768, %v2936
  %v2938 = vpop.f32.mrf.mxu0
  %v2939 = vadd.f32 %v2770, %v2938
  %2940 = vmatmul.bf16.gmra.mxu0 %v1308
  %v2941 = vpop.f32.mrf.mxu0
  %v2942 = vadd.f32 %v2773, %v2941
  %v2943 = vpop.f32.mrf.mxu0
  %v2944 = vadd.f32 %v2775, %v2943
  %2945 = vmatmul.bf16.gmra.mxu0 %v1311
  %v2946 = vpop.f32.mrf.mxu0
  %v2947 = vadd.f32 %v2778, %v2946
  %v2948 = vpop.f32.mrf.mxu0
  %v2949 = vadd.f32 %v2780, %v2948
  %2950 = vmatmul.bf16.gmra.mxu0 %v1314
  %v2951 = vpop.f32.mrf.mxu0
  %v2952 = vadd.f32 %v2783, %v2951
  %v2953 = vpop.f32.mrf.mxu0
  %v2954 = vadd.f32 %v2785, %v2953
  %2955 = vmatmul.bf16.gmra.mxu0 %v1317
  %v2956 = vpop.f32.mrf.mxu0
  %v2957 = vadd.f32 %v2788, %v2956
  %v2958 = vpop.f32.mrf.mxu0
  %v2959 = vadd.f32 %v2790, %v2958
  %2960 = vmatmul.bf16.gmra.mxu0 %v1320
  %v2961 = vpop.f32.mrf.mxu0
  %v2962 = vadd.f32 %v2793, %v2961
  %v2963 = vpop.f32.mrf.mxu0
  %v2964 = vadd.f32 %v2795, %v2963
  %2965 = vmatmul.bf16.gmra.mxu0 %v1323
  %v2966 = vpop.f32.mrf.mxu0
  %v2967 = vadd.f32 %v2798, %v2966
  %v2968 = vpop.f32.mrf.mxu0
  %v2969 = vadd.f32 %v2800, %v2968
  %2970 = vmatmul.bf16.gmra.mxu0 %v1326
  %v2971 = vpop.f32.mrf.mxu0
  %v2972 = vadd.f32 %v2803, %v2971
  %v2973 = vpop.f32.mrf.mxu0
  %v2974 = vadd.f32 %v2805, %v2973
  %2975 = vmatmul.bf16.gmra.mxu0 %v1329
  %v2976 = vpop.f32.mrf.mxu0
  %v2977 = vadd.f32 %v2808, %v2976
  %v2978 = vpop.f32.mrf.mxu0
  %v2979 = vadd.f32 %v2810, %v2978
  %2980 = vmatmul.bf16.gmra.mxu0 %v1332
  %v2981 = vpop.f32.mrf.mxu0
  %v2982 = vadd.f32 %v2813, %v2981
  %v2983 = vpop.f32.mrf.mxu0
  %v2984 = vadd.f32 %v2815, %v2983
  %2985 = vmatmul.bf16.gmra.mxu0 %v1335
  %v2986 = vpop.f32.mrf.mxu0
  %v2987 = vadd.f32 %v2818, %v2986
  %v2988 = vpop.f32.mrf.mxu0
  %v2989 = vadd.f32 %v2820, %v2988
  %2990 = vmatmul.bf16.gmra.mxu0 %v1338
  %v2991 = vpop.f32.mrf.mxu0
  %v2992 = vadd.f32 %v2823, %v2991
  %v2993 = vpop.f32.mrf.mxu0
  %v2994 = vadd.f32 %v2825, %v2993
  %2995 = vmatmul.bf16.gmra.mxu0 %v1341
  %v2996 = vpop.f32.mrf.mxu0
  %v2997 = vadd.f32 %v2828, %v2996
  %v2998 = vpop.f32.mrf.mxu0
  %v2999 = vadd.f32 %v2830, %v2998
  %3000 = vmatmul.bf16.gmra.mxu0 %v1344
  %v3001 = vpop.f32.mrf.mxu0
  %v3002 = vadd.f32 %v2833, %v3001
  %v3003 = vpop.f32.mrf.mxu0
  %v3004 = vadd.f32 %v2835, %v3003
  %3005 = vmatmul.bf16.gmra.mxu0 %v1347
  %v3006 = vpop.f32.mrf.mxu0
  %v3007 = vadd.f32 %v2838, %v3006
  %v3008 = vpop.f32.mrf.mxu0
  %v3009 = vadd.f32 %v2840, %v3008
  %3010 = vmatmul.bf16.gmra.mxu0 %v1350
  %v3011 = vpop.f32.mrf.mxu0
  %v3012 = vadd.f32 %v2843, %v3011
  %v3013 = vpop.f32.mrf.mxu0
  %v3014 = vadd.f32 %v2845, %v3013
  %3015 = vmatmul.bf16.gmra.mxu0 %v1353
  %v3016 = vpop.f32.mrf.mxu0
  %v3017 = vadd.f32 %v2848, %v3016
  %v3018 = vpop.f32.mrf.mxu0
  %v3019 = vadd.f32 %v2850, %v3018
  %3020 = vmatmul.bf16.gmra.mxu0 %v1356
  %v3021 = vpop.f32.mrf.mxu0
  %v3022 = vadd.f32 %v2853, %v3021
  %v3023 = vpop.f32.mrf.mxu0
  %v3024 = vadd.f32 %v2855, %v3023
  %3025 = vmatmul.bf16.gmra.mxu0 %v1359
  %v3026 = vpop.f32.mrf.mxu0
  %v3027 = vadd.f32 %v2858, %v3026
  %v3028 = vpop.f32.mrf.mxu0
  %v3029 = vadd.f32 %v2860, %v3028
  %3030 = vmatmul.bf16.gmra.mxu0 %v1362
  %v3031 = vpop.f32.mrf.mxu0
  %v3032 = vadd.f32 %v2863, %v3031
  %v3033 = vpop.f32.mrf.mxu0
  %v3034 = vadd.f32 %v2865, %v3033
  %3035 = vmatmul.bf16.gmra.mxu0 %v1365
  %v3036 = vpop.f32.mrf.mxu0
  %v3037 = vadd.f32 %v2868, %v3036
  %v3038 = vpop.f32.mrf.mxu0
  %v3039 = vadd.f32 %v2870, %v3038
  %3040 = vmatmul.bf16.gmra.mxu0 %v1368
  %v3041 = vpop.f32.mrf.mxu0
  %v3042 = vadd.f32 %v2873, %v3041
  %v3043 = vpop.f32.mrf.mxu0
  %v3044 = vadd.f32 %v2875, %v3043
  %3045 = vmatmul.bf16.gmra.mxu0 %v1371
  %v3046 = vpop.f32.mrf.mxu0
  %v3047 = vadd.f32 %v2878, %v3046
  %v3048 = vpop.f32.mrf.mxu0
  %v3049 = vadd.f32 %v2880, %v3048
  %3050 = vmatmul.bf16.gmra.mxu0 %v1374
  %v3051 = vpop.f32.mrf.mxu0
  %v3052 = vadd.f32 %v2883, %v3051
  %v3053 = vpop.f32.mrf.mxu0
  %v3054 = vadd.f32 %v2885, %v3053
  %3055 = vmatmul.bf16.gmra.mxu0 %v1377
  %v3056 = vpop.f32.mrf.mxu0
  %v3057 = vadd.f32 %v2888, %v3056
  %v3058 = vpop.f32.mrf.mxu0
  %v3059 = vadd.f32 %v2890, %v3058
  %3060 = vmatmul.bf16.gmra.mxu0 %v1380
  %v3061 = vpop.f32.mrf.mxu0
  %v3062 = vadd.f32 %v2893, %v3061
  %v3063 = vpop.f32.mrf.mxu0
  %v3064 = vadd.f32 %v2895, %v3063
  %3065 = vmatmul.bf16.gmra.mxu0 %v1383
  %v3066 = vpop.f32.mrf.mxu0
  %v3067 = vadd.f32 %v2898, %v3066
  %v3068 = vpop.f32.mrf.mxu0
  %v3069 = vadd.f32 %v2900, %v3068
  %3070 = vmatmul.bf16.gmra.mxu0 %v1386
  %v3071 = vpop.f32.mrf.mxu0
  %v3072 = vadd.f32 %v2903, %v3071
  %v3073 = vpop.f32.mrf.mxu0
  %v3074 = vadd.f32 %v2905, %v3073
  %3075 = vmatmul.bf16.gmra.mxu0 %v1389
  %v3076 = vpop.f32.mrf.mxu0
  %v3077 = vadd.f32 %v2908, %v3076
  %v3078 = vpop.f32.mrf.mxu0
  %v3079 = vadd.f32 %v2910, %v3078
  %3080 = vdwg.mxu0
  %s3081 = scalar_lea.vmem %s0, 1024
  %v3082 = vld [vmem:[%s3081] sm:$0xf]
  %v3083 = vld [vmem:[%s3081 + $0x4] sm:$0xf]
  %v3084 = vld [vmem:[%s3081 + $0x8] sm:$0xf]
  %v3085 = vld [vmem:[%s3081 + $0xc] sm:$0xf]
  %v3086 = vld [vmem:[%s3081 + $0x10] sm:$0xf]
  %v3087 = vld [vmem:[%s3081 + $0x14] sm:$0xf]
  %v3088 = vld [vmem:[%s3081 + $0x18] sm:$0xf]
  %v3089 = vld [vmem:[%s3081 + $0x1c] sm:$0xf]
  %v3090 = vld [vmem:[%s3081 + $0x20] sm:$0xf]
  %v3091 = vld [vmem:[%s3081 + $0x24] sm:$0xf]
  %v3092 = vld [vmem:[%s3081 + $0x28] sm:$0xf]
  %v3093 = vld [vmem:[%s3081 + $0x2c] sm:$0xf]
  %v3094 = vld [vmem:[%s3081 + $0x30] sm:$0xf]
  %v3095 = vld [vmem:[%s3081 + $0x34] sm:$0xf]
  %v3096 = vld [vmem:[%s3081 + $0x38] sm:$0xf]
  %v3097 = vld [vmem:[%s3081 + $0x3c] sm:$0xf]
  %v3098 = vld [vmem:[%s3081 + $0x40] sm:$0xf]
  %v3099 = vld [vmem:[%s3081 + $0x44] sm:$0xf]
  %v3100 = vld [vmem:[%s3081 + $0x48] sm:$0xf]
  %v3101 = vld [vmem:[%s3081 + $0x4c] sm:$0xf]
  %v3102 = vld [vmem:[%s3081 + $0x50] sm:$0xf]
  %v3103 = vld [vmem:[%s3081 + $0x54] sm:$0xf]
  %v3104 = vld [vmem:[%s3081 + $0x58] sm:$0xf]
  %v3105 = vld [vmem:[%s3081 + $0x5c] sm:$0xf]
  %v3106 = vld [vmem:[%s3081 + $0x60] sm:$0xf]
  %v3107 = vld [vmem:[%s3081 + $0x64] sm:$0xf]
  %v3108 = vld [vmem:[%s3081 + $0x68] sm:$0xf]
  %v3109 = vld [vmem:[%s3081 + $0x6c] sm:$0xf]
  %v3110 = vld [vmem:[%s3081 + $0x70] sm:$0xf]
  %v3111 = vld [vmem:[%s3081 + $0x74] sm:$0xf]
  %v3112 = vld [vmem:[%s3081 + $0x78] sm:$0xf]
  %v3113 = vld [vmem:[%s3081 + $0x7c] sm:$0xf]
  %v3114 = vld [vmem:[%s3081 + $0x80] sm:$0xf]
  %v3115 = vld [vmem:[%s3081 + $0x84] sm:$0xf]
  %v3116 = vld [vmem:[%s3081 + $0x88] sm:$0xf]
  %v3117 = vld [vmem:[%s3081 + $0x8c] sm:$0xf]
  %v3118 = vld [vmem:[%s3081 + $0x90] sm:$0xf]
  %v3119 = vld [vmem:[%s3081 + $0x94] sm:$0xf]
  %v3120 = vld [vmem:[%s3081 + $0x98] sm:$0xf]
  %v3121 = vld [vmem:[%s3081 + $0x9c] sm:$0xf]
  %v3122 = vld [vmem:[%s3081 + $0xa0] sm:$0xf]
  %v3123 = vld [vmem:[%s3081 + $0xa4] sm:$0xf]
  %v3124 = vld [vmem:[%s3081 + $0xa8] sm:$0xf]
  %v3125 = vld [vmem:[%s3081 + $0xac] sm:$0xf]
  %v3126 = vld [vmem:[%s3081 + $0xb0] sm:$0xf]
  %v3127 = vld [vmem:[%s3081 + $0xb4] sm:$0xf]
  %v3128 = vld [vmem:[%s3081 + $0xb8] sm:$0xf]
  %v3129 = vld [vmem:[%s3081 + $0xbc] sm:$0xf]
  %v3130 = vld [vmem:[%s3081 + $0xc0] sm:$0xf]
  %v3131 = vld [vmem:[%s3081 + $0xc4] sm:$0xf]
  %v3132 = vld [vmem:[%s3081 + $0xc8] sm:$0xf]
  %v3133 = vld [vmem:[%s3081 + $0xcc] sm:$0xf]
  %v3134 = vld [vmem:[%s3081 + $0xd0] sm:$0xf]
  %v3135 = vld [vmem:[%s3081 + $0xd4] sm:$0xf]
  %v3136 = vld [vmem:[%s3081 + $0xd8] sm:$0xf]
  %v3137 = vld [vmem:[%s3081 + $0xdc] sm:$0xf]
  %v3138 = vld [vmem:[%s3081 + $0xe0] sm:$0xf]
  %v3139 = vld [vmem:[%s3081 + $0xe4] sm:$0xf]
  %v3140 = vld [vmem:[%s3081 + $0xe8] sm:$0xf]
  %v3141 = vld [vmem:[%s3081 + $0xec] sm:$0xf]
  %v3142 = vld [vmem:[%s3081 + $0xf0] sm:$0xf]
  %v3143 = vld [vmem:[%s3081 + $0xf4] sm:$0xf]
  %v3144 = vld [vmem:[%s3081 + $0xf8] sm:$0xf]
  %v3145 = vld [vmem:[%s3081 + $0xfc] sm:$0xf]
  %v3210 = vunpack.c.l.b16 %v3082
  %v3211 = vunpack.c.l.b16 %v3083
  %v3212 = vunpack.c.l.b16 %v3084
  %v3213 = vunpack.c.l.b16 %v3085
  %v3214 = vunpack.c.l.b16 %v3086
  %v3215 = vunpack.c.l.b16 %v3087
  %v3216 = vunpack.c.l.b16 %v3088
  %v3217 = vunpack.c.l.b16 %v3089
  %v3218 = vunpack.c.l.b16 %v3090
  %v3219 = vunpack.c.l.b16 %v3091
  %v3220 = vunpack.c.l.b16 %v3092
  %v3221 = vunpack.c.l.b16 %v3093
  %v3222 = vunpack.c.l.b16 %v3094
  %v3223 = vunpack.c.l.b16 %v3095
  %v3224 = vunpack.c.l.b16 %v3096
  %v3225 = vunpack.c.l.b16 %v3097
  %v3226 = vunpack.c.l.b16 %v3098
  %v3227 = vunpack.c.l.b16 %v3099
  %v3228 = vunpack.c.l.b16 %v3100
  %v3229 = vunpack.c.l.b16 %v3101
  %v3230 = vunpack.c.l.b16 %v3102
  %v3231 = vunpack.c.l.b16 %v3103
  %v3232 = vunpack.c.l.b16 %v3104
  %v3233 = vunpack.c.l.b16 %v3105
  %v3234 = vunpack.c.l.b16 %v3106
  %v3235 = vunpack.c.l.b16 %v3107
  %v3236 = vunpack.c.l.b16 %v3108
  %v3237 = vunpack.c.l.b16 %v3109
  %v3238 = vunpack.c.l.b16 %v3110
  %v3239 = vunpack.c.l.b16 %v3111
  %v3240 = vunpack.c.l.b16 %v3112
  %v3241 = vunpack.c.l.b16 %v3113
  %v3242 = vunpack.c.l.b16 %v3114
  %v3243 = vunpack.c.l.b16 %v3115
  %v3244 = vunpack.c.l.b16 %v3116
  %v3245 = vunpack.c.l.b16 %v3117
  %v3246 = vunpack.c.l.b16 %v3118
  %v3247 = vunpack.c.l.b16 %v3119
  %v3248 = vunpack.c.l.b16 %v3120
  %v3249 = vunpack.c.l.b16 %v3121
  %v3250 = vunpack.c.l.b16 %v3122
  %v3251 = vunpack.c.l.b16 %v3123
  %v3252 = vunpack.c.l.b16 %v3124
  %v3253 = vunpack.c.l.b16 %v3125
  %v3254 = vunpack.c.l.b16 %v3126
  %v3255 = vunpack.c.l.b16 %v3127
  %v3256 = vunpack.c.l.b16 %v3128
  %v3257 = vunpack.c.l.b16 %v3129
  %v3258 = vunpack.c.l.b16 %v3130
  %v3259 = vunpack.c.l.b16 %v3131
  %v3260 = vunpack.c.l.b16 %v3132
  %v3261 = vunpack.c.l.b16 %v3133
  %v3262 = vunpack.c.l.b16 %v3134
  %v3263 = vunpack.c.l.b16 %v3135
  %v3264 = vunpack.c.l.b16 %v3136
  %v3265 = vunpack.c.l.b16 %v3137
  %v3266 = vunpack.c.l.b16 %v3138
  %v3267 = vunpack.c.l.b16 %v3139
  %v3268 = vunpack.c.l.b16 %v3140
  %v3269 = vunpack.c.l.b16 %v3141
  %v3270 = vunpack.c.l.b16 %v3142
  %v3271 = vunpack.c.l.b16 %v3143
  %v3272 = vunpack.c.l.b16 %v3144
  %v3273 = vunpack.c.l.b16 %v3145
  %v3274 = vpack.c.b16 %v3211, %v3210
  %v3275 = vpack.c.b16 %v3213, %v3212
  %v3276 = vpack.c.b16 %v3215, %v3214
  %v3277 = vpack.c.b16 %v3217, %v3216
  %v3278 = vpack.c.b16 %v3219, %v3218
  %v3279 = vpack.c.b16 %v3221, %v3220
  %v3280 = vpack.c.b16 %v3223, %v3222
  %v3281 = vpack.c.b16 %v3225, %v3224
  %v3282 = vpack.c.b16 %v3227, %v3226
  %v3283 = vpack.c.b16 %v3229, %v3228
  %v3284 = vpack.c.b16 %v3231, %v3230
  %v3285 = vpack.c.b16 %v3233, %v3232
  %v3286 = vpack.c.b16 %v3235, %v3234
  %v3287 = vpack.c.b16 %v3237, %v3236
  %v3288 = vpack.c.b16 %v3239, %v3238
  %v3289 = vpack.c.b16 %v3241, %v3240
  %v3290 = vpack.c.b16 %v3243, %v3242
  %v3291 = vpack.c.b16 %v3245, %v3244
  %v3292 = vpack.c.b16 %v3247, %v3246
  %v3293 = vpack.c.b16 %v3249, %v3248
  %v3294 = vpack.c.b16 %v3251, %v3250
  %v3295 = vpack.c.b16 %v3253, %v3252
  %v3296 = vpack.c.b16 %v3255, %v3254
  %v3297 = vpack.c.b16 %v3257, %v3256
  %v3298 = vpack.c.b16 %v3259, %v3258
  %v3299 = vpack.c.b16 %v3261, %v3260
  %v3300 = vpack.c.b16 %v3263, %v3262
  %v3301 = vpack.c.b16 %v3265, %v3264
  %v3302 = vpack.c.b16 %v3267, %v3266
  %v3303 = vpack.c.b16 %v3269, %v3268
  %v3304 = vpack.c.b16 %v3271, %v3270
  %v3305 = vpack.c.b16 %v3273, %v3272
  %v3307 = vsel %vm342, %v3274, 0
  %v3310 = vsel %vm342, %v3275, 0
  %v3313 = vsel %vm342, %v3276, 0
  %v3316 = vsel %vm342, %v3277, 0
  %v3319 = vsel %vm342, %v3278, 0
  %v3322 = vsel %vm342, %v3279, 0
  %v3325 = vsel %vm342, %v3280, 0
  %v3328 = vsel %vm342, %v3281, 0
  %v3331 = vsel %vm342, %v3282, 0
  %v3334 = vsel %vm342, %v3283, 0
  %v3337 = vsel %vm342, %v3284, 0
  %v3340 = vsel %vm342, %v3285, 0
  %v3343 = vsel %vm342, %v3286, 0
  %v3346 = vsel %vm342, %v3287, 0
  %v3349 = vsel %vm342, %v3288, 0
  %v3352 = vsel %vm342, %v3289, 0
  %v3355 = vsel %vm342, %v3290, 0
  %v3358 = vsel %vm342, %v3291, 0
  %v3361 = vsel %vm342, %v3292, 0
  %v3364 = vsel %vm342, %v3293, 0
  %v3367 = vsel %vm342, %v3294, 0
  %v3370 = vsel %vm342, %v3295, 0
  %v3373 = vsel %vm342, %v3296, 0
  %v3376 = vsel %vm342, %v3297, 0
  %v3379 = vsel %vm342, %v3298, 0
  %v3382 = vsel %vm342, %v3299, 0
  %v3385 = vsel %vm342, %v3300, 0
  %v3388 = vsel %vm342, %v3301, 0
  %v3391 = vsel %vm342, %v3302, 0
  %v3394 = vsel %vm342, %v3303, 0
  %v3397 = vsel %vm342, %v3304, 0
  %v3400 = vsel %vm342, %v3305, 0
  %3402 = vmatpush.bf16.msra.mxu0 0
  %3403 = vmatpush.bf16.msra.mxu0 0
  %3404 = vmatpush.bf16.msra.mxu0 0
  %3405 = vmatpush.bf16.msra.mxu0 0
  %3406 = vmatpush.bf16.msra.mxu0 0
  %3407 = vmatpush.bf16.msra.mxu0 %v1392
  %3408 = vmatpush.bf16.msra.mxu0 %v1291
  %3409 = vmatpush.bf16.msra.mxu0 %v1290
  %3410 = vmatmul.bf16.gmra.mxu0 %v3307
  %v3411 = vpop.f32.mrf.mxu0
  %v3412 = vadd.f32 0.0, %v3411
  %v3413 = vpop.f32.mrf.mxu0
  %v3414 = vadd.f32 0.0, %v3413
  %3415 = vmatmul.bf16.gmra.mxu0 %v3310
  %v3416 = vpop.f32.mrf.mxu0
  %v3417 = vadd.f32 0.0, %v3416
  %v3418 = vpop.f32.mrf.mxu0
  %v3419 = vadd.f32 0.0, %v3418
  %3420 = vmatmul.bf16.gmra.mxu0 %v3313
  %v3421 = vpop.f32.mrf.mxu0
  %v3422 = vadd.f32 0.0, %v3421
  %v3423 = vpop.f32.mrf.mxu0
  %v3424 = vadd.f32 0.0, %v3423
  %3425 = vmatmul.bf16.gmra.mxu0 %v3316
  %v3426 = vpop.f32.mrf.mxu0
  %v3427 = vadd.f32 0.0, %v3426
  %v3428 = vpop.f32.mrf.mxu0
  %v3429 = vadd.f32 0.0, %v3428
  %3430 = vmatmul.bf16.gmra.mxu0 %v3319
  %v3431 = vpop.f32.mrf.mxu0
  %v3432 = vadd.f32 0.0, %v3431
  %v3433 = vpop.f32.mrf.mxu0
  %v3434 = vadd.f32 0.0, %v3433
  %3435 = vmatmul.bf16.gmra.mxu0 %v3322
  %v3436 = vpop.f32.mrf.mxu0
  %v3437 = vadd.f32 0.0, %v3436
  %v3438 = vpop.f32.mrf.mxu0
  %v3439 = vadd.f32 0.0, %v3438
  %3440 = vmatmul.bf16.gmra.mxu0 %v3325
  %v3441 = vpop.f32.mrf.mxu0
  %v3442 = vadd.f32 0.0, %v3441
  %v3443 = vpop.f32.mrf.mxu0
  %v3444 = vadd.f32 0.0, %v3443
  %3445 = vmatmul.bf16.gmra.mxu0 %v3328
  %v3446 = vpop.f32.mrf.mxu0
  %v3447 = vadd.f32 0.0, %v3446
  %v3448 = vpop.f32.mrf.mxu0
  %v3449 = vadd.f32 0.0, %v3448
  %3450 = vmatmul.bf16.gmra.mxu0 %v3331
  %v3451 = vpop.f32.mrf.mxu0
  %v3452 = vadd.f32 0.0, %v3451
  %v3453 = vpop.f32.mrf.mxu0
  %v3454 = vadd.f32 0.0, %v3453
  %3455 = vmatmul.bf16.gmra.mxu0 %v3334
  %v3456 = vpop.f32.mrf.mxu0
  %v3457 = vadd.f32 0.0, %v3456
  %v3458 = vpop.f32.mrf.mxu0
  %v3459 = vadd.f32 0.0, %v3458
  %3460 = vmatmul.bf16.gmra.mxu0 %v3337
  %v3461 = vpop.f32.mrf.mxu0
  %v3462 = vadd.f32 0.0, %v3461
  %v3463 = vpop.f32.mrf.mxu0
  %v3464 = vadd.f32 0.0, %v3463
  %3465 = vmatmul.bf16.gmra.mxu0 %v3340
  %v3466 = vpop.f32.mrf.mxu0
  %v3467 = vadd.f32 0.0, %v3466
  %v3468 = vpop.f32.mrf.mxu0
  %v3469 = vadd.f32 0.0, %v3468
  %3470 = vmatmul.bf16.gmra.mxu0 %v3343
  %v3471 = vpop.f32.mrf.mxu0
  %v3472 = vadd.f32 0.0, %v3471
  %v3473 = vpop.f32.mrf.mxu0
  %v3474 = vadd.f32 0.0, %v3473
  %3475 = vmatmul.bf16.gmra.mxu0 %v3346
  %v3476 = vpop.f32.mrf.mxu0
  %v3477 = vadd.f32 0.0, %v3476
  %v3478 = vpop.f32.mrf.mxu0
  %v3479 = vadd.f32 0.0, %v3478
  %3480 = vmatmul.bf16.gmra.mxu0 %v3349
  %v3481 = vpop.f32.mrf.mxu0
  %v3482 = vadd.f32 0.0, %v3481
  %v3483 = vpop.f32.mrf.mxu0
  %v3484 = vadd.f32 0.0, %v3483
  %3485 = vmatmul.bf16.gmra.mxu0 %v3352
  %v3486 = vpop.f32.mrf.mxu0
  %v3487 = vadd.f32 0.0, %v3486
  %v3488 = vpop.f32.mrf.mxu0
  %v3489 = vadd.f32 0.0, %v3488
  %3490 = vmatmul.bf16.gmra.mxu0 %v3355
  %v3491 = vpop.f32.mrf.mxu0
  %v3492 = vadd.f32 0.0, %v3491
  %v3493 = vpop.f32.mrf.mxu0
  %v3494 = vadd.f32 0.0, %v3493
  %3495 = vmatmul.bf16.gmra.mxu0 %v3358
  %v3496 = vpop.f32.mrf.mxu0
  %v3497 = vadd.f32 0.0, %v3496
  %v3498 = vpop.f32.mrf.mxu0
  %v3499 = vadd.f32 0.0, %v3498
  %3500 = vmatmul.bf16.gmra.mxu0 %v3361
  %v3501 = vpop.f32.mrf.mxu0
  %v3502 = vadd.f32 0.0, %v3501
  %v3503 = vpop.f32.mrf.mxu0
  %v3504 = vadd.f32 0.0, %v3503
  %3505 = vmatmul.bf16.gmra.mxu0 %v3364
  %v3506 = vpop.f32.mrf.mxu0
  %v3507 = vadd.f32 0.0, %v3506
  %v3508 = vpop.f32.mrf.mxu0
  %v3509 = vadd.f32 0.0, %v3508
  %3510 = vmatmul.bf16.gmra.mxu0 %v3367
  %v3511 = vpop.f32.mrf.mxu0
  %v3512 = vadd.f32 0.0, %v3511
  %v3513 = vpop.f32.mrf.mxu0
  %v3514 = vadd.f32 0.0, %v3513
  %3515 = vmatmul.bf16.gmra.mxu0 %v3370
  %v3516 = vpop.f32.mrf.mxu0
  %v3517 = vadd.f32 0.0, %v3516
  %v3518 = vpop.f32.mrf.mxu0
  %v3519 = vadd.f32 0.0, %v3518
  %3520 = vmatmul.bf16.gmra.mxu0 %v3373
  %v3521 = vpop.f32.mrf.mxu0
  %v3522 = vadd.f32 0.0, %v3521
  %v3523 = vpop.f32.mrf.mxu0
  %v3524 = vadd.f32 0.0, %v3523
  %3525 = vmatmul.bf16.gmra.mxu0 %v3376
  %v3526 = vpop.f32.mrf.mxu0
  %v3527 = vadd.f32 0.0, %v3526
  %v3528 = vpop.f32.mrf.mxu0
  %v3529 = vadd.f32 0.0, %v3528
  %3530 = vmatmul.bf16.gmra.mxu0 %v3379
  %v3531 = vpop.f32.mrf.mxu0
  %v3532 = vadd.f32 0.0, %v3531
  %v3533 = vpop.f32.mrf.mxu0
  %v3534 = vadd.f32 0.0, %v3533
  %3535 = vmatmul.bf16.gmra.mxu0 %v3382
  %v3536 = vpop.f32.mrf.mxu0
  %v3537 = vadd.f32 0.0, %v3536
  %v3538 = vpop.f32.mrf.mxu0
  %v3539 = vadd.f32 0.0, %v3538
  %3540 = vmatmul.bf16.gmra.mxu0 %v3385
  %v3541 = vpop.f32.mrf.mxu0
  %v3542 = vadd.f32 0.0, %v3541
  %v3543 = vpop.f32.mrf.mxu0
  %v3544 = vadd.f32 0.0, %v3543
  %3545 = vmatmul.bf16.gmra.mxu0 %v3388
  %v3546 = vpop.f32.mrf.mxu0
  %v3547 = vadd.f32 0.0, %v3546
  %v3548 = vpop.f32.mrf.mxu0
  %v3549 = vadd.f32 0.0, %v3548
  %3550 = vmatmul.bf16.gmra.mxu0 %v3391
  %v3551 = vpop.f32.mrf.mxu0
  %v3552 = vadd.f32 0.0, %v3551
  %v3553 = vpop.f32.mrf.mxu0
  %v3554 = vadd.f32 0.0, %v3553
  %3555 = vmatmul.bf16.gmra.mxu0 %v3394
  %v3556 = vpop.f32.mrf.mxu0
  %v3557 = vadd.f32 0.0, %v3556
  %v3558 = vpop.f32.mrf.mxu0
  %v3559 = vadd.f32 0.0, %v3558
  %3560 = vmatmul.bf16.gmra.mxu0 %v3397
  %v3561 = vpop.f32.mrf.mxu0
  %v3562 = vadd.f32 0.0, %v3561
  %v3563 = vpop.f32.mrf.mxu0
  %v3564 = vadd.f32 0.0, %v3563
  %3565 = vmatmul.bf16.gmra.mxu0 %v3400
  %v3566 = vpop.f32.mrf.mxu0
  %v3567 = vadd.f32 0.0, %v3566
  %v3568 = vpop.f32.mrf.mxu0
  %v3569 = vadd.f32 0.0, %v3568
  %3570 = vdwg.mxu0
  %v3571 = vadd.f32 %v2922, %v3412
  %v3572 = vadd.f32 %v2924, %v3414
  %v3573 = vadd.f32 %v2927, %v3417
  %v3574 = vadd.f32 %v2929, %v3419
  %v3575 = vadd.f32 %v2932, %v3422
  %v3576 = vadd.f32 %v2934, %v3424
  %v3577 = vadd.f32 %v2937, %v3427
  %v3578 = vadd.f32 %v2939, %v3429
  %v3579 = vadd.f32 %v2942, %v3432
  %v3580 = vadd.f32 %v2944, %v3434
  %v3581 = vadd.f32 %v2947, %v3437
  %v3582 = vadd.f32 %v2949, %v3439
  %v3583 = vadd.f32 %v2952, %v3442
  %v3584 = vadd.f32 %v2954, %v3444
  %v3585 = vadd.f32 %v2957, %v3447
  %v3586 = vadd.f32 %v2959, %v3449
  %v3587 = vadd.f32 %v2962, %v3452
  %v3588 = vadd.f32 %v2964, %v3454
  %v3589 = vadd.f32 %v2967, %v3457
  %v3590 = vadd.f32 %v2969, %v3459
  %v3591 = vadd.f32 %v2972, %v3462
  %v3592 = vadd.f32 %v2974, %v3464
  %v3593 = vadd.f32 %v2977, %v3467
  %v3594 = vadd.f32 %v2979, %v3469
  %v3595 = vadd.f32 %v2982, %v3472
  %v3596 = vadd.f32 %v2984, %v3474
  %v3597 = vadd.f32 %v2987, %v3477
  %v3598 = vadd.f32 %v2989, %v3479
  %v3599 = vadd.f32 %v2992, %v3482
  %v3600 = vadd.f32 %v2994, %v3484
  %v3601 = vadd.f32 %v2997, %v3487
  %v3602 = vadd.f32 %v2999, %v3489
  %v3603 = vadd.f32 %v3002, %v3492
  %v3604 = vadd.f32 %v3004, %v3494
  %v3605 = vadd.f32 %v3007, %v3497
  %v3606 = vadd.f32 %v3009, %v3499
  %v3607 = vadd.f32 %v3012, %v3502
  %v3608 = vadd.f32 %v3014, %v3504
  %v3609 = vadd.f32 %v3017, %v3507
  %v3610 = vadd.f32 %v3019, %v3509
  %v3611 = vadd.f32 %v3022, %v3512
  %v3612 = vadd.f32 %v3024, %v3514
  %v3613 = vadd.f32 %v3027, %v3517
  %v3614 = vadd.f32 %v3029, %v3519
  %v3615 = vadd.f32 %v3032, %v3522
  %v3616 = vadd.f32 %v3034, %v3524
  %v3617 = vadd.f32 %v3037, %v3527
  %v3618 = vadd.f32 %v3039, %v3529
  %v3619 = vadd.f32 %v3042, %v3532
  %v3620 = vadd.f32 %v3044, %v3534
  %v3621 = vadd.f32 %v3047, %v3537
  %v3622 = vadd.f32 %v3049, %v3539
  %v3623 = vadd.f32 %v3052, %v3542
  %v3624 = vadd.f32 %v3054, %v3544
  %v3625 = vadd.f32 %v3057, %v3547
  %v3626 = vadd.f32 %v3059, %v3549
  %v3627 = vadd.f32 %v3062, %v3552
  %v3628 = vadd.f32 %v3064, %v3554
  %v3629 = vadd.f32 %v3067, %v3557
  %v3630 = vadd.f32 %v3069, %v3559
  %v3631 = vadd.f32 %v3072, %v3562
  %v3632 = vadd.f32 %v3074, %v3564
  %v3633 = vadd.f32 %v3077, %v3567
  %v3634 = vadd.f32 %v3079, %v3569
  %v3635 = vadd.f32 %v3571, %v3572
  %v3636 = vadd.f32 %v3635, %v3573
  %v3637 = vadd.f32 %v3636, %v3574
  %v3638 = vadd.f32 %v3637, %v3575
  %v3639 = vadd.f32 %v3638, %v3576
  %v3640 = vadd.f32 %v3639, %v3577
  %v3641 = vadd.f32 %v3640, %v3578
  %v3642 = vrot.slane %v3641, 4
  %v3643 = vadd.f32 %v3641, %v3642
  %v3644 = vrot.slane %v3643, 2
  %v3645 = vadd.f32 %v3643, %v3644
  %v3646 = vrot.slane %v3645, 1
  %v3647 = vadd.f32 %v3645, %v3646
  %v3648 = vadd.f32 %v3579, %v3580
  %v3649 = vadd.f32 %v3648, %v3581
  %v3650 = vadd.f32 %v3649, %v3582
  %v3651 = vadd.f32 %v3650, %v3583
  %v3652 = vadd.f32 %v3651, %v3584
  %v3653 = vadd.f32 %v3652, %v3585
  %v3654 = vadd.f32 %v3653, %v3586
  %v3655 = vrot.slane %v3654, 4
  %v3656 = vadd.f32 %v3654, %v3655
  %v3657 = vrot.slane %v3656, 2
  %v3658 = vadd.f32 %v3656, %v3657
  %v3659 = vrot.slane %v3658, 1
  %v3660 = vadd.f32 %v3658, %v3659
  %v3661 = vadd.f32 %v3587, %v3588
  %v3662 = vadd.f32 %v3661, %v3589
  %v3663 = vadd.f32 %v3662, %v3590
  %v3664 = vadd.f32 %v3663, %v3591
  %v3665 = vadd.f32 %v3664, %v3592
  %v3666 = vadd.f32 %v3665, %v3593
  %v3667 = vadd.f32 %v3666, %v3594
  %v3668 = vrot.slane %v3667, 4
  %v3669 = vadd.f32 %v3667, %v3668
  %v3670 = vrot.slane %v3669, 2
  %v3671 = vadd.f32 %v3669, %v3670
  %v3672 = vrot.slane %v3671, 1
  %v3673 = vadd.f32 %v3671, %v3672
  %v3674 = vadd.f32 %v3595, %v3596
  %v3675 = vadd.f32 %v3674, %v3597
  %v3676 = vadd.f32 %v3675, %v3598
  %v3677 = vadd.f32 %v3676, %v3599
  %v3678 = vadd.f32 %v3677, %v3600
  %v3679 = vadd.f32 %v3678, %v3601
  %v3680 = vadd.f32 %v3679, %v3602
  %v3681 = vrot.slane %v3680, 4
  %v3682 = vadd.f32 %v3680, %v3681
  %v3683 = vrot.slane %v3682, 2
  %v3684 = vadd.f32 %v3682, %v3683
  %v3685 = vrot.slane %v3684, 1
  %v3686 = vadd.f32 %v3684, %v3685
  %v3687 = vadd.f32 %v3603, %v3604
  %v3688 = vadd.f32 %v3687, %v3605
  %v3689 = vadd.f32 %v3688, %v3606
  %v3690 = vadd.f32 %v3689, %v3607
  %v3691 = vadd.f32 %v3690, %v3608
  %v3692 = vadd.f32 %v3691, %v3609
  %v3693 = vadd.f32 %v3692, %v3610
  %v3694 = vrot.slane %v3693, 4
  %v3695 = vadd.f32 %v3693, %v3694
  %v3696 = vrot.slane %v3695, 2
  %v3697 = vadd.f32 %v3695, %v3696
  %v3698 = vrot.slane %v3697, 1
  %v3699 = vadd.f32 %v3697, %v3698
  %v3700 = vadd.f32 %v3611, %v3612
  %v3701 = vadd.f32 %v3700, %v3613
  %v3702 = vadd.f32 %v3701, %v3614
  %v3703 = vadd.f32 %v3702, %v3615
  %v3704 = vadd.f32 %v3703, %v3616
  %v3705 = vadd.f32 %v3704, %v3617
  %v3706 = vadd.f32 %v3705, %v3618
  %v3707 = vrot.slane %v3706, 4
  %v3708 = vadd.f32 %v3706, %v3707
  %v3709 = vrot.slane %v3708, 2
  %v3710 = vadd.f32 %v3708, %v3709
  %v3711 = vrot.slane %v3710, 1
  %v3712 = vadd.f32 %v3710, %v3711
  %v3713 = vadd.f32 %v3619, %v3620
  %v3714 = vadd.f32 %v3713, %v3621
  %v3715 = vadd.f32 %v3714, %v3622
  %v3716 = vadd.f32 %v3715, %v3623
  %v3717 = vadd.f32 %v3716, %v3624
  %v3718 = vadd.f32 %v3717, %v3625
  %v3719 = vadd.f32 %v3718, %v3626
  %v3720 = vrot.slane %v3719, 4
  %v3721 = vadd.f32 %v3719, %v3720
  %v3722 = vrot.slane %v3721, 2
  %v3723 = vadd.f32 %v3721, %v3722
  %v3724 = vrot.slane %v3723, 1
  %v3725 = vadd.f32 %v3723, %v3724
  %v3726 = vadd.f32 %v3627, %v3628
  %v3727 = vadd.f32 %v3726, %v3629
  %v3728 = vadd.f32 %v3727, %v3630
  %v3729 = vadd.f32 %v3728, %v3631
  %v3730 = vadd.f32 %v3729, %v3632
  %v3731 = vadd.f32 %v3730, %v3633
  %v3732 = vadd.f32 %v3731, %v3634
  %v3733 = vrot.slane %v3732, 4
  %v3734 = vadd.f32 %v3732, %v3733
  %v3735 = vrot.slane %v3734, 2
  %v3736 = vadd.f32 %v3734, %v3735
  %v3737 = vrot.slane %v3736, 1
  %v3738 = vadd.f32 %v3736, %v3737
  %v3739 = vadd.f32 %v2735, %v3647
  %v3740 = vadd.f32 %v2736, %v3660
  %v3741 = vadd.f32 %v2737, %v3673
  %v3742 = vadd.f32 %v2738, %v3686
  %v3743 = vadd.f32 %v2739, %v3699
  %v3744 = vadd.f32 %v2740, %v3712
  %v3745 = vadd.f32 %v2741, %v3725
  %v3746 = vadd.f32 %v2742, %v3738
  %3747 = vmatpush.bf16.msra.mxu0 0
  %3748 = vmatpush.bf16.msra.mxu0 0
  %3749 = vmatpush.bf16.msra.mxu0 0
  %3750 = vmatpush.bf16.msra.mxu0 0
  %3751 = vmatpush.bf16.msra.mxu0 0
  %3752 = vmatpush.bf16.msra.mxu0 %v441
  %3753 = vmatpush.bf16.msra.mxu0 %v338
  %3754 = vmatpush.bf16.msra.mxu0 %v337
  %3755 = vmatmul.bf16.gmra.mxu0 %v3307
  %v3756 = vpop.f32.mrf.mxu0
  %v3757 = vadd.f32 0.0, %v3756
  %v3758 = vpop.f32.mrf.mxu0
  %v3759 = vadd.f32 0.0, %v3758
  %3760 = vmatmul.bf16.gmra.mxu0 %v3310
  %v3761 = vpop.f32.mrf.mxu0
  %v3762 = vadd.f32 0.0, %v3761
  %v3763 = vpop.f32.mrf.mxu0
  %v3764 = vadd.f32 0.0, %v3763
  %3765 = vmatmul.bf16.gmra.mxu0 %v3313
  %v3766 = vpop.f32.mrf.mxu0
  %v3767 = vadd.f32 0.0, %v3766
  %v3768 = vpop.f32.mrf.mxu0
  %v3769 = vadd.f32 0.0, %v3768
  %3770 = vmatmul.bf16.gmra.mxu0 %v3316
  %v3771 = vpop.f32.mrf.mxu0
  %v3772 = vadd.f32 0.0, %v3771
  %v3773 = vpop.f32.mrf.mxu0
  %v3774 = vadd.f32 0.0, %v3773
  %3775 = vmatmul.bf16.gmra.mxu0 %v3319
  %v3776 = vpop.f32.mrf.mxu0
  %v3777 = vadd.f32 0.0, %v3776
  %v3778 = vpop.f32.mrf.mxu0
  %v3779 = vadd.f32 0.0, %v3778
  %3780 = vmatmul.bf16.gmra.mxu0 %v3322
  %v3781 = vpop.f32.mrf.mxu0
  %v3782 = vadd.f32 0.0, %v3781
  %v3783 = vpop.f32.mrf.mxu0
  %v3784 = vadd.f32 0.0, %v3783
  %3785 = vmatmul.bf16.gmra.mxu0 %v3325
  %v3786 = vpop.f32.mrf.mxu0
  %v3787 = vadd.f32 0.0, %v3786
  %v3788 = vpop.f32.mrf.mxu0
  %v3789 = vadd.f32 0.0, %v3788
  %3790 = vmatmul.bf16.gmra.mxu0 %v3328
  %v3791 = vpop.f32.mrf.mxu0
  %v3792 = vadd.f32 0.0, %v3791
  %v3793 = vpop.f32.mrf.mxu0
  %v3794 = vadd.f32 0.0, %v3793
  %3795 = vmatmul.bf16.gmra.mxu0 %v3331
  %v3796 = vpop.f32.mrf.mxu0
  %v3797 = vadd.f32 0.0, %v3796
  %v3798 = vpop.f32.mrf.mxu0
  %v3799 = vadd.f32 0.0, %v3798
  %3800 = vmatmul.bf16.gmra.mxu0 %v3334
  %v3801 = vpop.f32.mrf.mxu0
  %v3802 = vadd.f32 0.0, %v3801
  %v3803 = vpop.f32.mrf.mxu0
  %v3804 = vadd.f32 0.0, %v3803
  %3805 = vmatmul.bf16.gmra.mxu0 %v3337
  %v3806 = vpop.f32.mrf.mxu0
  %v3807 = vadd.f32 0.0, %v3806
  %v3808 = vpop.f32.mrf.mxu0
  %v3809 = vadd.f32 0.0, %v3808
  %3810 = vmatmul.bf16.gmra.mxu0 %v3340
  %v3811 = vpop.f32.mrf.mxu0
  %v3812 = vadd.f32 0.0, %v3811
  %v3813 = vpop.f32.mrf.mxu0
  %v3814 = vadd.f32 0.0, %v3813
  %3815 = vmatmul.bf16.gmra.mxu0 %v3343
  %v3816 = vpop.f32.mrf.mxu0
  %v3817 = vadd.f32 0.0, %v3816
  %v3818 = vpop.f32.mrf.mxu0
  %v3819 = vadd.f32 0.0, %v3818
  %3820 = vmatmul.bf16.gmra.mxu0 %v3346
  %v3821 = vpop.f32.mrf.mxu0
  %v3822 = vadd.f32 0.0, %v3821
  %v3823 = vpop.f32.mrf.mxu0
  %v3824 = vadd.f32 0.0, %v3823
  %3825 = vmatmul.bf16.gmra.mxu0 %v3349
  %v3826 = vpop.f32.mrf.mxu0
  %v3827 = vadd.f32 0.0, %v3826
  %v3828 = vpop.f32.mrf.mxu0
  %v3829 = vadd.f32 0.0, %v3828
  %3830 = vmatmul.bf16.gmra.mxu0 %v3352
  %v3831 = vpop.f32.mrf.mxu0
  %v3832 = vadd.f32 0.0, %v3831
  %v3833 = vpop.f32.mrf.mxu0
  %v3834 = vadd.f32 0.0, %v3833
  %3835 = vmatmul.bf16.gmra.mxu0 %v3355
  %v3836 = vpop.f32.mrf.mxu0
  %v3837 = vadd.f32 0.0, %v3836
  %v3838 = vpop.f32.mrf.mxu0
  %v3839 = vadd.f32 0.0, %v3838
  %3840 = vmatmul.bf16.gmra.mxu0 %v3358
  %v3841 = vpop.f32.mrf.mxu0
  %v3842 = vadd.f32 0.0, %v3841
  %v3843 = vpop.f32.mrf.mxu0
  %v3844 = vadd.f32 0.0, %v3843
  %3845 = vmatmul.bf16.gmra.mxu0 %v3361
  %v3846 = vpop.f32.mrf.mxu0
  %v3847 = vadd.f32 0.0, %v3846
  %v3848 = vpop.f32.mrf.mxu0
  %v3849 = vadd.f32 0.0, %v3848
  %3850 = vmatmul.bf16.gmra.mxu0 %v3364
  %v3851 = vpop.f32.mrf.mxu0
  %v3852 = vadd.f32 0.0, %v3851
  %v3853 = vpop.f32.mrf.mxu0
  %v3854 = vadd.f32 0.0, %v3853
  %3855 = vmatmul.bf16.gmra.mxu0 %v3367
  %v3856 = vpop.f32.mrf.mxu0
  %v3857 = vadd.f32 0.0, %v3856
  %v3858 = vpop.f32.mrf.mxu0
  %v3859 = vadd.f32 0.0, %v3858
  %3860 = vmatmul.bf16.gmra.mxu0 %v3370
  %v3861 = vpop.f32.mrf.mxu0
  %v3862 = vadd.f32 0.0, %v3861
  %v3863 = vpop.f32.mrf.mxu0
  %v3864 = vadd.f32 0.0, %v3863
  %3865 = vmatmul.bf16.gmra.mxu0 %v3373
  %v3866 = vpop.f32.mrf.mxu0
  %v3867 = vadd.f32 0.0, %v3866
  %v3868 = vpop.f32.mrf.mxu0
  %v3869 = vadd.f32 0.0, %v3868
  %3870 = vmatmul.bf16.gmra.mxu0 %v3376
  %v3871 = vpop.f32.mrf.mxu0
  %v3872 = vadd.f32 0.0, %v3871
  %v3873 = vpop.f32.mrf.mxu0
  %v3874 = vadd.f32 0.0, %v3873
  %3875 = vmatmul.bf16.gmra.mxu0 %v3379
  %v3876 = vpop.f32.mrf.mxu0
  %v3877 = vadd.f32 0.0, %v3876
  %v3878 = vpop.f32.mrf.mxu0
  %v3879 = vadd.f32 0.0, %v3878
  %3880 = vmatmul.bf16.gmra.mxu0 %v3382
  %v3881 = vpop.f32.mrf.mxu0
  %v3882 = vadd.f32 0.0, %v3881
  %v3883 = vpop.f32.mrf.mxu0
  %v3884 = vadd.f32 0.0, %v3883
  %3885 = vmatmul.bf16.gmra.mxu0 %v3385
  %v3886 = vpop.f32.mrf.mxu0
  %v3887 = vadd.f32 0.0, %v3886
  %v3888 = vpop.f32.mrf.mxu0
  %v3889 = vadd.f32 0.0, %v3888
  %3890 = vmatmul.bf16.gmra.mxu0 %v3388
  %v3891 = vpop.f32.mrf.mxu0
  %v3892 = vadd.f32 0.0, %v3891
  %v3893 = vpop.f32.mrf.mxu0
  %v3894 = vadd.f32 0.0, %v3893
  %3895 = vmatmul.bf16.gmra.mxu0 %v3391
  %v3896 = vpop.f32.mrf.mxu0
  %v3897 = vadd.f32 0.0, %v3896
  %v3898 = vpop.f32.mrf.mxu0
  %v3899 = vadd.f32 0.0, %v3898
  %3900 = vmatmul.bf16.gmra.mxu0 %v3394
  %v3901 = vpop.f32.mrf.mxu0
  %v3902 = vadd.f32 0.0, %v3901
  %v3903 = vpop.f32.mrf.mxu0
  %v3904 = vadd.f32 0.0, %v3903
  %3905 = vmatmul.bf16.gmra.mxu0 %v3397
  %v3906 = vpop.f32.mrf.mxu0
  %v3907 = vadd.f32 0.0, %v3906
  %v3908 = vpop.f32.mrf.mxu0
  %v3909 = vadd.f32 0.0, %v3908
  %3910 = vmatmul.bf16.gmra.mxu0 %v3400
  %v3911 = vpop.f32.mrf.mxu0
  %v3912 = vadd.f32 0.0, %v3911
  %v3913 = vpop.f32.mrf.mxu0
  %v3914 = vadd.f32 0.0, %v3913
  %3915 = vdwg.mxu0
  %3916 = vmatpush.bf16.msra.mxu0 0
  %3917 = vmatpush.bf16.msra.mxu0 0
  %3918 = vmatpush.bf16.msra.mxu0 0
  %3919 = vmatpush.bf16.msra.mxu0 0
  %3920 = vmatpush.bf16.msra.mxu0 0
  %3921 = vmatpush.bf16.msra.mxu0 %v884
  %3922 = vmatpush.bf16.msra.mxu0 %v783
  %3923 = vmatpush.bf16.msra.mxu0 %v782
  %3924 = vmatmul.bf16.gmra.mxu0 %v2303
  %v3925 = vpop.f32.mrf.mxu0
  %v3926 = vadd.f32 %v3757, %v3925
  %v3927 = vpop.f32.mrf.mxu0
  %v3928 = vadd.f32 %v3759, %v3927
  %3929 = vmatmul.bf16.gmra.mxu0 %v2306
  %v3930 = vpop.f32.mrf.mxu0
  %v3931 = vadd.f32 %v3762, %v3930
  %v3932 = vpop.f32.mrf.mxu0
  %v3933 = vadd.f32 %v3764, %v3932
  %3934 = vmatmul.bf16.gmra.mxu0 %v2309
  %v3935 = vpop.f32.mrf.mxu0
  %v3936 = vadd.f32 %v3767, %v3935
  %v3937 = vpop.f32.mrf.mxu0
  %v3938 = vadd.f32 %v3769, %v3937
  %3939 = vmatmul.bf16.gmra.mxu0 %v2312
  %v3940 = vpop.f32.mrf.mxu0
  %v3941 = vadd.f32 %v3772, %v3940
  %v3942 = vpop.f32.mrf.mxu0
  %v3943 = vadd.f32 %v3774, %v3942
  %3944 = vmatmul.bf16.gmra.mxu0 %v2315
  %v3945 = vpop.f32.mrf.mxu0
  %v3946 = vadd.f32 %v3777, %v3945
  %v3947 = vpop.f32.mrf.mxu0
  %v3948 = vadd.f32 %v3779, %v3947
  %3949 = vmatmul.bf16.gmra.mxu0 %v2318
  %v3950 = vpop.f32.mrf.mxu0
  %v3951 = vadd.f32 %v3782, %v3950
  %v3952 = vpop.f32.mrf.mxu0
  %v3953 = vadd.f32 %v3784, %v3952
  %3954 = vmatmul.bf16.gmra.mxu0 %v2321
  %v3955 = vpop.f32.mrf.mxu0
  %v3956 = vadd.f32 %v3787, %v3955
  %v3957 = vpop.f32.mrf.mxu0
  %v3958 = vadd.f32 %v3789, %v3957
  %3959 = vmatmul.bf16.gmra.mxu0 %v2324
  %v3960 = vpop.f32.mrf.mxu0
  %v3961 = vadd.f32 %v3792, %v3960
  %v3962 = vpop.f32.mrf.mxu0
  %v3963 = vadd.f32 %v3794, %v3962
  %3964 = vmatmul.bf16.gmra.mxu0 %v2327
  %v3965 = vpop.f32.mrf.mxu0
  %v3966 = vadd.f32 %v3797, %v3965
  %v3967 = vpop.f32.mrf.mxu0
  %v3968 = vadd.f32 %v3799, %v3967
  %3969 = vmatmul.bf16.gmra.mxu0 %v2330
  %v3970 = vpop.f32.mrf.mxu0
  %v3971 = vadd.f32 %v3802, %v3970
  %v3972 = vpop.f32.mrf.mxu0
  %v3973 = vadd.f32 %v3804, %v3972
  %3974 = vmatmul.bf16.gmra.mxu0 %v2333
  %v3975 = vpop.f32.mrf.mxu0
  %v3976 = vadd.f32 %v3807, %v3975
  %v3977 = vpop.f32.mrf.mxu0
  %v3978 = vadd.f32 %v3809, %v3977
  %3979 = vmatmul.bf16.gmra.mxu0 %v2336
  %v3980 = vpop.f32.mrf.mxu0
  %v3981 = vadd.f32 %v3812, %v3980
  %v3982 = vpop.f32.mrf.mxu0
  %v3983 = vadd.f32 %v3814, %v3982
  %3984 = vmatmul.bf16.gmra.mxu0 %v2339
  %v3985 = vpop.f32.mrf.mxu0
  %v3986 = vadd.f32 %v3817, %v3985
  %v3987 = vpop.f32.mrf.mxu0
  %v3988 = vadd.f32 %v3819, %v3987
  %3989 = vmatmul.bf16.gmra.mxu0 %v2342
  %v3990 = vpop.f32.mrf.mxu0
  %v3991 = vadd.f32 %v3822, %v3990
  %v3992 = vpop.f32.mrf.mxu0
  %v3993 = vadd.f32 %v3824, %v3992
  %3994 = vmatmul.bf16.gmra.mxu0 %v2345
  %v3995 = vpop.f32.mrf.mxu0
  %v3996 = vadd.f32 %v3827, %v3995
  %v3997 = vpop.f32.mrf.mxu0
  %v3998 = vadd.f32 %v3829, %v3997
  %3999 = vmatmul.bf16.gmra.mxu0 %v2348
  %v4000 = vpop.f32.mrf.mxu0
  %v4001 = vadd.f32 %v3832, %v4000
  %v4002 = vpop.f32.mrf.mxu0
  %v4003 = vadd.f32 %v3834, %v4002
  %4004 = vmatmul.bf16.gmra.mxu0 %v2351
  %v4005 = vpop.f32.mrf.mxu0
  %v4006 = vadd.f32 %v3837, %v4005
  %v4007 = vpop.f32.mrf.mxu0
  %v4008 = vadd.f32 %v3839, %v4007
  %4009 = vmatmul.bf16.gmra.mxu0 %v2354
  %v4010 = vpop.f32.mrf.mxu0
  %v4011 = vadd.f32 %v3842, %v4010
  %v4012 = vpop.f32.mrf.mxu0
  %v4013 = vadd.f32 %v3844, %v4012
  %4014 = vmatmul.bf16.gmra.mxu0 %v2357
  %v4015 = vpop.f32.mrf.mxu0
  %v4016 = vadd.f32 %v3847, %v4015
  %v4017 = vpop.f32.mrf.mxu0
  %v4018 = vadd.f32 %v3849, %v4017
  %4019 = vmatmul.bf16.gmra.mxu0 %v2360
  %v4020 = vpop.f32.mrf.mxu0
  %v4021 = vadd.f32 %v3852, %v4020
  %v4022 = vpop.f32.mrf.mxu0
  %v4023 = vadd.f32 %v3854, %v4022
  %4024 = vmatmul.bf16.gmra.mxu0 %v2363
  %v4025 = vpop.f32.mrf.mxu0
  %v4026 = vadd.f32 %v3857, %v4025
  %v4027 = vpop.f32.mrf.mxu0
  %v4028 = vadd.f32 %v3859, %v4027
  %4029 = vmatmul.bf16.gmra.mxu0 %v2366
  %v4030 = vpop.f32.mrf.mxu0
  %v4031 = vadd.f32 %v3862, %v4030
  %v4032 = vpop.f32.mrf.mxu0
  %v4033 = vadd.f32 %v3864, %v4032
  %4034 = vmatmul.bf16.gmra.mxu0 %v2369
  %v4035 = vpop.f32.mrf.mxu0
  %v4036 = vadd.f32 %v3867, %v4035
  %v4037 = vpop.f32.mrf.mxu0
  %v4038 = vadd.f32 %v3869, %v4037
  %4039 = vmatmul.bf16.gmra.mxu0 %v2372
  %v4040 = vpop.f32.mrf.mxu0
  %v4041 = vadd.f32 %v3872, %v4040
  %v4042 = vpop.f32.mrf.mxu0
  %v4043 = vadd.f32 %v3874, %v4042
  %4044 = vmatmul.bf16.gmra.mxu0 %v2375
  %v4045 = vpop.f32.mrf.mxu0
  %v4046 = vadd.f32 %v3877, %v4045
  %v4047 = vpop.f32.mrf.mxu0
  %v4048 = vadd.f32 %v3879, %v4047
  %4049 = vmatmul.bf16.gmra.mxu0 %v2378
  %v4050 = vpop.f32.mrf.mxu0
  %v4051 = vadd.f32 %v3882, %v4050
  %v4052 = vpop.f32.mrf.mxu0
  %v4053 = vadd.f32 %v3884, %v4052
  %4054 = vmatmul.bf16.gmra.mxu0 %v2381
  %v4055 = vpop.f32.mrf.mxu0
  %v4056 = vadd.f32 %v3887, %v4055
  %v4057 = vpop.f32.mrf.mxu0
  %v4058 = vadd.f32 %v3889, %v4057
  %4059 = vmatmul.bf16.gmra.mxu0 %v2384
  %v4060 = vpop.f32.mrf.mxu0
  %v4061 = vadd.f32 %v3892, %v4060
  %v4062 = vpop.f32.mrf.mxu0
  %v4063 = vadd.f32 %v3894, %v4062
  %4064 = vmatmul.bf16.gmra.mxu0 %v2387
  %v4065 = vpop.f32.mrf.mxu0
  %v4066 = vadd.f32 %v3897, %v4065
  %v4067 = vpop.f32.mrf.mxu0
  %v4068 = vadd.f32 %v3899, %v4067
  %4069 = vmatmul.bf16.gmra.mxu0 %v2390
  %v4070 = vpop.f32.mrf.mxu0
  %v4071 = vadd.f32 %v3902, %v4070
  %v4072 = vpop.f32.mrf.mxu0
  %v4073 = vadd.f32 %v3904, %v4072
  %4074 = vmatmul.bf16.gmra.mxu0 %v2393
  %v4075 = vpop.f32.mrf.mxu0
  %v4076 = vadd.f32 %v3907, %v4075
  %v4077 = vpop.f32.mrf.mxu0
  %v4078 = vadd.f32 %v3909, %v4077
  %4079 = vmatmul.bf16.gmra.mxu0 %v2396
  %v4080 = vpop.f32.mrf.mxu0
  %v4081 = vadd.f32 %v3912, %v4080
  %v4082 = vpop.f32.mrf.mxu0
  %v4083 = vadd.f32 %v3914, %v4082
  %4084 = vdwg.mxu0
  %s4085 = scalar_lea.vmem %s0, 1280
  %v4086 = vld [vmem:[%s4085] sm:$0xf]
  %v4087 = vld [vmem:[%s4085 + $0x4] sm:$0xf]
  %v4088 = vld [vmem:[%s4085 + $0x8] sm:$0xf]
  %v4089 = vld [vmem:[%s4085 + $0xc] sm:$0xf]
  %v4090 = vld [vmem:[%s4085 + $0x10] sm:$0xf]
  %v4091 = vld [vmem:[%s4085 + $0x14] sm:$0xf]
  %v4092 = vld [vmem:[%s4085 + $0x18] sm:$0xf]
  %v4093 = vld [vmem:[%s4085 + $0x1c] sm:$0xf]
  %v4094 = vld [vmem:[%s4085 + $0x20] sm:$0xf]
  %v4095 = vld [vmem:[%s4085 + $0x24] sm:$0xf]
  %v4096 = vld [vmem:[%s4085 + $0x28] sm:$0xf]
  %v4097 = vld [vmem:[%s4085 + $0x2c] sm:$0xf]
  %v4098 = vld [vmem:[%s4085 + $0x30] sm:$0xf]
  %v4099 = vld [vmem:[%s4085 + $0x34] sm:$0xf]
  %v4100 = vld [vmem:[%s4085 + $0x38] sm:$0xf]
  %v4101 = vld [vmem:[%s4085 + $0x3c] sm:$0xf]
  %v4102 = vld [vmem:[%s4085 + $0x40] sm:$0xf]
  %v4103 = vld [vmem:[%s4085 + $0x44] sm:$0xf]
  %v4104 = vld [vmem:[%s4085 + $0x48] sm:$0xf]
  %v4105 = vld [vmem:[%s4085 + $0x4c] sm:$0xf]
  %v4106 = vld [vmem:[%s4085 + $0x50] sm:$0xf]
  %v4107 = vld [vmem:[%s4085 + $0x54] sm:$0xf]
  %v4108 = vld [vmem:[%s4085 + $0x58] sm:$0xf]
  %v4109 = vld [vmem:[%s4085 + $0x5c] sm:$0xf]
  %v4110 = vld [vmem:[%s4085 + $0x60] sm:$0xf]
  %v4111 = vld [vmem:[%s4085 + $0x64] sm:$0xf]
  %v4112 = vld [vmem:[%s4085 + $0x68] sm:$0xf]
  %v4113 = vld [vmem:[%s4085 + $0x6c] sm:$0xf]
  %v4114 = vld [vmem:[%s4085 + $0x70] sm:$0xf]
  %v4115 = vld [vmem:[%s4085 + $0x74] sm:$0xf]
  %v4116 = vld [vmem:[%s4085 + $0x78] sm:$0xf]
  %v4117 = vld [vmem:[%s4085 + $0x7c] sm:$0xf]
  %v4118 = vld [vmem:[%s4085 + $0x80] sm:$0xf]
  %v4119 = vld [vmem:[%s4085 + $0x84] sm:$0xf]
  %v4120 = vld [vmem:[%s4085 + $0x88] sm:$0xf]
  %v4121 = vld [vmem:[%s4085 + $0x8c] sm:$0xf]
  %v4122 = vld [vmem:[%s4085 + $0x90] sm:$0xf]
  %v4123 = vld [vmem:[%s4085 + $0x94] sm:$0xf]
  %v4124 = vld [vmem:[%s4085 + $0x98] sm:$0xf]
  %v4125 = vld [vmem:[%s4085 + $0x9c] sm:$0xf]
  %v4126 = vld [vmem:[%s4085 + $0xa0] sm:$0xf]
  %v4127 = vld [vmem:[%s4085 + $0xa4] sm:$0xf]
  %v4128 = vld [vmem:[%s4085 + $0xa8] sm:$0xf]
  %v4129 = vld [vmem:[%s4085 + $0xac] sm:$0xf]
  %v4130 = vld [vmem:[%s4085 + $0xb0] sm:$0xf]
  %v4131 = vld [vmem:[%s4085 + $0xb4] sm:$0xf]
  %v4132 = vld [vmem:[%s4085 + $0xb8] sm:$0xf]
  %v4133 = vld [vmem:[%s4085 + $0xbc] sm:$0xf]
  %v4134 = vld [vmem:[%s4085 + $0xc0] sm:$0xf]
  %v4135 = vld [vmem:[%s4085 + $0xc4] sm:$0xf]
  %v4136 = vld [vmem:[%s4085 + $0xc8] sm:$0xf]
  %v4137 = vld [vmem:[%s4085 + $0xcc] sm:$0xf]
  %v4138 = vld [vmem:[%s4085 + $0xd0] sm:$0xf]
  %v4139 = vld [vmem:[%s4085 + $0xd4] sm:$0xf]
  %v4140 = vld [vmem:[%s4085 + $0xd8] sm:$0xf]
  %v4141 = vld [vmem:[%s4085 + $0xdc] sm:$0xf]
  %v4142 = vld [vmem:[%s4085 + $0xe0] sm:$0xf]
  %v4143 = vld [vmem:[%s4085 + $0xe4] sm:$0xf]
  %v4144 = vld [vmem:[%s4085 + $0xe8] sm:$0xf]
  %v4145 = vld [vmem:[%s4085 + $0xec] sm:$0xf]
  %v4146 = vld [vmem:[%s4085 + $0xf0] sm:$0xf]
  %v4147 = vld [vmem:[%s4085 + $0xf4] sm:$0xf]
  %v4148 = vld [vmem:[%s4085 + $0xf8] sm:$0xf]
  %v4149 = vld [vmem:[%s4085 + $0xfc] sm:$0xf]
  %v4214 = vunpack.c.l.b16 %v4086
  %v4215 = vunpack.c.l.b16 %v4087
  %v4216 = vunpack.c.l.b16 %v4088
  %v4217 = vunpack.c.l.b16 %v4089
  %v4218 = vunpack.c.l.b16 %v4090
  %v4219 = vunpack.c.l.b16 %v4091
  %v4220 = vunpack.c.l.b16 %v4092
  %v4221 = vunpack.c.l.b16 %v4093
  %v4222 = vunpack.c.l.b16 %v4094
  %v4223 = vunpack.c.l.b16 %v4095
  %v4224 = vunpack.c.l.b16 %v4096
  %v4225 = vunpack.c.l.b16 %v4097
  %v4226 = vunpack.c.l.b16 %v4098
  %v4227 = vunpack.c.l.b16 %v4099
  %v4228 = vunpack.c.l.b16 %v4100
  %v4229 = vunpack.c.l.b16 %v4101
  %v4230 = vunpack.c.l.b16 %v4102
  %v4231 = vunpack.c.l.b16 %v4103
  %v4232 = vunpack.c.l.b16 %v4104
  %v4233 = vunpack.c.l.b16 %v4105
  %v4234 = vunpack.c.l.b16 %v4106
  %v4235 = vunpack.c.l.b16 %v4107
  %v4236 = vunpack.c.l.b16 %v4108
  %v4237 = vunpack.c.l.b16 %v4109
  %v4238 = vunpack.c.l.b16 %v4110
  %v4239 = vunpack.c.l.b16 %v4111
  %v4240 = vunpack.c.l.b16 %v4112
  %v4241 = vunpack.c.l.b16 %v4113
  %v4242 = vunpack.c.l.b16 %v4114
  %v4243 = vunpack.c.l.b16 %v4115
  %v4244 = vunpack.c.l.b16 %v4116
  %v4245 = vunpack.c.l.b16 %v4117
  %v4246 = vunpack.c.l.b16 %v4118
  %v4247 = vunpack.c.l.b16 %v4119
  %v4248 = vunpack.c.l.b16 %v4120
  %v4249 = vunpack.c.l.b16 %v4121
  %v4250 = vunpack.c.l.b16 %v4122
  %v4251 = vunpack.c.l.b16 %v4123
  %v4252 = vunpack.c.l.b16 %v4124
  %v4253 = vunpack.c.l.b16 %v4125
  %v4254 = vunpack.c.l.b16 %v4126
  %v4255 = vunpack.c.l.b16 %v4127
  %v4256 = vunpack.c.l.b16 %v4128
  %v4257 = vunpack.c.l.b16 %v4129
  %v4258 = vunpack.c.l.b16 %v4130
  %v4259 = vunpack.c.l.b16 %v4131
  %v4260 = vunpack.c.l.b16 %v4132
  %v4261 = vunpack.c.l.b16 %v4133
  %v4262 = vunpack.c.l.b16 %v4134
  %v4263 = vunpack.c.l.b16 %v4135
  %v4264 = vunpack.c.l.b16 %v4136
  %v4265 = vunpack.c.l.b16 %v4137
  %v4266 = vunpack.c.l.b16 %v4138
  %v4267 = vunpack.c.l.b16 %v4139
  %v4268 = vunpack.c.l.b16 %v4140
  %v4269 = vunpack.c.l.b16 %v4141
  %v4270 = vunpack.c.l.b16 %v4142
  %v4271 = vunpack.c.l.b16 %v4143
  %v4272 = vunpack.c.l.b16 %v4144
  %v4273 = vunpack.c.l.b16 %v4145
  %v4274 = vunpack.c.l.b16 %v4146
  %v4275 = vunpack.c.l.b16 %v4147
  %v4276 = vunpack.c.l.b16 %v4148
  %v4277 = vunpack.c.l.b16 %v4149
  %v4278 = vpack.c.b16 %v4215, %v4214
  %v4279 = vpack.c.b16 %v4217, %v4216
  %v4280 = vpack.c.b16 %v4219, %v4218
  %v4281 = vpack.c.b16 %v4221, %v4220
  %v4282 = vpack.c.b16 %v4223, %v4222
  %v4283 = vpack.c.b16 %v4225, %v4224
  %v4284 = vpack.c.b16 %v4227, %v4226
  %v4285 = vpack.c.b16 %v4229, %v4228
  %v4286 = vpack.c.b16 %v4231, %v4230
  %v4287 = vpack.c.b16 %v4233, %v4232
  %v4288 = vpack.c.b16 %v4235, %v4234
  %v4289 = vpack.c.b16 %v4237, %v4236
  %v4290 = vpack.c.b16 %v4239, %v4238
  %v4291 = vpack.c.b16 %v4241, %v4240
  %v4292 = vpack.c.b16 %v4243, %v4242
  %v4293 = vpack.c.b16 %v4245, %v4244
  %v4294 = vpack.c.b16 %v4247, %v4246
  %v4295 = vpack.c.b16 %v4249, %v4248
  %v4296 = vpack.c.b16 %v4251, %v4250
  %v4297 = vpack.c.b16 %v4253, %v4252
  %v4298 = vpack.c.b16 %v4255, %v4254
  %v4299 = vpack.c.b16 %v4257, %v4256
  %v4300 = vpack.c.b16 %v4259, %v4258
  %v4301 = vpack.c.b16 %v4261, %v4260
  %v4302 = vpack.c.b16 %v4263, %v4262
  %v4303 = vpack.c.b16 %v4265, %v4264
  %v4304 = vpack.c.b16 %v4267, %v4266
  %v4305 = vpack.c.b16 %v4269, %v4268
  %v4306 = vpack.c.b16 %v4271, %v4270
  %v4307 = vpack.c.b16 %v4273, %v4272
  %v4308 = vpack.c.b16 %v4275, %v4274
  %v4309 = vpack.c.b16 %v4277, %v4276
  %v4311 = vsel %vm342, %v4278, 0
  %v4314 = vsel %vm342, %v4279, 0
  %v4317 = vsel %vm342, %v4280, 0
  %v4320 = vsel %vm342, %v4281, 0
  %v4323 = vsel %vm342, %v4282, 0
  %v4326 = vsel %vm342, %v4283, 0
  %v4329 = vsel %vm342, %v4284, 0
  %v4332 = vsel %vm342, %v4285, 0
  %v4335 = vsel %vm342, %v4286, 0
  %v4338 = vsel %vm342, %v4287, 0
  %v4341 = vsel %vm342, %v4288, 0
  %v4344 = vsel %vm342, %v4289, 0
  %v4347 = vsel %vm342, %v4290, 0
  %v4350 = vsel %vm342, %v4291, 0
  %v4353 = vsel %vm342, %v4292, 0
  %v4356 = vsel %vm342, %v4293, 0
  %v4359 = vsel %vm342, %v4294, 0
  %v4362 = vsel %vm342, %v4295, 0
  %v4365 = vsel %vm342, %v4296, 0
  %v4368 = vsel %vm342, %v4297, 0
  %v4371 = vsel %vm342, %v4298, 0
  %v4374 = vsel %vm342, %v4299, 0
  %v4377 = vsel %vm342, %v4300, 0
  %v4380 = vsel %vm342, %v4301, 0
  %v4383 = vsel %vm342, %v4302, 0
  %v4386 = vsel %vm342, %v4303, 0
  %v4389 = vsel %vm342, %v4304, 0
  %v4392 = vsel %vm342, %v4305, 0
  %v4395 = vsel %vm342, %v4306, 0
  %v4398 = vsel %vm342, %v4307, 0
  %v4401 = vsel %vm342, %v4308, 0
  %v4404 = vsel %vm342, %v4309, 0
  %4406 = vmatpush.bf16.msra.mxu0 0
  %4407 = vmatpush.bf16.msra.mxu0 0
  %4408 = vmatpush.bf16.msra.mxu0 0
  %4409 = vmatpush.bf16.msra.mxu0 0
  %4410 = vmatpush.bf16.msra.mxu0 0
  %4411 = vmatpush.bf16.msra.mxu0 %v1392
  %4412 = vmatpush.bf16.msra.mxu0 %v1291
  %4413 = vmatpush.bf16.msra.mxu0 %v1290
  %4414 = vmatmul.bf16.gmra.mxu0 %v4311
  %v4415 = vpop.f32.mrf.mxu0
  %v4416 = vadd.f32 0.0, %v4415
  %v4417 = vpop.f32.mrf.mxu0
  %v4418 = vadd.f32 0.0, %v4417
  %4419 = vmatmul.bf16.gmra.mxu0 %v4314
  %v4420 = vpop.f32.mrf.mxu0
  %v4421 = vadd.f32 0.0, %v4420
  %v4422 = vpop.f32.mrf.mxu0
  %v4423 = vadd.f32 0.0, %v4422
  %4424 = vmatmul.bf16.gmra.mxu0 %v4317
  %v4425 = vpop.f32.mrf.mxu0
  %v4426 = vadd.f32 0.0, %v4425
  %v4427 = vpop.f32.mrf.mxu0
  %v4428 = vadd.f32 0.0, %v4427
  %4429 = vmatmul.bf16.gmra.mxu0 %v4320
  %v4430 = vpop.f32.mrf.mxu0
  %v4431 = vadd.f32 0.0, %v4430
  %v4432 = vpop.f32.mrf.mxu0
  %v4433 = vadd.f32 0.0, %v4432
  %4434 = vmatmul.bf16.gmra.mxu0 %v4323
  %v4435 = vpop.f32.mrf.mxu0
  %v4436 = vadd.f32 0.0, %v4435
  %v4437 = vpop.f32.mrf.mxu0
  %v4438 = vadd.f32 0.0, %v4437
  %4439 = vmatmul.bf16.gmra.mxu0 %v4326
  %v4440 = vpop.f32.mrf.mxu0
  %v4441 = vadd.f32 0.0, %v4440
  %v4442 = vpop.f32.mrf.mxu0
  %v4443 = vadd.f32 0.0, %v4442
  %4444 = vmatmul.bf16.gmra.mxu0 %v4329
  %v4445 = vpop.f32.mrf.mxu0
  %v4446 = vadd.f32 0.0, %v4445
  %v4447 = vpop.f32.mrf.mxu0
  %v4448 = vadd.f32 0.0, %v4447
  %4449 = vmatmul.bf16.gmra.mxu0 %v4332
  %v4450 = vpop.f32.mrf.mxu0
  %v4451 = vadd.f32 0.0, %v4450
  %v4452 = vpop.f32.mrf.mxu0
  %v4453 = vadd.f32 0.0, %v4452
  %4454 = vmatmul.bf16.gmra.mxu0 %v4335
  %v4455 = vpop.f32.mrf.mxu0
  %v4456 = vadd.f32 0.0, %v4455
  %v4457 = vpop.f32.mrf.mxu0
  %v4458 = vadd.f32 0.0, %v4457
  %4459 = vmatmul.bf16.gmra.mxu0 %v4338
  %v4460 = vpop.f32.mrf.mxu0
  %v4461 = vadd.f32 0.0, %v4460
  %v4462 = vpop.f32.mrf.mxu0
  %v4463 = vadd.f32 0.0, %v4462
  %4464 = vmatmul.bf16.gmra.mxu0 %v4341
  %v4465 = vpop.f32.mrf.mxu0
  %v4466 = vadd.f32 0.0, %v4465
  %v4467 = vpop.f32.mrf.mxu0
  %v4468 = vadd.f32 0.0, %v4467
  %4469 = vmatmul.bf16.gmra.mxu0 %v4344
  %v4470 = vpop.f32.mrf.mxu0
  %v4471 = vadd.f32 0.0, %v4470
  %v4472 = vpop.f32.mrf.mxu0
  %v4473 = vadd.f32 0.0, %v4472
  %4474 = vmatmul.bf16.gmra.mxu0 %v4347
  %v4475 = vpop.f32.mrf.mxu0
  %v4476 = vadd.f32 0.0, %v4475
  %v4477 = vpop.f32.mrf.mxu0
  %v4478 = vadd.f32 0.0, %v4477
  %4479 = vmatmul.bf16.gmra.mxu0 %v4350
  %v4480 = vpop.f32.mrf.mxu0
  %v4481 = vadd.f32 0.0, %v4480
  %v4482 = vpop.f32.mrf.mxu0
  %v4483 = vadd.f32 0.0, %v4482
  %4484 = vmatmul.bf16.gmra.mxu0 %v4353
  %v4485 = vpop.f32.mrf.mxu0
  %v4486 = vadd.f32 0.0, %v4485
  %v4487 = vpop.f32.mrf.mxu0
  %v4488 = vadd.f32 0.0, %v4487
  %4489 = vmatmul.bf16.gmra.mxu0 %v4356
  %v4490 = vpop.f32.mrf.mxu0
  %v4491 = vadd.f32 0.0, %v4490
  %v4492 = vpop.f32.mrf.mxu0
  %v4493 = vadd.f32 0.0, %v4492
  %4494 = vmatmul.bf16.gmra.mxu0 %v4359
  %v4495 = vpop.f32.mrf.mxu0
  %v4496 = vadd.f32 0.0, %v4495
  %v4497 = vpop.f32.mrf.mxu0
  %v4498 = vadd.f32 0.0, %v4497
  %4499 = vmatmul.bf16.gmra.mxu0 %v4362
  %v4500 = vpop.f32.mrf.mxu0
  %v4501 = vadd.f32 0.0, %v4500
  %v4502 = vpop.f32.mrf.mxu0
  %v4503 = vadd.f32 0.0, %v4502
  %4504 = vmatmul.bf16.gmra.mxu0 %v4365
  %v4505 = vpop.f32.mrf.mxu0
  %v4506 = vadd.f32 0.0, %v4505
  %v4507 = vpop.f32.mrf.mxu0
  %v4508 = vadd.f32 0.0, %v4507
  %4509 = vmatmul.bf16.gmra.mxu0 %v4368
  %v4510 = vpop.f32.mrf.mxu0
  %v4511 = vadd.f32 0.0, %v4510
  %v4512 = vpop.f32.mrf.mxu0
  %v4513 = vadd.f32 0.0, %v4512
  %4514 = vmatmul.bf16.gmra.mxu0 %v4371
  %v4515 = vpop.f32.mrf.mxu0
  %v4516 = vadd.f32 0.0, %v4515
  %v4517 = vpop.f32.mrf.mxu0
  %v4518 = vadd.f32 0.0, %v4517
  %4519 = vmatmul.bf16.gmra.mxu0 %v4374
  %v4520 = vpop.f32.mrf.mxu0
  %v4521 = vadd.f32 0.0, %v4520
  %v4522 = vpop.f32.mrf.mxu0
  %v4523 = vadd.f32 0.0, %v4522
  %4524 = vmatmul.bf16.gmra.mxu0 %v4377
  %v4525 = vpop.f32.mrf.mxu0
  %v4526 = vadd.f32 0.0, %v4525
  %v4527 = vpop.f32.mrf.mxu0
  %v4528 = vadd.f32 0.0, %v4527
  %4529 = vmatmul.bf16.gmra.mxu0 %v4380
  %v4530 = vpop.f32.mrf.mxu0
  %v4531 = vadd.f32 0.0, %v4530
  %v4532 = vpop.f32.mrf.mxu0
  %v4533 = vadd.f32 0.0, %v4532
  %4534 = vmatmul.bf16.gmra.mxu0 %v4383
  %v4535 = vpop.f32.mrf.mxu0
  %v4536 = vadd.f32 0.0, %v4535
  %v4537 = vpop.f32.mrf.mxu0
  %v4538 = vadd.f32 0.0, %v4537
  %4539 = vmatmul.bf16.gmra.mxu0 %v4386
  %v4540 = vpop.f32.mrf.mxu0
  %v4541 = vadd.f32 0.0, %v4540
  %v4542 = vpop.f32.mrf.mxu0
  %v4543 = vadd.f32 0.0, %v4542
  %4544 = vmatmul.bf16.gmra.mxu0 %v4389
  %v4545 = vpop.f32.mrf.mxu0
  %v4546 = vadd.f32 0.0, %v4545
  %v4547 = vpop.f32.mrf.mxu0
  %v4548 = vadd.f32 0.0, %v4547
  %4549 = vmatmul.bf16.gmra.mxu0 %v4392
  %v4550 = vpop.f32.mrf.mxu0
  %v4551 = vadd.f32 0.0, %v4550
  %v4552 = vpop.f32.mrf.mxu0
  %v4553 = vadd.f32 0.0, %v4552
  %4554 = vmatmul.bf16.gmra.mxu0 %v4395
  %v4555 = vpop.f32.mrf.mxu0
  %v4556 = vadd.f32 0.0, %v4555
  %v4557 = vpop.f32.mrf.mxu0
  %v4558 = vadd.f32 0.0, %v4557
  %4559 = vmatmul.bf16.gmra.mxu0 %v4398
  %v4560 = vpop.f32.mrf.mxu0
  %v4561 = vadd.f32 0.0, %v4560
  %v4562 = vpop.f32.mrf.mxu0
  %v4563 = vadd.f32 0.0, %v4562
  %4564 = vmatmul.bf16.gmra.mxu0 %v4401
  %v4565 = vpop.f32.mrf.mxu0
  %v4566 = vadd.f32 0.0, %v4565
  %v4567 = vpop.f32.mrf.mxu0
  %v4568 = vadd.f32 0.0, %v4567
  %4569 = vmatmul.bf16.gmra.mxu0 %v4404
  %v4570 = vpop.f32.mrf.mxu0
  %v4571 = vadd.f32 0.0, %v4570
  %v4572 = vpop.f32.mrf.mxu0
  %v4573 = vadd.f32 0.0, %v4572
  %4574 = vdwg.mxu0
  %v4575 = vadd.f32 %v3926, %v4416
  %v4576 = vadd.f32 %v3928, %v4418
  %v4577 = vadd.f32 %v3931, %v4421
  %v4578 = vadd.f32 %v3933, %v4423
  %v4579 = vadd.f32 %v3936, %v4426
  %v4580 = vadd.f32 %v3938, %v4428
  %v4581 = vadd.f32 %v3941, %v4431
  %v4582 = vadd.f32 %v3943, %v4433
  %v4583 = vadd.f32 %v3946, %v4436
  %v4584 = vadd.f32 %v3948, %v4438
  %v4585 = vadd.f32 %v3951, %v4441
  %v4586 = vadd.f32 %v3953, %v4443
  %v4587 = vadd.f32 %v3956, %v4446
  %v4588 = vadd.f32 %v3958, %v4448
  %v4589 = vadd.f32 %v3961, %v4451
  %v4590 = vadd.f32 %v3963, %v4453
  %v4591 = vadd.f32 %v3966, %v4456
  %v4592 = vadd.f32 %v3968, %v4458
  %v4593 = vadd.f32 %v3971, %v4461
  %v4594 = vadd.f32 %v3973, %v4463
  %v4595 = vadd.f32 %v3976, %v4466
  %v4596 = vadd.f32 %v3978, %v4468
  %v4597 = vadd.f32 %v3981, %v4471
  %v4598 = vadd.f32 %v3983, %v4473
  %v4599 = vadd.f32 %v3986, %v4476
  %v4600 = vadd.f32 %v3988, %v4478
  %v4601 = vadd.f32 %v3991, %v4481
  %v4602 = vadd.f32 %v3993, %v4483
  %v4603 = vadd.f32 %v3996, %v4486
  %v4604 = vadd.f32 %v3998, %v4488
  %v4605 = vadd.f32 %v4001, %v4491
  %v4606 = vadd.f32 %v4003, %v4493
  %v4607 = vadd.f32 %v4006, %v4496
  %v4608 = vadd.f32 %v4008, %v4498
  %v4609 = vadd.f32 %v4011, %v4501
  %v4610 = vadd.f32 %v4013, %v4503
  %v4611 = vadd.f32 %v4016, %v4506
  %v4612 = vadd.f32 %v4018, %v4508
  %v4613 = vadd.f32 %v4021, %v4511
  %v4614 = vadd.f32 %v4023, %v4513
  %v4615 = vadd.f32 %v4026, %v4516
  %v4616 = vadd.f32 %v4028, %v4518
  %v4617 = vadd.f32 %v4031, %v4521
  %v4618 = vadd.f32 %v4033, %v4523
  %v4619 = vadd.f32 %v4036, %v4526
  %v4620 = vadd.f32 %v4038, %v4528
  %v4621 = vadd.f32 %v4041, %v4531
  %v4622 = vadd.f32 %v4043, %v4533
  %v4623 = vadd.f32 %v4046, %v4536
  %v4624 = vadd.f32 %v4048, %v4538
  %v4625 = vadd.f32 %v4051, %v4541
  %v4626 = vadd.f32 %v4053, %v4543
  %v4627 = vadd.f32 %v4056, %v4546
  %v4628 = vadd.f32 %v4058, %v4548
  %v4629 = vadd.f32 %v4061, %v4551
  %v4630 = vadd.f32 %v4063, %v4553
  %v4631 = vadd.f32 %v4066, %v4556
  %v4632 = vadd.f32 %v4068, %v4558
  %v4633 = vadd.f32 %v4071, %v4561
  %v4634 = vadd.f32 %v4073, %v4563
  %v4635 = vadd.f32 %v4076, %v4566
  %v4636 = vadd.f32 %v4078, %v4568
  %v4637 = vadd.f32 %v4081, %v4571
  %v4638 = vadd.f32 %v4083, %v4573
  %v4639 = vadd.f32 %v4575, %v4576
  %v4640 = vadd.f32 %v4639, %v4577
  %v4641 = vadd.f32 %v4640, %v4578
  %v4642 = vadd.f32 %v4641, %v4579
  %v4643 = vadd.f32 %v4642, %v4580
  %v4644 = vadd.f32 %v4643, %v4581
  %v4645 = vadd.f32 %v4644, %v4582
  %v4646 = vrot.slane %v4645, 4
  %v4647 = vadd.f32 %v4645, %v4646
  %v4648 = vrot.slane %v4647, 2
  %v4649 = vadd.f32 %v4647, %v4648
  %v4650 = vrot.slane %v4649, 1
  %v4651 = vadd.f32 %v4649, %v4650
  %v4652 = vadd.f32 %v4583, %v4584
  %v4653 = vadd.f32 %v4652, %v4585
  %v4654 = vadd.f32 %v4653, %v4586
  %v4655 = vadd.f32 %v4654, %v4587
  %v4656 = vadd.f32 %v4655, %v4588
  %v4657 = vadd.f32 %v4656, %v4589
  %v4658 = vadd.f32 %v4657, %v4590
  %v4659 = vrot.slane %v4658, 4
  %v4660 = vadd.f32 %v4658, %v4659
  %v4661 = vrot.slane %v4660, 2
  %v4662 = vadd.f32 %v4660, %v4661
  %v4663 = vrot.slane %v4662, 1
  %v4664 = vadd.f32 %v4662, %v4663
  %v4665 = vadd.f32 %v4591, %v4592
  %v4666 = vadd.f32 %v4665, %v4593
  %v4667 = vadd.f32 %v4666, %v4594
  %v4668 = vadd.f32 %v4667, %v4595
  %v4669 = vadd.f32 %v4668, %v4596
  %v4670 = vadd.f32 %v4669, %v4597
  %v4671 = vadd.f32 %v4670, %v4598
  %v4672 = vrot.slane %v4671, 4
  %v4673 = vadd.f32 %v4671, %v4672
  %v4674 = vrot.slane %v4673, 2
  %v4675 = vadd.f32 %v4673, %v4674
  %v4676 = vrot.slane %v4675, 1
  %v4677 = vadd.f32 %v4675, %v4676
  %v4678 = vadd.f32 %v4599, %v4600
  %v4679 = vadd.f32 %v4678, %v4601
  %v4680 = vadd.f32 %v4679, %v4602
  %v4681 = vadd.f32 %v4680, %v4603
  %v4682 = vadd.f32 %v4681, %v4604
  %v4683 = vadd.f32 %v4682, %v4605
  %v4684 = vadd.f32 %v4683, %v4606
  %v4685 = vrot.slane %v4684, 4
  %v4686 = vadd.f32 %v4684, %v4685
  %v4687 = vrot.slane %v4686, 2
  %v4688 = vadd.f32 %v4686, %v4687
  %v4689 = vrot.slane %v4688, 1
  %v4690 = vadd.f32 %v4688, %v4689
  %v4691 = vadd.f32 %v4607, %v4608
  %v4692 = vadd.f32 %v4691, %v4609
  %v4693 = vadd.f32 %v4692, %v4610
  %v4694 = vadd.f32 %v4693, %v4611
  %v4695 = vadd.f32 %v4694, %v4612
  %v4696 = vadd.f32 %v4695, %v4613
  %v4697 = vadd.f32 %v4696, %v4614
  %v4698 = vrot.slane %v4697, 4
  %v4699 = vadd.f32 %v4697, %v4698
  %v4700 = vrot.slane %v4699, 2
  %v4701 = vadd.f32 %v4699, %v4700
  %v4702 = vrot.slane %v4701, 1
  %v4703 = vadd.f32 %v4701, %v4702
  %v4704 = vadd.f32 %v4615, %v4616
  %v4705 = vadd.f32 %v4704, %v4617
  %v4706 = vadd.f32 %v4705, %v4618
  %v4707 = vadd.f32 %v4706, %v4619
  %v4708 = vadd.f32 %v4707, %v4620
  %v4709 = vadd.f32 %v4708, %v4621
  %v4710 = vadd.f32 %v4709, %v4622
  %v4711 = vrot.slane %v4710, 4
  %v4712 = vadd.f32 %v4710, %v4711
  %v4713 = vrot.slane %v4712, 2
  %v4714 = vadd.f32 %v4712, %v4713
  %v4715 = vrot.slane %v4714, 1
  %v4716 = vadd.f32 %v4714, %v4715
  %v4717 = vadd.f32 %v4623, %v4624
  %v4718 = vadd.f32 %v4717, %v4625
  %v4719 = vadd.f32 %v4718, %v4626
  %v4720 = vadd.f32 %v4719, %v4627
  %v4721 = vadd.f32 %v4720, %v4628
  %v4722 = vadd.f32 %v4721, %v4629
  %v4723 = vadd.f32 %v4722, %v4630
  %v4724 = vrot.slane %v4723, 4
  %v4725 = vadd.f32 %v4723, %v4724
  %v4726 = vrot.slane %v4725, 2
  %v4727 = vadd.f32 %v4725, %v4726
  %v4728 = vrot.slane %v4727, 1
  %v4729 = vadd.f32 %v4727, %v4728
  %v4730 = vadd.f32 %v4631, %v4632
  %v4731 = vadd.f32 %v4730, %v4633
  %v4732 = vadd.f32 %v4731, %v4634
  %v4733 = vadd.f32 %v4732, %v4635
  %v4734 = vadd.f32 %v4733, %v4636
  %v4735 = vadd.f32 %v4734, %v4637
  %v4736 = vadd.f32 %v4735, %v4638
  %v4737 = vrot.slane %v4736, 4
  %v4738 = vadd.f32 %v4736, %v4737
  %v4739 = vrot.slane %v4738, 2
  %v4740 = vadd.f32 %v4738, %v4739
  %v4741 = vrot.slane %v4740, 1
  %v4742 = vadd.f32 %v4740, %v4741
  %v4743 = vadd.f32 %v3739, %v4651
  %v4744 = vadd.f32 %v3740, %v4664
  %v4745 = vadd.f32 %v3741, %v4677
  %v4746 = vadd.f32 %v3742, %v4690
  %v4747 = vadd.f32 %v3743, %v4703
  %v4748 = vadd.f32 %v3744, %v4716
  %v4749 = vadd.f32 %v3745, %v4729
  %v4750 = vadd.f32 %v3746, %v4742
  %4751 = vmatpush.bf16.msra.mxu0 0
  %4752 = vmatpush.bf16.msra.mxu0 0
  %4753 = vmatpush.bf16.msra.mxu0 0
  %4754 = vmatpush.bf16.msra.mxu0 0
  %4755 = vmatpush.bf16.msra.mxu0 0
  %4756 = vmatpush.bf16.msra.mxu0 %v441
  %4757 = vmatpush.bf16.msra.mxu0 %v338
  %4758 = vmatpush.bf16.msra.mxu0 %v337
  %4759 = vmatmul.bf16.gmra.mxu0 %v4311
  %v4760 = vpop.f32.mrf.mxu0
  %v4761 = vadd.f32 0.0, %v4760
  %v4762 = vpop.f32.mrf.mxu0
  %v4763 = vadd.f32 0.0, %v4762
  %4764 = vmatmul.bf16.gmra.mxu0 %v4314
  %v4765 = vpop.f32.mrf.mxu0
  %v4766 = vadd.f32 0.0, %v4765
  %v4767 = vpop.f32.mrf.mxu0
  %v4768 = vadd.f32 0.0, %v4767
  %4769 = vmatmul.bf16.gmra.mxu0 %v4317
  %v4770 = vpop.f32.mrf.mxu0
  %v4771 = vadd.f32 0.0, %v4770
  %v4772 = vpop.f32.mrf.mxu0
  %v4773 = vadd.f32 0.0, %v4772
  %4774 = vmatmul.bf16.gmra.mxu0 %v4320
  %v4775 = vpop.f32.mrf.mxu0
  %v4776 = vadd.f32 0.0, %v4775
  %v4777 = vpop.f32.mrf.mxu0
  %v4778 = vadd.f32 0.0, %v4777
  %4779 = vmatmul.bf16.gmra.mxu0 %v4323
  %v4780 = vpop.f32.mrf.mxu0
  %v4781 = vadd.f32 0.0, %v4780
  %v4782 = vpop.f32.mrf.mxu0
  %v4783 = vadd.f32 0.0, %v4782
  %4784 = vmatmul.bf16.gmra.mxu0 %v4326
  %v4785 = vpop.f32.mrf.mxu0
  %v4786 = vadd.f32 0.0, %v4785
  %v4787 = vpop.f32.mrf.mxu0
  %v4788 = vadd.f32 0.0, %v4787
  %4789 = vmatmul.bf16.gmra.mxu0 %v4329
  %v4790 = vpop.f32.mrf.mxu0
  %v4791 = vadd.f32 0.0, %v4790
  %v4792 = vpop.f32.mrf.mxu0
  %v4793 = vadd.f32 0.0, %v4792
  %4794 = vmatmul.bf16.gmra.mxu0 %v4332
  %v4795 = vpop.f32.mrf.mxu0
  %v4796 = vadd.f32 0.0, %v4795
  %v4797 = vpop.f32.mrf.mxu0
  %v4798 = vadd.f32 0.0, %v4797
  %4799 = vmatmul.bf16.gmra.mxu0 %v4335
  %v4800 = vpop.f32.mrf.mxu0
  %v4801 = vadd.f32 0.0, %v4800
  %v4802 = vpop.f32.mrf.mxu0
  %v4803 = vadd.f32 0.0, %v4802
  %4804 = vmatmul.bf16.gmra.mxu0 %v4338
  %v4805 = vpop.f32.mrf.mxu0
  %v4806 = vadd.f32 0.0, %v4805
  %v4807 = vpop.f32.mrf.mxu0
  %v4808 = vadd.f32 0.0, %v4807
  %4809 = vmatmul.bf16.gmra.mxu0 %v4341
  %v4810 = vpop.f32.mrf.mxu0
  %v4811 = vadd.f32 0.0, %v4810
  %v4812 = vpop.f32.mrf.mxu0
  %v4813 = vadd.f32 0.0, %v4812
  %4814 = vmatmul.bf16.gmra.mxu0 %v4344
  %v4815 = vpop.f32.mrf.mxu0
  %v4816 = vadd.f32 0.0, %v4815
  %v4817 = vpop.f32.mrf.mxu0
  %v4818 = vadd.f32 0.0, %v4817
  %4819 = vmatmul.bf16.gmra.mxu0 %v4347
  %v4820 = vpop.f32.mrf.mxu0
  %v4821 = vadd.f32 0.0, %v4820
  %v4822 = vpop.f32.mrf.mxu0
  %v4823 = vadd.f32 0.0, %v4822
  %4824 = vmatmul.bf16.gmra.mxu0 %v4350
  %v4825 = vpop.f32.mrf.mxu0
  %v4826 = vadd.f32 0.0, %v4825
  %v4827 = vpop.f32.mrf.mxu0
  %v4828 = vadd.f32 0.0, %v4827
  %4829 = vmatmul.bf16.gmra.mxu0 %v4353
  %v4830 = vpop.f32.mrf.mxu0
  %v4831 = vadd.f32 0.0, %v4830
  %v4832 = vpop.f32.mrf.mxu0
  %v4833 = vadd.f32 0.0, %v4832
  %4834 = vmatmul.bf16.gmra.mxu0 %v4356
  %v4835 = vpop.f32.mrf.mxu0
  %v4836 = vadd.f32 0.0, %v4835
  %v4837 = vpop.f32.mrf.mxu0
  %v4838 = vadd.f32 0.0, %v4837
  %4839 = vmatmul.bf16.gmra.mxu0 %v4359
  %v4840 = vpop.f32.mrf.mxu0
  %v4841 = vadd.f32 0.0, %v4840
  %v4842 = vpop.f32.mrf.mxu0
  %v4843 = vadd.f32 0.0, %v4842
  %4844 = vmatmul.bf16.gmra.mxu0 %v4362
  %v4845 = vpop.f32.mrf.mxu0
  %v4846 = vadd.f32 0.0, %v4845
  %v4847 = vpop.f32.mrf.mxu0
  %v4848 = vadd.f32 0.0, %v4847
  %4849 = vmatmul.bf16.gmra.mxu0 %v4365
  %v4850 = vpop.f32.mrf.mxu0
  %v4851 = vadd.f32 0.0, %v4850
  %v4852 = vpop.f32.mrf.mxu0
  %v4853 = vadd.f32 0.0, %v4852
  %4854 = vmatmul.bf16.gmra.mxu0 %v4368
  %v4855 = vpop.f32.mrf.mxu0
  %v4856 = vadd.f32 0.0, %v4855
  %v4857 = vpop.f32.mrf.mxu0
  %v4858 = vadd.f32 0.0, %v4857
  %4859 = vmatmul.bf16.gmra.mxu0 %v4371
  %v4860 = vpop.f32.mrf.mxu0
  %v4861 = vadd.f32 0.0, %v4860
  %v4862 = vpop.f32.mrf.mxu0
  %v4863 = vadd.f32 0.0, %v4862
  %4864 = vmatmul.bf16.gmra.mxu0 %v4374
  %v4865 = vpop.f32.mrf.mxu0
  %v4866 = vadd.f32 0.0, %v4865
  %v4867 = vpop.f32.mrf.mxu0
  %v4868 = vadd.f32 0.0, %v4867
  %4869 = vmatmul.bf16.gmra.mxu0 %v4377
  %v4870 = vpop.f32.mrf.mxu0
  %v4871 = vadd.f32 0.0, %v4870
  %v4872 = vpop.f32.mrf.mxu0
  %v4873 = vadd.f32 0.0, %v4872
  %4874 = vmatmul.bf16.gmra.mxu0 %v4380
  %v4875 = vpop.f32.mrf.mxu0
  %v4876 = vadd.f32 0.0, %v4875
  %v4877 = vpop.f32.mrf.mxu0
  %v4878 = vadd.f32 0.0, %v4877
  %4879 = vmatmul.bf16.gmra.mxu0 %v4383
  %v4880 = vpop.f32.mrf.mxu0
  %v4881 = vadd.f32 0.0, %v4880
  %v4882 = vpop.f32.mrf.mxu0
  %v4883 = vadd.f32 0.0, %v4882
  %4884 = vmatmul.bf16.gmra.mxu0 %v4386
  %v4885 = vpop.f32.mrf.mxu0
  %v4886 = vadd.f32 0.0, %v4885
  %v4887 = vpop.f32.mrf.mxu0
  %v4888 = vadd.f32 0.0, %v4887
  %4889 = vmatmul.bf16.gmra.mxu0 %v4389
  %v4890 = vpop.f32.mrf.mxu0
  %v4891 = vadd.f32 0.0, %v4890
  %v4892 = vpop.f32.mrf.mxu0
  %v4893 = vadd.f32 0.0, %v4892
  %4894 = vmatmul.bf16.gmra.mxu0 %v4392
  %v4895 = vpop.f32.mrf.mxu0
  %v4896 = vadd.f32 0.0, %v4895
  %v4897 = vpop.f32.mrf.mxu0
  %v4898 = vadd.f32 0.0, %v4897
  %4899 = vmatmul.bf16.gmra.mxu0 %v4395
  %v4900 = vpop.f32.mrf.mxu0
  %v4901 = vadd.f32 0.0, %v4900
  %v4902 = vpop.f32.mrf.mxu0
  %v4903 = vadd.f32 0.0, %v4902
  %4904 = vmatmul.bf16.gmra.mxu0 %v4398
  %v4905 = vpop.f32.mrf.mxu0
  %v4906 = vadd.f32 0.0, %v4905
  %v4907 = vpop.f32.mrf.mxu0
  %v4908 = vadd.f32 0.0, %v4907
  %4909 = vmatmul.bf16.gmra.mxu0 %v4401
  %v4910 = vpop.f32.mrf.mxu0
  %v4911 = vadd.f32 0.0, %v4910
  %v4912 = vpop.f32.mrf.mxu0
  %v4913 = vadd.f32 0.0, %v4912
  %4914 = vmatmul.bf16.gmra.mxu0 %v4404
  %v4915 = vpop.f32.mrf.mxu0
  %v4916 = vadd.f32 0.0, %v4915
  %v4917 = vpop.f32.mrf.mxu0
  %v4918 = vadd.f32 0.0, %v4917
  %4919 = vdwg.mxu0
  %4920 = vmatpush.bf16.msra.mxu0 0
  %4921 = vmatpush.bf16.msra.mxu0 0
  %4922 = vmatpush.bf16.msra.mxu0 0
  %4923 = vmatpush.bf16.msra.mxu0 0
  %4924 = vmatpush.bf16.msra.mxu0 0
  %4925 = vmatpush.bf16.msra.mxu0 %v884
  %4926 = vmatpush.bf16.msra.mxu0 %v783
  %4927 = vmatpush.bf16.msra.mxu0 %v782
  %4928 = vmatmul.bf16.gmra.mxu0 %v3307
  %v4929 = vpop.f32.mrf.mxu0
  %v4930 = vadd.f32 %v4761, %v4929
  %v4931 = vpop.f32.mrf.mxu0
  %v4932 = vadd.f32 %v4763, %v4931
  %4933 = vmatmul.bf16.gmra.mxu0 %v3310
  %v4934 = vpop.f32.mrf.mxu0
  %v4935 = vadd.f32 %v4766, %v4934
  %v4936 = vpop.f32.mrf.mxu0
  %v4937 = vadd.f32 %v4768, %v4936
  %4938 = vmatmul.bf16.gmra.mxu0 %v3313
  %v4939 = vpop.f32.mrf.mxu0
  %v4940 = vadd.f32 %v4771, %v4939
  %v4941 = vpop.f32.mrf.mxu0
  %v4942 = vadd.f32 %v4773, %v4941
  %4943 = vmatmul.bf16.gmra.mxu0 %v3316
  %v4944 = vpop.f32.mrf.mxu0
  %v4945 = vadd.f32 %v4776, %v4944
  %v4946 = vpop.f32.mrf.mxu0
  %v4947 = vadd.f32 %v4778, %v4946
  %4948 = vmatmul.bf16.gmra.mxu0 %v3319
  %v4949 = vpop.f32.mrf.mxu0
  %v4950 = vadd.f32 %v4781, %v4949
  %v4951 = vpop.f32.mrf.mxu0
  %v4952 = vadd.f32 %v4783, %v4951
  %4953 = vmatmul.bf16.gmra.mxu0 %v3322
  %v4954 = vpop.f32.mrf.mxu0
  %v4955 = vadd.f32 %v4786, %v4954
  %v4956 = vpop.f32.mrf.mxu0
  %v4957 = vadd.f32 %v4788, %v4956
  %4958 = vmatmul.bf16.gmra.mxu0 %v3325
  %v4959 = vpop.f32.mrf.mxu0
  %v4960 = vadd.f32 %v4791, %v4959
  %v4961 = vpop.f32.mrf.mxu0
  %v4962 = vadd.f32 %v4793, %v4961
  %4963 = vmatmul.bf16.gmra.mxu0 %v3328
  %v4964 = vpop.f32.mrf.mxu0
  %v4965 = vadd.f32 %v4796, %v4964
  %v4966 = vpop.f32.mrf.mxu0
  %v4967 = vadd.f32 %v4798, %v4966
  %4968 = vmatmul.bf16.gmra.mxu0 %v3331
  %v4969 = vpop.f32.mrf.mxu0
  %v4970 = vadd.f32 %v4801, %v4969
  %v4971 = vpop.f32.mrf.mxu0
  %v4972 = vadd.f32 %v4803, %v4971
  %4973 = vmatmul.bf16.gmra.mxu0 %v3334
  %v4974 = vpop.f32.mrf.mxu0
  %v4975 = vadd.f32 %v4806, %v4974
  %v4976 = vpop.f32.mrf.mxu0
  %v4977 = vadd.f32 %v4808, %v4976
  %4978 = vmatmul.bf16.gmra.mxu0 %v3337
  %v4979 = vpop.f32.mrf.mxu0
  %v4980 = vadd.f32 %v4811, %v4979
  %v4981 = vpop.f32.mrf.mxu0
  %v4982 = vadd.f32 %v4813, %v4981
  %4983 = vmatmul.bf16.gmra.mxu0 %v3340
  %v4984 = vpop.f32.mrf.mxu0
  %v4985 = vadd.f32 %v4816, %v4984
  %v4986 = vpop.f32.mrf.mxu0
  %v4987 = vadd.f32 %v4818, %v4986
  %4988 = vmatmul.bf16.gmra.mxu0 %v3343
  %v4989 = vpop.f32.mrf.mxu0
  %v4990 = vadd.f32 %v4821, %v4989
  %v4991 = vpop.f32.mrf.mxu0
  %v4992 = vadd.f32 %v4823, %v4991
  %4993 = vmatmul.bf16.gmra.mxu0 %v3346
  %v4994 = vpop.f32.mrf.mxu0
  %v4995 = vadd.f32 %v4826, %v4994
  %v4996 = vpop.f32.mrf.mxu0
  %v4997 = vadd.f32 %v4828, %v4996
  %4998 = vmatmul.bf16.gmra.mxu0 %v3349
  %v4999 = vpop.f32.mrf.mxu0
  %v5000 = vadd.f32 %v4831, %v4999
  %v5001 = vpop.f32.mrf.mxu0
  %v5002 = vadd.f32 %v4833, %v5001
  %5003 = vmatmul.bf16.gmra.mxu0 %v3352
  %v5004 = vpop.f32.mrf.mxu0
  %v5005 = vadd.f32 %v4836, %v5004
  %v5006 = vpop.f32.mrf.mxu0
  %v5007 = vadd.f32 %v4838, %v5006
  %5008 = vmatmul.bf16.gmra.mxu0 %v3355
  %v5009 = vpop.f32.mrf.mxu0
  %v5010 = vadd.f32 %v4841, %v5009
  %v5011 = vpop.f32.mrf.mxu0
  %v5012 = vadd.f32 %v4843, %v5011
  %5013 = vmatmul.bf16.gmra.mxu0 %v3358
  %v5014 = vpop.f32.mrf.mxu0
  %v5015 = vadd.f32 %v4846, %v5014
  %v5016 = vpop.f32.mrf.mxu0
  %v5017 = vadd.f32 %v4848, %v5016
  %5018 = vmatmul.bf16.gmra.mxu0 %v3361
  %v5019 = vpop.f32.mrf.mxu0
  %v5020 = vadd.f32 %v4851, %v5019
  %v5021 = vpop.f32.mrf.mxu0
  %v5022 = vadd.f32 %v4853, %v5021
  %5023 = vmatmul.bf16.gmra.mxu0 %v3364
  %v5024 = vpop.f32.mrf.mxu0
  %v5025 = vadd.f32 %v4856, %v5024
  %v5026 = vpop.f32.mrf.mxu0
  %v5027 = vadd.f32 %v4858, %v5026
  %5028 = vmatmul.bf16.gmra.mxu0 %v3367
  %v5029 = vpop.f32.mrf.mxu0
  %v5030 = vadd.f32 %v4861, %v5029
  %v5031 = vpop.f32.mrf.mxu0
  %v5032 = vadd.f32 %v4863, %v5031
  %5033 = vmatmul.bf16.gmra.mxu0 %v3370
  %v5034 = vpop.f32.mrf.mxu0
  %v5035 = vadd.f32 %v4866, %v5034
  %v5036 = vpop.f32.mrf.mxu0
  %v5037 = vadd.f32 %v4868, %v5036
  %5038 = vmatmul.bf16.gmra.mxu0 %v3373
  %v5039 = vpop.f32.mrf.mxu0
  %v5040 = vadd.f32 %v4871, %v5039
  %v5041 = vpop.f32.mrf.mxu0
  %v5042 = vadd.f32 %v4873, %v5041
  %5043 = vmatmul.bf16.gmra.mxu0 %v3376
  %v5044 = vpop.f32.mrf.mxu0
  %v5045 = vadd.f32 %v4876, %v5044
  %v5046 = vpop.f32.mrf.mxu0
  %v5047 = vadd.f32 %v4878, %v5046
  %5048 = vmatmul.bf16.gmra.mxu0 %v3379
  %v5049 = vpop.f32.mrf.mxu0
  %v5050 = vadd.f32 %v4881, %v5049
  %v5051 = vpop.f32.mrf.mxu0
  %v5052 = vadd.f32 %v4883, %v5051
  %5053 = vmatmul.bf16.gmra.mxu0 %v3382
  %v5054 = vpop.f32.mrf.mxu0
  %v5055 = vadd.f32 %v4886, %v5054
  %v5056 = vpop.f32.mrf.mxu0
  %v5057 = vadd.f32 %v4888, %v5056
  %5058 = vmatmul.bf16.gmra.mxu0 %v3385
  %v5059 = vpop.f32.mrf.mxu0
  %v5060 = vadd.f32 %v4891, %v5059
  %v5061 = vpop.f32.mrf.mxu0
  %v5062 = vadd.f32 %v4893, %v5061
  %5063 = vmatmul.bf16.gmra.mxu0 %v3388
  %v5064 = vpop.f32.mrf.mxu0
  %v5065 = vadd.f32 %v4896, %v5064
  %v5066 = vpop.f32.mrf.mxu0
  %v5067 = vadd.f32 %v4898, %v5066
  %5068 = vmatmul.bf16.gmra.mxu0 %v3391
  %v5069 = vpop.f32.mrf.mxu0
  %v5070 = vadd.f32 %v4901, %v5069
  %v5071 = vpop.f32.mrf.mxu0
  %v5072 = vadd.f32 %v4903, %v5071
  %5073 = vmatmul.bf16.gmra.mxu0 %v3394
  %v5074 = vpop.f32.mrf.mxu0
  %v5075 = vadd.f32 %v4906, %v5074
  %v5076 = vpop.f32.mrf.mxu0
  %v5077 = vadd.f32 %v4908, %v5076
  %5078 = vmatmul.bf16.gmra.mxu0 %v3397
  %v5079 = vpop.f32.mrf.mxu0
  %v5080 = vadd.f32 %v4911, %v5079
  %v5081 = vpop.f32.mrf.mxu0
  %v5082 = vadd.f32 %v4913, %v5081
  %5083 = vmatmul.bf16.gmra.mxu0 %v3400
  %v5084 = vpop.f32.mrf.mxu0
  %v5085 = vadd.f32 %v4916, %v5084
  %v5086 = vpop.f32.mrf.mxu0
  %v5087 = vadd.f32 %v4918, %v5086
  %5088 = vdwg.mxu0
  %s5089 = scalar_lea.vmem %s0, 1536
  %v5090 = vld [vmem:[%s5089] sm:$0xf]
  %v5091 = vld [vmem:[%s5089 + $0x4] sm:$0xf]
  %v5092 = vld [vmem:[%s5089 + $0x8] sm:$0xf]
  %v5093 = vld [vmem:[%s5089 + $0xc] sm:$0xf]
  %v5094 = vld [vmem:[%s5089 + $0x10] sm:$0xf]
  %v5095 = vld [vmem:[%s5089 + $0x14] sm:$0xf]
  %v5096 = vld [vmem:[%s5089 + $0x18] sm:$0xf]
  %v5097 = vld [vmem:[%s5089 + $0x1c] sm:$0xf]
  %v5098 = vld [vmem:[%s5089 + $0x20] sm:$0xf]
  %v5099 = vld [vmem:[%s5089 + $0x24] sm:$0xf]
  %v5100 = vld [vmem:[%s5089 + $0x28] sm:$0xf]
  %v5101 = vld [vmem:[%s5089 + $0x2c] sm:$0xf]
  %v5102 = vld [vmem:[%s5089 + $0x30] sm:$0xf]
  %v5103 = vld [vmem:[%s5089 + $0x34] sm:$0xf]
  %v5104 = vld [vmem:[%s5089 + $0x38] sm:$0xf]
  %v5105 = vld [vmem:[%s5089 + $0x3c] sm:$0xf]
  %v5106 = vld [vmem:[%s5089 + $0x40] sm:$0xf]
  %v5107 = vld [vmem:[%s5089 + $0x44] sm:$0xf]
  %v5108 = vld [vmem:[%s5089 + $0x48] sm:$0xf]
  %v5109 = vld [vmem:[%s5089 + $0x4c] sm:$0xf]
  %v5110 = vld [vmem:[%s5089 + $0x50] sm:$0xf]
  %v5111 = vld [vmem:[%s5089 + $0x54] sm:$0xf]
  %v5112 = vld [vmem:[%s5089 + $0x58] sm:$0xf]
  %v5113 = vld [vmem:[%s5089 + $0x5c] sm:$0xf]
  %v5114 = vld [vmem:[%s5089 + $0x60] sm:$0xf]
  %v5115 = vld [vmem:[%s5089 + $0x64] sm:$0xf]
  %v5116 = vld [vmem:[%s5089 + $0x68] sm:$0xf]
  %v5117 = vld [vmem:[%s5089 + $0x6c] sm:$0xf]
  %v5118 = vld [vmem:[%s5089 + $0x70] sm:$0xf]
  %v5119 = vld [vmem:[%s5089 + $0x74] sm:$0xf]
  %v5120 = vld [vmem:[%s5089 + $0x78] sm:$0xf]
  %v5121 = vld [vmem:[%s5089 + $0x7c] sm:$0xf]
  %v5122 = vld [vmem:[%s5089 + $0x80] sm:$0xf]
  %v5123 = vld [vmem:[%s5089 + $0x84] sm:$0xf]
  %v5124 = vld [vmem:[%s5089 + $0x88] sm:$0xf]
  %v5125 = vld [vmem:[%s5089 + $0x8c] sm:$0xf]
  %v5126 = vld [vmem:[%s5089 + $0x90] sm:$0xf]
  %v5127 = vld [vmem:[%s5089 + $0x94] sm:$0xf]
  %v5128 = vld [vmem:[%s5089 + $0x98] sm:$0xf]
  %v5129 = vld [vmem:[%s5089 + $0x9c] sm:$0xf]
  %v5130 = vld [vmem:[%s5089 + $0xa0] sm:$0xf]
  %v5131 = vld [vmem:[%s5089 + $0xa4] sm:$0xf]
  %v5132 = vld [vmem:[%s5089 + $0xa8] sm:$0xf]
  %v5133 = vld [vmem:[%s5089 + $0xac] sm:$0xf]
  %v5134 = vld [vmem:[%s5089 + $0xb0] sm:$0xf]
  %v5135 = vld [vmem:[%s5089 + $0xb4] sm:$0xf]
  %v5136 = vld [vmem:[%s5089 + $0xb8] sm:$0xf]
  %v5137 = vld [vmem:[%s5089 + $0xbc] sm:$0xf]
  %v5138 = vld [vmem:[%s5089 + $0xc0] sm:$0xf]
  %v5139 = vld [vmem:[%s5089 + $0xc4] sm:$0xf]
  %v5140 = vld [vmem:[%s5089 + $0xc8] sm:$0xf]
  %v5141 = vld [vmem:[%s5089 + $0xcc] sm:$0xf]
  %v5142 = vld [vmem:[%s5089 + $0xd0] sm:$0xf]
  %v5143 = vld [vmem:[%s5089 + $0xd4] sm:$0xf]
  %v5144 = vld [vmem:[%s5089 + $0xd8] sm:$0xf]
  %v5145 = vld [vmem:[%s5089 + $0xdc] sm:$0xf]
  %v5146 = vld [vmem:[%s5089 + $0xe0] sm:$0xf]
  %v5147 = vld [vmem:[%s5089 + $0xe4] sm:$0xf]
  %v5148 = vld [vmem:[%s5089 + $0xe8] sm:$0xf]
  %v5149 = vld [vmem:[%s5089 + $0xec] sm:$0xf]
  %v5150 = vld [vmem:[%s5089 + $0xf0] sm:$0xf]
  %v5151 = vld [vmem:[%s5089 + $0xf4] sm:$0xf]
  %v5152 = vld [vmem:[%s5089 + $0xf8] sm:$0xf]
  %v5153 = vld [vmem:[%s5089 + $0xfc] sm:$0xf]
  %v5218 = vunpack.c.l.b16 %v5090
  %v5219 = vunpack.c.l.b16 %v5091
  %v5220 = vunpack.c.l.b16 %v5092
  %v5221 = vunpack.c.l.b16 %v5093
  %v5222 = vunpack.c.l.b16 %v5094
  %v5223 = vunpack.c.l.b16 %v5095
  %v5224 = vunpack.c.l.b16 %v5096
  %v5225 = vunpack.c.l.b16 %v5097
  %v5226 = vunpack.c.l.b16 %v5098
  %v5227 = vunpack.c.l.b16 %v5099
  %v5228 = vunpack.c.l.b16 %v5100
  %v5229 = vunpack.c.l.b16 %v5101
  %v5230 = vunpack.c.l.b16 %v5102
  %v5231 = vunpack.c.l.b16 %v5103
  %v5232 = vunpack.c.l.b16 %v5104
  %v5233 = vunpack.c.l.b16 %v5105
  %v5234 = vunpack.c.l.b16 %v5106
  %v5235 = vunpack.c.l.b16 %v5107
  %v5236 = vunpack.c.l.b16 %v5108
  %v5237 = vunpack.c.l.b16 %v5109
  %v5238 = vunpack.c.l.b16 %v5110
  %v5239 = vunpack.c.l.b16 %v5111
  %v5240 = vunpack.c.l.b16 %v5112
  %v5241 = vunpack.c.l.b16 %v5113
  %v5242 = vunpack.c.l.b16 %v5114
  %v5243 = vunpack.c.l.b16 %v5115
  %v5244 = vunpack.c.l.b16 %v5116
  %v5245 = vunpack.c.l.b16 %v5117
  %v5246 = vunpack.c.l.b16 %v5118
  %v5247 = vunpack.c.l.b16 %v5119
  %v5248 = vunpack.c.l.b16 %v5120
  %v5249 = vunpack.c.l.b16 %v5121
  %v5250 = vunpack.c.l.b16 %v5122
  %v5251 = vunpack.c.l.b16 %v5123
  %v5252 = vunpack.c.l.b16 %v5124
  %v5253 = vunpack.c.l.b16 %v5125
  %v5254 = vunpack.c.l.b16 %v5126
  %v5255 = vunpack.c.l.b16 %v5127
  %v5256 = vunpack.c.l.b16 %v5128
  %v5257 = vunpack.c.l.b16 %v5129
  %v5258 = vunpack.c.l.b16 %v5130
  %v5259 = vunpack.c.l.b16 %v5131
  %v5260 = vunpack.c.l.b16 %v5132
  %v5261 = vunpack.c.l.b16 %v5133
  %v5262 = vunpack.c.l.b16 %v5134
  %v5263 = vunpack.c.l.b16 %v5135
  %v5264 = vunpack.c.l.b16 %v5136
  %v5265 = vunpack.c.l.b16 %v5137
  %v5266 = vunpack.c.l.b16 %v5138
  %v5267 = vunpack.c.l.b16 %v5139
  %v5268 = vunpack.c.l.b16 %v5140
  %v5269 = vunpack.c.l.b16 %v5141
  %v5270 = vunpack.c.l.b16 %v5142
  %v5271 = vunpack.c.l.b16 %v5143
  %v5272 = vunpack.c.l.b16 %v5144
  %v5273 = vunpack.c.l.b16 %v5145
  %v5274 = vunpack.c.l.b16 %v5146
  %v5275 = vunpack.c.l.b16 %v5147
  %v5276 = vunpack.c.l.b16 %v5148
  %v5277 = vunpack.c.l.b16 %v5149
  %v5278 = vunpack.c.l.b16 %v5150
  %v5279 = vunpack.c.l.b16 %v5151
  %v5280 = vunpack.c.l.b16 %v5152
  %v5281 = vunpack.c.l.b16 %v5153
  %v5282 = vpack.c.b16 %v5219, %v5218
  %v5283 = vpack.c.b16 %v5221, %v5220
  %v5284 = vpack.c.b16 %v5223, %v5222
  %v5285 = vpack.c.b16 %v5225, %v5224
  %v5286 = vpack.c.b16 %v5227, %v5226
  %v5287 = vpack.c.b16 %v5229, %v5228
  %v5288 = vpack.c.b16 %v5231, %v5230
  %v5289 = vpack.c.b16 %v5233, %v5232
  %v5290 = vpack.c.b16 %v5235, %v5234
  %v5291 = vpack.c.b16 %v5237, %v5236
  %v5292 = vpack.c.b16 %v5239, %v5238
  %v5293 = vpack.c.b16 %v5241, %v5240
  %v5294 = vpack.c.b16 %v5243, %v5242
  %v5295 = vpack.c.b16 %v5245, %v5244
  %v5296 = vpack.c.b16 %v5247, %v5246
  %v5297 = vpack.c.b16 %v5249, %v5248
  %v5298 = vpack.c.b16 %v5251, %v5250
  %v5299 = vpack.c.b16 %v5253, %v5252
  %v5300 = vpack.c.b16 %v5255, %v5254
  %v5301 = vpack.c.b16 %v5257, %v5256
  %v5302 = vpack.c.b16 %v5259, %v5258
  %v5303 = vpack.c.b16 %v5261, %v5260
  %v5304 = vpack.c.b16 %v5263, %v5262
  %v5305 = vpack.c.b16 %v5265, %v5264
  %v5306 = vpack.c.b16 %v5267, %v5266
  %v5307 = vpack.c.b16 %v5269, %v5268
  %v5308 = vpack.c.b16 %v5271, %v5270
  %v5309 = vpack.c.b16 %v5273, %v5272
  %v5310 = vpack.c.b16 %v5275, %v5274
  %v5311 = vpack.c.b16 %v5277, %v5276
  %v5312 = vpack.c.b16 %v5279, %v5278
  %v5313 = vpack.c.b16 %v5281, %v5280
  %v5315 = vsel %vm342, %v5282, 0
  %v5318 = vsel %vm342, %v5283, 0
  %v5321 = vsel %vm342, %v5284, 0
  %v5324 = vsel %vm342, %v5285, 0
  %v5327 = vsel %vm342, %v5286, 0
  %v5330 = vsel %vm342, %v5287, 0
  %v5333 = vsel %vm342, %v5288, 0
  %v5336 = vsel %vm342, %v5289, 0
  %v5339 = vsel %vm342, %v5290, 0
  %v5342 = vsel %vm342, %v5291, 0
  %v5345 = vsel %vm342, %v5292, 0
  %v5348 = vsel %vm342, %v5293, 0
  %v5351 = vsel %vm342, %v5294, 0
  %v5354 = vsel %vm342, %v5295, 0
  %v5357 = vsel %vm342, %v5296, 0
  %v5360 = vsel %vm342, %v5297, 0
  %v5363 = vsel %vm342, %v5298, 0
  %v5366 = vsel %vm342, %v5299, 0
  %v5369 = vsel %vm342, %v5300, 0
  %v5372 = vsel %vm342, %v5301, 0
  %v5375 = vsel %vm342, %v5302, 0
  %v5378 = vsel %vm342, %v5303, 0
  %v5381 = vsel %vm342, %v5304, 0
  %v5384 = vsel %vm342, %v5305, 0
  %v5387 = vsel %vm342, %v5306, 0
  %v5390 = vsel %vm342, %v5307, 0
  %v5393 = vsel %vm342, %v5308, 0
  %v5396 = vsel %vm342, %v5309, 0
  %v5399 = vsel %vm342, %v5310, 0
  %v5402 = vsel %vm342, %v5311, 0
  %v5405 = vsel %vm342, %v5312, 0
  %v5408 = vsel %vm342, %v5313, 0
  %5410 = vmatpush.bf16.msra.mxu0 0
  %5411 = vmatpush.bf16.msra.mxu0 0
  %5412 = vmatpush.bf16.msra.mxu0 0
  %5413 = vmatpush.bf16.msra.mxu0 0
  %5414 = vmatpush.bf16.msra.mxu0 0
  %5415 = vmatpush.bf16.msra.mxu0 %v1392
  %5416 = vmatpush.bf16.msra.mxu0 %v1291
  %5417 = vmatpush.bf16.msra.mxu0 %v1290
  %5418 = vmatmul.bf16.gmra.mxu0 %v5315
  %v5419 = vpop.f32.mrf.mxu0
  %v5420 = vadd.f32 0.0, %v5419
  %v5421 = vpop.f32.mrf.mxu0
  %v5422 = vadd.f32 0.0, %v5421
  %5423 = vmatmul.bf16.gmra.mxu0 %v5318
  %v5424 = vpop.f32.mrf.mxu0
  %v5425 = vadd.f32 0.0, %v5424
  %v5426 = vpop.f32.mrf.mxu0
  %v5427 = vadd.f32 0.0, %v5426
  %5428 = vmatmul.bf16.gmra.mxu0 %v5321
  %v5429 = vpop.f32.mrf.mxu0
  %v5430 = vadd.f32 0.0, %v5429
  %v5431 = vpop.f32.mrf.mxu0
  %v5432 = vadd.f32 0.0, %v5431
  %5433 = vmatmul.bf16.gmra.mxu0 %v5324
  %v5434 = vpop.f32.mrf.mxu0
  %v5435 = vadd.f32 0.0, %v5434
  %v5436 = vpop.f32.mrf.mxu0
  %v5437 = vadd.f32 0.0, %v5436
  %5438 = vmatmul.bf16.gmra.mxu0 %v5327
  %v5439 = vpop.f32.mrf.mxu0
  %v5440 = vadd.f32 0.0, %v5439
  %v5441 = vpop.f32.mrf.mxu0
  %v5442 = vadd.f32 0.0, %v5441
  %5443 = vmatmul.bf16.gmra.mxu0 %v5330
  %v5444 = vpop.f32.mrf.mxu0
  %v5445 = vadd.f32 0.0, %v5444
  %v5446 = vpop.f32.mrf.mxu0
  %v5447 = vadd.f32 0.0, %v5446
  %5448 = vmatmul.bf16.gmra.mxu0 %v5333
  %v5449 = vpop.f32.mrf.mxu0
  %v5450 = vadd.f32 0.0, %v5449
  %v5451 = vpop.f32.mrf.mxu0
  %v5452 = vadd.f32 0.0, %v5451
  %5453 = vmatmul.bf16.gmra.mxu0 %v5336
  %v5454 = vpop.f32.mrf.mxu0
  %v5455 = vadd.f32 0.0, %v5454
  %v5456 = vpop.f32.mrf.mxu0
  %v5457 = vadd.f32 0.0, %v5456
  %5458 = vmatmul.bf16.gmra.mxu0 %v5339
  %v5459 = vpop.f32.mrf.mxu0
  %v5460 = vadd.f32 0.0, %v5459
  %v5461 = vpop.f32.mrf.mxu0
  %v5462 = vadd.f32 0.0, %v5461
  %5463 = vmatmul.bf16.gmra.mxu0 %v5342
  %v5464 = vpop.f32.mrf.mxu0
  %v5465 = vadd.f32 0.0, %v5464
  %v5466 = vpop.f32.mrf.mxu0
  %v5467 = vadd.f32 0.0, %v5466
  %5468 = vmatmul.bf16.gmra.mxu0 %v5345
  %v5469 = vpop.f32.mrf.mxu0
  %v5470 = vadd.f32 0.0, %v5469
  %v5471 = vpop.f32.mrf.mxu0
  %v5472 = vadd.f32 0.0, %v5471
  %5473 = vmatmul.bf16.gmra.mxu0 %v5348
  %v5474 = vpop.f32.mrf.mxu0
  %v5475 = vadd.f32 0.0, %v5474
  %v5476 = vpop.f32.mrf.mxu0
  %v5477 = vadd.f32 0.0, %v5476
  %5478 = vmatmul.bf16.gmra.mxu0 %v5351
  %v5479 = vpop.f32.mrf.mxu0
  %v5480 = vadd.f32 0.0, %v5479
  %v5481 = vpop.f32.mrf.mxu0
  %v5482 = vadd.f32 0.0, %v5481
  %5483 = vmatmul.bf16.gmra.mxu0 %v5354
  %v5484 = vpop.f32.mrf.mxu0
  %v5485 = vadd.f32 0.0, %v5484
  %v5486 = vpop.f32.mrf.mxu0
  %v5487 = vadd.f32 0.0, %v5486
  %5488 = vmatmul.bf16.gmra.mxu0 %v5357
  %v5489 = vpop.f32.mrf.mxu0
  %v5490 = vadd.f32 0.0, %v5489
  %v5491 = vpop.f32.mrf.mxu0
  %v5492 = vadd.f32 0.0, %v5491
  %5493 = vmatmul.bf16.gmra.mxu0 %v5360
  %v5494 = vpop.f32.mrf.mxu0
  %v5495 = vadd.f32 0.0, %v5494
  %v5496 = vpop.f32.mrf.mxu0
  %v5497 = vadd.f32 0.0, %v5496
  %5498 = vmatmul.bf16.gmra.mxu0 %v5363
  %v5499 = vpop.f32.mrf.mxu0
  %v5500 = vadd.f32 0.0, %v5499
  %v5501 = vpop.f32.mrf.mxu0
  %v5502 = vadd.f32 0.0, %v5501
  %5503 = vmatmul.bf16.gmra.mxu0 %v5366
  %v5504 = vpop.f32.mrf.mxu0
  %v5505 = vadd.f32 0.0, %v5504
  %v5506 = vpop.f32.mrf.mxu0
  %v5507 = vadd.f32 0.0, %v5506
  %5508 = vmatmul.bf16.gmra.mxu0 %v5369
  %v5509 = vpop.f32.mrf.mxu0
  %v5510 = vadd.f32 0.0, %v5509
  %v5511 = vpop.f32.mrf.mxu0
  %v5512 = vadd.f32 0.0, %v5511
  %5513 = vmatmul.bf16.gmra.mxu0 %v5372
  %v5514 = vpop.f32.mrf.mxu0
  %v5515 = vadd.f32 0.0, %v5514
  %v5516 = vpop.f32.mrf.mxu0
  %v5517 = vadd.f32 0.0, %v5516
  %5518 = vmatmul.bf16.gmra.mxu0 %v5375
  %v5519 = vpop.f32.mrf.mxu0
  %v5520 = vadd.f32 0.0, %v5519
  %v5521 = vpop.f32.mrf.mxu0
  %v5522 = vadd.f32 0.0, %v5521
  %5523 = vmatmul.bf16.gmra.mxu0 %v5378
  %v5524 = vpop.f32.mrf.mxu0
  %v5525 = vadd.f32 0.0, %v5524
  %v5526 = vpop.f32.mrf.mxu0
  %v5527 = vadd.f32 0.0, %v5526
  %5528 = vmatmul.bf16.gmra.mxu0 %v5381
  %v5529 = vpop.f32.mrf.mxu0
  %v5530 = vadd.f32 0.0, %v5529
  %v5531 = vpop.f32.mrf.mxu0
  %v5532 = vadd.f32 0.0, %v5531
  %5533 = vmatmul.bf16.gmra.mxu0 %v5384
  %v5534 = vpop.f32.mrf.mxu0
  %v5535 = vadd.f32 0.0, %v5534
  %v5536 = vpop.f32.mrf.mxu0
  %v5537 = vadd.f32 0.0, %v5536
  %5538 = vmatmul.bf16.gmra.mxu0 %v5387
  %v5539 = vpop.f32.mrf.mxu0
  %v5540 = vadd.f32 0.0, %v5539
  %v5541 = vpop.f32.mrf.mxu0
  %v5542 = vadd.f32 0.0, %v5541
  %5543 = vmatmul.bf16.gmra.mxu0 %v5390
  %v5544 = vpop.f32.mrf.mxu0
  %v5545 = vadd.f32 0.0, %v5544
  %v5546 = vpop.f32.mrf.mxu0
  %v5547 = vadd.f32 0.0, %v5546
  %5548 = vmatmul.bf16.gmra.mxu0 %v5393
  %v5549 = vpop.f32.mrf.mxu0
  %v5550 = vadd.f32 0.0, %v5549
  %v5551 = vpop.f32.mrf.mxu0
  %v5552 = vadd.f32 0.0, %v5551
  %5553 = vmatmul.bf16.gmra.mxu0 %v5396
  %v5554 = vpop.f32.mrf.mxu0
  %v5555 = vadd.f32 0.0, %v5554
  %v5556 = vpop.f32.mrf.mxu0
  %v5557 = vadd.f32 0.0, %v5556
  %5558 = vmatmul.bf16.gmra.mxu0 %v5399
  %v5559 = vpop.f32.mrf.mxu0
  %v5560 = vadd.f32 0.0, %v5559
  %v5561 = vpop.f32.mrf.mxu0
  %v5562 = vadd.f32 0.0, %v5561
  %5563 = vmatmul.bf16.gmra.mxu0 %v5402
  %v5564 = vpop.f32.mrf.mxu0
  %v5565 = vadd.f32 0.0, %v5564
  %v5566 = vpop.f32.mrf.mxu0
  %v5567 = vadd.f32 0.0, %v5566
  %5568 = vmatmul.bf16.gmra.mxu0 %v5405
  %v5569 = vpop.f32.mrf.mxu0
  %v5570 = vadd.f32 0.0, %v5569
  %v5571 = vpop.f32.mrf.mxu0
  %v5572 = vadd.f32 0.0, %v5571
  %5573 = vmatmul.bf16.gmra.mxu0 %v5408
  %v5574 = vpop.f32.mrf.mxu0
  %v5575 = vadd.f32 0.0, %v5574
  %v5576 = vpop.f32.mrf.mxu0
  %v5577 = vadd.f32 0.0, %v5576
  %5578 = vdwg.mxu0
  %v5579 = vadd.f32 %v4930, %v5420
  %v5580 = vadd.f32 %v4932, %v5422
  %v5581 = vadd.f32 %v4935, %v5425
  %v5582 = vadd.f32 %v4937, %v5427
  %v5583 = vadd.f32 %v4940, %v5430
  %v5584 = vadd.f32 %v4942, %v5432
  %v5585 = vadd.f32 %v4945, %v5435
  %v5586 = vadd.f32 %v4947, %v5437
  %v5587 = vadd.f32 %v4950, %v5440
  %v5588 = vadd.f32 %v4952, %v5442
  %v5589 = vadd.f32 %v4955, %v5445
  %v5590 = vadd.f32 %v4957, %v5447
  %v5591 = vadd.f32 %v4960, %v5450
  %v5592 = vadd.f32 %v4962, %v5452
  %v5593 = vadd.f32 %v4965, %v5455
  %v5594 = vadd.f32 %v4967, %v5457
  %v5595 = vadd.f32 %v4970, %v5460
  %v5596 = vadd.f32 %v4972, %v5462
  %v5597 = vadd.f32 %v4975, %v5465
  %v5598 = vadd.f32 %v4977, %v5467
  %v5599 = vadd.f32 %v4980, %v5470
  %v5600 = vadd.f32 %v4982, %v5472
  %v5601 = vadd.f32 %v4985, %v5475
  %v5602 = vadd.f32 %v4987, %v5477
  %v5603 = vadd.f32 %v4990, %v5480
  %v5604 = vadd.f32 %v4992, %v5482
  %v5605 = vadd.f32 %v4995, %v5485
  %v5606 = vadd.f32 %v4997, %v5487
  %v5607 = vadd.f32 %v5000, %v5490
  %v5608 = vadd.f32 %v5002, %v5492
  %v5609 = vadd.f32 %v5005, %v5495
  %v5610 = vadd.f32 %v5007, %v5497
  %v5611 = vadd.f32 %v5010, %v5500
  %v5612 = vadd.f32 %v5012, %v5502
  %v5613 = vadd.f32 %v5015, %v5505
  %v5614 = vadd.f32 %v5017, %v5507
  %v5615 = vadd.f32 %v5020, %v5510
  %v5616 = vadd.f32 %v5022, %v5512
  %v5617 = vadd.f32 %v5025, %v5515
  %v5618 = vadd.f32 %v5027, %v5517
  %v5619 = vadd.f32 %v5030, %v5520
  %v5620 = vadd.f32 %v5032, %v5522
  %v5621 = vadd.f32 %v5035, %v5525
  %v5622 = vadd.f32 %v5037, %v5527
  %v5623 = vadd.f32 %v5040, %v5530
  %v5624 = vadd.f32 %v5042, %v5532
  %v5625 = vadd.f32 %v5045, %v5535
  %v5626 = vadd.f32 %v5047, %v5537
  %v5627 = vadd.f32 %v5050, %v5540
  %v5628 = vadd.f32 %v5052, %v5542
  %v5629 = vadd.f32 %v5055, %v5545
  %v5630 = vadd.f32 %v5057, %v5547
  %v5631 = vadd.f32 %v5060, %v5550
  %v5632 = vadd.f32 %v5062, %v5552
  %v5633 = vadd.f32 %v5065, %v5555
  %v5634 = vadd.f32 %v5067, %v5557
  %v5635 = vadd.f32 %v5070, %v5560
  %v5636 = vadd.f32 %v5072, %v5562
  %v5637 = vadd.f32 %v5075, %v5565
  %v5638 = vadd.f32 %v5077, %v5567
  %v5639 = vadd.f32 %v5080, %v5570
  %v5640 = vadd.f32 %v5082, %v5572
  %v5641 = vadd.f32 %v5085, %v5575
  %v5642 = vadd.f32 %v5087, %v5577
  %v5643 = vadd.f32 %v5579, %v5580
  %v5644 = vadd.f32 %v5643, %v5581
  %v5645 = vadd.f32 %v5644, %v5582
  %v5646 = vadd.f32 %v5645, %v5583
  %v5647 = vadd.f32 %v5646, %v5584
  %v5648 = vadd.f32 %v5647, %v5585
  %v5649 = vadd.f32 %v5648, %v5586
  %v5650 = vrot.slane %v5649, 4
  %v5651 = vadd.f32 %v5649, %v5650
  %v5652 = vrot.slane %v5651, 2
  %v5653 = vadd.f32 %v5651, %v5652
  %v5654 = vrot.slane %v5653, 1
  %v5655 = vadd.f32 %v5653, %v5654
  %v5656 = vadd.f32 %v5587, %v5588
  %v5657 = vadd.f32 %v5656, %v5589
  %v5658 = vadd.f32 %v5657, %v5590
  %v5659 = vadd.f32 %v5658, %v5591
  %v5660 = vadd.f32 %v5659, %v5592
  %v5661 = vadd.f32 %v5660, %v5593
  %v5662 = vadd.f32 %v5661, %v5594
  %v5663 = vrot.slane %v5662, 4
  %v5664 = vadd.f32 %v5662, %v5663
  %v5665 = vrot.slane %v5664, 2
  %v5666 = vadd.f32 %v5664, %v5665
  %v5667 = vrot.slane %v5666, 1
  %v5668 = vadd.f32 %v5666, %v5667
  %v5669 = vadd.f32 %v5595, %v5596
  %v5670 = vadd.f32 %v5669, %v5597
  %v5671 = vadd.f32 %v5670, %v5598
  %v5672 = vadd.f32 %v5671, %v5599
  %v5673 = vadd.f32 %v5672, %v5600
  %v5674 = vadd.f32 %v5673, %v5601
  %v5675 = vadd.f32 %v5674, %v5602
  %v5676 = vrot.slane %v5675, 4
  %v5677 = vadd.f32 %v5675, %v5676
  %v5678 = vrot.slane %v5677, 2
  %v5679 = vadd.f32 %v5677, %v5678
  %v5680 = vrot.slane %v5679, 1
  %v5681 = vadd.f32 %v5679, %v5680
  %v5682 = vadd.f32 %v5603, %v5604
  %v5683 = vadd.f32 %v5682, %v5605
  %v5684 = vadd.f32 %v5683, %v5606
  %v5685 = vadd.f32 %v5684, %v5607
  %v5686 = vadd.f32 %v5685, %v5608
  %v5687 = vadd.f32 %v5686, %v5609
  %v5688 = vadd.f32 %v5687, %v5610
  %v5689 = vrot.slane %v5688, 4
  %v5690 = vadd.f32 %v5688, %v5689
  %v5691 = vrot.slane %v5690, 2
  %v5692 = vadd.f32 %v5690, %v5691
  %v5693 = vrot.slane %v5692, 1
  %v5694 = vadd.f32 %v5692, %v5693
  %v5695 = vadd.f32 %v5611, %v5612
  %v5696 = vadd.f32 %v5695, %v5613
  %v5697 = vadd.f32 %v5696, %v5614
  %v5698 = vadd.f32 %v5697, %v5615
  %v5699 = vadd.f32 %v5698, %v5616
  %v5700 = vadd.f32 %v5699, %v5617
  %v5701 = vadd.f32 %v5700, %v5618
  %v5702 = vrot.slane %v5701, 4
  %v5703 = vadd.f32 %v5701, %v5702
  %v5704 = vrot.slane %v5703, 2
  %v5705 = vadd.f32 %v5703, %v5704
  %v5706 = vrot.slane %v5705, 1
  %v5707 = vadd.f32 %v5705, %v5706
  %v5708 = vadd.f32 %v5619, %v5620
  %v5709 = vadd.f32 %v5708, %v5621
  %v5710 = vadd.f32 %v5709, %v5622
  %v5711 = vadd.f32 %v5710, %v5623
  %v5712 = vadd.f32 %v5711, %v5624
  %v5713 = vadd.f32 %v5712, %v5625
  %v5714 = vadd.f32 %v5713, %v5626
  %v5715 = vrot.slane %v5714, 4
  %v5716 = vadd.f32 %v5714, %v5715
  %v5717 = vrot.slane %v5716, 2
  %v5718 = vadd.f32 %v5716, %v5717
  %v5719 = vrot.slane %v5718, 1
  %v5720 = vadd.f32 %v5718, %v5719
  %v5721 = vadd.f32 %v5627, %v5628
  %v5722 = vadd.f32 %v5721, %v5629
  %v5723 = vadd.f32 %v5722, %v5630
  %v5724 = vadd.f32 %v5723, %v5631
  %v5725 = vadd.f32 %v5724, %v5632
  %v5726 = vadd.f32 %v5725, %v5633
  %v5727 = vadd.f32 %v5726, %v5634
  %v5728 = vrot.slane %v5727, 4
  %v5729 = vadd.f32 %v5727, %v5728
  %v5730 = vrot.slane %v5729, 2
  %v5731 = vadd.f32 %v5729, %v5730
  %v5732 = vrot.slane %v5731, 1
  %v5733 = vadd.f32 %v5731, %v5732
  %v5734 = vadd.f32 %v5635, %v5636
  %v5735 = vadd.f32 %v5734, %v5637
  %v5736 = vadd.f32 %v5735, %v5638
  %v5737 = vadd.f32 %v5736, %v5639
  %v5738 = vadd.f32 %v5737, %v5640
  %v5739 = vadd.f32 %v5738, %v5641
  %v5740 = vadd.f32 %v5739, %v5642
  %v5741 = vrot.slane %v5740, 4
  %v5742 = vadd.f32 %v5740, %v5741
  %v5743 = vrot.slane %v5742, 2
  %v5744 = vadd.f32 %v5742, %v5743
  %v5745 = vrot.slane %v5744, 1
  %v5746 = vadd.f32 %v5744, %v5745
  %v5747 = vadd.f32 %v4743, %v5655
  %v5748 = vadd.f32 %v4744, %v5668
  %v5749 = vadd.f32 %v4745, %v5681
  %v5750 = vadd.f32 %v4746, %v5694
  %v5751 = vadd.f32 %v4747, %v5707
  %v5752 = vadd.f32 %v4748, %v5720
  %v5753 = vadd.f32 %v4749, %v5733
  %v5754 = vadd.f32 %v4750, %v5746
  %5755 = vmatpush.bf16.msra.mxu0 0
  %5756 = vmatpush.bf16.msra.mxu0 0
  %5757 = vmatpush.bf16.msra.mxu0 0
  %5758 = vmatpush.bf16.msra.mxu0 0
  %5759 = vmatpush.bf16.msra.mxu0 0
  %5760 = vmatpush.bf16.msra.mxu0 %v441
  %5761 = vmatpush.bf16.msra.mxu0 %v338
  %5762 = vmatpush.bf16.msra.mxu0 %v337
  %5763 = vmatmul.bf16.gmra.mxu0 %v5315
  %v5764 = vpop.f32.mrf.mxu0
  %v5765 = vadd.f32 0.0, %v5764
  %v5766 = vpop.f32.mrf.mxu0
  %v5767 = vadd.f32 0.0, %v5766
  %5768 = vmatmul.bf16.gmra.mxu0 %v5318
  %v5769 = vpop.f32.mrf.mxu0
  %v5770 = vadd.f32 0.0, %v5769
  %v5771 = vpop.f32.mrf.mxu0
  %v5772 = vadd.f32 0.0, %v5771
  %5773 = vmatmul.bf16.gmra.mxu0 %v5321
  %v5774 = vpop.f32.mrf.mxu0
  %v5775 = vadd.f32 0.0, %v5774
  %v5776 = vpop.f32.mrf.mxu0
  %v5777 = vadd.f32 0.0, %v5776
  %5778 = vmatmul.bf16.gmra.mxu0 %v5324
  %v5779 = vpop.f32.mrf.mxu0
  %v5780 = vadd.f32 0.0, %v5779
  %v5781 = vpop.f32.mrf.mxu0
  %v5782 = vadd.f32 0.0, %v5781
  %5783 = vmatmul.bf16.gmra.mxu0 %v5327
  %v5784 = vpop.f32.mrf.mxu0
  %v5785 = vadd.f32 0.0, %v5784
  %v5786 = vpop.f32.mrf.mxu0
  %v5787 = vadd.f32 0.0, %v5786
  %5788 = vmatmul.bf16.gmra.mxu0 %v5330
  %v5789 = vpop.f32.mrf.mxu0
  %v5790 = vadd.f32 0.0, %v5789
  %v5791 = vpop.f32.mrf.mxu0
  %v5792 = vadd.f32 0.0, %v5791
  %5793 = vmatmul.bf16.gmra.mxu0 %v5333
  %v5794 = vpop.f32.mrf.mxu0
  %v5795 = vadd.f32 0.0, %v5794
  %v5796 = vpop.f32.mrf.mxu0
  %v5797 = vadd.f32 0.0, %v5796
  %5798 = vmatmul.bf16.gmra.mxu0 %v5336
  %v5799 = vpop.f32.mrf.mxu0
  %v5800 = vadd.f32 0.0, %v5799
  %v5801 = vpop.f32.mrf.mxu0
  %v5802 = vadd.f32 0.0, %v5801
  %5803 = vmatmul.bf16.gmra.mxu0 %v5339
  %v5804 = vpop.f32.mrf.mxu0
  %v5805 = vadd.f32 0.0, %v5804
  %v5806 = vpop.f32.mrf.mxu0
  %v5807 = vadd.f32 0.0, %v5806
  %5808 = vmatmul.bf16.gmra.mxu0 %v5342
  %v5809 = vpop.f32.mrf.mxu0
  %v5810 = vadd.f32 0.0, %v5809
  %v5811 = vpop.f32.mrf.mxu0
  %v5812 = vadd.f32 0.0, %v5811
  %5813 = vmatmul.bf16.gmra.mxu0 %v5345
  %v5814 = vpop.f32.mrf.mxu0
  %v5815 = vadd.f32 0.0, %v5814
  %v5816 = vpop.f32.mrf.mxu0
  %v5817 = vadd.f32 0.0, %v5816
  %5818 = vmatmul.bf16.gmra.mxu0 %v5348
  %v5819 = vpop.f32.mrf.mxu0
  %v5820 = vadd.f32 0.0, %v5819
  %v5821 = vpop.f32.mrf.mxu0
  %v5822 = vadd.f32 0.0, %v5821
  %5823 = vmatmul.bf16.gmra.mxu0 %v5351
  %v5824 = vpop.f32.mrf.mxu0
  %v5825 = vadd.f32 0.0, %v5824
  %v5826 = vpop.f32.mrf.mxu0
  %v5827 = vadd.f32 0.0, %v5826
  %5828 = vmatmul.bf16.gmra.mxu0 %v5354
  %v5829 = vpop.f32.mrf.mxu0
  %v5830 = vadd.f32 0.0, %v5829
  %v5831 = vpop.f32.mrf.mxu0
  %v5832 = vadd.f32 0.0, %v5831
  %5833 = vmatmul.bf16.gmra.mxu0 %v5357
  %v5834 = vpop.f32.mrf.mxu0
  %v5835 = vadd.f32 0.0, %v5834
  %v5836 = vpop.f32.mrf.mxu0
  %v5837 = vadd.f32 0.0, %v5836
  %5838 = vmatmul.bf16.gmra.mxu0 %v5360
  %v5839 = vpop.f32.mrf.mxu0
  %v5840 = vadd.f32 0.0, %v5839
  %v5841 = vpop.f32.mrf.mxu0
  %v5842 = vadd.f32 0.0, %v5841
  %5843 = vmatmul.bf16.gmra.mxu0 %v5363
  %v5844 = vpop.f32.mrf.mxu0
  %v5845 = vadd.f32 0.0, %v5844
  %v5846 = vpop.f32.mrf.mxu0
  %v5847 = vadd.f32 0.0, %v5846
  %5848 = vmatmul.bf16.gmra.mxu0 %v5366
  %v5849 = vpop.f32.mrf.mxu0
  %v5850 = vadd.f32 0.0, %v5849
  %v5851 = vpop.f32.mrf.mxu0
  %v5852 = vadd.f32 0.0, %v5851
  %5853 = vmatmul.bf16.gmra.mxu0 %v5369
  %v5854 = vpop.f32.mrf.mxu0
  %v5855 = vadd.f32 0.0, %v5854
  %v5856 = vpop.f32.mrf.mxu0
  %v5857 = vadd.f32 0.0, %v5856
  %5858 = vmatmul.bf16.gmra.mxu0 %v5372
  %v5859 = vpop.f32.mrf.mxu0
  %v5860 = vadd.f32 0.0, %v5859
  %v5861 = vpop.f32.mrf.mxu0
  %v5862 = vadd.f32 0.0, %v5861
  %5863 = vmatmul.bf16.gmra.mxu0 %v5375
  %v5864 = vpop.f32.mrf.mxu0
  %v5865 = vadd.f32 0.0, %v5864
  %v5866 = vpop.f32.mrf.mxu0
  %v5867 = vadd.f32 0.0, %v5866
  %5868 = vmatmul.bf16.gmra.mxu0 %v5378
  %v5869 = vpop.f32.mrf.mxu0
  %v5870 = vadd.f32 0.0, %v5869
  %v5871 = vpop.f32.mrf.mxu0
  %v5872 = vadd.f32 0.0, %v5871
  %5873 = vmatmul.bf16.gmra.mxu0 %v5381
  %v5874 = vpop.f32.mrf.mxu0
  %v5875 = vadd.f32 0.0, %v5874
  %v5876 = vpop.f32.mrf.mxu0
  %v5877 = vadd.f32 0.0, %v5876
  %5878 = vmatmul.bf16.gmra.mxu0 %v5384
  %v5879 = vpop.f32.mrf.mxu0
  %v5880 = vadd.f32 0.0, %v5879
  %v5881 = vpop.f32.mrf.mxu0
  %v5882 = vadd.f32 0.0, %v5881
  %5883 = vmatmul.bf16.gmra.mxu0 %v5387
  %v5884 = vpop.f32.mrf.mxu0
  %v5885 = vadd.f32 0.0, %v5884
  %v5886 = vpop.f32.mrf.mxu0
  %v5887 = vadd.f32 0.0, %v5886
  %5888 = vmatmul.bf16.gmra.mxu0 %v5390
  %v5889 = vpop.f32.mrf.mxu0
  %v5890 = vadd.f32 0.0, %v5889
  %v5891 = vpop.f32.mrf.mxu0
  %v5892 = vadd.f32 0.0, %v5891
  %5893 = vmatmul.bf16.gmra.mxu0 %v5393
  %v5894 = vpop.f32.mrf.mxu0
  %v5895 = vadd.f32 0.0, %v5894
  %v5896 = vpop.f32.mrf.mxu0
  %v5897 = vadd.f32 0.0, %v5896
  %5898 = vmatmul.bf16.gmra.mxu0 %v5396
  %v5899 = vpop.f32.mrf.mxu0
  %v5900 = vadd.f32 0.0, %v5899
  %v5901 = vpop.f32.mrf.mxu0
  %v5902 = vadd.f32 0.0, %v5901
  %5903 = vmatmul.bf16.gmra.mxu0 %v5399
  %v5904 = vpop.f32.mrf.mxu0
  %v5905 = vadd.f32 0.0, %v5904
  %v5906 = vpop.f32.mrf.mxu0
  %v5907 = vadd.f32 0.0, %v5906
  %5908 = vmatmul.bf16.gmra.mxu0 %v5402
  %v5909 = vpop.f32.mrf.mxu0
  %v5910 = vadd.f32 0.0, %v5909
  %v5911 = vpop.f32.mrf.mxu0
  %v5912 = vadd.f32 0.0, %v5911
  %5913 = vmatmul.bf16.gmra.mxu0 %v5405
  %v5914 = vpop.f32.mrf.mxu0
  %v5915 = vadd.f32 0.0, %v5914
  %v5916 = vpop.f32.mrf.mxu0
  %v5917 = vadd.f32 0.0, %v5916
  %5918 = vmatmul.bf16.gmra.mxu0 %v5408
  %v5919 = vpop.f32.mrf.mxu0
  %v5920 = vadd.f32 0.0, %v5919
  %v5921 = vpop.f32.mrf.mxu0
  %v5922 = vadd.f32 0.0, %v5921
  %5923 = vdwg.mxu0
  %5924 = vmatpush.bf16.msra.mxu0 0
  %5925 = vmatpush.bf16.msra.mxu0 0
  %5926 = vmatpush.bf16.msra.mxu0 0
  %5927 = vmatpush.bf16.msra.mxu0 0
  %5928 = vmatpush.bf16.msra.mxu0 0
  %5929 = vmatpush.bf16.msra.mxu0 %v884
  %5930 = vmatpush.bf16.msra.mxu0 %v783
  %5931 = vmatpush.bf16.msra.mxu0 %v782
  %5932 = vmatmul.bf16.gmra.mxu0 %v4311
  %v5933 = vpop.f32.mrf.mxu0
  %v5934 = vadd.f32 %v5765, %v5933
  %v5935 = vpop.f32.mrf.mxu0
  %v5936 = vadd.f32 %v5767, %v5935
  %5937 = vmatmul.bf16.gmra.mxu0 %v4314
  %v5938 = vpop.f32.mrf.mxu0
  %v5939 = vadd.f32 %v5770, %v5938
  %v5940 = vpop.f32.mrf.mxu0
  %v5941 = vadd.f32 %v5772, %v5940
  %5942 = vmatmul.bf16.gmra.mxu0 %v4317
  %v5943 = vpop.f32.mrf.mxu0
  %v5944 = vadd.f32 %v5775, %v5943
  %v5945 = vpop.f32.mrf.mxu0
  %v5946 = vadd.f32 %v5777, %v5945
  %5947 = vmatmul.bf16.gmra.mxu0 %v4320
  %v5948 = vpop.f32.mrf.mxu0
  %v5949 = vadd.f32 %v5780, %v5948
  %v5950 = vpop.f32.mrf.mxu0
  %v5951 = vadd.f32 %v5782, %v5950
  %5952 = vmatmul.bf16.gmra.mxu0 %v4323
  %v5953 = vpop.f32.mrf.mxu0
  %v5954 = vadd.f32 %v5785, %v5953
  %v5955 = vpop.f32.mrf.mxu0
  %v5956 = vadd.f32 %v5787, %v5955
  %5957 = vmatmul.bf16.gmra.mxu0 %v4326
  %v5958 = vpop.f32.mrf.mxu0
  %v5959 = vadd.f32 %v5790, %v5958
  %v5960 = vpop.f32.mrf.mxu0
  %v5961 = vadd.f32 %v5792, %v5960
  %5962 = vmatmul.bf16.gmra.mxu0 %v4329
  %v5963 = vpop.f32.mrf.mxu0
  %v5964 = vadd.f32 %v5795, %v5963
  %v5965 = vpop.f32.mrf.mxu0
  %v5966 = vadd.f32 %v5797, %v5965
  %5967 = vmatmul.bf16.gmra.mxu0 %v4332
  %v5968 = vpop.f32.mrf.mxu0
  %v5969 = vadd.f32 %v5800, %v5968
  %v5970 = vpop.f32.mrf.mxu0
  %v5971 = vadd.f32 %v5802, %v5970
  %5972 = vmatmul.bf16.gmra.mxu0 %v4335
  %v5973 = vpop.f32.mrf.mxu0
  %v5974 = vadd.f32 %v5805, %v5973
  %v5975 = vpop.f32.mrf.mxu0
  %v5976 = vadd.f32 %v5807, %v5975
  %5977 = vmatmul.bf16.gmra.mxu0 %v4338
  %v5978 = vpop.f32.mrf.mxu0
  %v5979 = vadd.f32 %v5810, %v5978
  %v5980 = vpop.f32.mrf.mxu0
  %v5981 = vadd.f32 %v5812, %v5980
  %5982 = vmatmul.bf16.gmra.mxu0 %v4341
  %v5983 = vpop.f32.mrf.mxu0
  %v5984 = vadd.f32 %v5815, %v5983
  %v5985 = vpop.f32.mrf.mxu0
  %v5986 = vadd.f32 %v5817, %v5985
  %5987 = vmatmul.bf16.gmra.mxu0 %v4344
  %v5988 = vpop.f32.mrf.mxu0
  %v5989 = vadd.f32 %v5820, %v5988
  %v5990 = vpop.f32.mrf.mxu0
  %v5991 = vadd.f32 %v5822, %v5990
  %5992 = vmatmul.bf16.gmra.mxu0 %v4347
  %v5993 = vpop.f32.mrf.mxu0
  %v5994 = vadd.f32 %v5825, %v5993
  %v5995 = vpop.f32.mrf.mxu0
  %v5996 = vadd.f32 %v5827, %v5995
  %5997 = vmatmul.bf16.gmra.mxu0 %v4350
  %v5998 = vpop.f32.mrf.mxu0
  %v5999 = vadd.f32 %v5830, %v5998
  %v6000 = vpop.f32.mrf.mxu0
  %v6001 = vadd.f32 %v5832, %v6000
  %6002 = vmatmul.bf16.gmra.mxu0 %v4353
  %v6003 = vpop.f32.mrf.mxu0
  %v6004 = vadd.f32 %v5835, %v6003
  %v6005 = vpop.f32.mrf.mxu0
  %v6006 = vadd.f32 %v5837, %v6005
  %6007 = vmatmul.bf16.gmra.mxu0 %v4356
  %v6008 = vpop.f32.mrf.mxu0
  %v6009 = vadd.f32 %v5840, %v6008
  %v6010 = vpop.f32.mrf.mxu0
  %v6011 = vadd.f32 %v5842, %v6010
  %6012 = vmatmul.bf16.gmra.mxu0 %v4359
  %v6013 = vpop.f32.mrf.mxu0
  %v6014 = vadd.f32 %v5845, %v6013
  %v6015 = vpop.f32.mrf.mxu0
  %v6016 = vadd.f32 %v5847, %v6015
  %6017 = vmatmul.bf16.gmra.mxu0 %v4362
  %v6018 = vpop.f32.mrf.mxu0
  %v6019 = vadd.f32 %v5850, %v6018
  %v6020 = vpop.f32.mrf.mxu0
  %v6021 = vadd.f32 %v5852, %v6020
  %6022 = vmatmul.bf16.gmra.mxu0 %v4365
  %v6023 = vpop.f32.mrf.mxu0
  %v6024 = vadd.f32 %v5855, %v6023
  %v6025 = vpop.f32.mrf.mxu0
  %v6026 = vadd.f32 %v5857, %v6025
  %6027 = vmatmul.bf16.gmra.mxu0 %v4368
  %v6028 = vpop.f32.mrf.mxu0
  %v6029 = vadd.f32 %v5860, %v6028
  %v6030 = vpop.f32.mrf.mxu0
  %v6031 = vadd.f32 %v5862, %v6030
  %6032 = vmatmul.bf16.gmra.mxu0 %v4371
  %v6033 = vpop.f32.mrf.mxu0
  %v6034 = vadd.f32 %v5865, %v6033
  %v6035 = vpop.f32.mrf.mxu0
  %v6036 = vadd.f32 %v5867, %v6035
  %6037 = vmatmul.bf16.gmra.mxu0 %v4374
  %v6038 = vpop.f32.mrf.mxu0
  %v6039 = vadd.f32 %v5870, %v6038
  %v6040 = vpop.f32.mrf.mxu0
  %v6041 = vadd.f32 %v5872, %v6040
  %6042 = vmatmul.bf16.gmra.mxu0 %v4377
  %v6043 = vpop.f32.mrf.mxu0
  %v6044 = vadd.f32 %v5875, %v6043
  %v6045 = vpop.f32.mrf.mxu0
  %v6046 = vadd.f32 %v5877, %v6045
  %6047 = vmatmul.bf16.gmra.mxu0 %v4380
  %v6048 = vpop.f32.mrf.mxu0
  %v6049 = vadd.f32 %v5880, %v6048
  %v6050 = vpop.f32.mrf.mxu0
  %v6051 = vadd.f32 %v5882, %v6050
  %6052 = vmatmul.bf16.gmra.mxu0 %v4383
  %v6053 = vpop.f32.mrf.mxu0
  %v6054 = vadd.f32 %v5885, %v6053
  %v6055 = vpop.f32.mrf.mxu0
  %v6056 = vadd.f32 %v5887, %v6055
  %6057 = vmatmul.bf16.gmra.mxu0 %v4386
  %v6058 = vpop.f32.mrf.mxu0
  %v6059 = vadd.f32 %v5890, %v6058
  %v6060 = vpop.f32.mrf.mxu0
  %v6061 = vadd.f32 %v5892, %v6060
  %6062 = vmatmul.bf16.gmra.mxu0 %v4389
  %v6063 = vpop.f32.mrf.mxu0
  %v6064 = vadd.f32 %v5895, %v6063
  %v6065 = vpop.f32.mrf.mxu0
  %v6066 = vadd.f32 %v5897, %v6065
  %6067 = vmatmul.bf16.gmra.mxu0 %v4392
  %v6068 = vpop.f32.mrf.mxu0
  %v6069 = vadd.f32 %v5900, %v6068
  %v6070 = vpop.f32.mrf.mxu0
  %v6071 = vadd.f32 %v5902, %v6070
  %6072 = vmatmul.bf16.gmra.mxu0 %v4395
  %v6073 = vpop.f32.mrf.mxu0
  %v6074 = vadd.f32 %v5905, %v6073
  %v6075 = vpop.f32.mrf.mxu0
  %v6076 = vadd.f32 %v5907, %v6075
  %6077 = vmatmul.bf16.gmra.mxu0 %v4398
  %v6078 = vpop.f32.mrf.mxu0
  %v6079 = vadd.f32 %v5910, %v6078
  %v6080 = vpop.f32.mrf.mxu0
  %v6081 = vadd.f32 %v5912, %v6080
  %6082 = vmatmul.bf16.gmra.mxu0 %v4401
  %v6083 = vpop.f32.mrf.mxu0
  %v6084 = vadd.f32 %v5915, %v6083
  %v6085 = vpop.f32.mrf.mxu0
  %v6086 = vadd.f32 %v5917, %v6085
  %6087 = vmatmul.bf16.gmra.mxu0 %v4404
  %v6088 = vpop.f32.mrf.mxu0
  %v6089 = vadd.f32 %v5920, %v6088
  %v6090 = vpop.f32.mrf.mxu0
  %v6091 = vadd.f32 %v5922, %v6090
  %6092 = vdwg.mxu0
  %s6093 = scalar_lea.vmem %s0, 1792
  %v6094 = vld [vmem:[%s6093] sm:$0xf]
  %v6095 = vld [vmem:[%s6093 + $0x4] sm:$0xf]
  %v6096 = vld [vmem:[%s6093 + $0x8] sm:$0xf]
  %v6097 = vld [vmem:[%s6093 + $0xc] sm:$0xf]
  %v6098 = vld [vmem:[%s6093 + $0x10] sm:$0xf]
  %v6099 = vld [vmem:[%s6093 + $0x14] sm:$0xf]
  %v6100 = vld [vmem:[%s6093 + $0x18] sm:$0xf]
  %v6101 = vld [vmem:[%s6093 + $0x1c] sm:$0xf]
  %v6102 = vld [vmem:[%s6093 + $0x20] sm:$0xf]
  %v6103 = vld [vmem:[%s6093 + $0x24] sm:$0xf]
  %v6104 = vld [vmem:[%s6093 + $0x28] sm:$0xf]
  %v6105 = vld [vmem:[%s6093 + $0x2c] sm:$0xf]
  %v6106 = vld [vmem:[%s6093 + $0x30] sm:$0xf]
  %v6107 = vld [vmem:[%s6093 + $0x34] sm:$0xf]
  %v6108 = vld [vmem:[%s6093 + $0x38] sm:$0xf]
  %v6109 = vld [vmem:[%s6093 + $0x3c] sm:$0xf]
  %v6110 = vld [vmem:[%s6093 + $0x40] sm:$0xf]
  %v6111 = vld [vmem:[%s6093 + $0x44] sm:$0xf]
  %v6112 = vld [vmem:[%s6093 + $0x48] sm:$0xf]
  %v6113 = vld [vmem:[%s6093 + $0x4c] sm:$0xf]
  %v6114 = vld [vmem:[%s6093 + $0x50] sm:$0xf]
  %v6115 = vld [vmem:[%s6093 + $0x54] sm:$0xf]
  %v6116 = vld [vmem:[%s6093 + $0x58] sm:$0xf]
  %v6117 = vld [vmem:[%s6093 + $0x5c] sm:$0xf]
  %v6118 = vld [vmem:[%s6093 + $0x60] sm:$0xf]
  %v6119 = vld [vmem:[%s6093 + $0x64] sm:$0xf]
  %v6120 = vld [vmem:[%s6093 + $0x68] sm:$0xf]
  %v6121 = vld [vmem:[%s6093 + $0x6c] sm:$0xf]
  %v6122 = vld [vmem:[%s6093 + $0x70] sm:$0xf]
  %v6123 = vld [vmem:[%s6093 + $0x74] sm:$0xf]
  %v6124 = vld [vmem:[%s6093 + $0x78] sm:$0xf]
  %v6125 = vld [vmem:[%s6093 + $0x7c] sm:$0xf]
  %v6126 = vld [vmem:[%s6093 + $0x80] sm:$0xf]
  %v6127 = vld [vmem:[%s6093 + $0x84] sm:$0xf]
  %v6128 = vld [vmem:[%s6093 + $0x88] sm:$0xf]
  %v6129 = vld [vmem:[%s6093 + $0x8c] sm:$0xf]
  %v6130 = vld [vmem:[%s6093 + $0x90] sm:$0xf]
  %v6131 = vld [vmem:[%s6093 + $0x94] sm:$0xf]
  %v6132 = vld [vmem:[%s6093 + $0x98] sm:$0xf]
  %v6133 = vld [vmem:[%s6093 + $0x9c] sm:$0xf]
  %v6134 = vld [vmem:[%s6093 + $0xa0] sm:$0xf]
  %v6135 = vld [vmem:[%s6093 + $0xa4] sm:$0xf]
  %v6136 = vld [vmem:[%s6093 + $0xa8] sm:$0xf]
  %v6137 = vld [vmem:[%s6093 + $0xac] sm:$0xf]
  %v6138 = vld [vmem:[%s6093 + $0xb0] sm:$0xf]
  %v6139 = vld [vmem:[%s6093 + $0xb4] sm:$0xf]
  %v6140 = vld [vmem:[%s6093 + $0xb8] sm:$0xf]
  %v6141 = vld [vmem:[%s6093 + $0xbc] sm:$0xf]
  %v6142 = vld [vmem:[%s6093 + $0xc0] sm:$0xf]
  %v6143 = vld [vmem:[%s6093 + $0xc4] sm:$0xf]
  %v6144 = vld [vmem:[%s6093 + $0xc8] sm:$0xf]
  %v6145 = vld [vmem:[%s6093 + $0xcc] sm:$0xf]
  %v6146 = vld [vmem:[%s6093 + $0xd0] sm:$0xf]
  %v6147 = vld [vmem:[%s6093 + $0xd4] sm:$0xf]
  %v6148 = vld [vmem:[%s6093 + $0xd8] sm:$0xf]
  %v6149 = vld [vmem:[%s6093 + $0xdc] sm:$0xf]
  %v6150 = vld [vmem:[%s6093 + $0xe0] sm:$0xf]
  %v6151 = vld [vmem:[%s6093 + $0xe4] sm:$0xf]
  %v6152 = vld [vmem:[%s6093 + $0xe8] sm:$0xf]
  %v6153 = vld [vmem:[%s6093 + $0xec] sm:$0xf]
  %v6154 = vld [vmem:[%s6093 + $0xf0] sm:$0xf]
  %v6155 = vld [vmem:[%s6093 + $0xf4] sm:$0xf]
  %v6156 = vld [vmem:[%s6093 + $0xf8] sm:$0xf]
  %v6157 = vld [vmem:[%s6093 + $0xfc] sm:$0xf]
  %v6222 = vunpack.c.l.b16 %v6094
  %v6223 = vunpack.c.l.b16 %v6095
  %v6224 = vunpack.c.l.b16 %v6096
  %v6225 = vunpack.c.l.b16 %v6097
  %v6226 = vunpack.c.l.b16 %v6098
  %v6227 = vunpack.c.l.b16 %v6099
  %v6228 = vunpack.c.l.b16 %v6100
  %v6229 = vunpack.c.l.b16 %v6101
  %v6230 = vunpack.c.l.b16 %v6102
  %v6231 = vunpack.c.l.b16 %v6103
  %v6232 = vunpack.c.l.b16 %v6104
  %v6233 = vunpack.c.l.b16 %v6105
  %v6234 = vunpack.c.l.b16 %v6106
  %v6235 = vunpack.c.l.b16 %v6107
  %v6236 = vunpack.c.l.b16 %v6108
  %v6237 = vunpack.c.l.b16 %v6109
  %v6238 = vunpack.c.l.b16 %v6110
  %v6239 = vunpack.c.l.b16 %v6111
  %v6240 = vunpack.c.l.b16 %v6112
  %v6241 = vunpack.c.l.b16 %v6113
  %v6242 = vunpack.c.l.b16 %v6114
  %v6243 = vunpack.c.l.b16 %v6115
  %v6244 = vunpack.c.l.b16 %v6116
  %v6245 = vunpack.c.l.b16 %v6117
  %v6246 = vunpack.c.l.b16 %v6118
  %v6247 = vunpack.c.l.b16 %v6119
  %v6248 = vunpack.c.l.b16 %v6120
  %v6249 = vunpack.c.l.b16 %v6121
  %v6250 = vunpack.c.l.b16 %v6122
  %v6251 = vunpack.c.l.b16 %v6123
  %v6252 = vunpack.c.l.b16 %v6124
  %v6253 = vunpack.c.l.b16 %v6125
  %v6254 = vunpack.c.l.b16 %v6126
  %v6255 = vunpack.c.l.b16 %v6127
  %v6256 = vunpack.c.l.b16 %v6128
  %v6257 = vunpack.c.l.b16 %v6129
  %v6258 = vunpack.c.l.b16 %v6130
  %v6259 = vunpack.c.l.b16 %v6131
  %v6260 = vunpack.c.l.b16 %v6132
  %v6261 = vunpack.c.l.b16 %v6133
  %v6262 = vunpack.c.l.b16 %v6134
  %v6263 = vunpack.c.l.b16 %v6135
  %v6264 = vunpack.c.l.b16 %v6136
  %v6265 = vunpack.c.l.b16 %v6137
  %v6266 = vunpack.c.l.b16 %v6138
  %v6267 = vunpack.c.l.b16 %v6139
  %v6268 = vunpack.c.l.b16 %v6140
  %v6269 = vunpack.c.l.b16 %v6141
  %v6270 = vunpack.c.l.b16 %v6142
  %v6271 = vunpack.c.l.b16 %v6143
  %v6272 = vunpack.c.l.b16 %v6144
  %v6273 = vunpack.c.l.b16 %v6145
  %v6274 = vunpack.c.l.b16 %v6146
  %v6275 = vunpack.c.l.b16 %v6147
  %v6276 = vunpack.c.l.b16 %v6148
  %v6277 = vunpack.c.l.b16 %v6149
  %v6278 = vunpack.c.l.b16 %v6150
  %v6279 = vunpack.c.l.b16 %v6151
  %v6280 = vunpack.c.l.b16 %v6152
  %v6281 = vunpack.c.l.b16 %v6153
  %v6282 = vunpack.c.l.b16 %v6154
  %v6283 = vunpack.c.l.b16 %v6155
  %v6284 = vunpack.c.l.b16 %v6156
  %v6285 = vunpack.c.l.b16 %v6157
  %v6286 = vpack.c.b16 %v6223, %v6222
  %v6287 = vpack.c.b16 %v6225, %v6224
  %v6288 = vpack.c.b16 %v6227, %v6226
  %v6289 = vpack.c.b16 %v6229, %v6228
  %v6290 = vpack.c.b16 %v6231, %v6230
  %v6291 = vpack.c.b16 %v6233, %v6232
  %v6292 = vpack.c.b16 %v6235, %v6234
  %v6293 = vpack.c.b16 %v6237, %v6236
  %v6294 = vpack.c.b16 %v6239, %v6238
  %v6295 = vpack.c.b16 %v6241, %v6240
  %v6296 = vpack.c.b16 %v6243, %v6242
  %v6297 = vpack.c.b16 %v6245, %v6244
  %v6298 = vpack.c.b16 %v6247, %v6246
  %v6299 = vpack.c.b16 %v6249, %v6248
  %v6300 = vpack.c.b16 %v6251, %v6250
  %v6301 = vpack.c.b16 %v6253, %v6252
  %v6302 = vpack.c.b16 %v6255, %v6254
  %v6303 = vpack.c.b16 %v6257, %v6256
  %v6304 = vpack.c.b16 %v6259, %v6258
  %v6305 = vpack.c.b16 %v6261, %v6260
  %v6306 = vpack.c.b16 %v6263, %v6262
  %v6307 = vpack.c.b16 %v6265, %v6264
  %v6308 = vpack.c.b16 %v6267, %v6266
  %v6309 = vpack.c.b16 %v6269, %v6268
  %v6310 = vpack.c.b16 %v6271, %v6270
  %v6311 = vpack.c.b16 %v6273, %v6272
  %v6312 = vpack.c.b16 %v6275, %v6274
  %v6313 = vpack.c.b16 %v6277, %v6276
  %v6314 = vpack.c.b16 %v6279, %v6278
  %v6315 = vpack.c.b16 %v6281, %v6280
  %v6316 = vpack.c.b16 %v6283, %v6282
  %v6317 = vpack.c.b16 %v6285, %v6284
  %v6319 = vsel %vm342, %v6286, 0
  %v6322 = vsel %vm342, %v6287, 0
  %v6325 = vsel %vm342, %v6288, 0
  %v6328 = vsel %vm342, %v6289, 0
  %v6331 = vsel %vm342, %v6290, 0
  %v6334 = vsel %vm342, %v6291, 0
  %v6337 = vsel %vm342, %v6292, 0
  %v6340 = vsel %vm342, %v6293, 0
  %v6343 = vsel %vm342, %v6294, 0
  %v6346 = vsel %vm342, %v6295, 0
  %v6349 = vsel %vm342, %v6296, 0
  %v6352 = vsel %vm342, %v6297, 0
  %v6355 = vsel %vm342, %v6298, 0
  %v6358 = vsel %vm342, %v6299, 0
  %v6361 = vsel %vm342, %v6300, 0
  %v6364 = vsel %vm342, %v6301, 0
  %v6367 = vsel %vm342, %v6302, 0
  %v6370 = vsel %vm342, %v6303, 0
  %v6373 = vsel %vm342, %v6304, 0
  %v6376 = vsel %vm342, %v6305, 0
  %v6379 = vsel %vm342, %v6306, 0
  %v6382 = vsel %vm342, %v6307, 0
  %v6385 = vsel %vm342, %v6308, 0
  %v6388 = vsel %vm342, %v6309, 0
  %v6391 = vsel %vm342, %v6310, 0
  %v6394 = vsel %vm342, %v6311, 0
  %v6397 = vsel %vm342, %v6312, 0
  %v6400 = vsel %vm342, %v6313, 0
  %v6403 = vsel %vm342, %v6314, 0
  %v6406 = vsel %vm342, %v6315, 0
  %v6409 = vsel %vm342, %v6316, 0
  %v6412 = vsel %vm342, %v6317, 0
  %6414 = vmatpush.bf16.msra.mxu0 0
  %6415 = vmatpush.bf16.msra.mxu0 0
  %6416 = vmatpush.bf16.msra.mxu0 0
  %6417 = vmatpush.bf16.msra.mxu0 0
  %6418 = vmatpush.bf16.msra.mxu0 0
  %6419 = vmatpush.bf16.msra.mxu0 %v1392
  %6420 = vmatpush.bf16.msra.mxu0 %v1291
  %6421 = vmatpush.bf16.msra.mxu0 %v1290
  %6422 = vmatmul.bf16.gmra.mxu0 %v6319
  %v6423 = vpop.f32.mrf.mxu0
  %v6424 = vadd.f32 0.0, %v6423
  %v6425 = vpop.f32.mrf.mxu0
  %v6426 = vadd.f32 0.0, %v6425
  %6427 = vmatmul.bf16.gmra.mxu0 %v6322
  %v6428 = vpop.f32.mrf.mxu0
  %v6429 = vadd.f32 0.0, %v6428
  %v6430 = vpop.f32.mrf.mxu0
  %v6431 = vadd.f32 0.0, %v6430
  %6432 = vmatmul.bf16.gmra.mxu0 %v6325
  %v6433 = vpop.f32.mrf.mxu0
  %v6434 = vadd.f32 0.0, %v6433
  %v6435 = vpop.f32.mrf.mxu0
  %v6436 = vadd.f32 0.0, %v6435
  %6437 = vmatmul.bf16.gmra.mxu0 %v6328
  %v6438 = vpop.f32.mrf.mxu0
  %v6439 = vadd.f32 0.0, %v6438
  %v6440 = vpop.f32.mrf.mxu0
  %v6441 = vadd.f32 0.0, %v6440
  %6442 = vmatmul.bf16.gmra.mxu0 %v6331
  %v6443 = vpop.f32.mrf.mxu0
  %v6444 = vadd.f32 0.0, %v6443
  %v6445 = vpop.f32.mrf.mxu0
  %v6446 = vadd.f32 0.0, %v6445
  %6447 = vmatmul.bf16.gmra.mxu0 %v6334
  %v6448 = vpop.f32.mrf.mxu0
  %v6449 = vadd.f32 0.0, %v6448
  %v6450 = vpop.f32.mrf.mxu0
  %v6451 = vadd.f32 0.0, %v6450
  %6452 = vmatmul.bf16.gmra.mxu0 %v6337
  %v6453 = vpop.f32.mrf.mxu0
  %v6454 = vadd.f32 0.0, %v6453
  %v6455 = vpop.f32.mrf.mxu0
  %v6456 = vadd.f32 0.0, %v6455
  %6457 = vmatmul.bf16.gmra.mxu0 %v6340
  %v6458 = vpop.f32.mrf.mxu0
  %v6459 = vadd.f32 0.0, %v6458
  %v6460 = vpop.f32.mrf.mxu0
  %v6461 = vadd.f32 0.0, %v6460
  %6462 = vmatmul.bf16.gmra.mxu0 %v6343
  %v6463 = vpop.f32.mrf.mxu0
  %v6464 = vadd.f32 0.0, %v6463
  %v6465 = vpop.f32.mrf.mxu0
  %v6466 = vadd.f32 0.0, %v6465
  %6467 = vmatmul.bf16.gmra.mxu0 %v6346
  %v6468 = vpop.f32.mrf.mxu0
  %v6469 = vadd.f32 0.0, %v6468
  %v6470 = vpop.f32.mrf.mxu0
  %v6471 = vadd.f32 0.0, %v6470
  %6472 = vmatmul.bf16.gmra.mxu0 %v6349
  %v6473 = vpop.f32.mrf.mxu0
  %v6474 = vadd.f32 0.0, %v6473
  %v6475 = vpop.f32.mrf.mxu0
  %v6476 = vadd.f32 0.0, %v6475
  %6477 = vmatmul.bf16.gmra.mxu0 %v6352
  %v6478 = vpop.f32.mrf.mxu0
  %v6479 = vadd.f32 0.0, %v6478
  %v6480 = vpop.f32.mrf.mxu0
  %v6481 = vadd.f32 0.0, %v6480
  %6482 = vmatmul.bf16.gmra.mxu0 %v6355
  %v6483 = vpop.f32.mrf.mxu0
  %v6484 = vadd.f32 0.0, %v6483
  %v6485 = vpop.f32.mrf.mxu0
  %v6486 = vadd.f32 0.0, %v6485
  %6487 = vmatmul.bf16.gmra.mxu0 %v6358
  %v6488 = vpop.f32.mrf.mxu0
  %v6489 = vadd.f32 0.0, %v6488
  %v6490 = vpop.f32.mrf.mxu0
  %v6491 = vadd.f32 0.0, %v6490
  %6492 = vmatmul.bf16.gmra.mxu0 %v6361
  %v6493 = vpop.f32.mrf.mxu0
  %v6494 = vadd.f32 0.0, %v6493
  %v6495 = vpop.f32.mrf.mxu0
  %v6496 = vadd.f32 0.0, %v6495
  %6497 = vmatmul.bf16.gmra.mxu0 %v6364
  %v6498 = vpop.f32.mrf.mxu0
  %v6499 = vadd.f32 0.0, %v6498
  %v6500 = vpop.f32.mrf.mxu0
  %v6501 = vadd.f32 0.0, %v6500
  %6502 = vmatmul.bf16.gmra.mxu0 %v6367
  %v6503 = vpop.f32.mrf.mxu0
  %v6504 = vadd.f32 0.0, %v6503
  %v6505 = vpop.f32.mrf.mxu0
  %v6506 = vadd.f32 0.0, %v6505
  %6507 = vmatmul.bf16.gmra.mxu0 %v6370
  %v6508 = vpop.f32.mrf.mxu0
  %v6509 = vadd.f32 0.0, %v6508
  %v6510 = vpop.f32.mrf.mxu0
  %v6511 = vadd.f32 0.0, %v6510
  %6512 = vmatmul.bf16.gmra.mxu0 %v6373
  %v6513 = vpop.f32.mrf.mxu0
  %v6514 = vadd.f32 0.0, %v6513
  %v6515 = vpop.f32.mrf.mxu0
  %v6516 = vadd.f32 0.0, %v6515
  %6517 = vmatmul.bf16.gmra.mxu0 %v6376
  %v6518 = vpop.f32.mrf.mxu0
  %v6519 = vadd.f32 0.0, %v6518
  %v6520 = vpop.f32.mrf.mxu0
  %v6521 = vadd.f32 0.0, %v6520
  %6522 = vmatmul.bf16.gmra.mxu0 %v6379
  %v6523 = vpop.f32.mrf.mxu0
  %v6524 = vadd.f32 0.0, %v6523
  %v6525 = vpop.f32.mrf.mxu0
  %v6526 = vadd.f32 0.0, %v6525
  %6527 = vmatmul.bf16.gmra.mxu0 %v6382
  %v6528 = vpop.f32.mrf.mxu0
  %v6529 = vadd.f32 0.0, %v6528
  %v6530 = vpop.f32.mrf.mxu0
  %v6531 = vadd.f32 0.0, %v6530
  %6532 = vmatmul.bf16.gmra.mxu0 %v6385
  %v6533 = vpop.f32.mrf.mxu0
  %v6534 = vadd.f32 0.0, %v6533
  %v6535 = vpop.f32.mrf.mxu0
  %v6536 = vadd.f32 0.0, %v6535
  %6537 = vmatmul.bf16.gmra.mxu0 %v6388
  %v6538 = vpop.f32.mrf.mxu0
  %v6539 = vadd.f32 0.0, %v6538
  %v6540 = vpop.f32.mrf.mxu0
  %v6541 = vadd.f32 0.0, %v6540
  %6542 = vmatmul.bf16.gmra.mxu0 %v6391
  %v6543 = vpop.f32.mrf.mxu0
  %v6544 = vadd.f32 0.0, %v6543
  %v6545 = vpop.f32.mrf.mxu0
  %v6546 = vadd.f32 0.0, %v6545
  %6547 = vmatmul.bf16.gmra.mxu0 %v6394
  %v6548 = vpop.f32.mrf.mxu0
  %v6549 = vadd.f32 0.0, %v6548
  %v6550 = vpop.f32.mrf.mxu0
  %v6551 = vadd.f32 0.0, %v6550
  %6552 = vmatmul.bf16.gmra.mxu0 %v6397
  %v6553 = vpop.f32.mrf.mxu0
  %v6554 = vadd.f32 0.0, %v6553
  %v6555 = vpop.f32.mrf.mxu0
  %v6556 = vadd.f32 0.0, %v6555
  %6557 = vmatmul.bf16.gmra.mxu0 %v6400
  %v6558 = vpop.f32.mrf.mxu0
  %v6559 = vadd.f32 0.0, %v6558
  %v6560 = vpop.f32.mrf.mxu0
  %v6561 = vadd.f32 0.0, %v6560
  %6562 = vmatmul.bf16.gmra.mxu0 %v6403
  %v6563 = vpop.f32.mrf.mxu0
  %v6564 = vadd.f32 0.0, %v6563
  %v6565 = vpop.f32.mrf.mxu0
  %v6566 = vadd.f32 0.0, %v6565
  %6567 = vmatmul.bf16.gmra.mxu0 %v6406
  %v6568 = vpop.f32.mrf.mxu0
  %v6569 = vadd.f32 0.0, %v6568
  %v6570 = vpop.f32.mrf.mxu0
  %v6571 = vadd.f32 0.0, %v6570
  %6572 = vmatmul.bf16.gmra.mxu0 %v6409
  %v6573 = vpop.f32.mrf.mxu0
  %v6574 = vadd.f32 0.0, %v6573
  %v6575 = vpop.f32.mrf.mxu0
  %v6576 = vadd.f32 0.0, %v6575
  %6577 = vmatmul.bf16.gmra.mxu0 %v6412
  %v6578 = vpop.f32.mrf.mxu0
  %v6579 = vadd.f32 0.0, %v6578
  %v6580 = vpop.f32.mrf.mxu0
  %v6581 = vadd.f32 0.0, %v6580
  %6582 = vdwg.mxu0
  %v6583 = vadd.f32 %v5934, %v6424
  %v6584 = vadd.f32 %v5936, %v6426
  %v6585 = vadd.f32 %v5939, %v6429
  %v6586 = vadd.f32 %v5941, %v6431
  %v6587 = vadd.f32 %v5944, %v6434
  %v6588 = vadd.f32 %v5946, %v6436
  %v6589 = vadd.f32 %v5949, %v6439
  %v6590 = vadd.f32 %v5951, %v6441
  %v6591 = vadd.f32 %v5954, %v6444
  %v6592 = vadd.f32 %v5956, %v6446
  %v6593 = vadd.f32 %v5959, %v6449
  %v6594 = vadd.f32 %v5961, %v6451
  %v6595 = vadd.f32 %v5964, %v6454
  %v6596 = vadd.f32 %v5966, %v6456
  %v6597 = vadd.f32 %v5969, %v6459
  %v6598 = vadd.f32 %v5971, %v6461
  %v6599 = vadd.f32 %v5974, %v6464
  %v6600 = vadd.f32 %v5976, %v6466
  %v6601 = vadd.f32 %v5979, %v6469
  %v6602 = vadd.f32 %v5981, %v6471
  %v6603 = vadd.f32 %v5984, %v6474
  %v6604 = vadd.f32 %v5986, %v6476
  %v6605 = vadd.f32 %v5989, %v6479
  %v6606 = vadd.f32 %v5991, %v6481
  %v6607 = vadd.f32 %v5994, %v6484
  %v6608 = vadd.f32 %v5996, %v6486
  %v6609 = vadd.f32 %v5999, %v6489
  %v6610 = vadd.f32 %v6001, %v6491
  %v6611 = vadd.f32 %v6004, %v6494
  %v6612 = vadd.f32 %v6006, %v6496
  %v6613 = vadd.f32 %v6009, %v6499
  %v6614 = vadd.f32 %v6011, %v6501
  %v6615 = vadd.f32 %v6014, %v6504
  %v6616 = vadd.f32 %v6016, %v6506
  %v6617 = vadd.f32 %v6019, %v6509
  %v6618 = vadd.f32 %v6021, %v6511
  %v6619 = vadd.f32 %v6024, %v6514
  %v6620 = vadd.f32 %v6026, %v6516
  %v6621 = vadd.f32 %v6029, %v6519
  %v6622 = vadd.f32 %v6031, %v6521
  %v6623 = vadd.f32 %v6034, %v6524
  %v6624 = vadd.f32 %v6036, %v6526
  %v6625 = vadd.f32 %v6039, %v6529
  %v6626 = vadd.f32 %v6041, %v6531
  %v6627 = vadd.f32 %v6044, %v6534
  %v6628 = vadd.f32 %v6046, %v6536
  %v6629 = vadd.f32 %v6049, %v6539
  %v6630 = vadd.f32 %v6051, %v6541
  %v6631 = vadd.f32 %v6054, %v6544
  %v6632 = vadd.f32 %v6056, %v6546
  %v6633 = vadd.f32 %v6059, %v6549
  %v6634 = vadd.f32 %v6061, %v6551
  %v6635 = vadd.f32 %v6064, %v6554
  %v6636 = vadd.f32 %v6066, %v6556
  %v6637 = vadd.f32 %v6069, %v6559
  %v6638 = vadd.f32 %v6071, %v6561
  %v6639 = vadd.f32 %v6074, %v6564
  %v6640 = vadd.f32 %v6076, %v6566
  %v6641 = vadd.f32 %v6079, %v6569
  %v6642 = vadd.f32 %v6081, %v6571
  %v6643 = vadd.f32 %v6084, %v6574
  %v6644 = vadd.f32 %v6086, %v6576
  %v6645 = vadd.f32 %v6089, %v6579
  %v6646 = vadd.f32 %v6091, %v6581
  %v6647 = vadd.f32 %v6583, %v6584
  %v6648 = vadd.f32 %v6647, %v6585
  %v6649 = vadd.f32 %v6648, %v6586
  %v6650 = vadd.f32 %v6649, %v6587
  %v6651 = vadd.f32 %v6650, %v6588
  %v6652 = vadd.f32 %v6651, %v6589
  %v6653 = vadd.f32 %v6652, %v6590
  %v6654 = vrot.slane %v6653, 4
  %v6655 = vadd.f32 %v6653, %v6654
  %v6656 = vrot.slane %v6655, 2
  %v6657 = vadd.f32 %v6655, %v6656
  %v6658 = vrot.slane %v6657, 1
  %v6659 = vadd.f32 %v6657, %v6658
  %v6660 = vadd.f32 %v6591, %v6592
  %v6661 = vadd.f32 %v6660, %v6593
  %v6662 = vadd.f32 %v6661, %v6594
  %v6663 = vadd.f32 %v6662, %v6595
  %v6664 = vadd.f32 %v6663, %v6596
  %v6665 = vadd.f32 %v6664, %v6597
  %v6666 = vadd.f32 %v6665, %v6598
  %v6667 = vrot.slane %v6666, 4
  %v6668 = vadd.f32 %v6666, %v6667
  %v6669 = vrot.slane %v6668, 2
  %v6670 = vadd.f32 %v6668, %v6669
  %v6671 = vrot.slane %v6670, 1
  %v6672 = vadd.f32 %v6670, %v6671
  %v6673 = vadd.f32 %v6599, %v6600
  %v6674 = vadd.f32 %v6673, %v6601
  %v6675 = vadd.f32 %v6674, %v6602
  %v6676 = vadd.f32 %v6675, %v6603
  %v6677 = vadd.f32 %v6676, %v6604
  %v6678 = vadd.f32 %v6677, %v6605
  %v6679 = vadd.f32 %v6678, %v6606
  %v6680 = vrot.slane %v6679, 4
  %v6681 = vadd.f32 %v6679, %v6680
  %v6682 = vrot.slane %v6681, 2
  %v6683 = vadd.f32 %v6681, %v6682
  %v6684 = vrot.slane %v6683, 1
  %v6685 = vadd.f32 %v6683, %v6684
  %v6686 = vadd.f32 %v6607, %v6608
  %v6687 = vadd.f32 %v6686, %v6609
  %v6688 = vadd.f32 %v6687, %v6610
  %v6689 = vadd.f32 %v6688, %v6611
  %v6690 = vadd.f32 %v6689, %v6612
  %v6691 = vadd.f32 %v6690, %v6613
  %v6692 = vadd.f32 %v6691, %v6614
  %v6693 = vrot.slane %v6692, 4
  %v6694 = vadd.f32 %v6692, %v6693
  %v6695 = vrot.slane %v6694, 2
  %v6696 = vadd.f32 %v6694, %v6695
  %v6697 = vrot.slane %v6696, 1
  %v6698 = vadd.f32 %v6696, %v6697
  %v6699 = vadd.f32 %v6615, %v6616
  %v6700 = vadd.f32 %v6699, %v6617
  %v6701 = vadd.f32 %v6700, %v6618
  %v6702 = vadd.f32 %v6701, %v6619
  %v6703 = vadd.f32 %v6702, %v6620
  %v6704 = vadd.f32 %v6703, %v6621
  %v6705 = vadd.f32 %v6704, %v6622
  %v6706 = vrot.slane %v6705, 4
  %v6707 = vadd.f32 %v6705, %v6706
  %v6708 = vrot.slane %v6707, 2
  %v6709 = vadd.f32 %v6707, %v6708
  %v6710 = vrot.slane %v6709, 1
  %v6711 = vadd.f32 %v6709, %v6710
  %v6712 = vadd.f32 %v6623, %v6624
  %v6713 = vadd.f32 %v6712, %v6625
  %v6714 = vadd.f32 %v6713, %v6626
  %v6715 = vadd.f32 %v6714, %v6627
  %v6716 = vadd.f32 %v6715, %v6628
  %v6717 = vadd.f32 %v6716, %v6629
  %v6718 = vadd.f32 %v6717, %v6630
  %v6719 = vrot.slane %v6718, 4
  %v6720 = vadd.f32 %v6718, %v6719
  %v6721 = vrot.slane %v6720, 2
  %v6722 = vadd.f32 %v6720, %v6721
  %v6723 = vrot.slane %v6722, 1
  %v6724 = vadd.f32 %v6722, %v6723
  %v6725 = vadd.f32 %v6631, %v6632
  %v6726 = vadd.f32 %v6725, %v6633
  %v6727 = vadd.f32 %v6726, %v6634
  %v6728 = vadd.f32 %v6727, %v6635
  %v6729 = vadd.f32 %v6728, %v6636
  %v6730 = vadd.f32 %v6729, %v6637
  %v6731 = vadd.f32 %v6730, %v6638
  %v6732 = vrot.slane %v6731, 4
  %v6733 = vadd.f32 %v6731, %v6732
  %v6734 = vrot.slane %v6733, 2
  %v6735 = vadd.f32 %v6733, %v6734
  %v6736 = vrot.slane %v6735, 1
  %v6737 = vadd.f32 %v6735, %v6736
  %v6738 = vadd.f32 %v6639, %v6640
  %v6739 = vadd.f32 %v6738, %v6641
  %v6740 = vadd.f32 %v6739, %v6642
  %v6741 = vadd.f32 %v6740, %v6643
  %v6742 = vadd.f32 %v6741, %v6644
  %v6743 = vadd.f32 %v6742, %v6645
  %v6744 = vadd.f32 %v6743, %v6646
  %v6745 = vrot.slane %v6744, 4
  %v6746 = vadd.f32 %v6744, %v6745
  %v6747 = vrot.slane %v6746, 2
  %v6748 = vadd.f32 %v6746, %v6747
  %v6749 = vrot.slane %v6748, 1
  %v6750 = vadd.f32 %v6748, %v6749
  %v6751 = vadd.f32 %v5747, %v6659
  %v6752 = vadd.f32 %v5748, %v6672
  %v6753 = vadd.f32 %v5749, %v6685
  %v6754 = vadd.f32 %v5750, %v6698
  %v6755 = vadd.f32 %v5751, %v6711
  %v6756 = vadd.f32 %v5752, %v6724
  %v6757 = vadd.f32 %v5753, %v6737
  %v6758 = vadd.f32 %v5754, %v6750
  %6759 = vmatpush.bf16.msra.mxu0 0
  %6760 = vmatpush.bf16.msra.mxu0 0
  %6761 = vmatpush.bf16.msra.mxu0 0
  %6762 = vmatpush.bf16.msra.mxu0 0
  %6763 = vmatpush.bf16.msra.mxu0 0
  %6764 = vmatpush.bf16.msra.mxu0 %v441
  %6765 = vmatpush.bf16.msra.mxu0 %v338
  %6766 = vmatpush.bf16.msra.mxu0 %v337
  %6767 = vmatmul.bf16.gmra.mxu0 %v6319
  %v6768 = vpop.f32.mrf.mxu0
  %v6769 = vadd.f32 0.0, %v6768
  %v6770 = vpop.f32.mrf.mxu0
  %v6771 = vadd.f32 0.0, %v6770
  %6772 = vmatmul.bf16.gmra.mxu0 %v6322
  %v6773 = vpop.f32.mrf.mxu0
  %v6774 = vadd.f32 0.0, %v6773
  %v6775 = vpop.f32.mrf.mxu0
  %v6776 = vadd.f32 0.0, %v6775
  %6777 = vmatmul.bf16.gmra.mxu0 %v6325
  %v6778 = vpop.f32.mrf.mxu0
  %v6779 = vadd.f32 0.0, %v6778
  %v6780 = vpop.f32.mrf.mxu0
  %v6781 = vadd.f32 0.0, %v6780
  %6782 = vmatmul.bf16.gmra.mxu0 %v6328
  %v6783 = vpop.f32.mrf.mxu0
  %v6784 = vadd.f32 0.0, %v6783
  %v6785 = vpop.f32.mrf.mxu0
  %v6786 = vadd.f32 0.0, %v6785
  %6787 = vmatmul.bf16.gmra.mxu0 %v6331
  %v6788 = vpop.f32.mrf.mxu0
  %v6789 = vadd.f32 0.0, %v6788
  %v6790 = vpop.f32.mrf.mxu0
  %v6791 = vadd.f32 0.0, %v6790
  %6792 = vmatmul.bf16.gmra.mxu0 %v6334
  %v6793 = vpop.f32.mrf.mxu0
  %v6794 = vadd.f32 0.0, %v6793
  %v6795 = vpop.f32.mrf.mxu0
  %v6796 = vadd.f32 0.0, %v6795
  %6797 = vmatmul.bf16.gmra.mxu0 %v6337
  %v6798 = vpop.f32.mrf.mxu0
  %v6799 = vadd.f32 0.0, %v6798
  %v6800 = vpop.f32.mrf.mxu0
  %v6801 = vadd.f32 0.0, %v6800
  %6802 = vmatmul.bf16.gmra.mxu0 %v6340
  %v6803 = vpop.f32.mrf.mxu0
  %v6804 = vadd.f32 0.0, %v6803
  %v6805 = vpop.f32.mrf.mxu0
  %v6806 = vadd.f32 0.0, %v6805
  %6807 = vmatmul.bf16.gmra.mxu0 %v6343
  %v6808 = vpop.f32.mrf.mxu0
  %v6809 = vadd.f32 0.0, %v6808
  %v6810 = vpop.f32.mrf.mxu0
  %v6811 = vadd.f32 0.0, %v6810
  %6812 = vmatmul.bf16.gmra.mxu0 %v6346
  %v6813 = vpop.f32.mrf.mxu0
  %v6814 = vadd.f32 0.0, %v6813
  %v6815 = vpop.f32.mrf.mxu0
  %v6816 = vadd.f32 0.0, %v6815
  %6817 = vmatmul.bf16.gmra.mxu0 %v6349
  %v6818 = vpop.f32.mrf.mxu0
  %v6819 = vadd.f32 0.0, %v6818
  %v6820 = vpop.f32.mrf.mxu0
  %v6821 = vadd.f32 0.0, %v6820
  %6822 = vmatmul.bf16.gmra.mxu0 %v6352
  %v6823 = vpop.f32.mrf.mxu0
  %v6824 = vadd.f32 0.0, %v6823
  %v6825 = vpop.f32.mrf.mxu0
  %v6826 = vadd.f32 0.0, %v6825
  %6827 = vmatmul.bf16.gmra.mxu0 %v6355
  %v6828 = vpop.f32.mrf.mxu0
  %v6829 = vadd.f32 0.0, %v6828
  %v6830 = vpop.f32.mrf.mxu0
  %v6831 = vadd.f32 0.0, %v6830
  %6832 = vmatmul.bf16.gmra.mxu0 %v6358
  %v6833 = vpop.f32.mrf.mxu0
  %v6834 = vadd.f32 0.0, %v6833
  %v6835 = vpop.f32.mrf.mxu0
  %v6836 = vadd.f32 0.0, %v6835
  %6837 = vmatmul.bf16.gmra.mxu0 %v6361
  %v6838 = vpop.f32.mrf.mxu0
  %v6839 = vadd.f32 0.0, %v6838
  %v6840 = vpop.f32.mrf.mxu0
  %v6841 = vadd.f32 0.0, %v6840
  %6842 = vmatmul.bf16.gmra.mxu0 %v6364
  %v6843 = vpop.f32.mrf.mxu0
  %v6844 = vadd.f32 0.0, %v6843
  %v6845 = vpop.f32.mrf.mxu0
  %v6846 = vadd.f32 0.0, %v6845
  %6847 = vmatmul.bf16.gmra.mxu0 %v6367
  %v6848 = vpop.f32.mrf.mxu0
  %v6849 = vadd.f32 0.0, %v6848
  %v6850 = vpop.f32.mrf.mxu0
  %v6851 = vadd.f32 0.0, %v6850
  %6852 = vmatmul.bf16.gmra.mxu0 %v6370
  %v6853 = vpop.f32.mrf.mxu0
  %v6854 = vadd.f32 0.0, %v6853
  %v6855 = vpop.f32.mrf.mxu0
  %v6856 = vadd.f32 0.0, %v6855
  %6857 = vmatmul.bf16.gmra.mxu0 %v6373
  %v6858 = vpop.f32.mrf.mxu0
  %v6859 = vadd.f32 0.0, %v6858
  %v6860 = vpop.f32.mrf.mxu0
  %v6861 = vadd.f32 0.0, %v6860
  %6862 = vmatmul.bf16.gmra.mxu0 %v6376
  %v6863 = vpop.f32.mrf.mxu0
  %v6864 = vadd.f32 0.0, %v6863
  %v6865 = vpop.f32.mrf.mxu0
  %v6866 = vadd.f32 0.0, %v6865
  %6867 = vmatmul.bf16.gmra.mxu0 %v6379
  %v6868 = vpop.f32.mrf.mxu0
  %v6869 = vadd.f32 0.0, %v6868
  %v6870 = vpop.f32.mrf.mxu0
  %v6871 = vadd.f32 0.0, %v6870
  %6872 = vmatmul.bf16.gmra.mxu0 %v6382
  %v6873 = vpop.f32.mrf.mxu0
  %v6874 = vadd.f32 0.0, %v6873
  %v6875 = vpop.f32.mrf.mxu0
  %v6876 = vadd.f32 0.0, %v6875
  %6877 = vmatmul.bf16.gmra.mxu0 %v6385
  %v6878 = vpop.f32.mrf.mxu0
  %v6879 = vadd.f32 0.0, %v6878
  %v6880 = vpop.f32.mrf.mxu0
  %v6881 = vadd.f32 0.0, %v6880
  %6882 = vmatmul.bf16.gmra.mxu0 %v6388
  %v6883 = vpop.f32.mrf.mxu0
  %v6884 = vadd.f32 0.0, %v6883
  %v6885 = vpop.f32.mrf.mxu0
  %v6886 = vadd.f32 0.0, %v6885
  %6887 = vmatmul.bf16.gmra.mxu0 %v6391
  %v6888 = vpop.f32.mrf.mxu0
  %v6889 = vadd.f32 0.0, %v6888
  %v6890 = vpop.f32.mrf.mxu0
  %v6891 = vadd.f32 0.0, %v6890
  %6892 = vmatmul.bf16.gmra.mxu0 %v6394
  %v6893 = vpop.f32.mrf.mxu0
  %v6894 = vadd.f32 0.0, %v6893
  %v6895 = vpop.f32.mrf.mxu0
  %v6896 = vadd.f32 0.0, %v6895
  %6897 = vmatmul.bf16.gmra.mxu0 %v6397
  %v6898 = vpop.f32.mrf.mxu0
  %v6899 = vadd.f32 0.0, %v6898
  %v6900 = vpop.f32.mrf.mxu0
  %v6901 = vadd.f32 0.0, %v6900
  %6902 = vmatmul.bf16.gmra.mxu0 %v6400
  %v6903 = vpop.f32.mrf.mxu0
  %v6904 = vadd.f32 0.0, %v6903
  %v6905 = vpop.f32.mrf.mxu0
  %v6906 = vadd.f32 0.0, %v6905
  %6907 = vmatmul.bf16.gmra.mxu0 %v6403
  %v6908 = vpop.f32.mrf.mxu0
  %v6909 = vadd.f32 0.0, %v6908
  %v6910 = vpop.f32.mrf.mxu0
  %v6911 = vadd.f32 0.0, %v6910
  %6912 = vmatmul.bf16.gmra.mxu0 %v6406
  %v6913 = vpop.f32.mrf.mxu0
  %v6914 = vadd.f32 0.0, %v6913
  %v6915 = vpop.f32.mrf.mxu0
  %v6916 = vadd.f32 0.0, %v6915
  %6917 = vmatmul.bf16.gmra.mxu0 %v6409
  %v6918 = vpop.f32.mrf.mxu0
  %v6919 = vadd.f32 0.0, %v6918
  %v6920 = vpop.f32.mrf.mxu0
  %v6921 = vadd.f32 0.0, %v6920
  %6922 = vmatmul.bf16.gmra.mxu0 %v6412
  %v6923 = vpop.f32.mrf.mxu0
  %v6924 = vadd.f32 0.0, %v6923
  %v6925 = vpop.f32.mrf.mxu0
  %v6926 = vadd.f32 0.0, %v6925
  %6927 = vdwg.mxu0
  %6928 = vmatpush.bf16.msra.mxu0 0
  %6929 = vmatpush.bf16.msra.mxu0 0
  %6930 = vmatpush.bf16.msra.mxu0 0
  %6931 = vmatpush.bf16.msra.mxu0 0
  %6932 = vmatpush.bf16.msra.mxu0 0
  %6933 = vmatpush.bf16.msra.mxu0 %v884
  %6934 = vmatpush.bf16.msra.mxu0 %v783
  %6935 = vmatpush.bf16.msra.mxu0 %v782
  %6936 = vmatmul.bf16.gmra.mxu0 %v5315
  %v6937 = vpop.f32.mrf.mxu0
  %v6938 = vadd.f32 %v6769, %v6937
  %v6939 = vpop.f32.mrf.mxu0
  %v6940 = vadd.f32 %v6771, %v6939
  %6941 = vmatmul.bf16.gmra.mxu0 %v5318
  %v6942 = vpop.f32.mrf.mxu0
  %v6943 = vadd.f32 %v6774, %v6942
  %v6944 = vpop.f32.mrf.mxu0
  %v6945 = vadd.f32 %v6776, %v6944
  %6946 = vmatmul.bf16.gmra.mxu0 %v5321
  %v6947 = vpop.f32.mrf.mxu0
  %v6948 = vadd.f32 %v6779, %v6947
  %v6949 = vpop.f32.mrf.mxu0
  %v6950 = vadd.f32 %v6781, %v6949
  %6951 = vmatmul.bf16.gmra.mxu0 %v5324
  %v6952 = vpop.f32.mrf.mxu0
  %v6953 = vadd.f32 %v6784, %v6952
  %v6954 = vpop.f32.mrf.mxu0
  %v6955 = vadd.f32 %v6786, %v6954
  %6956 = vmatmul.bf16.gmra.mxu0 %v5327
  %v6957 = vpop.f32.mrf.mxu0
  %v6958 = vadd.f32 %v6789, %v6957
  %v6959 = vpop.f32.mrf.mxu0
  %v6960 = vadd.f32 %v6791, %v6959
  %6961 = vmatmul.bf16.gmra.mxu0 %v5330
  %v6962 = vpop.f32.mrf.mxu0
  %v6963 = vadd.f32 %v6794, %v6962
  %v6964 = vpop.f32.mrf.mxu0
  %v6965 = vadd.f32 %v6796, %v6964
  %6966 = vmatmul.bf16.gmra.mxu0 %v5333
  %v6967 = vpop.f32.mrf.mxu0
  %v6968 = vadd.f32 %v6799, %v6967
  %v6969 = vpop.f32.mrf.mxu0
  %v6970 = vadd.f32 %v6801, %v6969
  %6971 = vmatmul.bf16.gmra.mxu0 %v5336
  %v6972 = vpop.f32.mrf.mxu0
  %v6973 = vadd.f32 %v6804, %v6972
  %v6974 = vpop.f32.mrf.mxu0
  %v6975 = vadd.f32 %v6806, %v6974
  %6976 = vmatmul.bf16.gmra.mxu0 %v5339
  %v6977 = vpop.f32.mrf.mxu0
  %v6978 = vadd.f32 %v6809, %v6977
  %v6979 = vpop.f32.mrf.mxu0
  %v6980 = vadd.f32 %v6811, %v6979
  %6981 = vmatmul.bf16.gmra.mxu0 %v5342
  %v6982 = vpop.f32.mrf.mxu0
  %v6983 = vadd.f32 %v6814, %v6982
  %v6984 = vpop.f32.mrf.mxu0
  %v6985 = vadd.f32 %v6816, %v6984
  %6986 = vmatmul.bf16.gmra.mxu0 %v5345
  %v6987 = vpop.f32.mrf.mxu0
  %v6988 = vadd.f32 %v6819, %v6987
  %v6989 = vpop.f32.mrf.mxu0
  %v6990 = vadd.f32 %v6821, %v6989
  %6991 = vmatmul.bf16.gmra.mxu0 %v5348
  %v6992 = vpop.f32.mrf.mxu0
  %v6993 = vadd.f32 %v6824, %v6992
  %v6994 = vpop.f32.mrf.mxu0
  %v6995 = vadd.f32 %v6826, %v6994
  %6996 = vmatmul.bf16.gmra.mxu0 %v5351
  %v6997 = vpop.f32.mrf.mxu0
  %v6998 = vadd.f32 %v6829, %v6997
  %v6999 = vpop.f32.mrf.mxu0
  %v7000 = vadd.f32 %v6831, %v6999
  %7001 = vmatmul.bf16.gmra.mxu0 %v5354
  %v7002 = vpop.f32.mrf.mxu0
  %v7003 = vadd.f32 %v6834, %v7002
  %v7004 = vpop.f32.mrf.mxu0
  %v7005 = vadd.f32 %v6836, %v7004
  %7006 = vmatmul.bf16.gmra.mxu0 %v5357
  %v7007 = vpop.f32.mrf.mxu0
  %v7008 = vadd.f32 %v6839, %v7007
  %v7009 = vpop.f32.mrf.mxu0
  %v7010 = vadd.f32 %v6841, %v7009
  %7011 = vmatmul.bf16.gmra.mxu0 %v5360
  %v7012 = vpop.f32.mrf.mxu0
  %v7013 = vadd.f32 %v6844, %v7012
  %v7014 = vpop.f32.mrf.mxu0
  %v7015 = vadd.f32 %v6846, %v7014
  %7016 = vmatmul.bf16.gmra.mxu0 %v5363
  %v7017 = vpop.f32.mrf.mxu0
  %v7018 = vadd.f32 %v6849, %v7017
  %v7019 = vpop.f32.mrf.mxu0
  %v7020 = vadd.f32 %v6851, %v7019
  %7021 = vmatmul.bf16.gmra.mxu0 %v5366
  %v7022 = vpop.f32.mrf.mxu0
  %v7023 = vadd.f32 %v6854, %v7022
  %v7024 = vpop.f32.mrf.mxu0
  %v7025 = vadd.f32 %v6856, %v7024
  %7026 = vmatmul.bf16.gmra.mxu0 %v5369
  %v7027 = vpop.f32.mrf.mxu0
  %v7028 = vadd.f32 %v6859, %v7027
  %v7029 = vpop.f32.mrf.mxu0
  %v7030 = vadd.f32 %v6861, %v7029
  %7031 = vmatmul.bf16.gmra.mxu0 %v5372
  %v7032 = vpop.f32.mrf.mxu0
  %v7033 = vadd.f32 %v6864, %v7032
  %v7034 = vpop.f32.mrf.mxu0
  %v7035 = vadd.f32 %v6866, %v7034
  %7036 = vmatmul.bf16.gmra.mxu0 %v5375
  %v7037 = vpop.f32.mrf.mxu0
  %v7038 = vadd.f32 %v6869, %v7037
  %v7039 = vpop.f32.mrf.mxu0
  %v7040 = vadd.f32 %v6871, %v7039
  %7041 = vmatmul.bf16.gmra.mxu0 %v5378
  %v7042 = vpop.f32.mrf.mxu0
  %v7043 = vadd.f32 %v6874, %v7042
  %v7044 = vpop.f32.mrf.mxu0
  %v7045 = vadd.f32 %v6876, %v7044
  %7046 = vmatmul.bf16.gmra.mxu0 %v5381
  %v7047 = vpop.f32.mrf.mxu0
  %v7048 = vadd.f32 %v6879, %v7047
  %v7049 = vpop.f32.mrf.mxu0
  %v7050 = vadd.f32 %v6881, %v7049
  %7051 = vmatmul.bf16.gmra.mxu0 %v5384
  %v7052 = vpop.f32.mrf.mxu0
  %v7053 = vadd.f32 %v6884, %v7052
  %v7054 = vpop.f32.mrf.mxu0
  %v7055 = vadd.f32 %v6886, %v7054
  %7056 = vmatmul.bf16.gmra.mxu0 %v5387
  %v7057 = vpop.f32.mrf.mxu0
  %v7058 = vadd.f32 %v6889, %v7057
  %v7059 = vpop.f32.mrf.mxu0
  %v7060 = vadd.f32 %v6891, %v7059
  %7061 = vmatmul.bf16.gmra.mxu0 %v5390
  %v7062 = vpop.f32.mrf.mxu0
  %v7063 = vadd.f32 %v6894, %v7062
  %v7064 = vpop.f32.mrf.mxu0
  %v7065 = vadd.f32 %v6896, %v7064
  %7066 = vmatmul.bf16.gmra.mxu0 %v5393
  %v7067 = vpop.f32.mrf.mxu0
  %v7068 = vadd.f32 %v6899, %v7067
  %v7069 = vpop.f32.mrf.mxu0
  %v7070 = vadd.f32 %v6901, %v7069
  %7071 = vmatmul.bf16.gmra.mxu0 %v5396
  %v7072 = vpop.f32.mrf.mxu0
  %v7073 = vadd.f32 %v6904, %v7072
  %v7074 = vpop.f32.mrf.mxu0
  %v7075 = vadd.f32 %v6906, %v7074
  %7076 = vmatmul.bf16.gmra.mxu0 %v5399
  %v7077 = vpop.f32.mrf.mxu0
  %v7078 = vadd.f32 %v6909, %v7077
  %v7079 = vpop.f32.mrf.mxu0
  %v7080 = vadd.f32 %v6911, %v7079
  %7081 = vmatmul.bf16.gmra.mxu0 %v5402
  %v7082 = vpop.f32.mrf.mxu0
  %v7083 = vadd.f32 %v6914, %v7082
  %v7084 = vpop.f32.mrf.mxu0
  %v7085 = vadd.f32 %v6916, %v7084
  %7086 = vmatmul.bf16.gmra.mxu0 %v5405
  %v7087 = vpop.f32.mrf.mxu0
  %v7088 = vadd.f32 %v6919, %v7087
  %v7089 = vpop.f32.mrf.mxu0
  %v7090 = vadd.f32 %v6921, %v7089
  %7091 = vmatmul.bf16.gmra.mxu0 %v5408
  %v7092 = vpop.f32.mrf.mxu0
  %v7093 = vadd.f32 %v6924, %v7092
  %v7094 = vpop.f32.mrf.mxu0
  %v7095 = vadd.f32 %v6926, %v7094
  %7096 = vdwg.mxu0
  %s7097 = scalar_lea.vmem %s0, 2048
  %v7098 = vld [vmem:[%s7097] sm:$0xf]
  %v7099 = vld [vmem:[%s7097 + $0x4] sm:$0xf]
  %v7100 = vld [vmem:[%s7097 + $0x8] sm:$0xf]
  %v7101 = vld [vmem:[%s7097 + $0xc] sm:$0xf]
  %v7102 = vld [vmem:[%s7097 + $0x10] sm:$0xf]
  %v7103 = vld [vmem:[%s7097 + $0x14] sm:$0xf]
  %v7104 = vld [vmem:[%s7097 + $0x18] sm:$0xf]
  %v7105 = vld [vmem:[%s7097 + $0x1c] sm:$0xf]
  %v7106 = vld [vmem:[%s7097 + $0x20] sm:$0xf]
  %v7107 = vld [vmem:[%s7097 + $0x24] sm:$0xf]
  %v7108 = vld [vmem:[%s7097 + $0x28] sm:$0xf]
  %v7109 = vld [vmem:[%s7097 + $0x2c] sm:$0xf]
  %v7110 = vld [vmem:[%s7097 + $0x30] sm:$0xf]
  %v7111 = vld [vmem:[%s7097 + $0x34] sm:$0xf]
  %v7112 = vld [vmem:[%s7097 + $0x38] sm:$0xf]
  %v7113 = vld [vmem:[%s7097 + $0x3c] sm:$0xf]
  %v7114 = vld [vmem:[%s7097 + $0x40] sm:$0xf]
  %v7115 = vld [vmem:[%s7097 + $0x44] sm:$0xf]
  %v7116 = vld [vmem:[%s7097 + $0x48] sm:$0xf]
  %v7117 = vld [vmem:[%s7097 + $0x4c] sm:$0xf]
  %v7118 = vld [vmem:[%s7097 + $0x50] sm:$0xf]
  %v7119 = vld [vmem:[%s7097 + $0x54] sm:$0xf]
  %v7120 = vld [vmem:[%s7097 + $0x58] sm:$0xf]
  %v7121 = vld [vmem:[%s7097 + $0x5c] sm:$0xf]
  %v7122 = vld [vmem:[%s7097 + $0x60] sm:$0xf]
  %v7123 = vld [vmem:[%s7097 + $0x64] sm:$0xf]
  %v7124 = vld [vmem:[%s7097 + $0x68] sm:$0xf]
  %v7125 = vld [vmem:[%s7097 + $0x6c] sm:$0xf]
  %v7126 = vld [vmem:[%s7097 + $0x70] sm:$0xf]
  %v7127 = vld [vmem:[%s7097 + $0x74] sm:$0xf]
  %v7128 = vld [vmem:[%s7097 + $0x78] sm:$0xf]
  %v7129 = vld [vmem:[%s7097 + $0x7c] sm:$0xf]
  %v7130 = vld [vmem:[%s7097 + $0x80] sm:$0xf]
  %v7131 = vld [vmem:[%s7097 + $0x84] sm:$0xf]
  %v7132 = vld [vmem:[%s7097 + $0x88] sm:$0xf]
  %v7133 = vld [vmem:[%s7097 + $0x8c] sm:$0xf]
  %v7134 = vld [vmem:[%s7097 + $0x90] sm:$0xf]
  %v7135 = vld [vmem:[%s7097 + $0x94] sm:$0xf]
  %v7136 = vld [vmem:[%s7097 + $0x98] sm:$0xf]
  %v7137 = vld [vmem:[%s7097 + $0x9c] sm:$0xf]
  %v7138 = vld [vmem:[%s7097 + $0xa0] sm:$0xf]
  %v7139 = vld [vmem:[%s7097 + $0xa4] sm:$0xf]
  %v7140 = vld [vmem:[%s7097 + $0xa8] sm:$0xf]
  %v7141 = vld [vmem:[%s7097 + $0xac] sm:$0xf]
  %v7142 = vld [vmem:[%s7097 + $0xb0] sm:$0xf]
  %v7143 = vld [vmem:[%s7097 + $0xb4] sm:$0xf]
  %v7144 = vld [vmem:[%s7097 + $0xb8] sm:$0xf]
  %v7145 = vld [vmem:[%s7097 + $0xbc] sm:$0xf]
  %v7146 = vld [vmem:[%s7097 + $0xc0] sm:$0xf]
  %v7147 = vld [vmem:[%s7097 + $0xc4] sm:$0xf]
  %v7148 = vld [vmem:[%s7097 + $0xc8] sm:$0xf]
  %v7149 = vld [vmem:[%s7097 + $0xcc] sm:$0xf]
  %v7150 = vld [vmem:[%s7097 + $0xd0] sm:$0xf]
  %v7151 = vld [vmem:[%s7097 + $0xd4] sm:$0xf]
  %v7152 = vld [vmem:[%s7097 + $0xd8] sm:$0xf]
  %v7153 = vld [vmem:[%s7097 + $0xdc] sm:$0xf]
  %v7154 = vld [vmem:[%s7097 + $0xe0] sm:$0xf]
  %v7155 = vld [vmem:[%s7097 + $0xe4] sm:$0xf]
  %v7156 = vld [vmem:[%s7097 + $0xe8] sm:$0xf]
  %v7157 = vld [vmem:[%s7097 + $0xec] sm:$0xf]
  %v7158 = vld [vmem:[%s7097 + $0xf0] sm:$0xf]
  %v7159 = vld [vmem:[%s7097 + $0xf4] sm:$0xf]
  %v7160 = vld [vmem:[%s7097 + $0xf8] sm:$0xf]
  %v7161 = vld [vmem:[%s7097 + $0xfc] sm:$0xf]
  %v7226 = vunpack.c.l.b16 %v7098
  %v7227 = vunpack.c.l.b16 %v7099
  %v7228 = vunpack.c.l.b16 %v7100
  %v7229 = vunpack.c.l.b16 %v7101
  %v7230 = vunpack.c.l.b16 %v7102
  %v7231 = vunpack.c.l.b16 %v7103
  %v7232 = vunpack.c.l.b16 %v7104
  %v7233 = vunpack.c.l.b16 %v7105
  %v7234 = vunpack.c.l.b16 %v7106
  %v7235 = vunpack.c.l.b16 %v7107
  %v7236 = vunpack.c.l.b16 %v7108
  %v7237 = vunpack.c.l.b16 %v7109
  %v7238 = vunpack.c.l.b16 %v7110
  %v7239 = vunpack.c.l.b16 %v7111
  %v7240 = vunpack.c.l.b16 %v7112
  %v7241 = vunpack.c.l.b16 %v7113
  %v7242 = vunpack.c.l.b16 %v7114
  %v7243 = vunpack.c.l.b16 %v7115
  %v7244 = vunpack.c.l.b16 %v7116
  %v7245 = vunpack.c.l.b16 %v7117
  %v7246 = vunpack.c.l.b16 %v7118
  %v7247 = vunpack.c.l.b16 %v7119
  %v7248 = vunpack.c.l.b16 %v7120
  %v7249 = vunpack.c.l.b16 %v7121
  %v7250 = vunpack.c.l.b16 %v7122
  %v7251 = vunpack.c.l.b16 %v7123
  %v7252 = vunpack.c.l.b16 %v7124
  %v7253 = vunpack.c.l.b16 %v7125
  %v7254 = vunpack.c.l.b16 %v7126
  %v7255 = vunpack.c.l.b16 %v7127
  %v7256 = vunpack.c.l.b16 %v7128
  %v7257 = vunpack.c.l.b16 %v7129
  %v7258 = vunpack.c.l.b16 %v7130
  %v7259 = vunpack.c.l.b16 %v7131
  %v7260 = vunpack.c.l.b16 %v7132
  %v7261 = vunpack.c.l.b16 %v7133
  %v7262 = vunpack.c.l.b16 %v7134
  %v7263 = vunpack.c.l.b16 %v7135
  %v7264 = vunpack.c.l.b16 %v7136
  %v7265 = vunpack.c.l.b16 %v7137
  %v7266 = vunpack.c.l.b16 %v7138
  %v7267 = vunpack.c.l.b16 %v7139
  %v7268 = vunpack.c.l.b16 %v7140
  %v7269 = vunpack.c.l.b16 %v7141
  %v7270 = vunpack.c.l.b16 %v7142
  %v7271 = vunpack.c.l.b16 %v7143
  %v7272 = vunpack.c.l.b16 %v7144
  %v7273 = vunpack.c.l.b16 %v7145
  %v7274 = vunpack.c.l.b16 %v7146
  %v7275 = vunpack.c.l.b16 %v7147
  %v7276 = vunpack.c.l.b16 %v7148
  %v7277 = vunpack.c.l.b16 %v7149
  %v7278 = vunpack.c.l.b16 %v7150
  %v7279 = vunpack.c.l.b16 %v7151
  %v7280 = vunpack.c.l.b16 %v7152
  %v7281 = vunpack.c.l.b16 %v7153
  %v7282 = vunpack.c.l.b16 %v7154
  %v7283 = vunpack.c.l.b16 %v7155
  %v7284 = vunpack.c.l.b16 %v7156
  %v7285 = vunpack.c.l.b16 %v7157
  %v7286 = vunpack.c.l.b16 %v7158
  %v7287 = vunpack.c.l.b16 %v7159
  %v7288 = vunpack.c.l.b16 %v7160
  %v7289 = vunpack.c.l.b16 %v7161
  %v7290 = vpack.c.b16 %v7227, %v7226
  %v7291 = vpack.c.b16 %v7229, %v7228
  %v7292 = vpack.c.b16 %v7231, %v7230
  %v7293 = vpack.c.b16 %v7233, %v7232
  %v7294 = vpack.c.b16 %v7235, %v7234
  %v7295 = vpack.c.b16 %v7237, %v7236
  %v7296 = vpack.c.b16 %v7239, %v7238
  %v7297 = vpack.c.b16 %v7241, %v7240
  %v7298 = vpack.c.b16 %v7243, %v7242
  %v7299 = vpack.c.b16 %v7245, %v7244
  %v7300 = vpack.c.b16 %v7247, %v7246
  %v7301 = vpack.c.b16 %v7249, %v7248
  %v7302 = vpack.c.b16 %v7251, %v7250
  %v7303 = vpack.c.b16 %v7253, %v7252
  %v7304 = vpack.c.b16 %v7255, %v7254
  %v7305 = vpack.c.b16 %v7257, %v7256
  %v7306 = vpack.c.b16 %v7259, %v7258
  %v7307 = vpack.c.b16 %v7261, %v7260
  %v7308 = vpack.c.b16 %v7263, %v7262
  %v7309 = vpack.c.b16 %v7265, %v7264
  %v7310 = vpack.c.b16 %v7267, %v7266
  %v7311 = vpack.c.b16 %v7269, %v7268
  %v7312 = vpack.c.b16 %v7271, %v7270
  %v7313 = vpack.c.b16 %v7273, %v7272
  %v7314 = vpack.c.b16 %v7275, %v7274
  %v7315 = vpack.c.b16 %v7277, %v7276
  %v7316 = vpack.c.b16 %v7279, %v7278
  %v7317 = vpack.c.b16 %v7281, %v7280
  %v7318 = vpack.c.b16 %v7283, %v7282
  %v7319 = vpack.c.b16 %v7285, %v7284
  %v7320 = vpack.c.b16 %v7287, %v7286
  %v7321 = vpack.c.b16 %v7289, %v7288
  %v7323 = vsel %vm342, %v7290, 0
  %v7326 = vsel %vm342, %v7291, 0
  %v7329 = vsel %vm342, %v7292, 0
  %v7332 = vsel %vm342, %v7293, 0
  %v7335 = vsel %vm342, %v7294, 0
  %v7338 = vsel %vm342, %v7295, 0
  %v7341 = vsel %vm342, %v7296, 0
  %v7344 = vsel %vm342, %v7297, 0
  %v7347 = vsel %vm342, %v7298, 0
  %v7350 = vsel %vm342, %v7299, 0
  %v7353 = vsel %vm342, %v7300, 0
  %v7356 = vsel %vm342, %v7301, 0
  %v7359 = vsel %vm342, %v7302, 0
  %v7362 = vsel %vm342, %v7303, 0
  %v7365 = vsel %vm342, %v7304, 0
  %v7368 = vsel %vm342, %v7305, 0
  %v7371 = vsel %vm342, %v7306, 0
  %v7374 = vsel %vm342, %v7307, 0
  %v7377 = vsel %vm342, %v7308, 0
  %v7380 = vsel %vm342, %v7309, 0
  %v7383 = vsel %vm342, %v7310, 0
  %v7386 = vsel %vm342, %v7311, 0
  %v7389 = vsel %vm342, %v7312, 0
  %v7392 = vsel %vm342, %v7313, 0
  %v7395 = vsel %vm342, %v7314, 0
  %v7398 = vsel %vm342, %v7315, 0
  %v7401 = vsel %vm342, %v7316, 0
  %v7404 = vsel %vm342, %v7317, 0
  %v7407 = vsel %vm342, %v7318, 0
  %v7410 = vsel %vm342, %v7319, 0
  %v7413 = vsel %vm342, %v7320, 0
  %v7416 = vsel %vm342, %v7321, 0
  %7418 = vmatpush.bf16.msra.mxu0 0
  %7419 = vmatpush.bf16.msra.mxu0 0
  %7420 = vmatpush.bf16.msra.mxu0 0
  %7421 = vmatpush.bf16.msra.mxu0 0
  %7422 = vmatpush.bf16.msra.mxu0 0
  %7423 = vmatpush.bf16.msra.mxu0 %v1392
  %7424 = vmatpush.bf16.msra.mxu0 %v1291
  %7425 = vmatpush.bf16.msra.mxu0 %v1290
  %7426 = vmatmul.bf16.gmra.mxu0 %v7323
  %v7427 = vpop.f32.mrf.mxu0
  %v7428 = vadd.f32 0.0, %v7427
  %v7429 = vpop.f32.mrf.mxu0
  %v7430 = vadd.f32 0.0, %v7429
  %7431 = vmatmul.bf16.gmra.mxu0 %v7326
  %v7432 = vpop.f32.mrf.mxu0
  %v7433 = vadd.f32 0.0, %v7432
  %v7434 = vpop.f32.mrf.mxu0
  %v7435 = vadd.f32 0.0, %v7434
  %7436 = vmatmul.bf16.gmra.mxu0 %v7329
  %v7437 = vpop.f32.mrf.mxu0
  %v7438 = vadd.f32 0.0, %v7437
  %v7439 = vpop.f32.mrf.mxu0
  %v7440 = vadd.f32 0.0, %v7439
  %7441 = vmatmul.bf16.gmra.mxu0 %v7332
  %v7442 = vpop.f32.mrf.mxu0
  %v7443 = vadd.f32 0.0, %v7442
  %v7444 = vpop.f32.mrf.mxu0
  %v7445 = vadd.f32 0.0, %v7444
  %7446 = vmatmul.bf16.gmra.mxu0 %v7335
  %v7447 = vpop.f32.mrf.mxu0
  %v7448 = vadd.f32 0.0, %v7447
  %v7449 = vpop.f32.mrf.mxu0
  %v7450 = vadd.f32 0.0, %v7449
  %7451 = vmatmul.bf16.gmra.mxu0 %v7338
  %v7452 = vpop.f32.mrf.mxu0
  %v7453 = vadd.f32 0.0, %v7452
  %v7454 = vpop.f32.mrf.mxu0
  %v7455 = vadd.f32 0.0, %v7454
  %7456 = vmatmul.bf16.gmra.mxu0 %v7341
  %v7457 = vpop.f32.mrf.mxu0
  %v7458 = vadd.f32 0.0, %v7457
  %v7459 = vpop.f32.mrf.mxu0
  %v7460 = vadd.f32 0.0, %v7459
  %7461 = vmatmul.bf16.gmra.mxu0 %v7344
  %v7462 = vpop.f32.mrf.mxu0
  %v7463 = vadd.f32 0.0, %v7462
  %v7464 = vpop.f32.mrf.mxu0
  %v7465 = vadd.f32 0.0, %v7464
  %7466 = vmatmul.bf16.gmra.mxu0 %v7347
  %v7467 = vpop.f32.mrf.mxu0
  %v7468 = vadd.f32 0.0, %v7467
  %v7469 = vpop.f32.mrf.mxu0
  %v7470 = vadd.f32 0.0, %v7469
  %7471 = vmatmul.bf16.gmra.mxu0 %v7350
  %v7472 = vpop.f32.mrf.mxu0
  %v7473 = vadd.f32 0.0, %v7472
  %v7474 = vpop.f32.mrf.mxu0
  %v7475 = vadd.f32 0.0, %v7474
  %7476 = vmatmul.bf16.gmra.mxu0 %v7353
  %v7477 = vpop.f32.mrf.mxu0
  %v7478 = vadd.f32 0.0, %v7477
  %v7479 = vpop.f32.mrf.mxu0
  %v7480 = vadd.f32 0.0, %v7479
  %7481 = vmatmul.bf16.gmra.mxu0 %v7356
  %v7482 = vpop.f32.mrf.mxu0
  %v7483 = vadd.f32 0.0, %v7482
  %v7484 = vpop.f32.mrf.mxu0
  %v7485 = vadd.f32 0.0, %v7484
  %7486 = vmatmul.bf16.gmra.mxu0 %v7359
  %v7487 = vpop.f32.mrf.mxu0
  %v7488 = vadd.f32 0.0, %v7487
  %v7489 = vpop.f32.mrf.mxu0
  %v7490 = vadd.f32 0.0, %v7489
  %7491 = vmatmul.bf16.gmra.mxu0 %v7362
  %v7492 = vpop.f32.mrf.mxu0
  %v7493 = vadd.f32 0.0, %v7492
  %v7494 = vpop.f32.mrf.mxu0
  %v7495 = vadd.f32 0.0, %v7494
  %7496 = vmatmul.bf16.gmra.mxu0 %v7365
  %v7497 = vpop.f32.mrf.mxu0
  %v7498 = vadd.f32 0.0, %v7497
  %v7499 = vpop.f32.mrf.mxu0
  %v7500 = vadd.f32 0.0, %v7499
  %7501 = vmatmul.bf16.gmra.mxu0 %v7368
  %v7502 = vpop.f32.mrf.mxu0
  %v7503 = vadd.f32 0.0, %v7502
  %v7504 = vpop.f32.mrf.mxu0
  %v7505 = vadd.f32 0.0, %v7504
  %7506 = vmatmul.bf16.gmra.mxu0 %v7371
  %v7507 = vpop.f32.mrf.mxu0
  %v7508 = vadd.f32 0.0, %v7507
  %v7509 = vpop.f32.mrf.mxu0
  %v7510 = vadd.f32 0.0, %v7509
  %7511 = vmatmul.bf16.gmra.mxu0 %v7374
  %v7512 = vpop.f32.mrf.mxu0
  %v7513 = vadd.f32 0.0, %v7512
  %v7514 = vpop.f32.mrf.mxu0
  %v7515 = vadd.f32 0.0, %v7514
  %7516 = vmatmul.bf16.gmra.mxu0 %v7377
  %v7517 = vpop.f32.mrf.mxu0
  %v7518 = vadd.f32 0.0, %v7517
  %v7519 = vpop.f32.mrf.mxu0
  %v7520 = vadd.f32 0.0, %v7519
  %7521 = vmatmul.bf16.gmra.mxu0 %v7380
  %v7522 = vpop.f32.mrf.mxu0
  %v7523 = vadd.f32 0.0, %v7522
  %v7524 = vpop.f32.mrf.mxu0
  %v7525 = vadd.f32 0.0, %v7524
  %7526 = vmatmul.bf16.gmra.mxu0 %v7383
  %v7527 = vpop.f32.mrf.mxu0
  %v7528 = vadd.f32 0.0, %v7527
  %v7529 = vpop.f32.mrf.mxu0
  %v7530 = vadd.f32 0.0, %v7529
  %7531 = vmatmul.bf16.gmra.mxu0 %v7386
  %v7532 = vpop.f32.mrf.mxu0
  %v7533 = vadd.f32 0.0, %v7532
  %v7534 = vpop.f32.mrf.mxu0
  %v7535 = vadd.f32 0.0, %v7534
  %7536 = vmatmul.bf16.gmra.mxu0 %v7389
  %v7537 = vpop.f32.mrf.mxu0
  %v7538 = vadd.f32 0.0, %v7537
  %v7539 = vpop.f32.mrf.mxu0
  %v7540 = vadd.f32 0.0, %v7539
  %7541 = vmatmul.bf16.gmra.mxu0 %v7392
  %v7542 = vpop.f32.mrf.mxu0
  %v7543 = vadd.f32 0.0, %v7542
  %v7544 = vpop.f32.mrf.mxu0
  %v7545 = vadd.f32 0.0, %v7544
  %7546 = vmatmul.bf16.gmra.mxu0 %v7395
  %v7547 = vpop.f32.mrf.mxu0
  %v7548 = vadd.f32 0.0, %v7547
  %v7549 = vpop.f32.mrf.mxu0
  %v7550 = vadd.f32 0.0, %v7549
  %7551 = vmatmul.bf16.gmra.mxu0 %v7398
  %v7552 = vpop.f32.mrf.mxu0
  %v7553 = vadd.f32 0.0, %v7552
  %v7554 = vpop.f32.mrf.mxu0
  %v7555 = vadd.f32 0.0, %v7554
  %7556 = vmatmul.bf16.gmra.mxu0 %v7401
  %v7557 = vpop.f32.mrf.mxu0
  %v7558 = vadd.f32 0.0, %v7557
  %v7559 = vpop.f32.mrf.mxu0
  %v7560 = vadd.f32 0.0, %v7559
  %7561 = vmatmul.bf16.gmra.mxu0 %v7404
  %v7562 = vpop.f32.mrf.mxu0
  %v7563 = vadd.f32 0.0, %v7562
  %v7564 = vpop.f32.mrf.mxu0
  %v7565 = vadd.f32 0.0, %v7564
  %7566 = vmatmul.bf16.gmra.mxu0 %v7407
  %v7567 = vpop.f32.mrf.mxu0
  %v7568 = vadd.f32 0.0, %v7567
  %v7569 = vpop.f32.mrf.mxu0
  %v7570 = vadd.f32 0.0, %v7569
  %7571 = vmatmul.bf16.gmra.mxu0 %v7410
  %v7572 = vpop.f32.mrf.mxu0
  %v7573 = vadd.f32 0.0, %v7572
  %v7574 = vpop.f32.mrf.mxu0
  %v7575 = vadd.f32 0.0, %v7574
  %7576 = vmatmul.bf16.gmra.mxu0 %v7413
  %v7577 = vpop.f32.mrf.mxu0
  %v7578 = vadd.f32 0.0, %v7577
  %v7579 = vpop.f32.mrf.mxu0
  %v7580 = vadd.f32 0.0, %v7579
  %7581 = vmatmul.bf16.gmra.mxu0 %v7416
  %v7582 = vpop.f32.mrf.mxu0
  %v7583 = vadd.f32 0.0, %v7582
  %v7584 = vpop.f32.mrf.mxu0
  %v7585 = vadd.f32 0.0, %v7584
  %7586 = vdwg.mxu0
  %v7587 = vadd.f32 %v6938, %v7428
  %v7588 = vadd.f32 %v6940, %v7430
  %v7589 = vadd.f32 %v6943, %v7433
  %v7590 = vadd.f32 %v6945, %v7435
  %v7591 = vadd.f32 %v6948, %v7438
  %v7592 = vadd.f32 %v6950, %v7440
  %v7593 = vadd.f32 %v6953, %v7443
  %v7594 = vadd.f32 %v6955, %v7445
  %v7595 = vadd.f32 %v6958, %v7448
  %v7596 = vadd.f32 %v6960, %v7450
  %v7597 = vadd.f32 %v6963, %v7453
  %v7598 = vadd.f32 %v6965, %v7455
  %v7599 = vadd.f32 %v6968, %v7458
  %v7600 = vadd.f32 %v6970, %v7460
  %v7601 = vadd.f32 %v6973, %v7463
  %v7602 = vadd.f32 %v6975, %v7465
  %v7603 = vadd.f32 %v6978, %v7468
  %v7604 = vadd.f32 %v6980, %v7470
  %v7605 = vadd.f32 %v6983, %v7473
  %v7606 = vadd.f32 %v6985, %v7475
  %v7607 = vadd.f32 %v6988, %v7478
  %v7608 = vadd.f32 %v6990, %v7480
  %v7609 = vadd.f32 %v6993, %v7483
  %v7610 = vadd.f32 %v6995, %v7485
  %v7611 = vadd.f32 %v6998, %v7488
  %v7612 = vadd.f32 %v7000, %v7490
  %v7613 = vadd.f32 %v7003, %v7493
  %v7614 = vadd.f32 %v7005, %v7495
  %v7615 = vadd.f32 %v7008, %v7498
  %v7616 = vadd.f32 %v7010, %v7500
  %v7617 = vadd.f32 %v7013, %v7503
  %v7618 = vadd.f32 %v7015, %v7505
  %v7619 = vadd.f32 %v7018, %v7508
  %v7620 = vadd.f32 %v7020, %v7510
  %v7621 = vadd.f32 %v7023, %v7513
  %v7622 = vadd.f32 %v7025, %v7515
  %v7623 = vadd.f32 %v7028, %v7518
  %v7624 = vadd.f32 %v7030, %v7520
  %v7625 = vadd.f32 %v7033, %v7523
  %v7626 = vadd.f32 %v7035, %v7525
  %v7627 = vadd.f32 %v7038, %v7528
  %v7628 = vadd.f32 %v7040, %v7530
  %v7629 = vadd.f32 %v7043, %v7533
  %v7630 = vadd.f32 %v7045, %v7535
  %v7631 = vadd.f32 %v7048, %v7538
  %v7632 = vadd.f32 %v7050, %v7540
  %v7633 = vadd.f32 %v7053, %v7543
  %v7634 = vadd.f32 %v7055, %v7545
  %v7635 = vadd.f32 %v7058, %v7548
  %v7636 = vadd.f32 %v7060, %v7550
  %v7637 = vadd.f32 %v7063, %v7553
  %v7638 = vadd.f32 %v7065, %v7555
  %v7639 = vadd.f32 %v7068, %v7558
  %v7640 = vadd.f32 %v7070, %v7560
  %v7641 = vadd.f32 %v7073, %v7563
  %v7642 = vadd.f32 %v7075, %v7565
  %v7643 = vadd.f32 %v7078, %v7568
  %v7644 = vadd.f32 %v7080, %v7570
  %v7645 = vadd.f32 %v7083, %v7573
  %v7646 = vadd.f32 %v7085, %v7575
  %v7647 = vadd.f32 %v7088, %v7578
  %v7648 = vadd.f32 %v7090, %v7580
  %v7649 = vadd.f32 %v7093, %v7583
  %v7650 = vadd.f32 %v7095, %v7585
  %v7651 = vadd.f32 %v7587, %v7588
  %v7652 = vadd.f32 %v7651, %v7589
  %v7653 = vadd.f32 %v7652, %v7590
  %v7654 = vadd.f32 %v7653, %v7591
  %v7655 = vadd.f32 %v7654, %v7592
  %v7656 = vadd.f32 %v7655, %v7593
  %v7657 = vadd.f32 %v7656, %v7594
  %v7658 = vrot.slane %v7657, 4
  %v7659 = vadd.f32 %v7657, %v7658
  %v7660 = vrot.slane %v7659, 2
  %v7661 = vadd.f32 %v7659, %v7660
  %v7662 = vrot.slane %v7661, 1
  %v7663 = vadd.f32 %v7661, %v7662
  %v7664 = vadd.f32 %v7595, %v7596
  %v7665 = vadd.f32 %v7664, %v7597
  %v7666 = vadd.f32 %v7665, %v7598
  %v7667 = vadd.f32 %v7666, %v7599
  %v7668 = vadd.f32 %v7667, %v7600
  %v7669 = vadd.f32 %v7668, %v7601
  %v7670 = vadd.f32 %v7669, %v7602
  %v7671 = vrot.slane %v7670, 4
  %v7672 = vadd.f32 %v7670, %v7671
  %v7673 = vrot.slane %v7672, 2
  %v7674 = vadd.f32 %v7672, %v7673
  %v7675 = vrot.slane %v7674, 1
  %v7676 = vadd.f32 %v7674, %v7675
  %v7677 = vadd.f32 %v7603, %v7604
  %v7678 = vadd.f32 %v7677, %v7605
  %v7679 = vadd.f32 %v7678, %v7606
  %v7680 = vadd.f32 %v7679, %v7607
  %v7681 = vadd.f32 %v7680, %v7608
  %v7682 = vadd.f32 %v7681, %v7609
  %v7683 = vadd.f32 %v7682, %v7610
  %v7684 = vrot.slane %v7683, 4
  %v7685 = vadd.f32 %v7683, %v7684
  %v7686 = vrot.slane %v7685, 2
  %v7687 = vadd.f32 %v7685, %v7686
  %v7688 = vrot.slane %v7687, 1
  %v7689 = vadd.f32 %v7687, %v7688
  %v7690 = vadd.f32 %v7611, %v7612
  %v7691 = vadd.f32 %v7690, %v7613
  %v7692 = vadd.f32 %v7691, %v7614
  %v7693 = vadd.f32 %v7692, %v7615
  %v7694 = vadd.f32 %v7693, %v7616
  %v7695 = vadd.f32 %v7694, %v7617
  %v7696 = vadd.f32 %v7695, %v7618
  %v7697 = vrot.slane %v7696, 4
  %v7698 = vadd.f32 %v7696, %v7697
  %v7699 = vrot.slane %v7698, 2
  %v7700 = vadd.f32 %v7698, %v7699
  %v7701 = vrot.slane %v7700, 1
  %v7702 = vadd.f32 %v7700, %v7701
  %v7703 = vadd.f32 %v7619, %v7620
  %v7704 = vadd.f32 %v7703, %v7621
  %v7705 = vadd.f32 %v7704, %v7622
  %v7706 = vadd.f32 %v7705, %v7623
  %v7707 = vadd.f32 %v7706, %v7624
  %v7708 = vadd.f32 %v7707, %v7625
  %v7709 = vadd.f32 %v7708, %v7626
  %v7710 = vrot.slane %v7709, 4
  %v7711 = vadd.f32 %v7709, %v7710
  %v7712 = vrot.slane %v7711, 2
  %v7713 = vadd.f32 %v7711, %v7712
  %v7714 = vrot.slane %v7713, 1
  %v7715 = vadd.f32 %v7713, %v7714
  %v7716 = vadd.f32 %v7627, %v7628
  %v7717 = vadd.f32 %v7716, %v7629
  %v7718 = vadd.f32 %v7717, %v7630
  %v7719 = vadd.f32 %v7718, %v7631
  %v7720 = vadd.f32 %v7719, %v7632
  %v7721 = vadd.f32 %v7720, %v7633
  %v7722 = vadd.f32 %v7721, %v7634
  %v7723 = vrot.slane %v7722, 4
  %v7724 = vadd.f32 %v7722, %v7723
  %v7725 = vrot.slane %v7724, 2
  %v7726 = vadd.f32 %v7724, %v7725
  %v7727 = vrot.slane %v7726, 1
  %v7728 = vadd.f32 %v7726, %v7727
  %v7729 = vadd.f32 %v7635, %v7636
  %v7730 = vadd.f32 %v7729, %v7637
  %v7731 = vadd.f32 %v7730, %v7638
  %v7732 = vadd.f32 %v7731, %v7639
  %v7733 = vadd.f32 %v7732, %v7640
  %v7734 = vadd.f32 %v7733, %v7641
  %v7735 = vadd.f32 %v7734, %v7642
  %v7736 = vrot.slane %v7735, 4
  %v7737 = vadd.f32 %v7735, %v7736
  %v7738 = vrot.slane %v7737, 2
  %v7739 = vadd.f32 %v7737, %v7738
  %v7740 = vrot.slane %v7739, 1
  %v7741 = vadd.f32 %v7739, %v7740
  %v7742 = vadd.f32 %v7643, %v7644
  %v7743 = vadd.f32 %v7742, %v7645
  %v7744 = vadd.f32 %v7743, %v7646
  %v7745 = vadd.f32 %v7744, %v7647
  %v7746 = vadd.f32 %v7745, %v7648
  %v7747 = vadd.f32 %v7746, %v7649
  %v7748 = vadd.f32 %v7747, %v7650
  %v7749 = vrot.slane %v7748, 4
  %v7750 = vadd.f32 %v7748, %v7749
  %v7751 = vrot.slane %v7750, 2
  %v7752 = vadd.f32 %v7750, %v7751
  %v7753 = vrot.slane %v7752, 1
  %v7754 = vadd.f32 %v7752, %v7753
  %v7755 = vadd.f32 %v6751, %v7663
  %v7756 = vadd.f32 %v6752, %v7676
  %v7757 = vadd.f32 %v6753, %v7689
  %v7758 = vadd.f32 %v6754, %v7702
  %v7759 = vadd.f32 %v6755, %v7715
  %v7760 = vadd.f32 %v6756, %v7728
  %v7761 = vadd.f32 %v6757, %v7741
  %v7762 = vadd.f32 %v6758, %v7754
  %7763 = vmatpush.bf16.msra.mxu0 0
  %7764 = vmatpush.bf16.msra.mxu0 0
  %7765 = vmatpush.bf16.msra.mxu0 0
  %7766 = vmatpush.bf16.msra.mxu0 0
  %7767 = vmatpush.bf16.msra.mxu0 0
  %7768 = vmatpush.bf16.msra.mxu0 %v441
  %7769 = vmatpush.bf16.msra.mxu0 %v338
  %7770 = vmatpush.bf16.msra.mxu0 %v337
  %7771 = vmatmul.bf16.gmra.mxu0 %v7323
  %v7772 = vpop.f32.mrf.mxu0
  %v7773 = vadd.f32 0.0, %v7772
  %v7774 = vpop.f32.mrf.mxu0
  %v7775 = vadd.f32 0.0, %v7774
  %7776 = vmatmul.bf16.gmra.mxu0 %v7326
  %v7777 = vpop.f32.mrf.mxu0
  %v7778 = vadd.f32 0.0, %v7777
  %v7779 = vpop.f32.mrf.mxu0
  %v7780 = vadd.f32 0.0, %v7779
  %7781 = vmatmul.bf16.gmra.mxu0 %v7329
  %v7782 = vpop.f32.mrf.mxu0
  %v7783 = vadd.f32 0.0, %v7782
  %v7784 = vpop.f32.mrf.mxu0
  %v7785 = vadd.f32 0.0, %v7784
  %7786 = vmatmul.bf16.gmra.mxu0 %v7332
  %v7787 = vpop.f32.mrf.mxu0
  %v7788 = vadd.f32 0.0, %v7787
  %v7789 = vpop.f32.mrf.mxu0
  %v7790 = vadd.f32 0.0, %v7789
  %7791 = vmatmul.bf16.gmra.mxu0 %v7335
  %v7792 = vpop.f32.mrf.mxu0
  %v7793 = vadd.f32 0.0, %v7792
  %v7794 = vpop.f32.mrf.mxu0
  %v7795 = vadd.f32 0.0, %v7794
  %7796 = vmatmul.bf16.gmra.mxu0 %v7338
  %v7797 = vpop.f32.mrf.mxu0
  %v7798 = vadd.f32 0.0, %v7797
  %v7799 = vpop.f32.mrf.mxu0
  %v7800 = vadd.f32 0.0, %v7799
  %7801 = vmatmul.bf16.gmra.mxu0 %v7341
  %v7802 = vpop.f32.mrf.mxu0
  %v7803 = vadd.f32 0.0, %v7802
  %v7804 = vpop.f32.mrf.mxu0
  %v7805 = vadd.f32 0.0, %v7804
  %7806 = vmatmul.bf16.gmra.mxu0 %v7344
  %v7807 = vpop.f32.mrf.mxu0
  %v7808 = vadd.f32 0.0, %v7807
  %v7809 = vpop.f32.mrf.mxu0
  %v7810 = vadd.f32 0.0, %v7809
  %7811 = vmatmul.bf16.gmra.mxu0 %v7347
  %v7812 = vpop.f32.mrf.mxu0
  %v7813 = vadd.f32 0.0, %v7812
  %v7814 = vpop.f32.mrf.mxu0
  %v7815 = vadd.f32 0.0, %v7814
  %7816 = vmatmul.bf16.gmra.mxu0 %v7350
  %v7817 = vpop.f32.mrf.mxu0
  %v7818 = vadd.f32 0.0, %v7817
  %v7819 = vpop.f32.mrf.mxu0
  %v7820 = vadd.f32 0.0, %v7819
  %7821 = vmatmul.bf16.gmra.mxu0 %v7353
  %v7822 = vpop.f32.mrf.mxu0
  %v7823 = vadd.f32 0.0, %v7822
  %v7824 = vpop.f32.mrf.mxu0
  %v7825 = vadd.f32 0.0, %v7824
  %7826 = vmatmul.bf16.gmra.mxu0 %v7356
  %v7827 = vpop.f32.mrf.mxu0
  %v7828 = vadd.f32 0.0, %v7827
  %v7829 = vpop.f32.mrf.mxu0
  %v7830 = vadd.f32 0.0, %v7829
  %7831 = vmatmul.bf16.gmra.mxu0 %v7359
  %v7832 = vpop.f32.mrf.mxu0
  %v7833 = vadd.f32 0.0, %v7832
  %v7834 = vpop.f32.mrf.mxu0
  %v7835 = vadd.f32 0.0, %v7834
  %7836 = vmatmul.bf16.gmra.mxu0 %v7362
  %v7837 = vpop.f32.mrf.mxu0
  %v7838 = vadd.f32 0.0, %v7837
  %v7839 = vpop.f32.mrf.mxu0
  %v7840 = vadd.f32 0.0, %v7839
  %7841 = vmatmul.bf16.gmra.mxu0 %v7365
  %v7842 = vpop.f32.mrf.mxu0
  %v7843 = vadd.f32 0.0, %v7842
  %v7844 = vpop.f32.mrf.mxu0
  %v7845 = vadd.f32 0.0, %v7844
  %7846 = vmatmul.bf16.gmra.mxu0 %v7368
  %v7847 = vpop.f32.mrf.mxu0
  %v7848 = vadd.f32 0.0, %v7847
  %v7849 = vpop.f32.mrf.mxu0
  %v7850 = vadd.f32 0.0, %v7849
  %7851 = vmatmul.bf16.gmra.mxu0 %v7371
  %v7852 = vpop.f32.mrf.mxu0
  %v7853 = vadd.f32 0.0, %v7852
  %v7854 = vpop.f32.mrf.mxu0
  %v7855 = vadd.f32 0.0, %v7854
  %7856 = vmatmul.bf16.gmra.mxu0 %v7374
  %v7857 = vpop.f32.mrf.mxu0
  %v7858 = vadd.f32 0.0, %v7857
  %v7859 = vpop.f32.mrf.mxu0
  %v7860 = vadd.f32 0.0, %v7859
  %7861 = vmatmul.bf16.gmra.mxu0 %v7377
  %v7862 = vpop.f32.mrf.mxu0
  %v7863 = vadd.f32 0.0, %v7862
  %v7864 = vpop.f32.mrf.mxu0
  %v7865 = vadd.f32 0.0, %v7864
  %7866 = vmatmul.bf16.gmra.mxu0 %v7380
  %v7867 = vpop.f32.mrf.mxu0
  %v7868 = vadd.f32 0.0, %v7867
  %v7869 = vpop.f32.mrf.mxu0
  %v7870 = vadd.f32 0.0, %v7869
  %7871 = vmatmul.bf16.gmra.mxu0 %v7383
  %v7872 = vpop.f32.mrf.mxu0
  %v7873 = vadd.f32 0.0, %v7872
  %v7874 = vpop.f32.mrf.mxu0
  %v7875 = vadd.f32 0.0, %v7874
  %7876 = vmatmul.bf16.gmra.mxu0 %v7386
  %v7877 = vpop.f32.mrf.mxu0
  %v7878 = vadd.f32 0.0, %v7877
  %v7879 = vpop.f32.mrf.mxu0
  %v7880 = vadd.f32 0.0, %v7879
  %7881 = vmatmul.bf16.gmra.mxu0 %v7389
  %v7882 = vpop.f32.mrf.mxu0
  %v7883 = vadd.f32 0.0, %v7882
  %v7884 = vpop.f32.mrf.mxu0
  %v7885 = vadd.f32 0.0, %v7884
  %7886 = vmatmul.bf16.gmra.mxu0 %v7392
  %v7887 = vpop.f32.mrf.mxu0
  %v7888 = vadd.f32 0.0, %v7887
  %v7889 = vpop.f32.mrf.mxu0
  %v7890 = vadd.f32 0.0, %v7889
  %7891 = vmatmul.bf16.gmra.mxu0 %v7395
  %v7892 = vpop.f32.mrf.mxu0
  %v7893 = vadd.f32 0.0, %v7892
  %v7894 = vpop.f32.mrf.mxu0
  %v7895 = vadd.f32 0.0, %v7894
  %7896 = vmatmul.bf16.gmra.mxu0 %v7398
  %v7897 = vpop.f32.mrf.mxu0
  %v7898 = vadd.f32 0.0, %v7897
  %v7899 = vpop.f32.mrf.mxu0
  %v7900 = vadd.f32 0.0, %v7899
  %7901 = vmatmul.bf16.gmra.mxu0 %v7401
  %v7902 = vpop.f32.mrf.mxu0
  %v7903 = vadd.f32 0.0, %v7902
  %v7904 = vpop.f32.mrf.mxu0
  %v7905 = vadd.f32 0.0, %v7904
  %7906 = vmatmul.bf16.gmra.mxu0 %v7404
  %v7907 = vpop.f32.mrf.mxu0
  %v7908 = vadd.f32 0.0, %v7907
  %v7909 = vpop.f32.mrf.mxu0
  %v7910 = vadd.f32 0.0, %v7909
  %7911 = vmatmul.bf16.gmra.mxu0 %v7407
  %v7912 = vpop.f32.mrf.mxu0
  %v7913 = vadd.f32 0.0, %v7912
  %v7914 = vpop.f32.mrf.mxu0
  %v7915 = vadd.f32 0.0, %v7914
  %7916 = vmatmul.bf16.gmra.mxu0 %v7410
  %v7917 = vpop.f32.mrf.mxu0
  %v7918 = vadd.f32 0.0, %v7917
  %v7919 = vpop.f32.mrf.mxu0
  %v7920 = vadd.f32 0.0, %v7919
  %7921 = vmatmul.bf16.gmra.mxu0 %v7413
  %v7922 = vpop.f32.mrf.mxu0
  %v7923 = vadd.f32 0.0, %v7922
  %v7924 = vpop.f32.mrf.mxu0
  %v7925 = vadd.f32 0.0, %v7924
  %7926 = vmatmul.bf16.gmra.mxu0 %v7416
  %v7927 = vpop.f32.mrf.mxu0
  %v7928 = vadd.f32 0.0, %v7927
  %v7929 = vpop.f32.mrf.mxu0
  %v7930 = vadd.f32 0.0, %v7929
  %7931 = vdwg.mxu0
  %7932 = vmatpush.bf16.msra.mxu0 0
  %7933 = vmatpush.bf16.msra.mxu0 0
  %7934 = vmatpush.bf16.msra.mxu0 0
  %7935 = vmatpush.bf16.msra.mxu0 0
  %7936 = vmatpush.bf16.msra.mxu0 0
  %7937 = vmatpush.bf16.msra.mxu0 %v884
  %7938 = vmatpush.bf16.msra.mxu0 %v783
  %7939 = vmatpush.bf16.msra.mxu0 %v782
  %7940 = vmatmul.bf16.gmra.mxu0 %v6319
  %v7941 = vpop.f32.mrf.mxu0
  %v7942 = vadd.f32 %v7773, %v7941
  %v7943 = vpop.f32.mrf.mxu0
  %v7944 = vadd.f32 %v7775, %v7943
  %7945 = vmatmul.bf16.gmra.mxu0 %v6322
  %v7946 = vpop.f32.mrf.mxu0
  %v7947 = vadd.f32 %v7778, %v7946
  %v7948 = vpop.f32.mrf.mxu0
  %v7949 = vadd.f32 %v7780, %v7948
  %7950 = vmatmul.bf16.gmra.mxu0 %v6325
  %v7951 = vpop.f32.mrf.mxu0
  %v7952 = vadd.f32 %v7783, %v7951
  %v7953 = vpop.f32.mrf.mxu0
  %v7954 = vadd.f32 %v7785, %v7953
  %7955 = vmatmul.bf16.gmra.mxu0 %v6328
  %v7956 = vpop.f32.mrf.mxu0
  %v7957 = vadd.f32 %v7788, %v7956
  %v7958 = vpop.f32.mrf.mxu0
  %v7959 = vadd.f32 %v7790, %v7958
  %7960 = vmatmul.bf16.gmra.mxu0 %v6331
  %v7961 = vpop.f32.mrf.mxu0
  %v7962 = vadd.f32 %v7793, %v7961
  %v7963 = vpop.f32.mrf.mxu0
  %v7964 = vadd.f32 %v7795, %v7963
  %7965 = vmatmul.bf16.gmra.mxu0 %v6334
  %v7966 = vpop.f32.mrf.mxu0
  %v7967 = vadd.f32 %v7798, %v7966
  %v7968 = vpop.f32.mrf.mxu0
  %v7969 = vadd.f32 %v7800, %v7968
  %7970 = vmatmul.bf16.gmra.mxu0 %v6337
  %v7971 = vpop.f32.mrf.mxu0
  %v7972 = vadd.f32 %v7803, %v7971
  %v7973 = vpop.f32.mrf.mxu0
  %v7974 = vadd.f32 %v7805, %v7973
  %7975 = vmatmul.bf16.gmra.mxu0 %v6340
  %v7976 = vpop.f32.mrf.mxu0
  %v7977 = vadd.f32 %v7808, %v7976
  %v7978 = vpop.f32.mrf.mxu0
  %v7979 = vadd.f32 %v7810, %v7978
  %7980 = vmatmul.bf16.gmra.mxu0 %v6343
  %v7981 = vpop.f32.mrf.mxu0
  %v7982 = vadd.f32 %v7813, %v7981
  %v7983 = vpop.f32.mrf.mxu0
  %v7984 = vadd.f32 %v7815, %v7983
  %7985 = vmatmul.bf16.gmra.mxu0 %v6346
  %v7986 = vpop.f32.mrf.mxu0
  %v7987 = vadd.f32 %v7818, %v7986
  %v7988 = vpop.f32.mrf.mxu0
  %v7989 = vadd.f32 %v7820, %v7988
  %7990 = vmatmul.bf16.gmra.mxu0 %v6349
  %v7991 = vpop.f32.mrf.mxu0
  %v7992 = vadd.f32 %v7823, %v7991
  %v7993 = vpop.f32.mrf.mxu0
  %v7994 = vadd.f32 %v7825, %v7993
  %7995 = vmatmul.bf16.gmra.mxu0 %v6352
  %v7996 = vpop.f32.mrf.mxu0
  %v7997 = vadd.f32 %v7828, %v7996
  %v7998 = vpop.f32.mrf.mxu0
  %v7999 = vadd.f32 %v7830, %v7998
  %8000 = vmatmul.bf16.gmra.mxu0 %v6355
  %v8001 = vpop.f32.mrf.mxu0
  %v8002 = vadd.f32 %v7833, %v8001
  %v8003 = vpop.f32.mrf.mxu0
  %v8004 = vadd.f32 %v7835, %v8003
  %8005 = vmatmul.bf16.gmra.mxu0 %v6358
  %v8006 = vpop.f32.mrf.mxu0
  %v8007 = vadd.f32 %v7838, %v8006
  %v8008 = vpop.f32.mrf.mxu0
  %v8009 = vadd.f32 %v7840, %v8008
  %8010 = vmatmul.bf16.gmra.mxu0 %v6361
  %v8011 = vpop.f32.mrf.mxu0
  %v8012 = vadd.f32 %v7843, %v8011
  %v8013 = vpop.f32.mrf.mxu0
  %v8014 = vadd.f32 %v7845, %v8013
  %8015 = vmatmul.bf16.gmra.mxu0 %v6364
  %v8016 = vpop.f32.mrf.mxu0
  %v8017 = vadd.f32 %v7848, %v8016
  %v8018 = vpop.f32.mrf.mxu0
  %v8019 = vadd.f32 %v7850, %v8018
  %8020 = vmatmul.bf16.gmra.mxu0 %v6367
  %v8021 = vpop.f32.mrf.mxu0
  %v8022 = vadd.f32 %v7853, %v8021
  %v8023 = vpop.f32.mrf.mxu0
  %v8024 = vadd.f32 %v7855, %v8023
  %8025 = vmatmul.bf16.gmra.mxu0 %v6370
  %v8026 = vpop.f32.mrf.mxu0
  %v8027 = vadd.f32 %v7858, %v8026
  %v8028 = vpop.f32.mrf.mxu0
  %v8029 = vadd.f32 %v7860, %v8028
  %8030 = vmatmul.bf16.gmra.mxu0 %v6373
  %v8031 = vpop.f32.mrf.mxu0
  %v8032 = vadd.f32 %v7863, %v8031
  %v8033 = vpop.f32.mrf.mxu0
  %v8034 = vadd.f32 %v7865, %v8033
  %8035 = vmatmul.bf16.gmra.mxu0 %v6376
  %v8036 = vpop.f32.mrf.mxu0
  %v8037 = vadd.f32 %v7868, %v8036
  %v8038 = vpop.f32.mrf.mxu0
  %v8039 = vadd.f32 %v7870, %v8038
  %8040 = vmatmul.bf16.gmra.mxu0 %v6379
  %v8041 = vpop.f32.mrf.mxu0
  %v8042 = vadd.f32 %v7873, %v8041
  %v8043 = vpop.f32.mrf.mxu0
  %v8044 = vadd.f32 %v7875, %v8043
  %8045 = vmatmul.bf16.gmra.mxu0 %v6382
  %v8046 = vpop.f32.mrf.mxu0
  %v8047 = vadd.f32 %v7878, %v8046
  %v8048 = vpop.f32.mrf.mxu0
  %v8049 = vadd.f32 %v7880, %v8048
  %8050 = vmatmul.bf16.gmra.mxu0 %v6385
  %v8051 = vpop.f32.mrf.mxu0
  %v8052 = vadd.f32 %v7883, %v8051
  %v8053 = vpop.f32.mrf.mxu0
  %v8054 = vadd.f32 %v7885, %v8053
  %8055 = vmatmul.bf16.gmra.mxu0 %v6388
  %v8056 = vpop.f32.mrf.mxu0
  %v8057 = vadd.f32 %v7888, %v8056
  %v8058 = vpop.f32.mrf.mxu0
  %v8059 = vadd.f32 %v7890, %v8058
  %8060 = vmatmul.bf16.gmra.mxu0 %v6391
  %v8061 = vpop.f32.mrf.mxu0
  %v8062 = vadd.f32 %v7893, %v8061
  %v8063 = vpop.f32.mrf.mxu0
  %v8064 = vadd.f32 %v7895, %v8063
  %8065 = vmatmul.bf16.gmra.mxu0 %v6394
  %v8066 = vpop.f32.mrf.mxu0
  %v8067 = vadd.f32 %v7898, %v8066
  %v8068 = vpop.f32.mrf.mxu0
  %v8069 = vadd.f32 %v7900, %v8068
  %8070 = vmatmul.bf16.gmra.mxu0 %v6397
  %v8071 = vpop.f32.mrf.mxu0
  %v8072 = vadd.f32 %v7903, %v8071
  %v8073 = vpop.f32.mrf.mxu0
  %v8074 = vadd.f32 %v7905, %v8073
  %8075 = vmatmul.bf16.gmra.mxu0 %v6400
  %v8076 = vpop.f32.mrf.mxu0
  %v8077 = vadd.f32 %v7908, %v8076
  %v8078 = vpop.f32.mrf.mxu0
  %v8079 = vadd.f32 %v7910, %v8078
  %8080 = vmatmul.bf16.gmra.mxu0 %v6403
  %v8081 = vpop.f32.mrf.mxu0
  %v8082 = vadd.f32 %v7913, %v8081
  %v8083 = vpop.f32.mrf.mxu0
  %v8084 = vadd.f32 %v7915, %v8083
  %8085 = vmatmul.bf16.gmra.mxu0 %v6406
  %v8086 = vpop.f32.mrf.mxu0
  %v8087 = vadd.f32 %v7918, %v8086
  %v8088 = vpop.f32.mrf.mxu0
  %v8089 = vadd.f32 %v7920, %v8088
  %8090 = vmatmul.bf16.gmra.mxu0 %v6409
  %v8091 = vpop.f32.mrf.mxu0
  %v8092 = vadd.f32 %v7923, %v8091
  %v8093 = vpop.f32.mrf.mxu0
  %v8094 = vadd.f32 %v7925, %v8093
  %8095 = vmatmul.bf16.gmra.mxu0 %v6412
  %v8096 = vpop.f32.mrf.mxu0
  %v8097 = vadd.f32 %v7928, %v8096
  %v8098 = vpop.f32.mrf.mxu0
  %v8099 = vadd.f32 %v7930, %v8098
  %8100 = vdwg.mxu0
  %s8101 = scalar_lea.vmem %s0, 2304
  %v8102 = vld [vmem:[%s8101] sm:$0xf]
  %v8103 = vld [vmem:[%s8101 + $0x4] sm:$0xf]
  %v8104 = vld [vmem:[%s8101 + $0x8] sm:$0xf]
  %v8105 = vld [vmem:[%s8101 + $0xc] sm:$0xf]
  %v8106 = vld [vmem:[%s8101 + $0x10] sm:$0xf]
  %v8107 = vld [vmem:[%s8101 + $0x14] sm:$0xf]
  %v8108 = vld [vmem:[%s8101 + $0x18] sm:$0xf]
  %v8109 = vld [vmem:[%s8101 + $0x1c] sm:$0xf]
  %v8110 = vld [vmem:[%s8101 + $0x20] sm:$0xf]
  %v8111 = vld [vmem:[%s8101 + $0x24] sm:$0xf]
  %v8112 = vld [vmem:[%s8101 + $0x28] sm:$0xf]
  %v8113 = vld [vmem:[%s8101 + $0x2c] sm:$0xf]
  %v8114 = vld [vmem:[%s8101 + $0x30] sm:$0xf]
  %v8115 = vld [vmem:[%s8101 + $0x34] sm:$0xf]
  %v8116 = vld [vmem:[%s8101 + $0x38] sm:$0xf]
  %v8117 = vld [vmem:[%s8101 + $0x3c] sm:$0xf]
  %v8118 = vld [vmem:[%s8101 + $0x40] sm:$0xf]
  %v8119 = vld [vmem:[%s8101 + $0x44] sm:$0xf]
  %v8120 = vld [vmem:[%s8101 + $0x48] sm:$0xf]
  %v8121 = vld [vmem:[%s8101 + $0x4c] sm:$0xf]
  %v8122 = vld [vmem:[%s8101 + $0x50] sm:$0xf]
  %v8123 = vld [vmem:[%s8101 + $0x54] sm:$0xf]
  %v8124 = vld [vmem:[%s8101 + $0x58] sm:$0xf]
  %v8125 = vld [vmem:[%s8101 + $0x5c] sm:$0xf]
  %v8126 = vld [vmem:[%s8101 + $0x60] sm:$0xf]
  %v8127 = vld [vmem:[%s8101 + $0x64] sm:$0xf]
  %v8128 = vld [vmem:[%s8101 + $0x68] sm:$0xf]
  %v8129 = vld [vmem:[%s8101 + $0x6c] sm:$0xf]
  %v8130 = vld [vmem:[%s8101 + $0x70] sm:$0xf]
  %v8131 = vld [vmem:[%s8101 + $0x74] sm:$0xf]
  %v8132 = vld [vmem:[%s8101 + $0x78] sm:$0xf]
  %v8133 = vld [vmem:[%s8101 + $0x7c] sm:$0xf]
  %v8134 = vld [vmem:[%s8101 + $0x80] sm:$0xf]
  %v8135 = vld [vmem:[%s8101 + $0x84] sm:$0xf]
  %v8136 = vld [vmem:[%s8101 + $0x88] sm:$0xf]
  %v8137 = vld [vmem:[%s8101 + $0x8c] sm:$0xf]
  %v8138 = vld [vmem:[%s8101 + $0x90] sm:$0xf]
  %v8139 = vld [vmem:[%s8101 + $0x94] sm:$0xf]
  %v8140 = vld [vmem:[%s8101 + $0x98] sm:$0xf]
  %v8141 = vld [vmem:[%s8101 + $0x9c] sm:$0xf]
  %v8142 = vld [vmem:[%s8101 + $0xa0] sm:$0xf]
  %v8143 = vld [vmem:[%s8101 + $0xa4] sm:$0xf]
  %v8144 = vld [vmem:[%s8101 + $0xa8] sm:$0xf]
  %v8145 = vld [vmem:[%s8101 + $0xac] sm:$0xf]
  %v8146 = vld [vmem:[%s8101 + $0xb0] sm:$0xf]
  %v8147 = vld [vmem:[%s8101 + $0xb4] sm:$0xf]
  %v8148 = vld [vmem:[%s8101 + $0xb8] sm:$0xf]
  %v8149 = vld [vmem:[%s8101 + $0xbc] sm:$0xf]
  %v8150 = vld [vmem:[%s8101 + $0xc0] sm:$0xf]
  %v8151 = vld [vmem:[%s8101 + $0xc4] sm:$0xf]
  %v8152 = vld [vmem:[%s8101 + $0xc8] sm:$0xf]
  %v8153 = vld [vmem:[%s8101 + $0xcc] sm:$0xf]
  %v8154 = vld [vmem:[%s8101 + $0xd0] sm:$0xf]
  %v8155 = vld [vmem:[%s8101 + $0xd4] sm:$0xf]
  %v8156 = vld [vmem:[%s8101 + $0xd8] sm:$0xf]
  %v8157 = vld [vmem:[%s8101 + $0xdc] sm:$0xf]
  %v8158 = vld [vmem:[%s8101 + $0xe0] sm:$0xf]
  %v8159 = vld [vmem:[%s8101 + $0xe4] sm:$0xf]
  %v8160 = vld [vmem:[%s8101 + $0xe8] sm:$0xf]
  %v8161 = vld [vmem:[%s8101 + $0xec] sm:$0xf]
  %v8162 = vld [vmem:[%s8101 + $0xf0] sm:$0xf]
  %v8163 = vld [vmem:[%s8101 + $0xf4] sm:$0xf]
  %v8164 = vld [vmem:[%s8101 + $0xf8] sm:$0xf]
  %v8165 = vld [vmem:[%s8101 + $0xfc] sm:$0xf]
  %v8230 = vunpack.c.l.b16 %v8102
  %v8231 = vunpack.c.l.b16 %v8103
  %v8232 = vunpack.c.l.b16 %v8104
  %v8233 = vunpack.c.l.b16 %v8105
  %v8234 = vunpack.c.l.b16 %v8106
  %v8235 = vunpack.c.l.b16 %v8107
  %v8236 = vunpack.c.l.b16 %v8108
  %v8237 = vunpack.c.l.b16 %v8109
  %v8238 = vunpack.c.l.b16 %v8110
  %v8239 = vunpack.c.l.b16 %v8111
  %v8240 = vunpack.c.l.b16 %v8112
  %v8241 = vunpack.c.l.b16 %v8113
  %v8242 = vunpack.c.l.b16 %v8114
  %v8243 = vunpack.c.l.b16 %v8115
  %v8244 = vunpack.c.l.b16 %v8116
  %v8245 = vunpack.c.l.b16 %v8117
  %v8246 = vunpack.c.l.b16 %v8118
  %v8247 = vunpack.c.l.b16 %v8119
  %v8248 = vunpack.c.l.b16 %v8120
  %v8249 = vunpack.c.l.b16 %v8121
  %v8250 = vunpack.c.l.b16 %v8122
  %v8251 = vunpack.c.l.b16 %v8123
  %v8252 = vunpack.c.l.b16 %v8124
  %v8253 = vunpack.c.l.b16 %v8125
  %v8254 = vunpack.c.l.b16 %v8126
  %v8255 = vunpack.c.l.b16 %v8127
  %v8256 = vunpack.c.l.b16 %v8128
  %v8257 = vunpack.c.l.b16 %v8129
  %v8258 = vunpack.c.l.b16 %v8130
  %v8259 = vunpack.c.l.b16 %v8131
  %v8260 = vunpack.c.l.b16 %v8132
  %v8261 = vunpack.c.l.b16 %v8133
  %v8262 = vunpack.c.l.b16 %v8134
  %v8263 = vunpack.c.l.b16 %v8135
  %v8264 = vunpack.c.l.b16 %v8136
  %v8265 = vunpack.c.l.b16 %v8137
  %v8266 = vunpack.c.l.b16 %v8138
  %v8267 = vunpack.c.l.b16 %v8139
  %v8268 = vunpack.c.l.b16 %v8140
  %v8269 = vunpack.c.l.b16 %v8141
  %v8270 = vunpack.c.l.b16 %v8142
  %v8271 = vunpack.c.l.b16 %v8143
  %v8272 = vunpack.c.l.b16 %v8144
  %v8273 = vunpack.c.l.b16 %v8145
  %v8274 = vunpack.c.l.b16 %v8146
  %v8275 = vunpack.c.l.b16 %v8147
  %v8276 = vunpack.c.l.b16 %v8148
  %v8277 = vunpack.c.l.b16 %v8149
  %v8278 = vunpack.c.l.b16 %v8150
  %v8279 = vunpack.c.l.b16 %v8151
  %v8280 = vunpack.c.l.b16 %v8152
  %v8281 = vunpack.c.l.b16 %v8153
  %v8282 = vunpack.c.l.b16 %v8154
  %v8283 = vunpack.c.l.b16 %v8155
  %v8284 = vunpack.c.l.b16 %v8156
  %v8285 = vunpack.c.l.b16 %v8157
  %v8286 = vunpack.c.l.b16 %v8158
  %v8287 = vunpack.c.l.b16 %v8159
  %v8288 = vunpack.c.l.b16 %v8160
  %v8289 = vunpack.c.l.b16 %v8161
  %v8290 = vunpack.c.l.b16 %v8162
  %v8291 = vunpack.c.l.b16 %v8163
  %v8292 = vunpack.c.l.b16 %v8164
  %v8293 = vunpack.c.l.b16 %v8165
  %v8294 = vpack.c.b16 %v8231, %v8230
  %v8295 = vpack.c.b16 %v8233, %v8232
  %v8296 = vpack.c.b16 %v8235, %v8234
  %v8297 = vpack.c.b16 %v8237, %v8236
  %v8298 = vpack.c.b16 %v8239, %v8238
  %v8299 = vpack.c.b16 %v8241, %v8240
  %v8300 = vpack.c.b16 %v8243, %v8242
  %v8301 = vpack.c.b16 %v8245, %v8244
  %v8302 = vpack.c.b16 %v8247, %v8246
  %v8303 = vpack.c.b16 %v8249, %v8248
  %v8304 = vpack.c.b16 %v8251, %v8250
  %v8305 = vpack.c.b16 %v8253, %v8252
  %v8306 = vpack.c.b16 %v8255, %v8254
  %v8307 = vpack.c.b16 %v8257, %v8256
  %v8308 = vpack.c.b16 %v8259, %v8258
  %v8309 = vpack.c.b16 %v8261, %v8260
  %v8310 = vpack.c.b16 %v8263, %v8262
  %v8311 = vpack.c.b16 %v8265, %v8264
  %v8312 = vpack.c.b16 %v8267, %v8266
  %v8313 = vpack.c.b16 %v8269, %v8268
  %v8314 = vpack.c.b16 %v8271, %v8270
  %v8315 = vpack.c.b16 %v8273, %v8272
  %v8316 = vpack.c.b16 %v8275, %v8274
  %v8317 = vpack.c.b16 %v8277, %v8276
  %v8318 = vpack.c.b16 %v8279, %v8278
  %v8319 = vpack.c.b16 %v8281, %v8280
  %v8320 = vpack.c.b16 %v8283, %v8282
  %v8321 = vpack.c.b16 %v8285, %v8284
  %v8322 = vpack.c.b16 %v8287, %v8286
  %v8323 = vpack.c.b16 %v8289, %v8288
  %v8324 = vpack.c.b16 %v8291, %v8290
  %v8325 = vpack.c.b16 %v8293, %v8292
  %v8327 = vsel %vm342, %v8294, 0
  %v8330 = vsel %vm342, %v8295, 0
  %v8333 = vsel %vm342, %v8296, 0
  %v8336 = vsel %vm342, %v8297, 0
  %v8339 = vsel %vm342, %v8298, 0
  %v8342 = vsel %vm342, %v8299, 0
  %v8345 = vsel %vm342, %v8300, 0
  %v8348 = vsel %vm342, %v8301, 0
  %v8351 = vsel %vm342, %v8302, 0
  %v8354 = vsel %vm342, %v8303, 0
  %v8357 = vsel %vm342, %v8304, 0
  %v8360 = vsel %vm342, %v8305, 0
  %v8363 = vsel %vm342, %v8306, 0
  %v8366 = vsel %vm342, %v8307, 0
  %v8369 = vsel %vm342, %v8308, 0
  %v8372 = vsel %vm342, %v8309, 0
  %v8375 = vsel %vm342, %v8310, 0
  %v8378 = vsel %vm342, %v8311, 0
  %v8381 = vsel %vm342, %v8312, 0
  %v8384 = vsel %vm342, %v8313, 0
  %v8387 = vsel %vm342, %v8314, 0
  %v8390 = vsel %vm342, %v8315, 0
  %v8393 = vsel %vm342, %v8316, 0
  %v8396 = vsel %vm342, %v8317, 0
  %v8399 = vsel %vm342, %v8318, 0
  %v8402 = vsel %vm342, %v8319, 0
  %v8405 = vsel %vm342, %v8320, 0
  %v8408 = vsel %vm342, %v8321, 0
  %v8411 = vsel %vm342, %v8322, 0
  %v8414 = vsel %vm342, %v8323, 0
  %v8417 = vsel %vm342, %v8324, 0
  %v8420 = vsel %vm342, %v8325, 0
  %8422 = vmatpush.bf16.msra.mxu0 0
  %8423 = vmatpush.bf16.msra.mxu0 0
  %8424 = vmatpush.bf16.msra.mxu0 0
  %8425 = vmatpush.bf16.msra.mxu0 0
  %8426 = vmatpush.bf16.msra.mxu0 0
  %8427 = vmatpush.bf16.msra.mxu0 %v1392
  %8428 = vmatpush.bf16.msra.mxu0 %v1291
  %8429 = vmatpush.bf16.msra.mxu0 %v1290
  %8430 = vmatmul.bf16.gmra.mxu0 %v8327
  %v8431 = vpop.f32.mrf.mxu0
  %v8432 = vadd.f32 0.0, %v8431
  %v8433 = vpop.f32.mrf.mxu0
  %v8434 = vadd.f32 0.0, %v8433
  %8435 = vmatmul.bf16.gmra.mxu0 %v8330
  %v8436 = vpop.f32.mrf.mxu0
  %v8437 = vadd.f32 0.0, %v8436
  %v8438 = vpop.f32.mrf.mxu0
  %v8439 = vadd.f32 0.0, %v8438
  %8440 = vmatmul.bf16.gmra.mxu0 %v8333
  %v8441 = vpop.f32.mrf.mxu0
  %v8442 = vadd.f32 0.0, %v8441
  %v8443 = vpop.f32.mrf.mxu0
  %v8444 = vadd.f32 0.0, %v8443
  %8445 = vmatmul.bf16.gmra.mxu0 %v8336
  %v8446 = vpop.f32.mrf.mxu0
  %v8447 = vadd.f32 0.0, %v8446
  %v8448 = vpop.f32.mrf.mxu0
  %v8449 = vadd.f32 0.0, %v8448
  %8450 = vmatmul.bf16.gmra.mxu0 %v8339
  %v8451 = vpop.f32.mrf.mxu0
  %v8452 = vadd.f32 0.0, %v8451
  %v8453 = vpop.f32.mrf.mxu0
  %v8454 = vadd.f32 0.0, %v8453
  %8455 = vmatmul.bf16.gmra.mxu0 %v8342
  %v8456 = vpop.f32.mrf.mxu0
  %v8457 = vadd.f32 0.0, %v8456
  %v8458 = vpop.f32.mrf.mxu0
  %v8459 = vadd.f32 0.0, %v8458
  %8460 = vmatmul.bf16.gmra.mxu0 %v8345
  %v8461 = vpop.f32.mrf.mxu0
  %v8462 = vadd.f32 0.0, %v8461
  %v8463 = vpop.f32.mrf.mxu0
  %v8464 = vadd.f32 0.0, %v8463
  %8465 = vmatmul.bf16.gmra.mxu0 %v8348
  %v8466 = vpop.f32.mrf.mxu0
  %v8467 = vadd.f32 0.0, %v8466
  %v8468 = vpop.f32.mrf.mxu0
  %v8469 = vadd.f32 0.0, %v8468
  %8470 = vmatmul.bf16.gmra.mxu0 %v8351
  %v8471 = vpop.f32.mrf.mxu0
  %v8472 = vadd.f32 0.0, %v8471
  %v8473 = vpop.f32.mrf.mxu0
  %v8474 = vadd.f32 0.0, %v8473
  %8475 = vmatmul.bf16.gmra.mxu0 %v8354
  %v8476 = vpop.f32.mrf.mxu0
  %v8477 = vadd.f32 0.0, %v8476
  %v8478 = vpop.f32.mrf.mxu0
  %v8479 = vadd.f32 0.0, %v8478
  %8480 = vmatmul.bf16.gmra.mxu0 %v8357
  %v8481 = vpop.f32.mrf.mxu0
  %v8482 = vadd.f32 0.0, %v8481
  %v8483 = vpop.f32.mrf.mxu0
  %v8484 = vadd.f32 0.0, %v8483
  %8485 = vmatmul.bf16.gmra.mxu0 %v8360
  %v8486 = vpop.f32.mrf.mxu0
  %v8487 = vadd.f32 0.0, %v8486
  %v8488 = vpop.f32.mrf.mxu0
  %v8489 = vadd.f32 0.0, %v8488
  %8490 = vmatmul.bf16.gmra.mxu0 %v8363
  %v8491 = vpop.f32.mrf.mxu0
  %v8492 = vadd.f32 0.0, %v8491
  %v8493 = vpop.f32.mrf.mxu0
  %v8494 = vadd.f32 0.0, %v8493
  %8495 = vmatmul.bf16.gmra.mxu0 %v8366
  %v8496 = vpop.f32.mrf.mxu0
  %v8497 = vadd.f32 0.0, %v8496
  %v8498 = vpop.f32.mrf.mxu0
  %v8499 = vadd.f32 0.0, %v8498
  %8500 = vmatmul.bf16.gmra.mxu0 %v8369
  %v8501 = vpop.f32.mrf.mxu0
  %v8502 = vadd.f32 0.0, %v8501
  %v8503 = vpop.f32.mrf.mxu0
  %v8504 = vadd.f32 0.0, %v8503
  %8505 = vmatmul.bf16.gmra.mxu0 %v8372
  %v8506 = vpop.f32.mrf.mxu0
  %v8507 = vadd.f32 0.0, %v8506
  %v8508 = vpop.f32.mrf.mxu0
  %v8509 = vadd.f32 0.0, %v8508
  %8510 = vmatmul.bf16.gmra.mxu0 %v8375
  %v8511 = vpop.f32.mrf.mxu0
  %v8512 = vadd.f32 0.0, %v8511
  %v8513 = vpop.f32.mrf.mxu0
  %v8514 = vadd.f32 0.0, %v8513
  %8515 = vmatmul.bf16.gmra.mxu0 %v8378
  %v8516 = vpop.f32.mrf.mxu0
  %v8517 = vadd.f32 0.0, %v8516
  %v8518 = vpop.f32.mrf.mxu0
  %v8519 = vadd.f32 0.0, %v8518
  %8520 = vmatmul.bf16.gmra.mxu0 %v8381
  %v8521 = vpop.f32.mrf.mxu0
  %v8522 = vadd.f32 0.0, %v8521
  %v8523 = vpop.f32.mrf.mxu0
  %v8524 = vadd.f32 0.0, %v8523
  %8525 = vmatmul.bf16.gmra.mxu0 %v8384
  %v8526 = vpop.f32.mrf.mxu0
  %v8527 = vadd.f32 0.0, %v8526
  %v8528 = vpop.f32.mrf.mxu0
  %v8529 = vadd.f32 0.0, %v8528
  %8530 = vmatmul.bf16.gmra.mxu0 %v8387
  %v8531 = vpop.f32.mrf.mxu0
  %v8532 = vadd.f32 0.0, %v8531
  %v8533 = vpop.f32.mrf.mxu0
  %v8534 = vadd.f32 0.0, %v8533
  %8535 = vmatmul.bf16.gmra.mxu0 %v8390
  %v8536 = vpop.f32.mrf.mxu0
  %v8537 = vadd.f32 0.0, %v8536
  %v8538 = vpop.f32.mrf.mxu0
  %v8539 = vadd.f32 0.0, %v8538
  %8540 = vmatmul.bf16.gmra.mxu0 %v8393
  %v8541 = vpop.f32.mrf.mxu0
  %v8542 = vadd.f32 0.0, %v8541
  %v8543 = vpop.f32.mrf.mxu0
  %v8544 = vadd.f32 0.0, %v8543
  %8545 = vmatmul.bf16.gmra.mxu0 %v8396
  %v8546 = vpop.f32.mrf.mxu0
  %v8547 = vadd.f32 0.0, %v8546
  %v8548 = vpop.f32.mrf.mxu0
  %v8549 = vadd.f32 0.0, %v8548
  %8550 = vmatmul.bf16.gmra.mxu0 %v8399
  %v8551 = vpop.f32.mrf.mxu0
  %v8552 = vadd.f32 0.0, %v8551
  %v8553 = vpop.f32.mrf.mxu0
  %v8554 = vadd.f32 0.0, %v8553
  %8555 = vmatmul.bf16.gmra.mxu0 %v8402
  %v8556 = vpop.f32.mrf.mxu0
  %v8557 = vadd.f32 0.0, %v8556
  %v8558 = vpop.f32.mrf.mxu0
  %v8559 = vadd.f32 0.0, %v8558
  %8560 = vmatmul.bf16.gmra.mxu0 %v8405
  %v8561 = vpop.f32.mrf.mxu0
  %v8562 = vadd.f32 0.0, %v8561
  %v8563 = vpop.f32.mrf.mxu0
  %v8564 = vadd.f32 0.0, %v8563
  %8565 = vmatmul.bf16.gmra.mxu0 %v8408
  %v8566 = vpop.f32.mrf.mxu0
  %v8567 = vadd.f32 0.0, %v8566
  %v8568 = vpop.f32.mrf.mxu0
  %v8569 = vadd.f32 0.0, %v8568
  %8570 = vmatmul.bf16.gmra.mxu0 %v8411
  %v8571 = vpop.f32.mrf.mxu0
  %v8572 = vadd.f32 0.0, %v8571
  %v8573 = vpop.f32.mrf.mxu0
  %v8574 = vadd.f32 0.0, %v8573
  %8575 = vmatmul.bf16.gmra.mxu0 %v8414
  %v8576 = vpop.f32.mrf.mxu0
  %v8577 = vadd.f32 0.0, %v8576
  %v8578 = vpop.f32.mrf.mxu0
  %v8579 = vadd.f32 0.0, %v8578
  %8580 = vmatmul.bf16.gmra.mxu0 %v8417
  %v8581 = vpop.f32.mrf.mxu0
  %v8582 = vadd.f32 0.0, %v8581
  %v8583 = vpop.f32.mrf.mxu0
  %v8584 = vadd.f32 0.0, %v8583
  %8585 = vmatmul.bf16.gmra.mxu0 %v8420
  %v8586 = vpop.f32.mrf.mxu0
  %v8587 = vadd.f32 0.0, %v8586
  %v8588 = vpop.f32.mrf.mxu0
  %v8589 = vadd.f32 0.0, %v8588
  %8590 = vdwg.mxu0
  %v8591 = vadd.f32 %v7942, %v8432
  %v8592 = vadd.f32 %v7944, %v8434
  %v8593 = vadd.f32 %v7947, %v8437
  %v8594 = vadd.f32 %v7949, %v8439
  %v8595 = vadd.f32 %v7952, %v8442
  %v8596 = vadd.f32 %v7954, %v8444
  %v8597 = vadd.f32 %v7957, %v8447
  %v8598 = vadd.f32 %v7959, %v8449
  %v8599 = vadd.f32 %v7962, %v8452
  %v8600 = vadd.f32 %v7964, %v8454
  %v8601 = vadd.f32 %v7967, %v8457
  %v8602 = vadd.f32 %v7969, %v8459
  %v8603 = vadd.f32 %v7972, %v8462
  %v8604 = vadd.f32 %v7974, %v8464
  %v8605 = vadd.f32 %v7977, %v8467
  %v8606 = vadd.f32 %v7979, %v8469
  %v8607 = vadd.f32 %v7982, %v8472
  %v8608 = vadd.f32 %v7984, %v8474
  %v8609 = vadd.f32 %v7987, %v8477
  %v8610 = vadd.f32 %v7989, %v8479
  %v8611 = vadd.f32 %v7992, %v8482
  %v8612 = vadd.f32 %v7994, %v8484
  %v8613 = vadd.f32 %v7997, %v8487
  %v8614 = vadd.f32 %v7999, %v8489
  %v8615 = vadd.f32 %v8002, %v8492
  %v8616 = vadd.f32 %v8004, %v8494
  %v8617 = vadd.f32 %v8007, %v8497
  %v8618 = vadd.f32 %v8009, %v8499
  %v8619 = vadd.f32 %v8012, %v8502
  %v8620 = vadd.f32 %v8014, %v8504
  %v8621 = vadd.f32 %v8017, %v8507
  %v8622 = vadd.f32 %v8019, %v8509
  %v8623 = vadd.f32 %v8022, %v8512
  %v8624 = vadd.f32 %v8024, %v8514
  %v8625 = vadd.f32 %v8027, %v8517
  %v8626 = vadd.f32 %v8029, %v8519
  %v8627 = vadd.f32 %v8032, %v8522
  %v8628 = vadd.f32 %v8034, %v8524
  %v8629 = vadd.f32 %v8037, %v8527
  %v8630 = vadd.f32 %v8039, %v8529
  %v8631 = vadd.f32 %v8042, %v8532
  %v8632 = vadd.f32 %v8044, %v8534
  %v8633 = vadd.f32 %v8047, %v8537
  %v8634 = vadd.f32 %v8049, %v8539
  %v8635 = vadd.f32 %v8052, %v8542
  %v8636 = vadd.f32 %v8054, %v8544
  %v8637 = vadd.f32 %v8057, %v8547
  %v8638 = vadd.f32 %v8059, %v8549
  %v8639 = vadd.f32 %v8062, %v8552
  %v8640 = vadd.f32 %v8064, %v8554
  %v8641 = vadd.f32 %v8067, %v8557
  %v8642 = vadd.f32 %v8069, %v8559
  %v8643 = vadd.f32 %v8072, %v8562
  %v8644 = vadd.f32 %v8074, %v8564
  %v8645 = vadd.f32 %v8077, %v8567
  %v8646 = vadd.f32 %v8079, %v8569
  %v8647 = vadd.f32 %v8082, %v8572
  %v8648 = vadd.f32 %v8084, %v8574
  %v8649 = vadd.f32 %v8087, %v8577
  %v8650 = vadd.f32 %v8089, %v8579
  %v8651 = vadd.f32 %v8092, %v8582
  %v8652 = vadd.f32 %v8094, %v8584
  %v8653 = vadd.f32 %v8097, %v8587
  %v8654 = vadd.f32 %v8099, %v8589
  %v8655 = vadd.f32 %v8591, %v8592
  %v8656 = vadd.f32 %v8655, %v8593
  %v8657 = vadd.f32 %v8656, %v8594
  %v8658 = vadd.f32 %v8657, %v8595
  %v8659 = vadd.f32 %v8658, %v8596
  %v8660 = vadd.f32 %v8659, %v8597
  %v8661 = vadd.f32 %v8660, %v8598
  %v8662 = vrot.slane %v8661, 4
  %v8663 = vadd.f32 %v8661, %v8662
  %v8664 = vrot.slane %v8663, 2
  %v8665 = vadd.f32 %v8663, %v8664
  %v8666 = vrot.slane %v8665, 1
  %v8667 = vadd.f32 %v8665, %v8666
  %v8668 = vadd.f32 %v8599, %v8600
  %v8669 = vadd.f32 %v8668, %v8601
  %v8670 = vadd.f32 %v8669, %v8602
  %v8671 = vadd.f32 %v8670, %v8603
  %v8672 = vadd.f32 %v8671, %v8604
  %v8673 = vadd.f32 %v8672, %v8605
  %v8674 = vadd.f32 %v8673, %v8606
  %v8675 = vrot.slane %v8674, 4
  %v8676 = vadd.f32 %v8674, %v8675
  %v8677 = vrot.slane %v8676, 2
  %v8678 = vadd.f32 %v8676, %v8677
  %v8679 = vrot.slane %v8678, 1
  %v8680 = vadd.f32 %v8678, %v8679
  %v8681 = vadd.f32 %v8607, %v8608
  %v8682 = vadd.f32 %v8681, %v8609
  %v8683 = vadd.f32 %v8682, %v8610
  %v8684 = vadd.f32 %v8683, %v8611
  %v8685 = vadd.f32 %v8684, %v8612
  %v8686 = vadd.f32 %v8685, %v8613
  %v8687 = vadd.f32 %v8686, %v8614
  %v8688 = vrot.slane %v8687, 4
  %v8689 = vadd.f32 %v8687, %v8688
  %v8690 = vrot.slane %v8689, 2
  %v8691 = vadd.f32 %v8689, %v8690
  %v8692 = vrot.slane %v8691, 1
  %v8693 = vadd.f32 %v8691, %v8692
  %v8694 = vadd.f32 %v8615, %v8616
  %v8695 = vadd.f32 %v8694, %v8617
  %v8696 = vadd.f32 %v8695, %v8618
  %v8697 = vadd.f32 %v8696, %v8619
  %v8698 = vadd.f32 %v8697, %v8620
  %v8699 = vadd.f32 %v8698, %v8621
  %v8700 = vadd.f32 %v8699, %v8622
  %v8701 = vrot.slane %v8700, 4
  %v8702 = vadd.f32 %v8700, %v8701
  %v8703 = vrot.slane %v8702, 2
  %v8704 = vadd.f32 %v8702, %v8703
  %v8705 = vrot.slane %v8704, 1
  %v8706 = vadd.f32 %v8704, %v8705
  %v8707 = vadd.f32 %v8623, %v8624
  %v8708 = vadd.f32 %v8707, %v8625
  %v8709 = vadd.f32 %v8708, %v8626
  %v8710 = vadd.f32 %v8709, %v8627
  %v8711 = vadd.f32 %v8710, %v8628
  %v8712 = vadd.f32 %v8711, %v8629
  %v8713 = vadd.f32 %v8712, %v8630
  %v8714 = vrot.slane %v8713, 4
  %v8715 = vadd.f32 %v8713, %v8714
  %v8716 = vrot.slane %v8715, 2
  %v8717 = vadd.f32 %v8715, %v8716
  %v8718 = vrot.slane %v8717, 1
  %v8719 = vadd.f32 %v8717, %v8718
  %v8720 = vadd.f32 %v8631, %v8632
  %v8721 = vadd.f32 %v8720, %v8633
  %v8722 = vadd.f32 %v8721, %v8634
  %v8723 = vadd.f32 %v8722, %v8635
  %v8724 = vadd.f32 %v8723, %v8636
  %v8725 = vadd.f32 %v8724, %v8637
  %v8726 = vadd.f32 %v8725, %v8638
  %v8727 = vrot.slane %v8726, 4
  %v8728 = vadd.f32 %v8726, %v8727
  %v8729 = vrot.slane %v8728, 2
  %v8730 = vadd.f32 %v8728, %v8729
  %v8731 = vrot.slane %v8730, 1
  %v8732 = vadd.f32 %v8730, %v8731
  %v8733 = vadd.f32 %v8639, %v8640
  %v8734 = vadd.f32 %v8733, %v8641
  %v8735 = vadd.f32 %v8734, %v8642
  %v8736 = vadd.f32 %v8735, %v8643
  %v8737 = vadd.f32 %v8736, %v8644
  %v8738 = vadd.f32 %v8737, %v8645
  %v8739 = vadd.f32 %v8738, %v8646
  %v8740 = vrot.slane %v8739, 4
  %v8741 = vadd.f32 %v8739, %v8740
  %v8742 = vrot.slane %v8741, 2
  %v8743 = vadd.f32 %v8741, %v8742
  %v8744 = vrot.slane %v8743, 1
  %v8745 = vadd.f32 %v8743, %v8744
  %v8746 = vadd.f32 %v8647, %v8648
  %v8747 = vadd.f32 %v8746, %v8649
  %v8748 = vadd.f32 %v8747, %v8650
  %v8749 = vadd.f32 %v8748, %v8651
  %v8750 = vadd.f32 %v8749, %v8652
  %v8751 = vadd.f32 %v8750, %v8653
  %v8752 = vadd.f32 %v8751, %v8654
  %v8753 = vrot.slane %v8752, 4
  %v8754 = vadd.f32 %v8752, %v8753
  %v8755 = vrot.slane %v8754, 2
  %v8756 = vadd.f32 %v8754, %v8755
  %v8757 = vrot.slane %v8756, 1
  %v8758 = vadd.f32 %v8756, %v8757
  %v8759 = vadd.f32 %v7755, %v8667
  %v8760 = vadd.f32 %v7756, %v8680
  %v8761 = vadd.f32 %v7757, %v8693
  %v8762 = vadd.f32 %v7758, %v8706
  %v8763 = vadd.f32 %v7759, %v8719
  %v8764 = vadd.f32 %v7760, %v8732
  %v8765 = vadd.f32 %v7761, %v8745
  %v8766 = vadd.f32 %v7762, %v8758
  %v8767 = vmul.f32 %v8759, 0.001953125
  %v8768 = vmul.f32 %v8760, 0.001953125
  %v8769 = vmul.f32 %v8761, 0.001953125
  %v8770 = vmul.f32 %v8762, 0.001953125
  %v8771 = vmul.f32 %v8763, 0.001953125
  %v8772 = vmul.f32 %v8764, 0.001953125
  %v8773 = vmul.f32 %v8765, 0.001953125
  %v8774 = vmul.f32 %v8766, 0.001953125
  %v8775 = vld [vmem:[%s2] sm:$0x1]
  %v8777 = vperm.slane %v8775, 0
  %v8779 = vadd.f32 %v8767, %v8777
  %v8780 = vadd.f32 %v8768, %v8777
  %v8781 = vadd.f32 %v8769, %v8777
  %v8782 = vadd.f32 %v8770, %v8777
  %v8783 = vadd.f32 %v8771, %v8777
  %v8784 = vadd.f32 %v8772, %v8777
  %v8785 = vadd.f32 %v8773, %v8777
  %v8786 = vadd.f32 %v8774, %v8777
  %v8787 = vpack.c.bf16 %v8779, %v8779
  %v8788 = vpack.c.bf16 %v8780, %v8780
  %v8789 = vpack.c.bf16 %v8781, %v8781
  %v8790 = vpack.c.bf16 %v8782, %v8782
  %v8791 = vpack.c.bf16 %v8783, %v8783
  %v8792 = vpack.c.bf16 %v8784, %v8784
  %v8793 = vpack.c.bf16 %v8785, %v8785
  %v8794 = vpack.c.bf16 %v8786, %v8786
  %v8795 = vld [vmem:[%s3] sm:$0xf]
  %v8796 = vld [vmem:[%s3 + $0x4] sm:$0xf]
  %v8797 = vld [vmem:[%s3 + $0x8] sm:$0xf]
  %v8798 = vld [vmem:[%s3 + $0xc] sm:$0xf]
  %v8799 = vld [vmem:[%s3 + $0x10] sm:$0xf]
  %v8800 = vld [vmem:[%s3 + $0x14] sm:$0xf]
  %v8801 = vld [vmem:[%s3 + $0x18] sm:$0xf]
  %v8802 = vld [vmem:[%s3 + $0x1c] sm:$0xf]
  %v8803 = vld [vmem:[%s3 + $0x20] sm:$0xf]
  %v8804 = vld [vmem:[%s3 + $0x24] sm:$0xf]
  %v8805 = vld [vmem:[%s3 + $0x28] sm:$0xf]
  %v8806 = vld [vmem:[%s3 + $0x2c] sm:$0xf]
  %v8807 = vld [vmem:[%s3 + $0x30] sm:$0xf]
  %v8808 = vld [vmem:[%s3 + $0x34] sm:$0xf]
  %v8809 = vld [vmem:[%s3 + $0x38] sm:$0xf]
  %v8810 = vld [vmem:[%s3 + $0x3c] sm:$0xf]
  %v8811 = vld [vmem:[%s4] sm:$0x1]
  %v8813 = vperm.slane %v8811, 0
  %v8823 = vunpack.c.l.b16 %v8787
  %v8824 = vunpack.c.l.b16 %v8788
  %v8825 = vunpack.c.l.b16 %v8789
  %v8826 = vunpack.c.l.b16 %v8790
  %v8827 = vunpack.c.l.b16 %v8791
  %v8828 = vunpack.c.l.b16 %v8792
  %v8829 = vunpack.c.l.b16 %v8793
  %v8830 = vunpack.c.l.b16 %v8794
  %v8831 = vrot.slane %v8824, 7
  %vm8832 = vcmask 1041409
  %v8833 = vsel %vm8832, %v8831, %v8823
  %v8834 = vrot.slane %v8825, 6
  %vm8835 = vcmask 1042434
  %v8836 = vsel %vm8835, %v8834, %v8833
  %v8837 = vrot.slane %v8826, 5
  %vm8838 = vcmask 1043459
  %v8839 = vsel %vm8838, %v8837, %v8836
  %v8840 = vrot.slane %v8827, 4
  %vm8841 = vcmask 1044484
  %v8842 = vsel %vm8841, %v8840, %v8839
  %v8843 = vrot.slane %v8828, 3
  %vm8844 = vcmask 1045509
  %v8845 = vsel %vm8844, %v8843, %v8842
  %v8846 = vrot.slane %v8829, 2
  %vm8847 = vcmask 1046534
  %v8848 = vsel %vm8847, %v8846, %v8845
  %v8849 = vrot.slane %v8830, 1
  %vm8850 = vcmask 1047559
  %v8851 = vsel %vm8850, %v8849, %v8848
  %v8852 = vpack.c.b16 %v8851, %v8851
  %v8870 = vunpack.c.l.b16 %v8795
  %v8871 = vunpack.c.l.b16 %v8796
  %v8872 = vunpack.c.l.b16 %v8797
  %v8873 = vunpack.c.l.b16 %v8798
  %v8874 = vunpack.c.l.b16 %v8799
  %v8875 = vunpack.c.l.b16 %v8800
  %v8876 = vunpack.c.l.b16 %v8801
  %v8877 = vunpack.c.l.b16 %v8802
  %v8878 = vunpack.c.l.b16 %v8803
  %v8879 = vunpack.c.l.b16 %v8804
  %v8880 = vunpack.c.l.b16 %v8805
  %v8881 = vunpack.c.l.b16 %v8806
  %v8882 = vunpack.c.l.b16 %v8807
  %v8883 = vunpack.c.l.b16 %v8808
  %v8884 = vunpack.c.l.b16 %v8809
  %v8885 = vunpack.c.l.b16 %v8810
  %v8886 = vpack.c.b16 %v8871, %v8870
  %v8887 = vpack.c.b16 %v8873, %v8872
  %v8888 = vpack.c.b16 %v8875, %v8874
  %v8889 = vpack.c.b16 %v8877, %v8876
  %v8890 = vpack.c.b16 %v8879, %v8878
  %v8891 = vpack.c.b16 %v8881, %v8880
  %v8892 = vpack.c.b16 %v8883, %v8882
  %v8893 = vpack.c.b16 %v8885, %v8884
  %8902 = vmatpush.bf16.msra.mxu0 %v8893
  %8903 = vmatpush.bf16.msra.mxu0 %v8892
  %8904 = vmatpush.bf16.msra.mxu0 %v8891
  %8905 = vmatpush.bf16.msra.mxu0 %v8890
  %8906 = vmatpush.bf16.msra.mxu0 %v8889
  %8907 = vmatpush.bf16.msra.mxu0 %v8888
  %8908 = vmatpush.bf16.msra.mxu0 %v8887
  %8909 = vmatpush.bf16.msra.mxu0 %v8886
  %8910 = vmatmul.bf16.gmra.mxu0 %v8852
  %v8911 = vpop.f32.mrf.mxu0
  %v8912 = vadd.f32 %v8813, %v8911
  %v8913 = vpop.f32.mrf.mxu0
  %8914 = vdwg.mxu0
  %8915 = vst [vmem:[%s5] sm:$0xff] %v8912
  // Predicated region
  $region22: #{s3transcnn_forward.1} parent=0 // pred_check
    _
  $region23: #{s3transcnn_forward.1} parent=0 // pred_check_branch
    %8917 = sbr.rel (0) target = $region25
  $region24: #{s3transcnn_forward.1} parent=0 // pred_region
    _
  $region25: #{s3transcnn_forward.1} parent=0 // pred_fallthru
    _
  // Predicated region
  $region26: #{s3transcnn_forward.1} parent=0 // pred_check
    _
  $region27: #{s3transcnn_forward.1} parent=0 // pred_check_branch
    %8919 = sbr.rel (0) target = $region29
  $region28: #{s3transcnn_forward.1} parent=0 // pred_region
    _
  $region29: #{s3transcnn_forward.1} parent=0 // pred_fallthru
    _

</llo_original>
